<compile_context>
chip_gen: v5e
topology: v5e:2x2
jax: 0.10.0
libtpu: 0.0.40
codegen_flags: <defaults>
</compile_context>

<pallas_src>
import numpy as np

import jax
import jax.numpy as jnp
from jax import lax
from jax.experimental import pallas as pl
from jax.experimental.pallas import tpu as pltpu


# ----------------------------- static geometry -----------------------------

C1_IN, C1_OUT, C2_OUT = 3, 6, 16
K = 5
H1 = W1 = 32
OH1 = OW1 = H1 - K + 1            # 28
P1 = (OH1 - 1) * W1 + OW1         # 892  (flat span covering all conv1 outputs)
PH1 = PW1 = OH1 // 2              # 14
Q1 = P1 - (W1 + 1)                # 859  (flat span covering all pool1 bases)

H2 = W2 = PH1                     # 14
OH2 = OW2 = H2 - K + 1            # 10
P2 = (OH2 - 1) * W2 + OW2         # 136
PH2 = PW2 = OH2 // 2              # 5
Q2 = P2 - (W2 + 1)                # 121

FC1_OUT, FC2_OUT, FC3_OUT = 120, 84, 10


# ------------------------------ fused kernel -------------------------------

def _cifarnet_kernel(x_ref, w1_ref, b1_ref, s1_ref, w2_ref, b2_ref, s2_ref,
                     f1w_ref, f1b_ref, f2w_ref, f2b_ref, f3w_ref, f3b_ref,
                     o_ref):
    # One batch element per grid step.
    x = x_ref[0]                                   # (3, 1024) flattened NCHW image

    # ---------------- conv1 + bias + ReLU (lane-dense (6, 892)) ----------------
    w1 = w1_ref[...]                               # (25, 6, 3)
    acc1 = jnp.zeros((C1_OUT, P1), jnp.float32)
    for kh in range(K):                            # 25 static taps -> 25 MXU pushes
        for kw in range(K):
            d = kh * W1 + kw
            slab = x[:, d:d + P1]                  # (3, 892) static lane-offset slice
            acc1 = acc1 + jnp.dot(w1[kh * K + kw], slab,
                                  preferred_element_type=jnp.float32)
    acc1 = jnp.maximum(acc1 + b1_ref[...], 0.0)    # bias (6,1) broadcasts over lanes

    # ---------------- maxpool 2x2 (shift-max + selection matmul) ---------------
    m1 = jnp.maximum(
        jnp.maximum(acc1[:, 0:Q1], acc1[:, 1:Q1 + 1]),
        jnp.maximum(acc1[:, W1:W1 + Q1], acc1[:, W1 + 1:W1 + 1 + Q1]))
    x2 = jnp.dot(m1, s1_ref[...], preferred_element_type=jnp.float32)   # (6, 196)

    # ---------------- conv2 + bias + ReLU (lane-dense (16, 136)) ---------------
    w2 = w2_ref[...]                               # (25, 16, 6)
    acc2 = jnp.zeros((C2_OUT, P2), jnp.float32)
    for kh in range(K):
        for kw in range(K):
            d = kh * W2 + kw
            slab = x2[:, d:d + P2]                 # (6, 136)
            acc2 = acc2 + jnp.dot(w2[kh * K + kw], slab,
                                  preferred_element_type=jnp.float32)
    acc2 = jnp.maximum(acc2 + b2_ref[...], 0.0)

    m2 = jnp.maximum(
        jnp.maximum(acc2[:, 0:Q2], acc2[:, 1:Q2 + 1]),
        jnp.maximum(acc2[:, W2:W2 + Q2], acc2[:, W2 + 1:W2 + 1 + Q2]))
    feat = jnp.dot(m2, s2_ref[...], preferred_element_type=jnp.float32)  # (16, 25)

    # ---------------- fc1 (flatten folded into per-channel dots) ---------------
    f1w = f1w_ref[...]                             # (16, 25, 120)
    h = f1b_ref[...]                               # (1, 120) -- start from the bias
    for c in range(C2_OUT):
        h = h + jnp.dot(feat[c:c + 1, :], f1w[c],
                        preferred_element_type=jnp.float32)
    h = jnp.maximum(h, 0.0)

    # ---------------- fc2 + ReLU, fc3 -------------------------------------------
    h = jnp.maximum(
        jnp.dot(h, f2w_ref[...], preferred_element_type=jnp.float32) + f2b_ref[...],
        0.0)
    h = jnp.dot(h, f3w_ref[...], preferred_element_type=jnp.float32) + f3b_ref[...]

    o_ref[...] = h.reshape(1, 1, FC3_OUT)


def _full_spec(a):
    """Whole-array block, resident across all grid steps."""
    nd = a.ndim
    return pl.BlockSpec(a.shape, lambda n, _nd=nd: (0,) * _nd)


def cifarnet_forward(x, pp):
    """x: (N, 3, 32, 32) f32, pp: prepared params -> logits (N, 10) f32."""
    n = x.shape[0]
    xflat = x.reshape(n, C1_IN, H1 * W1)           # cheap glue; conv runs flattened

    out = pl.pallas_call(
        _cifarnet_kernel,
        grid=(n,),
        out_shape=jax.ShapeDtypeStruct((n, 1, FC3_OUT), jnp.float32),
        in_specs=[
            pl.BlockSpec((1, C1_IN, H1 * W1), lambda i: (i, 0, 0)),
            _full_spec(pp["w1t"]), _full_spec(pp["b1"]), _full_spec(pp["s1"]),
            _full_spec(pp["w2t"]), _full_spec(pp["b2"]), _full_spec(pp["s2"]),
            _full_spec(pp["f1w"]), _full_spec(pp["f1b"]),
            _full_spec(pp["f2w"]), _full_spec(pp["f2b"]),
            _full_spec(pp["f3w"]), _full_spec(pp["f3b"]),
        ],
        out_specs=pl.BlockSpec((1, 1, FC3_OUT), lambda i: (i, 0, 0)),
        compiler_params=pltpu.CompilerParams(
            dimension_semantics=("parallel",)),     # v7x: one batch elem per core
    )(xflat, pp["w1t"], pp["b1"], pp["s1"], pp["w2t"], pp["b2"], pp["s2"],
      pp["f1w"], pp["f1b"], pp["f2w"], pp["f2b"], pp["f3w"], pp["f3b"])
    return out.reshape(n, FC3_OUT)


# --------------------------- parameter preparation --------------------------

def _pool_select_matrix(w_in, ph, pw, q):
    """0/1 matrix S with S[2i*w_in + 2j, i*pw + j] = 1 (pool-base compaction)."""
    s = np.zeros((q, ph * pw), np.float32)
    for i in range(ph):
        for j in range(pw):
            s[2 * i * w_in + 2 * j, i * pw + j] = 1.0
    return jnp.asarray(s)


def prepare_params(p):
    """One-time relayout of the PyTorch-shaped params (runs outside the jit)."""
    return {
        # conv taps as (kh*K+kw, Cout, Cin) so each tap is a clean leading index
        "w1t": jnp.transpose(p["conv1_w"], (2, 3, 0, 1)).reshape(K * K, C1_OUT, C1_IN),
        "b1": p["conv1_b"].reshape(C1_OUT, 1),
        "s1": _pool_select_matrix(W1, PH1, PW1, Q1),
        "w2t": jnp.transpose(p["conv2_w"], (2, 3, 0, 1)).reshape(K * K, C2_OUT, C1_OUT),
        "b2": p["conv2_b"].reshape(C2_OUT, 1),
        "s2": _pool_select_matrix(W2, PH2, PW2, Q2),
        # fc1 weight pre-split per input channel: (16, 25, 120)
        "f1w": p["fc1_w"].T.reshape(C2_OUT, PH2 * PW2, FC1_OUT),
        "f1b": p["fc1_b"].reshape(1, FC1_OUT),
        "f2w": p["fc2_w"].T,
        "f2b": p["fc2_b"].reshape(1, FC2_OUT),
        "f3w": p["fc3_w"].T,
        "f3b": p["fc3_b"].reshape(1, FC3_OUT),
    }


def init_params(key):
    """Deterministic init; shapes match nn.Conv2d / nn.Linear defaults."""
    def uni(k, shape, fan_in):
        bound = 1.0 / jnp.sqrt(jnp.float32(fan_in))
        return jax.random.uniform(k, shape, jnp.float32, -bound, bound)

    ks = jax.random.split(key, 10)
    return {
        "conv1_w": uni(ks[0], (6, 3, 5, 5), 3 * 5 * 5),
        "conv1_b": uni(ks[1], (6,), 3 * 5 * 5),
        "conv2_w": uni(ks[2], (16, 6, 5, 5), 6 * 5 * 5),
        "conv2_b": uni(ks[3], (16,), 6 * 5 * 5),
        "fc1_w": uni(ks[4], (120, 400), 400),
        "fc1_b": uni(ks[5], (120,), 400),
        "fc2_w": uni(ks[6], (84, 120), 120),
        "fc2_b": uni(ks[7], (84,), 120),
        "fc3_w": uni(ks[8], (10, 84), 84),
        "fc3_b": uni(ks[9], (10,), 84),
    }


# ------------------------- pure-JAX reference (check) ------------------------

def _reference_forward(x, p):
    dn = ("NCHW", "OIHW", "NCHW")
    y = lax.conv_general_dilated(x, p["conv1_w"], (1, 1), "VALID",
                                 dimension_numbers=dn)
    y = jax.nn.relu(y + p["conv1_b"][None, :, None, None])
    y = lax.reduce_window(y, -jnp.inf, lax.max, (1, 1, 2, 2), (1, 1, 2, 2), "VALID")
    y = lax.conv_general_dilated(y, p["conv2_w"], (1, 1), "VALID",
                                 dimension_numbers=dn)
    y = jax.nn.relu(y + p["conv2_b"][None, :, None, None])
    y = lax.reduce_window(y, -jnp.inf, lax.max, (1, 1, 2, 2), (1, 1, 2, 2), "VALID")
    y = y.reshape(y.shape[0], -1)                       # NCHW flatten == torch .view
    y = jax.nn.relu(y @ p["fc1_w"].T + p["fc1_b"])
    y = jax.nn.relu(y @ p["fc2_w"].T + p["fc2_b"])
    return y @ p["fc3_w"].T + p["fc3_b"]


# ------------------------------------ main -----------------------------------

if __name__ == "__main__":
    key = jax.random.PRNGKey(0)
    k_params, k_x = jax.random.split(key)
    params = init_params(k_params)
    prepped = prepare_params(params)                    # one-time weight relayout
    # Cifarnet requires 32x32 spatial (16*5*5 flatten); small batch of 2.
    x = jax.random.normal(k_x, (2, 3, 32, 32), dtype=jnp.float32)

    fwd = jax.jit(cifarnet_forward)
    out = jax.block_until_ready(fwd(x, prepped))
    assert out.shape == (2, 10) and out.dtype == jnp.float32

    ref = jax.block_until_ready(_reference_forward(x, params))
    assert jnp.allclose(out, ref, atol=1e-2, rtol=1e-2), float(
        jnp.max(jnp.abs(out - ref)))
    print("KERNEL_OK")
</pallas_src>

<mosaic_0001>
module attributes {stable_mosaic.version = 11 : i64} {
  func.func @_cifarnet_kernel(%arg0: i32, %arg1: memref<1x3x1024xf32, #tpu.memory_space<vmem>>, %arg2: memref<25x6x3xf32, #tpu.memory_space<vmem>>, %arg3: memref<6x1xf32, #tpu.memory_space<vmem>>, %arg4: memref<859x196xf32, #tpu.memory_space<vmem>>, %arg5: memref<25x16x6xf32, #tpu.memory_space<vmem>>, %arg6: memref<16x1xf32, #tpu.memory_space<vmem>>, %arg7: memref<121x25xf32, #tpu.memory_space<vmem>>, %arg8: memref<16x25x120xf32, #tpu.memory_space<vmem>>, %arg9: memref<1x120xf32, #tpu.memory_space<vmem>>, %arg10: memref<120x84xf32, #tpu.memory_space<vmem>>, %arg11: memref<1x84xf32, #tpu.memory_space<vmem>>, %arg12: memref<84x10xf32, #tpu.memory_space<vmem>>, %arg13: memref<1x10xf32, #tpu.memory_space<vmem>>, %arg14: memref<1x1x10xf32, #tpu.memory_space<vmem>>) attributes {dimension_semantics = [#tpu.dimension_semantics<parallel>], iteration_bounds = array<i64: 2>, scalar_prefetch = 0 : i64, scratch_operands = 0 : i64, tpu.core_type = #tpu.core_type<tc>, window_params = [{transform_indices = @transform_0, window_bounds = array<i64: 1, 3, 1024>}, {pipeline_mode = #tpu.pipeline_mode<synchronous>, transform_indices = @transform_1, window_bounds = array<i64: 25, 6, 3>}, {pipeline_mode = #tpu.pipeline_mode<synchronous>, transform_indices = @transform_2, window_bounds = array<i64: 6, 1>}, {pipeline_mode = #tpu.pipeline_mode<synchronous>, transform_indices = @transform_3, window_bounds = array<i64: 859, 196>}, {pipeline_mode = #tpu.pipeline_mode<synchronous>, transform_indices = @transform_4, window_bounds = array<i64: 25, 16, 6>}, {pipeline_mode = #tpu.pipeline_mode<synchronous>, transform_indices = @transform_5, window_bounds = array<i64: 16, 1>}, {pipeline_mode = #tpu.pipeline_mode<synchronous>, transform_indices = @transform_6, window_bounds = array<i64: 121, 25>}, {pipeline_mode = #tpu.pipeline_mode<synchronous>, transform_indices = @transform_7, window_bounds = array<i64: 16, 25, 120>}, {pipeline_mode = #tpu.pipeline_mode<synchronous>, transform_indices = @transform_8, window_bounds = array<i64: 1, 120>}, {pipeline_mode = #tpu.pipeline_mode<synchronous>, transform_indices = @transform_9, window_bounds = array<i64: 120, 84>}, {pipeline_mode = #tpu.pipeline_mode<synchronous>, transform_indices = @transform_10, window_bounds = array<i64: 1, 84>}, {pipeline_mode = #tpu.pipeline_mode<synchronous>, transform_indices = @transform_11, window_bounds = array<i64: 84, 10>}, {pipeline_mode = #tpu.pipeline_mode<synchronous>, transform_indices = @transform_12, window_bounds = array<i64: 1, 10>}, {transform_indices = @transform_13, window_bounds = array<i64: 1, 1, 10>}]} {
    %c0 = arith.constant 0 : index
    %c0_0 = arith.constant 0 : index
    %c0_1 = arith.constant 0 : index
    %0 = vector.load %arg1[%c0, %c0_0, %c0_1] : memref<1x3x1024xf32, #tpu.memory_space<vmem>>, vector<1x3x1024xf32>
    %1 = vector.shape_cast %0 : vector<1x3x1024xf32> to vector<3x1024xf32>
    %c0_2 = arith.constant 0 : index
    %c0_3 = arith.constant 0 : index
    %c0_4 = arith.constant 0 : index
    %2 = vector.load %arg2[%c0_2, %c0_3, %c0_4] : memref<25x6x3xf32, #tpu.memory_space<vmem>>, vector<25x6x3xf32>
    %cst = arith.constant 0.000000e+00 : f32
    %3 = vector.broadcast %cst : f32 to vector<6x892xf32>
    %4 = vector.extract_strided_slice %1 {offsets = [0, 0], sizes = [3, 892], strides = [1, 1]} : vector<3x1024xf32> to vector<3x892xf32>
    %5 = vector.extract_strided_slice %2 {offsets = [0, 0, 0], sizes = [1, 6, 3], strides = [1, 1, 1]} : vector<25x6x3xf32> to vector<1x6x3xf32>
    %6 = vector.shape_cast %5 : vector<1x6x3xf32> to vector<6x3xf32>
    %cst_5 = arith.constant dense<0.000000e+00> : vector<6x892xf32>
    %7 = tpu.matmul %6, %4, %cst_5 {dimension_numbers = #tpu.dot_dimension_numbers<[1], [0], [0], [1], [0, 0, 1, 1], [], []>} : vector<6x3xf32>, vector<3x892xf32>, vector<6x892xf32> -> vector<6x892xf32>
    %8 = arith.addf %3, %7 : vector<6x892xf32>
    %9 = vector.extract_strided_slice %1 {offsets = [0, 1], sizes = [3, 892], strides = [1, 1]} : vector<3x1024xf32> to vector<3x892xf32>
    %10 = vector.extract_strided_slice %2 {offsets = [1, 0, 0], sizes = [1, 6, 3], strides = [1, 1, 1]} : vector<25x6x3xf32> to vector<1x6x3xf32>
    %11 = vector.shape_cast %10 : vector<1x6x3xf32> to vector<6x3xf32>
    %cst_6 = arith.constant dense<0.000000e+00> : vector<6x892xf32>
    %12 = tpu.matmul %11, %9, %cst_6 {dimension_numbers = #tpu.dot_dimension_numbers<[1], [0], [0], [1], [0, 0, 1, 1], [], []>} : vector<6x3xf32>, vector<3x892xf32>, vector<6x892xf32> -> vector<6x892xf32>
    %13 = arith.addf %8, %12 : vector<6x892xf32>
    %14 = vector.extract_strided_slice %1 {offsets = [0, 2], sizes = [3, 892], strides = [1, 1]} : vector<3x1024xf32> to vector<3x892xf32>
    %15 = vector.extract_strided_slice %2 {offsets = [2, 0, 0], sizes = [1, 6, 3], strides = [1, 1, 1]} : vector<25x6x3xf32> to vector<1x6x3xf32>
    %16 = vector.shape_cast %15 : vector<1x6x3xf32> to vector<6x3xf32>
    %cst_7 = arith.constant dense<0.000000e+00> : vector<6x892xf32>
    %17 = tpu.matmul %16, %14, %cst_7 {dimension_numbers = #tpu.dot_dimension_numbers<[1], [0], [0], [1], [0, 0, 1, 1], [], []>} : vector<6x3xf32>, vector<3x892xf32>, vector<6x892xf32> -> vector<6x892xf32>
    %18 = arith.addf %13, %17 : vector<6x892xf32>
    %19 = vector.extract_strided_slice %1 {offsets = [0, 3], sizes = [3, 892], strides = [1, 1]} : vector<3x1024xf32> to vector<3x892xf32>
    %20 = vector.extract_strided_slice %2 {offsets = [3, 0, 0], sizes = [1, 6, 3], strides = [1, 1, 1]} : vector<25x6x3xf32> to vector<1x6x3xf32>
    %21 = vector.shape_cast %20 : vector<1x6x3xf32> to vector<6x3xf32>
    %cst_8 = arith.constant dense<0.000000e+00> : vector<6x892xf32>
    %22 = tpu.matmul %21, %19, %cst_8 {dimension_numbers = #tpu.dot_dimension_numbers<[1], [0], [0], [1], [0, 0, 1, 1], [], []>} : vector<6x3xf32>, vector<3x892xf32>, vector<6x892xf32> -> vector<6x892xf32>
    %23 = arith.addf %18, %22 : vector<6x892xf32>
    %24 = vector.extract_strided_slice %1 {offsets = [0, 4], sizes = [3, 892], strides = [1, 1]} : vector<3x1024xf32> to vector<3x892xf32>
    %25 = vector.extract_strided_slice %2 {offsets = [4, 0, 0], sizes = [1, 6, 3], strides = [1, 1, 1]} : vector<25x6x3xf32> to vector<1x6x3xf32>
    %26 = vector.shape_cast %25 : vector<1x6x3xf32> to vector<6x3xf32>
    %cst_9 = arith.constant dense<0.000000e+00> : vector<6x892xf32>
    %27 = tpu.matmul %26, %24, %cst_9 {dimension_numbers = #tpu.dot_dimension_numbers<[1], [0], [0], [1], [0, 0, 1, 1], [], []>} : vector<6x3xf32>, vector<3x892xf32>, vector<6x892xf32> -> vector<6x892xf32>
    %28 = arith.addf %23, %27 : vector<6x892xf32>
    %29 = vector.extract_strided_slice %1 {offsets = [0, 32], sizes = [3, 892], strides = [1, 1]} : vector<3x1024xf32> to vector<3x892xf32>
    %30 = vector.extract_strided_slice %2 {offsets = [5, 0, 0], sizes = [1, 6, 3], strides = [1, 1, 1]} : vector<25x6x3xf32> to vector<1x6x3xf32>
    %31 = vector.shape_cast %30 : vector<1x6x3xf32> to vector<6x3xf32>
    %cst_10 = arith.constant dense<0.000000e+00> : vector<6x892xf32>
    %32 = tpu.matmul %31, %29, %cst_10 {dimension_numbers = #tpu.dot_dimension_numbers<[1], [0], [0], [1], [0, 0, 1, 1], [], []>} : vector<6x3xf32>, vector<3x892xf32>, vector<6x892xf32> -> vector<6x892xf32>
    %33 = arith.addf %28, %32 : vector<6x892xf32>
    %34 = vector.extract_strided_slice %1 {offsets = [0, 33], sizes = [3, 892], strides = [1, 1]} : vector<3x1024xf32> to vector<3x892xf32>
    %35 = vector.extract_strided_slice %2 {offsets = [6, 0, 0], sizes = [1, 6, 3], strides = [1, 1, 1]} : vector<25x6x3xf32> to vector<1x6x3xf32>
    %36 = vector.shape_cast %35 : vector<1x6x3xf32> to vector<6x3xf32>
    %cst_11 = arith.constant dense<0.000000e+00> : vector<6x892xf32>
    %37 = tpu.matmul %36, %34, %cst_11 {dimension_numbers = #tpu.dot_dimension_numbers<[1], [0], [0], [1], [0, 0, 1, 1], [], []>} : vector<6x3xf32>, vector<3x892xf32>, vector<6x892xf32> -> vector<6x892xf32>
    %38 = arith.addf %33, %37 : vector<6x892xf32>
    %39 = vector.extract_strided_slice %1 {offsets = [0, 34], sizes = [3, 892], strides = [1, 1]} : vector<3x1024xf32> to vector<3x892xf32>
    %40 = vector.extract_strided_slice %2 {offsets = [7, 0, 0], sizes = [1, 6, 3], strides = [1, 1, 1]} : vector<25x6x3xf32> to vector<1x6x3xf32>
    %41 = vector.shape_cast %40 : vector<1x6x3xf32> to vector<6x3xf32>
    %cst_12 = arith.constant dense<0.000000e+00> : vector<6x892xf32>
    %42 = tpu.matmul %41, %39, %cst_12 {dimension_numbers = #tpu.dot_dimension_numbers<[1], [0], [0], [1], [0, 0, 1, 1], [], []>} : vector<6x3xf32>, vector<3x892xf32>, vector<6x892xf32> -> vector<6x892xf32>
    %43 = arith.addf %38, %42 : vector<6x892xf32>
    %44 = vector.extract_strided_slice %1 {offsets = [0, 35], sizes = [3, 892], strides = [1, 1]} : vector<3x1024xf32> to vector<3x892xf32>
    %45 = vector.extract_strided_slice %2 {offsets = [8, 0, 0], sizes = [1, 6, 3], strides = [1, 1, 1]} : vector<25x6x3xf32> to vector<1x6x3xf32>
    %46 = vector.shape_cast %45 : vector<1x6x3xf32> to vector<6x3xf32>
    %cst_13 = arith.constant dense<0.000000e+00> : vector<6x892xf32>
    %47 = tpu.matmul %46, %44, %cst_13 {dimension_numbers = #tpu.dot_dimension_numbers<[1], [0], [0], [1], [0, 0, 1, 1], [], []>} : vector<6x3xf32>, vector<3x892xf32>, vector<6x892xf32> -> vector<6x892xf32>
    %48 = arith.addf %43, %47 : vector<6x892xf32>
    %49 = vector.extract_strided_slice %1 {offsets = [0, 36], sizes = [3, 892], strides = [1, 1]} : vector<3x1024xf32> to vector<3x892xf32>
    %50 = vector.extract_strided_slice %2 {offsets = [9, 0, 0], sizes = [1, 6, 3], strides = [1, 1, 1]} : vector<25x6x3xf32> to vector<1x6x3xf32>
    %51 = vector.shape_cast %50 : vector<1x6x3xf32> to vector<6x3xf32>
    %cst_14 = arith.constant dense<0.000000e+00> : vector<6x892xf32>
    %52 = tpu.matmul %51, %49, %cst_14 {dimension_numbers = #tpu.dot_dimension_numbers<[1], [0], [0], [1], [0, 0, 1, 1], [], []>} : vector<6x3xf32>, vector<3x892xf32>, vector<6x892xf32> -> vector<6x892xf32>
    %53 = arith.addf %48, %52 : vector<6x892xf32>
    %54 = vector.extract_strided_slice %1 {offsets = [0, 64], sizes = [3, 892], strides = [1, 1]} : vector<3x1024xf32> to vector<3x892xf32>
    %55 = vector.extract_strided_slice %2 {offsets = [10, 0, 0], sizes = [1, 6, 3], strides = [1, 1, 1]} : vector<25x6x3xf32> to vector<1x6x3xf32>
    %56 = vector.shape_cast %55 : vector<1x6x3xf32> to vector<6x3xf32>
    %cst_15 = arith.constant dense<0.000000e+00> : vector<6x892xf32>
    %57 = tpu.matmul %56, %54, %cst_15 {dimension_numbers = #tpu.dot_dimension_numbers<[1], [0], [0], [1], [0, 0, 1, 1], [], []>} : vector<6x3xf32>, vector<3x892xf32>, vector<6x892xf32> -> vector<6x892xf32>
    %58 = arith.addf %53, %57 : vector<6x892xf32>
    %59 = vector.extract_strided_slice %1 {offsets = [0, 65], sizes = [3, 892], strides = [1, 1]} : vector<3x1024xf32> to vector<3x892xf32>
    %60 = vector.extract_strided_slice %2 {offsets = [11, 0, 0], sizes = [1, 6, 3], strides = [1, 1, 1]} : vector<25x6x3xf32> to vector<1x6x3xf32>
    %61 = vector.shape_cast %60 : vector<1x6x3xf32> to vector<6x3xf32>
    %cst_16 = arith.constant dense<0.000000e+00> : vector<6x892xf32>
    %62 = tpu.matmul %61, %59, %cst_16 {dimension_numbers = #tpu.dot_dimension_numbers<[1], [0], [0], [1], [0, 0, 1, 1], [], []>} : vector<6x3xf32>, vector<3x892xf32>, vector<6x892xf32> -> vector<6x892xf32>
    %63 = arith.addf %58, %62 : vector<6x892xf32>
    %64 = vector.extract_strided_slice %1 {offsets = [0, 66], sizes = [3, 892], strides = [1, 1]} : vector<3x1024xf32> to vector<3x892xf32>
    %65 = vector.extract_strided_slice %2 {offsets = [12, 0, 0], sizes = [1, 6, 3], strides = [1, 1, 1]} : vector<25x6x3xf32> to vector<1x6x3xf32>
    %66 = vector.shape_cast %65 : vector<1x6x3xf32> to vector<6x3xf32>
    %cst_17 = arith.constant dense<0.000000e+00> : vector<6x892xf32>
    %67 = tpu.matmul %66, %64, %cst_17 {dimension_numbers = #tpu.dot_dimension_numbers<[1], [0], [0], [1], [0, 0, 1, 1], [], []>} : vector<6x3xf32>, vector<3x892xf32>, vector<6x892xf32> -> vector<6x892xf32>
    %68 = arith.addf %63, %67 : vector<6x892xf32>
    %69 = vector.extract_strided_slice %1 {offsets = [0, 67], sizes = [3, 892], strides = [1, 1]} : vector<3x1024xf32> to vector<3x892xf32>
    %70 = vector.extract_strided_slice %2 {offsets = [13, 0, 0], sizes = [1, 6, 3], strides = [1, 1, 1]} : vector<25x6x3xf32> to vector<1x6x3xf32>
    %71 = vector.shape_cast %70 : vector<1x6x3xf32> to vector<6x3xf32>
    %cst_18 = arith.constant dense<0.000000e+00> : vector<6x892xf32>
    %72 = tpu.matmul %71, %69, %cst_18 {dimension_numbers = #tpu.dot_dimension_numbers<[1], [0], [0], [1], [0, 0, 1, 1], [], []>} : vector<6x3xf32>, vector<3x892xf32>, vector<6x892xf32> -> vector<6x892xf32>
    %73 = arith.addf %68, %72 : vector<6x892xf32>
    %74 = vector.extract_strided_slice %1 {offsets = [0, 68], sizes = [3, 892], strides = [1, 1]} : vector<3x1024xf32> to vector<3x892xf32>
    %75 = vector.extract_strided_slice %2 {offsets = [14, 0, 0], sizes = [1, 6, 3], strides = [1, 1, 1]} : vector<25x6x3xf32> to vector<1x6x3xf32>
    %76 = vector.shape_cast %75 : vector<1x6x3xf32> to vector<6x3xf32>
    %cst_19 = arith.constant dense<0.000000e+00> : vector<6x892xf32>
    %77 = tpu.matmul %76, %74, %cst_19 {dimension_numbers = #tpu.dot_dimension_numbers<[1], [0], [0], [1], [0, 0, 1, 1], [], []>} : vector<6x3xf32>, vector<3x892xf32>, vector<6x892xf32> -> vector<6x892xf32>
    %78 = arith.addf %73, %77 : vector<6x892xf32>
    %79 = vector.extract_strided_slice %1 {offsets = [0, 96], sizes = [3, 892], strides = [1, 1]} : vector<3x1024xf32> to vector<3x892xf32>
    %80 = vector.extract_strided_slice %2 {offsets = [15, 0, 0], sizes = [1, 6, 3], strides = [1, 1, 1]} : vector<25x6x3xf32> to vector<1x6x3xf32>
    %81 = vector.shape_cast %80 : vector<1x6x3xf32> to vector<6x3xf32>
    %cst_20 = arith.constant dense<0.000000e+00> : vector<6x892xf32>
    %82 = tpu.matmul %81, %79, %cst_20 {dimension_numbers = #tpu.dot_dimension_numbers<[1], [0], [0], [1], [0, 0, 1, 1], [], []>} : vector<6x3xf32>, vector<3x892xf32>, vector<6x892xf32> -> vector<6x892xf32>
    %83 = arith.addf %78, %82 : vector<6x892xf32>
    %84 = vector.extract_strided_slice %1 {offsets = [0, 97], sizes = [3, 892], strides = [1, 1]} : vector<3x1024xf32> to vector<3x892xf32>
    %85 = vector.extract_strided_slice %2 {offsets = [16, 0, 0], sizes = [1, 6, 3], strides = [1, 1, 1]} : vector<25x6x3xf32> to vector<1x6x3xf32>
    %86 = vector.shape_cast %85 : vector<1x6x3xf32> to vector<6x3xf32>
    %cst_21 = arith.constant dense<0.000000e+00> : vector<6x892xf32>
    %87 = tpu.matmul %86, %84, %cst_21 {dimension_numbers = #tpu.dot_dimension_numbers<[1], [0], [0], [1], [0, 0, 1, 1], [], []>} : vector<6x3xf32>, vector<3x892xf32>, vector<6x892xf32> -> vector<6x892xf32>
    %88 = arith.addf %83, %87 : vector<6x892xf32>
    %89 = vector.extract_strided_slice %1 {offsets = [0, 98], sizes = [3, 892], strides = [1, 1]} : vector<3x1024xf32> to vector<3x892xf32>
    %90 = vector.extract_strided_slice %2 {offsets = [17, 0, 0], sizes = [1, 6, 3], strides = [1, 1, 1]} : vector<25x6x3xf32> to vector<1x6x3xf32>
    %91 = vector.shape_cast %90 : vector<1x6x3xf32> to vector<6x3xf32>
    %cst_22 = arith.constant dense<0.000000e+00> : vector<6x892xf32>
    %92 = tpu.matmul %91, %89, %cst_22 {dimension_numbers = #tpu.dot_dimension_numbers<[1], [0], [0], [1], [0, 0, 1, 1], [], []>} : vector<6x3xf32>, vector<3x892xf32>, vector<6x892xf32> -> vector<6x892xf32>
    %93 = arith.addf %88, %92 : vector<6x892xf32>
    %94 = vector.extract_strided_slice %1 {offsets = [0, 99], sizes = [3, 892], strides = [1, 1]} : vector<3x1024xf32> to vector<3x892xf32>
    %95 = vector.extract_strided_slice %2 {offsets = [18, 0, 0], sizes = [1, 6, 3], strides = [1, 1, 1]} : vector<25x6x3xf32> to vector<1x6x3xf32>
    %96 = vector.shape_cast %95 : vector<1x6x3xf32> to vector<6x3xf32>
    %cst_23 = arith.constant dense<0.000000e+00> : vector<6x892xf32>
    %97 = tpu.matmul %96, %94, %cst_23 {dimension_numbers = #tpu.dot_dimension_numbers<[1], [0], [0], [1], [0, 0, 1, 1], [], []>} : vector<6x3xf32>, vector<3x892xf32>, vector<6x892xf32> -> vector<6x892xf32>
    %98 = arith.addf %93, %97 : vector<6x892xf32>
    %99 = vector.extract_strided_slice %1 {offsets = [0, 100], sizes = [3, 892], strides = [1, 1]} : vector<3x1024xf32> to vector<3x892xf32>
    %100 = vector.extract_strided_slice %2 {offsets = [19, 0, 0], sizes = [1, 6, 3], strides = [1, 1, 1]} : vector<25x6x3xf32> to vector<1x6x3xf32>
    %101 = vector.shape_cast %100 : vector<1x6x3xf32> to vector<6x3xf32>
    %cst_24 = arith.constant dense<0.000000e+00> : vector<6x892xf32>
    %102 = tpu.matmul %101, %99, %cst_24 {dimension_numbers = #tpu.dot_dimension_numbers<[1], [0], [0], [1], [0, 0, 1, 1], [], []>} : vector<6x3xf32>, vector<3x892xf32>, vector<6x892xf32> -> vector<6x892xf32>
    %103 = arith.addf %98, %102 : vector<6x892xf32>
    %104 = vector.extract_strided_slice %1 {offsets = [0, 128], sizes = [3, 892], strides = [1, 1]} : vector<3x1024xf32> to vector<3x892xf32>
    %105 = vector.extract_strided_slice %2 {offsets = [20, 0, 0], sizes = [1, 6, 3], strides = [1, 1, 1]} : vector<25x6x3xf32> to vector<1x6x3xf32>
    %106 = vector.shape_cast %105 : vector<1x6x3xf32> to vector<6x3xf32>
    %cst_25 = arith.constant dense<0.000000e+00> : vector<6x892xf32>
    %107 = tpu.matmul %106, %104, %cst_25 {dimension_numbers = #tpu.dot_dimension_numbers<[1], [0], [0], [1], [0, 0, 1, 1], [], []>} : vector<6x3xf32>, vector<3x892xf32>, vector<6x892xf32> -> vector<6x892xf32>
    %108 = arith.addf %103, %107 : vector<6x892xf32>
    %109 = vector.extract_strided_slice %1 {offsets = [0, 129], sizes = [3, 892], strides = [1, 1]} : vector<3x1024xf32> to vector<3x892xf32>
    %110 = vector.extract_strided_slice %2 {offsets = [21, 0, 0], sizes = [1, 6, 3], strides = [1, 1, 1]} : vector<25x6x3xf32> to vector<1x6x3xf32>
    %111 = vector.shape_cast %110 : vector<1x6x3xf32> to vector<6x3xf32>
    %cst_26 = arith.constant dense<0.000000e+00> : vector<6x892xf32>
    %112 = tpu.matmul %111, %109, %cst_26 {dimension_numbers = #tpu.dot_dimension_numbers<[1], [0], [0], [1], [0, 0, 1, 1], [], []>} : vector<6x3xf32>, vector<3x892xf32>, vector<6x892xf32> -> vector<6x892xf32>
    %113 = arith.addf %108, %112 : vector<6x892xf32>
    %114 = vector.extract_strided_slice %1 {offsets = [0, 130], sizes = [3, 892], strides = [1, 1]} : vector<3x1024xf32> to vector<3x892xf32>
    %115 = vector.extract_strided_slice %2 {offsets = [22, 0, 0], sizes = [1, 6, 3], strides = [1, 1, 1]} : vector<25x6x3xf32> to vector<1x6x3xf32>
    %116 = vector.shape_cast %115 : vector<1x6x3xf32> to vector<6x3xf32>
    %cst_27 = arith.constant dense<0.000000e+00> : vector<6x892xf32>
    %117 = tpu.matmul %116, %114, %cst_27 {dimension_numbers = #tpu.dot_dimension_numbers<[1], [0], [0], [1], [0, 0, 1, 1], [], []>} : vector<6x3xf32>, vector<3x892xf32>, vector<6x892xf32> -> vector<6x892xf32>
    %118 = arith.addf %113, %117 : vector<6x892xf32>
    %119 = vector.extract_strided_slice %1 {offsets = [0, 131], sizes = [3, 892], strides = [1, 1]} : vector<3x1024xf32> to vector<3x892xf32>
    %120 = vector.extract_strided_slice %2 {offsets = [23, 0, 0], sizes = [1, 6, 3], strides = [1, 1, 1]} : vector<25x6x3xf32> to vector<1x6x3xf32>
    %121 = vector.shape_cast %120 : vector<1x6x3xf32> to vector<6x3xf32>
    %cst_28 = arith.constant dense<0.000000e+00> : vector<6x892xf32>
    %122 = tpu.matmul %121, %119, %cst_28 {dimension_numbers = #tpu.dot_dimension_numbers<[1], [0], [0], [1], [0, 0, 1, 1], [], []>} : vector<6x3xf32>, vector<3x892xf32>, vector<6x892xf32> -> vector<6x892xf32>
    %123 = arith.addf %118, %122 : vector<6x892xf32>
    %124 = vector.extract_strided_slice %1 {offsets = [0, 132], sizes = [3, 892], strides = [1, 1]} : vector<3x1024xf32> to vector<3x892xf32>
    %125 = vector.extract_strided_slice %2 {offsets = [24, 0, 0], sizes = [1, 6, 3], strides = [1, 1, 1]} : vector<25x6x3xf32> to vector<1x6x3xf32>
    %126 = vector.shape_cast %125 : vector<1x6x3xf32> to vector<6x3xf32>
    %cst_29 = arith.constant dense<0.000000e+00> : vector<6x892xf32>
    %127 = tpu.matmul %126, %124, %cst_29 {dimension_numbers = #tpu.dot_dimension_numbers<[1], [0], [0], [1], [0, 0, 1, 1], [], []>} : vector<6x3xf32>, vector<3x892xf32>, vector<6x892xf32> -> vector<6x892xf32>
    %128 = arith.addf %123, %127 : vector<6x892xf32>
    %c0_30 = arith.constant 0 : index
    %c0_31 = arith.constant 0 : index
    %129 = vector.load %arg3[%c0_30, %c0_31] : memref<6x1xf32, #tpu.memory_space<vmem>>, vector<6x1xf32>
    %130 = vector.broadcast %129 : vector<6x1xf32> to vector<6x892xf32>
    %131 = arith.addf %128, %130 : vector<6x892xf32>
    %cst_32 = arith.constant 0.000000e+00 : f32
    %132 = vector.broadcast %cst_32 : f32 to vector<6x892xf32>
    %133 = arith.maximumf %131, %132 : vector<6x892xf32>
    %134 = vector.extract_strided_slice %133 {offsets = [0, 0], sizes = [6, 859], strides = [1, 1]} : vector<6x892xf32> to vector<6x859xf32>
    %135 = vector.extract_strided_slice %133 {offsets = [0, 1], sizes = [6, 859], strides = [1, 1]} : vector<6x892xf32> to vector<6x859xf32>
    %136 = arith.maximumf %134, %135 : vector<6x859xf32>
    %137 = vector.extract_strided_slice %133 {offsets = [0, 32], sizes = [6, 859], strides = [1, 1]} : vector<6x892xf32> to vector<6x859xf32>
    %138 = vector.extract_strided_slice %133 {offsets = [0, 33], sizes = [6, 859], strides = [1, 1]} : vector<6x892xf32> to vector<6x859xf32>
    %139 = arith.maximumf %137, %138 : vector<6x859xf32>
    %140 = arith.maximumf %136, %139 : vector<6x859xf32>
    %c0_33 = arith.constant 0 : index
    %c0_34 = arith.constant 0 : index
    %141 = vector.load %arg4[%c0_33, %c0_34] : memref<859x196xf32, #tpu.memory_space<vmem>>, vector<859x196xf32>
    %cst_35 = arith.constant dense<0.000000e+00> : vector<6x196xf32>
    %142 = tpu.matmul %140, %141, %cst_35 {dimension_numbers = #tpu.dot_dimension_numbers<[1], [0], [0], [1], [0, 0, 1, 1], [], []>} : vector<6x859xf32>, vector<859x196xf32>, vector<6x196xf32> -> vector<6x196xf32>
    %c0_36 = arith.constant 0 : index
    %c0_37 = arith.constant 0 : index
    %c0_38 = arith.constant 0 : index
    %143 = vector.load %arg5[%c0_36, %c0_37, %c0_38] : memref<25x16x6xf32, #tpu.memory_space<vmem>>, vector<25x16x6xf32>
    %cst_39 = arith.constant 0.000000e+00 : f32
    %144 = vector.broadcast %cst_39 : f32 to vector<16x136xf32>
    %145 = vector.extract_strided_slice %142 {offsets = [0, 0], sizes = [6, 136], strides = [1, 1]} : vector<6x196xf32> to vector<6x136xf32>
    %146 = vector.extract_strided_slice %143 {offsets = [0, 0, 0], sizes = [1, 16, 6], strides = [1, 1, 1]} : vector<25x16x6xf32> to vector<1x16x6xf32>
    %147 = vector.shape_cast %146 : vector<1x16x6xf32> to vector<16x6xf32>
    %cst_40 = arith.constant dense<0.000000e+00> : vector<16x136xf32>
    %148 = tpu.matmul %147, %145, %cst_40 {dimension_numbers = #tpu.dot_dimension_numbers<[1], [0], [0], [1], [0, 0, 1, 1], [], []>} : vector<16x6xf32>, vector<6x136xf32>, vector<16x136xf32> -> vector<16x136xf32>
    %149 = arith.addf %144, %148 : vector<16x136xf32>
    %150 = vector.extract_strided_slice %142 {offsets = [0, 1], sizes = [6, 136], strides = [1, 1]} : vector<6x196xf32> to vector<6x136xf32>
    %151 = vector.extract_strided_slice %143 {offsets = [1, 0, 0], sizes = [1, 16, 6], strides = [1, 1, 1]} : vector<25x16x6xf32> to vector<1x16x6xf32>
    %152 = vector.shape_cast %151 : vector<1x16x6xf32> to vector<16x6xf32>
    %cst_41 = arith.constant dense<0.000000e+00> : vector<16x136xf32>
    %153 = tpu.matmul %152, %150, %cst_41 {dimension_numbers = #tpu.dot_dimension_numbers<[1], [0], [0], [1], [0, 0, 1, 1], [], []>} : vector<16x6xf32>, vector<6x136xf32>, vector<16x136xf32> -> vector<16x136xf32>
    %154 = arith.addf %149, %153 : vector<16x136xf32>
    %155 = vector.extract_strided_slice %142 {offsets = [0, 2], sizes = [6, 136], strides = [1, 1]} : vector<6x196xf32> to vector<6x136xf32>
    %156 = vector.extract_strided_slice %143 {offsets = [2, 0, 0], sizes = [1, 16, 6], strides = [1, 1, 1]} : vector<25x16x6xf32> to vector<1x16x6xf32>
    %157 = vector.shape_cast %156 : vector<1x16x6xf32> to vector<16x6xf32>
    %cst_42 = arith.constant dense<0.000000e+00> : vector<16x136xf32>
    %158 = tpu.matmul %157, %155, %cst_42 {dimension_numbers = #tpu.dot_dimension_numbers<[1], [0], [0], [1], [0, 0, 1, 1], [], []>} : vector<16x6xf32>, vector<6x136xf32>, vector<16x136xf32> -> vector<16x136xf32>
    %159 = arith.addf %154, %158 : vector<16x136xf32>
    %160 = vector.extract_strided_slice %142 {offsets = [0, 3], sizes = [6, 136], strides = [1, 1]} : vector<6x196xf32> to vector<6x136xf32>
    %161 = vector.extract_strided_slice %143 {offsets = [3, 0, 0], sizes = [1, 16, 6], strides = [1, 1, 1]} : vector<25x16x6xf32> to vector<1x16x6xf32>
    %162 = vector.shape_cast %161 : vector<1x16x6xf32> to vector<16x6xf32>
    %cst_43 = arith.constant dense<0.000000e+00> : vector<16x136xf32>
    %163 = tpu.matmul %162, %160, %cst_43 {dimension_numbers = #tpu.dot_dimension_numbers<[1], [0], [0], [1], [0, 0, 1, 1], [], []>} : vector<16x6xf32>, vector<6x136xf32>, vector<16x136xf32> -> vector<16x136xf32>
    %164 = arith.addf %159, %163 : vector<16x136xf32>
    %165 = vector.extract_strided_slice %142 {offsets = [0, 4], sizes = [6, 136], strides = [1, 1]} : vector<6x196xf32> to vector<6x136xf32>
    %166 = vector.extract_strided_slice %143 {offsets = [4, 0, 0], sizes = [1, 16, 6], strides = [1, 1, 1]} : vector<25x16x6xf32> to vector<1x16x6xf32>
    %167 = vector.shape_cast %166 : vector<1x16x6xf32> to vector<16x6xf32>
    %cst_44 = arith.constant dense<0.000000e+00> : vector<16x136xf32>
    %168 = tpu.matmul %167, %165, %cst_44 {dimension_numbers = #tpu.dot_dimension_numbers<[1], [0], [0], [1], [0, 0, 1, 1], [], []>} : vector<16x6xf32>, vector<6x136xf32>, vector<16x136xf32> -> vector<16x136xf32>
    %169 = arith.addf %164, %168 : vector<16x136xf32>
    %170 = vector.extract_strided_slice %142 {offsets = [0, 14], sizes = [6, 136], strides = [1, 1]} : vector<6x196xf32> to vector<6x136xf32>
    %171 = vector.extract_strided_slice %143 {offsets = [5, 0, 0], sizes = [1, 16, 6], strides = [1, 1, 1]} : vector<25x16x6xf32> to vector<1x16x6xf32>
    %172 = vector.shape_cast %171 : vector<1x16x6xf32> to vector<16x6xf32>
    %cst_45 = arith.constant dense<0.000000e+00> : vector<16x136xf32>
    %173 = tpu.matmul %172, %170, %cst_45 {dimension_numbers = #tpu.dot_dimension_numbers<[1], [0], [0], [1], [0, 0, 1, 1], [], []>} : vector<16x6xf32>, vector<6x136xf32>, vector<16x136xf32> -> vector<16x136xf32>
    %174 = arith.addf %169, %173 : vector<16x136xf32>
    %175 = vector.extract_strided_slice %142 {offsets = [0, 15], sizes = [6, 136], strides = [1, 1]} : vector<6x196xf32> to vector<6x136xf32>
    %176 = vector.extract_strided_slice %143 {offsets = [6, 0, 0], sizes = [1, 16, 6], strides = [1, 1, 1]} : vector<25x16x6xf32> to vector<1x16x6xf32>
    %177 = vector.shape_cast %176 : vector<1x16x6xf32> to vector<16x6xf32>
    %cst_46 = arith.constant dense<0.000000e+00> : vector<16x136xf32>
    %178 = tpu.matmul %177, %175, %cst_46 {dimension_numbers = #tpu.dot_dimension_numbers<[1], [0], [0], [1], [0, 0, 1, 1], [], []>} : vector<16x6xf32>, vector<6x136xf32>, vector<16x136xf32> -> vector<16x136xf32>
    %179 = arith.addf %174, %178 : vector<16x136xf32>
    %180 = vector.extract_strided_slice %142 {offsets = [0, 16], sizes = [6, 136], strides = [1, 1]} : vector<6x196xf32> to vector<6x136xf32>
    %181 = vector.extract_strided_slice %143 {offsets = [7, 0, 0], sizes = [1, 16, 6], strides = [1, 1, 1]} : vector<25x16x6xf32> to vector<1x16x6xf32>
    %182 = vector.shape_cast %181 : vector<1x16x6xf32> to vector<16x6xf32>
    %cst_47 = arith.constant dense<0.000000e+00> : vector<16x136xf32>
    %183 = tpu.matmul %182, %180, %cst_47 {dimension_numbers = #tpu.dot_dimension_numbers<[1], [0], [0], [1], [0, 0, 1, 1], [], []>} : vector<16x6xf32>, vector<6x136xf32>, vector<16x136xf32> -> vector<16x136xf32>
    %184 = arith.addf %179, %183 : vector<16x136xf32>
    %185 = vector.extract_strided_slice %142 {offsets = [0, 17], sizes = [6, 136], strides = [1, 1]} : vector<6x196xf32> to vector<6x136xf32>
    %186 = vector.extract_strided_slice %143 {offsets = [8, 0, 0], sizes = [1, 16, 6], strides = [1, 1, 1]} : vector<25x16x6xf32> to vector<1x16x6xf32>
    %187 = vector.shape_cast %186 : vector<1x16x6xf32> to vector<16x6xf32>
    %cst_48 = arith.constant dense<0.000000e+00> : vector<16x136xf32>
    %188 = tpu.matmul %187, %185, %cst_48 {dimension_numbers = #tpu.dot_dimension_numbers<[1], [0], [0], [1], [0, 0, 1, 1], [], []>} : vector<16x6xf32>, vector<6x136xf32>, vector<16x136xf32> -> vector<16x136xf32>
    %189 = arith.addf %184, %188 : vector<16x136xf32>
    %190 = vector.extract_strided_slice %142 {offsets = [0, 18], sizes = [6, 136], strides = [1, 1]} : vector<6x196xf32> to vector<6x136xf32>
    %191 = vector.extract_strided_slice %143 {offsets = [9, 0, 0], sizes = [1, 16, 6], strides = [1, 1, 1]} : vector<25x16x6xf32> to vector<1x16x6xf32>
    %192 = vector.shape_cast %191 : vector<1x16x6xf32> to vector<16x6xf32>
    %cst_49 = arith.constant dense<0.000000e+00> : vector<16x136xf32>
    %193 = tpu.matmul %192, %190, %cst_49 {dimension_numbers = #tpu.dot_dimension_numbers<[1], [0], [0], [1], [0, 0, 1, 1], [], []>} : vector<16x6xf32>, vector<6x136xf32>, vector<16x136xf32> -> vector<16x136xf32>
    %194 = arith.addf %189, %193 : vector<16x136xf32>
    %195 = vector.extract_strided_slice %142 {offsets = [0, 28], sizes = [6, 136], strides = [1, 1]} : vector<6x196xf32> to vector<6x136xf32>
    %196 = vector.extract_strided_slice %143 {offsets = [10, 0, 0], sizes = [1, 16, 6], strides = [1, 1, 1]} : vector<25x16x6xf32> to vector<1x16x6xf32>
    %197 = vector.shape_cast %196 : vector<1x16x6xf32> to vector<16x6xf32>
    %cst_50 = arith.constant dense<0.000000e+00> : vector<16x136xf32>
    %198 = tpu.matmul %197, %195, %cst_50 {dimension_numbers = #tpu.dot_dimension_numbers<[1], [0], [0], [1], [0, 0, 1, 1], [], []>} : vector<16x6xf32>, vector<6x136xf32>, vector<16x136xf32> -> vector<16x136xf32>
    %199 = arith.addf %194, %198 : vector<16x136xf32>
    %200 = vector.extract_strided_slice %142 {offsets = [0, 29], sizes = [6, 136], strides = [1, 1]} : vector<6x196xf32> to vector<6x136xf32>
    %201 = vector.extract_strided_slice %143 {offsets = [11, 0, 0], sizes = [1, 16, 6], strides = [1, 1, 1]} : vector<25x16x6xf32> to vector<1x16x6xf32>
    %202 = vector.shape_cast %201 : vector<1x16x6xf32> to vector<16x6xf32>
    %cst_51 = arith.constant dense<0.000000e+00> : vector<16x136xf32>
    %203 = tpu.matmul %202, %200, %cst_51 {dimension_numbers = #tpu.dot_dimension_numbers<[1], [0], [0], [1], [0, 0, 1, 1], [], []>} : vector<16x6xf32>, vector<6x136xf32>, vector<16x136xf32> -> vector<16x136xf32>
    %204 = arith.addf %199, %203 : vector<16x136xf32>
    %205 = vector.extract_strided_slice %142 {offsets = [0, 30], sizes = [6, 136], strides = [1, 1]} : vector<6x196xf32> to vector<6x136xf32>
    %206 = vector.extract_strided_slice %143 {offsets = [12, 0, 0], sizes = [1, 16, 6], strides = [1, 1, 1]} : vector<25x16x6xf32> to vector<1x16x6xf32>
    %207 = vector.shape_cast %206 : vector<1x16x6xf32> to vector<16x6xf32>
    %cst_52 = arith.constant dense<0.000000e+00> : vector<16x136xf32>
    %208 = tpu.matmul %207, %205, %cst_52 {dimension_numbers = #tpu.dot_dimension_numbers<[1], [0], [0], [1], [0, 0, 1, 1], [], []>} : vector<16x6xf32>, vector<6x136xf32>, vector<16x136xf32> -> vector<16x136xf32>
    %209 = arith.addf %204, %208 : vector<16x136xf32>
    %210 = vector.extract_strided_slice %142 {offsets = [0, 31], sizes = [6, 136], strides = [1, 1]} : vector<6x196xf32> to vector<6x136xf32>
    %211 = vector.extract_strided_slice %143 {offsets = [13, 0, 0], sizes = [1, 16, 6], strides = [1, 1, 1]} : vector<25x16x6xf32> to vector<1x16x6xf32>
    %212 = vector.shape_cast %211 : vector<1x16x6xf32> to vector<16x6xf32>
    %cst_53 = arith.constant dense<0.000000e+00> : vector<16x136xf32>
    %213 = tpu.matmul %212, %210, %cst_53 {dimension_numbers = #tpu.dot_dimension_numbers<[1], [0], [0], [1], [0, 0, 1, 1], [], []>} : vector<16x6xf32>, vector<6x136xf32>, vector<16x136xf32> -> vector<16x136xf32>
    %214 = arith.addf %209, %213 : vector<16x136xf32>
    %215 = vector.extract_strided_slice %142 {offsets = [0, 32], sizes = [6, 136], strides = [1, 1]} : vector<6x196xf32> to vector<6x136xf32>
    %216 = vector.extract_strided_slice %143 {offsets = [14, 0, 0], sizes = [1, 16, 6], strides = [1, 1, 1]} : vector<25x16x6xf32> to vector<1x16x6xf32>
    %217 = vector.shape_cast %216 : vector<1x16x6xf32> to vector<16x6xf32>
    %cst_54 = arith.constant dense<0.000000e+00> : vector<16x136xf32>
    %218 = tpu.matmul %217, %215, %cst_54 {dimension_numbers = #tpu.dot_dimension_numbers<[1], [0], [0], [1], [0, 0, 1, 1], [], []>} : vector<16x6xf32>, vector<6x136xf32>, vector<16x136xf32> -> vector<16x136xf32>
    %219 = arith.addf %214, %218 : vector<16x136xf32>
    %220 = vector.extract_strided_slice %142 {offsets = [0, 42], sizes = [6, 136], strides = [1, 1]} : vector<6x196xf32> to vector<6x136xf32>
    %221 = vector.extract_strided_slice %143 {offsets = [15, 0, 0], sizes = [1, 16, 6], strides = [1, 1, 1]} : vector<25x16x6xf32> to vector<1x16x6xf32>
    %222 = vector.shape_cast %221 : vector<1x16x6xf32> to vector<16x6xf32>
    %cst_55 = arith.constant dense<0.000000e+00> : vector<16x136xf32>
    %223 = tpu.matmul %222, %220, %cst_55 {dimension_numbers = #tpu.dot_dimension_numbers<[1], [0], [0], [1], [0, 0, 1, 1], [], []>} : vector<16x6xf32>, vector<6x136xf32>, vector<16x136xf32> -> vector<16x136xf32>
    %224 = arith.addf %219, %223 : vector<16x136xf32>
    %225 = vector.extract_strided_slice %142 {offsets = [0, 43], sizes = [6, 136], strides = [1, 1]} : vector<6x196xf32> to vector<6x136xf32>
    %226 = vector.extract_strided_slice %143 {offsets = [16, 0, 0], sizes = [1, 16, 6], strides = [1, 1, 1]} : vector<25x16x6xf32> to vector<1x16x6xf32>
    %227 = vector.shape_cast %226 : vector<1x16x6xf32> to vector<16x6xf32>
    %cst_56 = arith.constant dense<0.000000e+00> : vector<16x136xf32>
    %228 = tpu.matmul %227, %225, %cst_56 {dimension_numbers = #tpu.dot_dimension_numbers<[1], [0], [0], [1], [0, 0, 1, 1], [], []>} : vector<16x6xf32>, vector<6x136xf32>, vector<16x136xf32> -> vector<16x136xf32>
    %229 = arith.addf %224, %228 : vector<16x136xf32>
    %230 = vector.extract_strided_slice %142 {offsets = [0, 44], sizes = [6, 136], strides = [1, 1]} : vector<6x196xf32> to vector<6x136xf32>
    %231 = vector.extract_strided_slice %143 {offsets = [17, 0, 0], sizes = [1, 16, 6], strides = [1, 1, 1]} : vector<25x16x6xf32> to vector<1x16x6xf32>
    %232 = vector.shape_cast %231 : vector<1x16x6xf32> to vector<16x6xf32>
    %cst_57 = arith.constant dense<0.000000e+00> : vector<16x136xf32>
    %233 = tpu.matmul %232, %230, %cst_57 {dimension_numbers = #tpu.dot_dimension_numbers<[1], [0], [0], [1], [0, 0, 1, 1], [], []>} : vector<16x6xf32>, vector<6x136xf32>, vector<16x136xf32> -> vector<16x136xf32>
    %234 = arith.addf %229, %233 : vector<16x136xf32>
    %235 = vector.extract_strided_slice %142 {offsets = [0, 45], sizes = [6, 136], strides = [1, 1]} : vector<6x196xf32> to vector<6x136xf32>
    %236 = vector.extract_strided_slice %143 {offsets = [18, 0, 0], sizes = [1, 16, 6], strides = [1, 1, 1]} : vector<25x16x6xf32> to vector<1x16x6xf32>
    %237 = vector.shape_cast %236 : vector<1x16x6xf32> to vector<16x6xf32>
    %cst_58 = arith.constant dense<0.000000e+00> : vector<16x136xf32>
    %238 = tpu.matmul %237, %235, %cst_58 {dimension_numbers = #tpu.dot_dimension_numbers<[1], [0], [0], [1], [0, 0, 1, 1], [], []>} : vector<16x6xf32>, vector<6x136xf32>, vector<16x136xf32> -> vector<16x136xf32>
    %239 = arith.addf %234, %238 : vector<16x136xf32>
    %240 = vector.extract_strided_slice %142 {offsets = [0, 46], sizes = [6, 136], strides = [1, 1]} : vector<6x196xf32> to vector<6x136xf32>
    %241 = vector.extract_strided_slice %143 {offsets = [19, 0, 0], sizes = [1, 16, 6], strides = [1, 1, 1]} : vector<25x16x6xf32> to vector<1x16x6xf32>
    %242 = vector.shape_cast %241 : vector<1x16x6xf32> to vector<16x6xf32>
    %cst_59 = arith.constant dense<0.000000e+00> : vector<16x136xf32>
    %243 = tpu.matmul %242, %240, %cst_59 {dimension_numbers = #tpu.dot_dimension_numbers<[1], [0], [0], [1], [0, 0, 1, 1], [], []>} : vector<16x6xf32>, vector<6x136xf32>, vector<16x136xf32> -> vector<16x136xf32>
    %244 = arith.addf %239, %243 : vector<16x136xf32>
    %245 = vector.extract_strided_slice %142 {offsets = [0, 56], sizes = [6, 136], strides = [1, 1]} : vector<6x196xf32> to vector<6x136xf32>
    %246 = vector.extract_strided_slice %143 {offsets = [20, 0, 0], sizes = [1, 16, 6], strides = [1, 1, 1]} : vector<25x16x6xf32> to vector<1x16x6xf32>
    %247 = vector.shape_cast %246 : vector<1x16x6xf32> to vector<16x6xf32>
    %cst_60 = arith.constant dense<0.000000e+00> : vector<16x136xf32>
    %248 = tpu.matmul %247, %245, %cst_60 {dimension_numbers = #tpu.dot_dimension_numbers<[1], [0], [0], [1], [0, 0, 1, 1], [], []>} : vector<16x6xf32>, vector<6x136xf32>, vector<16x136xf32> -> vector<16x136xf32>
    %249 = arith.addf %244, %248 : vector<16x136xf32>
    %250 = vector.extract_strided_slice %142 {offsets = [0, 57], sizes = [6, 136], strides = [1, 1]} : vector<6x196xf32> to vector<6x136xf32>
    %251 = vector.extract_strided_slice %143 {offsets = [21, 0, 0], sizes = [1, 16, 6], strides = [1, 1, 1]} : vector<25x16x6xf32> to vector<1x16x6xf32>
    %252 = vector.shape_cast %251 : vector<1x16x6xf32> to vector<16x6xf32>
    %cst_61 = arith.constant dense<0.000000e+00> : vector<16x136xf32>
    %253 = tpu.matmul %252, %250, %cst_61 {dimension_numbers = #tpu.dot_dimension_numbers<[1], [0], [0], [1], [0, 0, 1, 1], [], []>} : vector<16x6xf32>, vector<6x136xf32>, vector<16x136xf32> -> vector<16x136xf32>
    %254 = arith.addf %249, %253 : vector<16x136xf32>
    %255 = vector.extract_strided_slice %142 {offsets = [0, 58], sizes = [6, 136], strides = [1, 1]} : vector<6x196xf32> to vector<6x136xf32>
    %256 = vector.extract_strided_slice %143 {offsets = [22, 0, 0], sizes = [1, 16, 6], strides = [1, 1, 1]} : vector<25x16x6xf32> to vector<1x16x6xf32>
    %257 = vector.shape_cast %256 : vector<1x16x6xf32> to vector<16x6xf32>
    %cst_62 = arith.constant dense<0.000000e+00> : vector<16x136xf32>
    %258 = tpu.matmul %257, %255, %cst_62 {dimension_numbers = #tpu.dot_dimension_numbers<[1], [0], [0], [1], [0, 0, 1, 1], [], []>} : vector<16x6xf32>, vector<6x136xf32>, vector<16x136xf32> -> vector<16x136xf32>
    %259 = arith.addf %254, %258 : vector<16x136xf32>
    %260 = vector.extract_strided_slice %142 {offsets = [0, 59], sizes = [6, 136], strides = [1, 1]} : vector<6x196xf32> to vector<6x136xf32>
    %261 = vector.extract_strided_slice %143 {offsets = [23, 0, 0], sizes = [1, 16, 6], strides = [1, 1, 1]} : vector<25x16x6xf32> to vector<1x16x6xf32>
    %262 = vector.shape_cast %261 : vector<1x16x6xf32> to vector<16x6xf32>
    %cst_63 = arith.constant dense<0.000000e+00> : vector<16x136xf32>
    %263 = tpu.matmul %262, %260, %cst_63 {dimension_numbers = #tpu.dot_dimension_numbers<[1], [0], [0], [1], [0, 0, 1, 1], [], []>} : vector<16x6xf32>, vector<6x136xf32>, vector<16x136xf32> -> vector<16x136xf32>
    %264 = arith.addf %259, %263 : vector<16x136xf32>
    %265 = vector.extract_strided_slice %142 {offsets = [0, 60], sizes = [6, 136], strides = [1, 1]} : vector<6x196xf32> to vector<6x136xf32>
    %266 = vector.extract_strided_slice %143 {offsets = [24, 0, 0], sizes = [1, 16, 6], strides = [1, 1, 1]} : vector<25x16x6xf32> to vector<1x16x6xf32>
    %267 = vector.shape_cast %266 : vector<1x16x6xf32> to vector<16x6xf32>
    %cst_64 = arith.constant dense<0.000000e+00> : vector<16x136xf32>
    %268 = tpu.matmul %267, %265, %cst_64 {dimension_numbers = #tpu.dot_dimension_numbers<[1], [0], [0], [1], [0, 0, 1, 1], [], []>} : vector<16x6xf32>, vector<6x136xf32>, vector<16x136xf32> -> vector<16x136xf32>
    %269 = arith.addf %264, %268 : vector<16x136xf32>
    %c0_65 = arith.constant 0 : index
    %c0_66 = arith.constant 0 : index
    %270 = vector.load %arg6[%c0_65, %c0_66] : memref<16x1xf32, #tpu.memory_space<vmem>>, vector<16x1xf32>
    %271 = vector.broadcast %270 : vector<16x1xf32> to vector<16x136xf32>
    %272 = arith.addf %269, %271 : vector<16x136xf32>
    %cst_67 = arith.constant 0.000000e+00 : f32
    %273 = vector.broadcast %cst_67 : f32 to vector<16x136xf32>
    %274 = arith.maximumf %272, %273 : vector<16x136xf32>
    %275 = vector.extract_strided_slice %274 {offsets = [0, 0], sizes = [16, 121], strides = [1, 1]} : vector<16x136xf32> to vector<16x121xf32>
    %276 = vector.extract_strided_slice %274 {offsets = [0, 1], sizes = [16, 121], strides = [1, 1]} : vector<16x136xf32> to vector<16x121xf32>
    %277 = arith.maximumf %275, %276 : vector<16x121xf32>
    %278 = vector.extract_strided_slice %274 {offsets = [0, 14], sizes = [16, 121], strides = [1, 1]} : vector<16x136xf32> to vector<16x121xf32>
    %279 = vector.extract_strided_slice %274 {offsets = [0, 15], sizes = [16, 121], strides = [1, 1]} : vector<16x136xf32> to vector<16x121xf32>
    %280 = arith.maximumf %278, %279 : vector<16x121xf32>
    %281 = arith.maximumf %277, %280 : vector<16x121xf32>
    %c0_68 = arith.constant 0 : index
    %c0_69 = arith.constant 0 : index
    %282 = vector.load %arg7[%c0_68, %c0_69] : memref<121x25xf32, #tpu.memory_space<vmem>>, vector<121x25xf32>
    %cst_70 = arith.constant dense<0.000000e+00> : vector<16x25xf32>
    %283 = tpu.matmul %281, %282, %cst_70 {dimension_numbers = #tpu.dot_dimension_numbers<[1], [0], [0], [1], [0, 0, 1, 1], [], []>} : vector<16x121xf32>, vector<121x25xf32>, vector<16x25xf32> -> vector<16x25xf32>
    %c0_71 = arith.constant 0 : index
    %c0_72 = arith.constant 0 : index
    %c0_73 = arith.constant 0 : index
    %284 = vector.load %arg8[%c0_71, %c0_72, %c0_73] : memref<16x25x120xf32, #tpu.memory_space<vmem>>, vector<16x25x120xf32>
    %c0_74 = arith.constant 0 : index
    %c0_75 = arith.constant 0 : index
    %285 = vector.load %arg9[%c0_74, %c0_75] : memref<1x120xf32, #tpu.memory_space<vmem>>, vector<1x120xf32>
    %286 = vector.extract_strided_slice %283 {offsets = [0, 0], sizes = [1, 25], strides = [1, 1]} : vector<16x25xf32> to vector<1x25xf32>
    %287 = vector.extract_strided_slice %284 {offsets = [0, 0, 0], sizes = [1, 25, 120], strides = [1, 1, 1]} : vector<16x25x120xf32> to vector<1x25x120xf32>
    %288 = vector.shape_cast %287 : vector<1x25x120xf32> to vector<25x120xf32>
    %cst_76 = arith.constant dense<0.000000e+00> : vector<1x120xf32>
    %289 = tpu.matmul %286, %288, %cst_76 {dimension_numbers = #tpu.dot_dimension_numbers<[1], [0], [0], [1], [0, 0, 1, 1], [], []>} : vector<1x25xf32>, vector<25x120xf32>, vector<1x120xf32> -> vector<1x120xf32>
    %290 = arith.addf %285, %289 : vector<1x120xf32>
    %291 = vector.extract_strided_slice %283 {offsets = [1, 0], sizes = [1, 25], strides = [1, 1]} : vector<16x25xf32> to vector<1x25xf32>
    %292 = vector.extract_strided_slice %284 {offsets = [1, 0, 0], sizes = [1, 25, 120], strides = [1, 1, 1]} : vector<16x25x120xf32> to vector<1x25x120xf32>
    %293 = vector.shape_cast %292 : vector<1x25x120xf32> to vector<25x120xf32>
    %cst_77 = arith.constant dense<0.000000e+00> : vector<1x120xf32>
    %294 = tpu.matmul %291, %293, %cst_77 {dimension_numbers = #tpu.dot_dimension_numbers<[1], [0], [0], [1], [0, 0, 1, 1], [], []>} : vector<1x25xf32>, vector<25x120xf32>, vector<1x120xf32> -> vector<1x120xf32>
    %295 = arith.addf %290, %294 : vector<1x120xf32>
    %296 = vector.extract_strided_slice %283 {offsets = [2, 0], sizes = [1, 25], strides = [1, 1]} : vector<16x25xf32> to vector<1x25xf32>
    %297 = vector.extract_strided_slice %284 {offsets = [2, 0, 0], sizes = [1, 25, 120], strides = [1, 1, 1]} : vector<16x25x120xf32> to vector<1x25x120xf32>
    %298 = vector.shape_cast %297 : vector<1x25x120xf32> to vector<25x120xf32>
    %cst_78 = arith.constant dense<0.000000e+00> : vector<1x120xf32>
    %299 = tpu.matmul %296, %298, %cst_78 {dimension_numbers = #tpu.dot_dimension_numbers<[1], [0], [0], [1], [0, 0, 1, 1], [], []>} : vector<1x25xf32>, vector<25x120xf32>, vector<1x120xf32> -> vector<1x120xf32>
    %300 = arith.addf %295, %299 : vector<1x120xf32>
    %301 = vector.extract_strided_slice %283 {offsets = [3, 0], sizes = [1, 25], strides = [1, 1]} : vector<16x25xf32> to vector<1x25xf32>
    %302 = vector.extract_strided_slice %284 {offsets = [3, 0, 0], sizes = [1, 25, 120], strides = [1, 1, 1]} : vector<16x25x120xf32> to vector<1x25x120xf32>
    %303 = vector.shape_cast %302 : vector<1x25x120xf32> to vector<25x120xf32>
    %cst_79 = arith.constant dense<0.000000e+00> : vector<1x120xf32>
    %304 = tpu.matmul %301, %303, %cst_79 {dimension_numbers = #tpu.dot_dimension_numbers<[1], [0], [0], [1], [0, 0, 1, 1], [], []>} : vector<1x25xf32>, vector<25x120xf32>, vector<1x120xf32> -> vector<1x120xf32>
    %305 = arith.addf %300, %304 : vector<1x120xf32>
    %306 = vector.extract_strided_slice %283 {offsets = [4, 0], sizes = [1, 25], strides = [1, 1]} : vector<16x25xf32> to vector<1x25xf32>
    %307 = vector.extract_strided_slice %284 {offsets = [4, 0, 0], sizes = [1, 25, 120], strides = [1, 1, 1]} : vector<16x25x120xf32> to vector<1x25x120xf32>
    %308 = vector.shape_cast %307 : vector<1x25x120xf32> to vector<25x120xf32>
    %cst_80 = arith.constant dense<0.000000e+00> : vector<1x120xf32>
    %309 = tpu.matmul %306, %308, %cst_80 {dimension_numbers = #tpu.dot_dimension_numbers<[1], [0], [0], [1], [0, 0, 1, 1], [], []>} : vector<1x25xf32>, vector<25x120xf32>, vector<1x120xf32> -> vector<1x120xf32>
    %310 = arith.addf %305, %309 : vector<1x120xf32>
    %311 = vector.extract_strided_slice %283 {offsets = [5, 0], sizes = [1, 25], strides = [1, 1]} : vector<16x25xf32> to vector<1x25xf32>
    %312 = vector.extract_strided_slice %284 {offsets = [5, 0, 0], sizes = [1, 25, 120], strides = [1, 1, 1]} : vector<16x25x120xf32> to vector<1x25x120xf32>
    %313 = vector.shape_cast %312 : vector<1x25x120xf32> to vector<25x120xf32>
    %cst_81 = arith.constant dense<0.000000e+00> : vector<1x120xf32>
    %314 = tpu.matmul %311, %313, %cst_81 {dimension_numbers = #tpu.dot_dimension_numbers<[1], [0], [0], [1], [0, 0, 1, 1], [], []>} : vector<1x25xf32>, vector<25x120xf32>, vector<1x120xf32> -> vector<1x120xf32>
    %315 = arith.addf %310, %314 : vector<1x120xf32>
    %316 = vector.extract_strided_slice %283 {offsets = [6, 0], sizes = [1, 25], strides = [1, 1]} : vector<16x25xf32> to vector<1x25xf32>
    %317 = vector.extract_strided_slice %284 {offsets = [6, 0, 0], sizes = [1, 25, 120], strides = [1, 1, 1]} : vector<16x25x120xf32> to vector<1x25x120xf32>
    %318 = vector.shape_cast %317 : vector<1x25x120xf32> to vector<25x120xf32>
    %cst_82 = arith.constant dense<0.000000e+00> : vector<1x120xf32>
    %319 = tpu.matmul %316, %318, %cst_82 {dimension_numbers = #tpu.dot_dimension_numbers<[1], [0], [0], [1], [0, 0, 1, 1], [], []>} : vector<1x25xf32>, vector<25x120xf32>, vector<1x120xf32> -> vector<1x120xf32>
    %320 = arith.addf %315, %319 : vector<1x120xf32>
    %321 = vector.extract_strided_slice %283 {offsets = [7, 0], sizes = [1, 25], strides = [1, 1]} : vector<16x25xf32> to vector<1x25xf32>
    %322 = vector.extract_strided_slice %284 {offsets = [7, 0, 0], sizes = [1, 25, 120], strides = [1, 1, 1]} : vector<16x25x120xf32> to vector<1x25x120xf32>
    %323 = vector.shape_cast %322 : vector<1x25x120xf32> to vector<25x120xf32>
    %cst_83 = arith.constant dense<0.000000e+00> : vector<1x120xf32>
    %324 = tpu.matmul %321, %323, %cst_83 {dimension_numbers = #tpu.dot_dimension_numbers<[1], [0], [0], [1], [0, 0, 1, 1], [], []>} : vector<1x25xf32>, vector<25x120xf32>, vector<1x120xf32> -> vector<1x120xf32>
    %325 = arith.addf %320, %324 : vector<1x120xf32>
    %326 = vector.extract_strided_slice %283 {offsets = [8, 0], sizes = [1, 25], strides = [1, 1]} : vector<16x25xf32> to vector<1x25xf32>
    %327 = vector.extract_strided_slice %284 {offsets = [8, 0, 0], sizes = [1, 25, 120], strides = [1, 1, 1]} : vector<16x25x120xf32> to vector<1x25x120xf32>
    %328 = vector.shape_cast %327 : vector<1x25x120xf32> to vector<25x120xf32>
    %cst_84 = arith.constant dense<0.000000e+00> : vector<1x120xf32>
    %329 = tpu.matmul %326, %328, %cst_84 {dimension_numbers = #tpu.dot_dimension_numbers<[1], [0], [0], [1], [0, 0, 1, 1], [], []>} : vector<1x25xf32>, vector<25x120xf32>, vector<1x120xf32> -> vector<1x120xf32>
    %330 = arith.addf %325, %329 : vector<1x120xf32>
    %331 = vector.extract_strided_slice %283 {offsets = [9, 0], sizes = [1, 25], strides = [1, 1]} : vector<16x25xf32> to vector<1x25xf32>
    %332 = vector.extract_strided_slice %284 {offsets = [9, 0, 0], sizes = [1, 25, 120], strides = [1, 1, 1]} : vector<16x25x120xf32> to vector<1x25x120xf32>
    %333 = vector.shape_cast %332 : vector<1x25x120xf32> to vector<25x120xf32>
    %cst_85 = arith.constant dense<0.000000e+00> : vector<1x120xf32>
    %334 = tpu.matmul %331, %333, %cst_85 {dimension_numbers = #tpu.dot_dimension_numbers<[1], [0], [0], [1], [0, 0, 1, 1], [], []>} : vector<1x25xf32>, vector<25x120xf32>, vector<1x120xf32> -> vector<1x120xf32>
    %335 = arith.addf %330, %334 : vector<1x120xf32>
    %336 = vector.extract_strided_slice %283 {offsets = [10, 0], sizes = [1, 25], strides = [1, 1]} : vector<16x25xf32> to vector<1x25xf32>
    %337 = vector.extract_strided_slice %284 {offsets = [10, 0, 0], sizes = [1, 25, 120], strides = [1, 1, 1]} : vector<16x25x120xf32> to vector<1x25x120xf32>
    %338 = vector.shape_cast %337 : vector<1x25x120xf32> to vector<25x120xf32>
    %cst_86 = arith.constant dense<0.000000e+00> : vector<1x120xf32>
    %339 = tpu.matmul %336, %338, %cst_86 {dimension_numbers = #tpu.dot_dimension_numbers<[1], [0], [0], [1], [0, 0, 1, 1], [], []>} : vector<1x25xf32>, vector<25x120xf32>, vector<1x120xf32> -> vector<1x120xf32>
    %340 = arith.addf %335, %339 : vector<1x120xf32>
    %341 = vector.extract_strided_slice %283 {offsets = [11, 0], sizes = [1, 25], strides = [1, 1]} : vector<16x25xf32> to vector<1x25xf32>
    %342 = vector.extract_strided_slice %284 {offsets = [11, 0, 0], sizes = [1, 25, 120], strides = [1, 1, 1]} : vector<16x25x120xf32> to vector<1x25x120xf32>
    %343 = vector.shape_cast %342 : vector<1x25x120xf32> to vector<25x120xf32>
    %cst_87 = arith.constant dense<0.000000e+00> : vector<1x120xf32>
    %344 = tpu.matmul %341, %343, %cst_87 {dimension_numbers = #tpu.dot_dimension_numbers<[1], [0], [0], [1], [0, 0, 1, 1], [], []>} : vector<1x25xf32>, vector<25x120xf32>, vector<1x120xf32> -> vector<1x120xf32>
    %345 = arith.addf %340, %344 : vector<1x120xf32>
    %346 = vector.extract_strided_slice %283 {offsets = [12, 0], sizes = [1, 25], strides = [1, 1]} : vector<16x25xf32> to vector<1x25xf32>
    %347 = vector.extract_strided_slice %284 {offsets = [12, 0, 0], sizes = [1, 25, 120], strides = [1, 1, 1]} : vector<16x25x120xf32> to vector<1x25x120xf32>
    %348 = vector.shape_cast %347 : vector<1x25x120xf32> to vector<25x120xf32>
    %cst_88 = arith.constant dense<0.000000e+00> : vector<1x120xf32>
    %349 = tpu.matmul %346, %348, %cst_88 {dimension_numbers = #tpu.dot_dimension_numbers<[1], [0], [0], [1], [0, 0, 1, 1], [], []>} : vector<1x25xf32>, vector<25x120xf32>, vector<1x120xf32> -> vector<1x120xf32>
    %350 = arith.addf %345, %349 : vector<1x120xf32>
    %351 = vector.extract_strided_slice %283 {offsets = [13, 0], sizes = [1, 25], strides = [1, 1]} : vector<16x25xf32> to vector<1x25xf32>
    %352 = vector.extract_strided_slice %284 {offsets = [13, 0, 0], sizes = [1, 25, 120], strides = [1, 1, 1]} : vector<16x25x120xf32> to vector<1x25x120xf32>
    %353 = vector.shape_cast %352 : vector<1x25x120xf32> to vector<25x120xf32>
    %cst_89 = arith.constant dense<0.000000e+00> : vector<1x120xf32>
    %354 = tpu.matmul %351, %353, %cst_89 {dimension_numbers = #tpu.dot_dimension_numbers<[1], [0], [0], [1], [0, 0, 1, 1], [], []>} : vector<1x25xf32>, vector<25x120xf32>, vector<1x120xf32> -> vector<1x120xf32>
    %355 = arith.addf %350, %354 : vector<1x120xf32>
    %356 = vector.extract_strided_slice %283 {offsets = [14, 0], sizes = [1, 25], strides = [1, 1]} : vector<16x25xf32> to vector<1x25xf32>
    %357 = vector.extract_strided_slice %284 {offsets = [14, 0, 0], sizes = [1, 25, 120], strides = [1, 1, 1]} : vector<16x25x120xf32> to vector<1x25x120xf32>
    %358 = vector.shape_cast %357 : vector<1x25x120xf32> to vector<25x120xf32>
    %cst_90 = arith.constant dense<0.000000e+00> : vector<1x120xf32>
    %359 = tpu.matmul %356, %358, %cst_90 {dimension_numbers = #tpu.dot_dimension_numbers<[1], [0], [0], [1], [0, 0, 1, 1], [], []>} : vector<1x25xf32>, vector<25x120xf32>, vector<1x120xf32> -> vector<1x120xf32>
    %360 = arith.addf %355, %359 : vector<1x120xf32>
    %361 = vector.extract_strided_slice %283 {offsets = [15, 0], sizes = [1, 25], strides = [1, 1]} : vector<16x25xf32> to vector<1x25xf32>
    %362 = vector.extract_strided_slice %284 {offsets = [15, 0, 0], sizes = [1, 25, 120], strides = [1, 1, 1]} : vector<16x25x120xf32> to vector<1x25x120xf32>
    %363 = vector.shape_cast %362 : vector<1x25x120xf32> to vector<25x120xf32>
    %cst_91 = arith.constant dense<0.000000e+00> : vector<1x120xf32>
    %364 = tpu.matmul %361, %363, %cst_91 {dimension_numbers = #tpu.dot_dimension_numbers<[1], [0], [0], [1], [0, 0, 1, 1], [], []>} : vector<1x25xf32>, vector<25x120xf32>, vector<1x120xf32> -> vector<1x120xf32>
    %365 = arith.addf %360, %364 : vector<1x120xf32>
    %cst_92 = arith.constant 0.000000e+00 : f32
    %366 = vector.broadcast %cst_92 : f32 to vector<1x120xf32>
    %367 = arith.maximumf %365, %366 : vector<1x120xf32>
    %c0_93 = arith.constant 0 : index
    %c0_94 = arith.constant 0 : index
    %368 = vector.load %arg10[%c0_93, %c0_94] : memref<120x84xf32, #tpu.memory_space<vmem>>, vector<120x84xf32>
    %cst_95 = arith.constant dense<0.000000e+00> : vector<1x84xf32>
    %369 = tpu.matmul %367, %368, %cst_95 {dimension_numbers = #tpu.dot_dimension_numbers<[1], [0], [0], [1], [0, 0, 1, 1], [], []>} : vector<1x120xf32>, vector<120x84xf32>, vector<1x84xf32> -> vector<1x84xf32>
    %c0_96 = arith.constant 0 : index
    %c0_97 = arith.constant 0 : index
    %370 = vector.load %arg11[%c0_96, %c0_97] : memref<1x84xf32, #tpu.memory_space<vmem>>, vector<1x84xf32>
    %371 = arith.addf %369, %370 : vector<1x84xf32>
    %cst_98 = arith.constant 0.000000e+00 : f32
    %372 = vector.broadcast %cst_98 : f32 to vector<1x84xf32>
    %373 = arith.maximumf %371, %372 : vector<1x84xf32>
    %c0_99 = arith.constant 0 : index
    %c0_100 = arith.constant 0 : index
    %374 = vector.load %arg12[%c0_99, %c0_100] : memref<84x10xf32, #tpu.memory_space<vmem>>, vector<84x10xf32>
    %cst_101 = arith.constant dense<0.000000e+00> : vector<1x10xf32>
    %375 = tpu.matmul %373, %374, %cst_101 {dimension_numbers = #tpu.dot_dimension_numbers<[1], [0], [0], [1], [0, 0, 1, 1], [], []>} : vector<1x84xf32>, vector<84x10xf32>, vector<1x10xf32> -> vector<1x10xf32>
    %c0_102 = arith.constant 0 : index
    %c0_103 = arith.constant 0 : index
    %376 = vector.load %arg13[%c0_102, %c0_103] : memref<1x10xf32, #tpu.memory_space<vmem>>, vector<1x10xf32>
    %377 = arith.addf %375, %376 : vector<1x10xf32>
    %378 = vector.shape_cast %377 : vector<1x10xf32> to vector<1x1x10xf32>
    %c0_104 = arith.constant 0 : index
    %c0_105 = arith.constant 0 : index
    %c0_106 = arith.constant 0 : index
    %379 = vector.load %arg14[%c0_104, %c0_105, %c0_106] : memref<1x1x10xf32, #tpu.memory_space<vmem>>, vector<1x1x10xf32>
    tpu.vector_store %arg14[%c0_104, %c0_105, %c0_106], %378 {strides = array<i32>} : memref<1x1x10xf32, #tpu.memory_space<vmem>>, vector<1x1x10xf32>,
    return
  }
  func.func @transform_0(%arg0: i32) -> (i32, i32, i32) {
    %c0_i32 = arith.constant 0 : i32
    %c0_i32_0 = arith.constant 0 : i32
    %c0_i32_1 = arith.constant 0 : i32
    return %arg0, %c0_i32, %c0_i32_0 : i32, i32, i32
  }
  func.func @transform_1(%arg0: i32) -> (i32, i32, i32) {
    %c0_i32 = arith.constant 0 : i32
    %c0_i32_0 = arith.constant 0 : i32
    %c0_i32_1 = arith.constant 0 : i32
    %c0_i32_2 = arith.constant 0 : i32
    return %c0_i32, %c0_i32_0, %c0_i32_1 : i32, i32, i32
  }
  func.func @transform_2(%arg0: i32) -> (i32, i32) {
    %c0_i32 = arith.constant 0 : i32
    %c0_i32_0 = arith.constant 0 : i32
    %c0_i32_1 = arith.constant 0 : i32
    return %c0_i32, %c0_i32_0 : i32, i32
  }
  func.func @transform_3(%arg0: i32) -> (i32, i32) {
    %c0_i32 = arith.constant 0 : i32
    %c0_i32_0 = arith.constant 0 : i32
    %c0_i32_1 = arith.constant 0 : i32
    return %c0_i32, %c0_i32_0 : i32, i32
  }
  func.func @transform_4(%arg0: i32) -> (i32, i32, i32) {
    %c0_i32 = arith.constant 0 : i32
    %c0_i32_0 = arith.constant 0 : i32
    %c0_i32_1 = arith.constant 0 : i32
    %c0_i32_2 = arith.constant 0 : i32
    return %c0_i32, %c0_i32_0, %c0_i32_1 : i32, i32, i32
  }
  func.func @transform_5(%arg0: i32) -> (i32, i32) {
    %c0_i32 = arith.constant 0 : i32
    %c0_i32_0 = arith.constant 0 : i32
    %c0_i32_1 = arith.constant 0 : i32
    return %c0_i32, %c0_i32_0 : i32, i32
  }
  func.func @transform_6(%arg0: i32) -> (i32, i32) {
    %c0_i32 = arith.constant 0 : i32
    %c0_i32_0 = arith.constant 0 : i32
    %c0_i32_1 = arith.constant 0 : i32
    return %c0_i32, %c0_i32_0 : i32, i32
  }
  func.func @transform_7(%arg0: i32) -> (i32, i32, i32) {
    %c0_i32 = arith.constant 0 : i32
    %c0_i32_0 = arith.constant 0 : i32
    %c0_i32_1 = arith.constant 0 : i32
    %c0_i32_2 = arith.constant 0 : i32
    return %c0_i32, %c0_i32_0, %c0_i32_1 : i32, i32, i32
  }
  func.func @transform_8(%arg0: i32) -> (i32, i32) {
    %c0_i32 = arith.constant 0 : i32
    %c0_i32_0 = arith.constant 0 : i32
    %c0_i32_1 = arith.constant 0 : i32
    return %c0_i32, %c0_i32_0 : i32, i32
  }
  func.func @transform_9(%arg0: i32) -> (i32, i32) {
    %c0_i32 = arith.constant 0 : i32
    %c0_i32_0 = arith.constant 0 : i32
    %c0_i32_1 = arith.constant 0 : i32
    return %c0_i32, %c0_i32_0 : i32, i32
  }
  func.func @transform_10(%arg0: i32) -> (i32, i32) {
    %c0_i32 = arith.constant 0 : i32
    %c0_i32_0 = arith.constant 0 : i32
    %c0_i32_1 = arith.constant 0 : i32
    return %c0_i32, %c0_i32_0 : i32, i32
  }
  func.func @transform_11(%arg0: i32) -> (i32, i32) {
    %c0_i32 = arith.constant 0 : i32
    %c0_i32_0 = arith.constant 0 : i32
    %c0_i32_1 = arith.constant 0 : i32
    return %c0_i32, %c0_i32_0 : i32, i32
  }
  func.func @transform_12(%arg0: i32) -> (i32, i32) {
    %c0_i32 = arith.constant 0 : i32
    %c0_i32_0 = arith.constant 0 : i32
    %c0_i32_1 = arith.constant 0 : i32
    return %c0_i32, %c0_i32_0 : i32, i32
  }
  func.func @transform_13(%arg0: i32) -> (i32, i32, i32) {
    %c0_i32 = arith.constant 0 : i32
    %c0_i32_0 = arith.constant 0 : i32
    %c0_i32_1 = arith.constant 0 : i32
    return %arg0, %c0_i32, %c0_i32_0 : i32, i32, i32
  }
}

</mosaic_0001>

<llo_original>
// kernel: cifarnet_forward.1
$region0: #{cifarnet_forward.1}
  #allocation0 [shape = 'u32[]', space=smem, size = 0x4, offset = 0x4, fixed_abs, tag = 'smem constant byte address 0x4 - core index']
  #allocation1 [shape = 'u32[72,128]{1,0:T(1,128)}', space=vmem, size = 0x9000, scoped, tag = 'internal scratch']
  %s0 = inlined_call_operand.vmem [shape: f32[2,3,1024], index: 0, kind: input, shape index: {}]
  %s1 = inlined_call_operand.vmem [shape: f32[25,6,3], index: 1, kind: input, shape index: {}]
  %s2 = inlined_call_operand.vmem [shape: f32[6,1], index: 2, kind: input, shape index: {}]
  %s3 = inlined_call_operand.vmem [shape: f32[859,196], index: 3, kind: input, shape index: {}]
  %s4 = inlined_call_operand.vmem [shape: f32[25,16,6], index: 4, kind: input, shape index: {}]
  %s5 = inlined_call_operand.vmem [shape: f32[16,1], index: 5, kind: input, shape index: {}]
  %s6 = inlined_call_operand.vmem [shape: f32[121,25], index: 6, kind: input, shape index: {}]
  %s7 = inlined_call_operand.vmem [shape: f32[16,25,120], index: 7, kind: input, shape index: {}]
  %s8 = inlined_call_operand.vmem [shape: f32[1,120], index: 8, kind: input, shape index: {}]
  %s9 = inlined_call_operand.vmem [shape: f32[120,84], index: 9, kind: input, shape index: {}]
  %s10 = inlined_call_operand.vmem [shape: f32[1,84], index: 10, kind: input, shape index: {}]
  %s11 = inlined_call_operand.vmem [shape: f32[84,10], index: 11, kind: input, shape index: {}]
  %s12 = inlined_call_operand.vmem [shape: f32[1,10], index: 12, kind: input, shape index: {}]
  %s13 = inlined_call_operand.hbm [shape: f32[2,1,10], index: 13, kind: output, shape index: {}]
  %s14 = sld [smem:[#allocation0]]
  $region85: #{cifarnet_forward.1} parent=0
    _
  %s16 = ssub.s32 1, %s14
  %s17 = scalar_select 0, %s16, %s14
  $region1: #{cifarnet_forward.1} parent=0
    #allocation2 [shape = 'u8[1024]{0}', space=vmem, size = 0x400, scoped, tag = 'output window, operand 0']
    #allocation3 [shape = 's32[2]{0}', space=sflag, size = 0x8, scoped, tag = 'scoped memory for cifarnet_forward.1']
    %18 = vsyncpa [#allocation3], 0
    %s19 = scalar_lea.sflag [#allocation3], 1
    %20 = vsyncpa %s19, 0
    loop: start=0, step=1, limit=4
    $region2: #{cifarnet_forward.1} parent=1 // loop_pre_header
      _
    $region3: #{cifarnet_forward.1} parent=1 // loop_header
      %s22 = sphi 0, %s26
      %p23 = scmp.ge.s32.totalorder %s22, 4
      %s32 = sphi 0, %s34
      %s35 = sphi 0, %s32
      %s36 = sphi 0, %s35
      %s52 = sphi 0, %s36
      %s56 = sphi 0, %s56
      %s58 = sphi 0, %s56
      %s59 = sphi 0, %s58
      %s73 = sphi 0, %s59
      %s77 = sphi 0, %s77
      %s79 = sphi 0, %s77
      %s80 = sphi 0, %s79
      %s94 = sphi 0, %s80
      %s98 = sphi 0, %s98
      %s100 = sphi 0, %s98
      %s101 = sphi 0, %s100
      %s115 = sphi 0, %s101
      %s119 = sphi 0, %s119
      %s121 = sphi 0, %s119
      %s122 = sphi 0, %s121
      %s136 = sphi 0, %s122
      %s140 = sphi 0, %s140
      %s142 = sphi 0, %s140
      %s143 = sphi 0, %s142
      %s157 = sphi 0, %s143
      %s161 = sphi 0, %s161
      %s163 = sphi 0, %s161
      %s164 = sphi 0, %s163
      %s178 = sphi 0, %s164
      %s182 = sphi 0, %s182
      %s184 = sphi 0, %s182
      %s185 = sphi 0, %s184
      %s199 = sphi 0, %s185
      %s203 = sphi 0, %s203
      %s205 = sphi 0, %s203
      %s206 = sphi 0, %s205
      %s220 = sphi 0, %s206
      %s224 = sphi 0, %s224
      %s226 = sphi 0, %s224
      %s227 = sphi 0, %s226
      %s241 = sphi 0, %s227
      %s245 = sphi 0, %s245
      %s247 = sphi 0, %s245
      %s248 = sphi 0, %s247
      %s262 = sphi 0, %s248
      %s266 = sphi 0, %s266
      %s268 = sphi 0, %s266
      %s269 = sphi 0, %s268
      %s283 = sphi 0, %s269
      %s287 = sphi 0, %s287
      %s289 = sphi 0, %s287
      %s290 = sphi 0, %s289
      %s304 = sphi 0, %s290
      %s310 = sphi 0, %s312
      %s313 = sphi 0, %s310
      %s314 = sphi 0, %s313
      %s330 = sphi 0, %s314
    $region4: #{cifarnet_forward.1} parent=1 // loop_header_branch
      %25 = sbr.rel (%p23) target = $region8
    $region5: #{cifarnet_forward.1} parent=1 // loop_body
      %s27 = ssub.s32 %s22, 1
      %s28 = ssub.s32 %s22, 2
      %s29 = sadd.s32 %s22, 1
      %s30 = ssub.s32 %s22, %s29
      %p31 = scmp.eq.s32.totalorder %s30, 0
      %s33 = sadd.s32 %s32, 1
      %s34 = scalar_select %p31, %s32, %s33
      %p37 = pneg %p31
      %p38 = scmp.eq.s32.totalorder %s22, 1
      %p39 = por %p37, %p38
      %p40 = scmp.ne.s32.totalorder %s32, %s35
      %p41 = scmp.eq.s32.totalorder %s22, 0
      %p42 = por %p40, %p41
      %p43 = scmp.ne.s32.totalorder %s32, %s35
      %p44 = scmp.eq.s32.totalorder %s27, 1
      %p45 = por %p43, %p44
      %p46 = scmp.ne.s32.totalorder %s35, %s36
      %p47 = scmp.eq.s32.totalorder %s27, 0
      %p48 = por %p46, %p47
      %p49 = scmp.ne.s32.totalorder %s35, %s36
      %p50 = scmp.eq.s32.totalorder %s28, 1
      %p51 = por %p49, %p50
      %p53 = scmp.ne.s32.totalorder %s36, %s52
      %p54 = scmp.eq.s32.totalorder %s28, 0
      %p55 = por %p53, %p54
      %s57 = sadd.s32 %s56, 1
      %p60 = scmp.eq.s32.totalorder %s22, 1
      %p61 = scmp.ne.s32.totalorder %s56, %s58
      %p62 = scmp.eq.s32.totalorder %s22, 0
      %p63 = por %p61, %p62
      %p64 = scmp.ne.s32.totalorder %s56, %s58
      %p65 = scmp.eq.s32.totalorder %s27, 1
      %p66 = por %p64, %p65
      %p67 = scmp.ne.s32.totalorder %s58, %s59
      %p68 = scmp.eq.s32.totalorder %s27, 0
      %p69 = por %p67, %p68
      %p70 = scmp.ne.s32.totalorder %s58, %s59
      %p71 = scmp.eq.s32.totalorder %s28, 1
      %p72 = por %p70, %p71
      %p74 = scmp.ne.s32.totalorder %s59, %s73
      %p75 = scmp.eq.s32.totalorder %s28, 0
      %p76 = por %p74, %p75
      %s78 = sadd.s32 %s77, 1
      %p81 = scmp.eq.s32.totalorder %s22, 1
      %p82 = scmp.ne.s32.totalorder %s77, %s79
      %p83 = scmp.eq.s32.totalorder %s22, 0
      %p84 = por %p82, %p83
      %p85 = scmp.ne.s32.totalorder %s77, %s79
      %p86 = scmp.eq.s32.totalorder %s27, 1
      %p87 = por %p85, %p86
      %p88 = scmp.ne.s32.totalorder %s79, %s80
      %p89 = scmp.eq.s32.totalorder %s27, 0
      %p90 = por %p88, %p89
      %p91 = scmp.ne.s32.totalorder %s79, %s80
      %p92 = scmp.eq.s32.totalorder %s28, 1
      %p93 = por %p91, %p92
      %p95 = scmp.ne.s32.totalorder %s80, %s94
      %p96 = scmp.eq.s32.totalorder %s28, 0
      %p97 = por %p95, %p96
      %s99 = sadd.s32 %s98, 1
      %p102 = scmp.eq.s32.totalorder %s22, 1
      %p103 = scmp.ne.s32.totalorder %s98, %s100
      %p104 = scmp.eq.s32.totalorder %s22, 0
      %p105 = por %p103, %p104
      %p106 = scmp.ne.s32.totalorder %s98, %s100
      %p107 = scmp.eq.s32.totalorder %s27, 1
      %p108 = por %p106, %p107
      %p109 = scmp.ne.s32.totalorder %s100, %s101
      %p110 = scmp.eq.s32.totalorder %s27, 0
      %p111 = por %p109, %p110
      %p112 = scmp.ne.s32.totalorder %s100, %s101
      %p113 = scmp.eq.s32.totalorder %s28, 1
      %p114 = por %p112, %p113
      %p116 = scmp.ne.s32.totalorder %s101, %s115
      %p117 = scmp.eq.s32.totalorder %s28, 0
      %p118 = por %p116, %p117
      %s120 = sadd.s32 %s119, 1
      %p123 = scmp.eq.s32.totalorder %s22, 1
      %p124 = scmp.ne.s32.totalorder %s119, %s121
      %p125 = scmp.eq.s32.totalorder %s22, 0
      %p126 = por %p124, %p125
      %p127 = scmp.ne.s32.totalorder %s119, %s121
      %p128 = scmp.eq.s32.totalorder %s27, 1
      %p129 = por %p127, %p128
      %p130 = scmp.ne.s32.totalorder %s121, %s122
      %p131 = scmp.eq.s32.totalorder %s27, 0
      %p132 = por %p130, %p131
      %p133 = scmp.ne.s32.totalorder %s121, %s122
      %p134 = scmp.eq.s32.totalorder %s28, 1
      %p135 = por %p133, %p134
      %p137 = scmp.ne.s32.totalorder %s122, %s136
      %p138 = scmp.eq.s32.totalorder %s28, 0
      %p139 = por %p137, %p138
      %s141 = sadd.s32 %s140, 1
      %p144 = scmp.eq.s32.totalorder %s22, 1
      %p145 = scmp.ne.s32.totalorder %s140, %s142
      %p146 = scmp.eq.s32.totalorder %s22, 0
      %p147 = por %p145, %p146
      %p148 = scmp.ne.s32.totalorder %s140, %s142
      %p149 = scmp.eq.s32.totalorder %s27, 1
      %p150 = por %p148, %p149
      %p151 = scmp.ne.s32.totalorder %s142, %s143
      %p152 = scmp.eq.s32.totalorder %s27, 0
      %p153 = por %p151, %p152
      %p154 = scmp.ne.s32.totalorder %s142, %s143
      %p155 = scmp.eq.s32.totalorder %s28, 1
      %p156 = por %p154, %p155
      %p158 = scmp.ne.s32.totalorder %s143, %s157
      %p159 = scmp.eq.s32.totalorder %s28, 0
      %p160 = por %p158, %p159
      %s162 = sadd.s32 %s161, 1
      %p165 = scmp.eq.s32.totalorder %s22, 1
      %p166 = scmp.ne.s32.totalorder %s161, %s163
      %p167 = scmp.eq.s32.totalorder %s22, 0
      %p168 = por %p166, %p167
      %p169 = scmp.ne.s32.totalorder %s161, %s163
      %p170 = scmp.eq.s32.totalorder %s27, 1
      %p171 = por %p169, %p170
      %p172 = scmp.ne.s32.totalorder %s163, %s164
      %p173 = scmp.eq.s32.totalorder %s27, 0
      %p174 = por %p172, %p173
      %p175 = scmp.ne.s32.totalorder %s163, %s164
      %p176 = scmp.eq.s32.totalorder %s28, 1
      %p177 = por %p175, %p176
      %p179 = scmp.ne.s32.totalorder %s164, %s178
      %p180 = scmp.eq.s32.totalorder %s28, 0
      %p181 = por %p179, %p180
      %s183 = sadd.s32 %s182, 1
      %p186 = scmp.eq.s32.totalorder %s22, 1
      %p187 = scmp.ne.s32.totalorder %s182, %s184
      %p188 = scmp.eq.s32.totalorder %s22, 0
      %p189 = por %p187, %p188
      %p190 = scmp.ne.s32.totalorder %s182, %s184
      %p191 = scmp.eq.s32.totalorder %s27, 1
      %p192 = por %p190, %p191
      %p193 = scmp.ne.s32.totalorder %s184, %s185
      %p194 = scmp.eq.s32.totalorder %s27, 0
      %p195 = por %p193, %p194
      %p196 = scmp.ne.s32.totalorder %s184, %s185
      %p197 = scmp.eq.s32.totalorder %s28, 1
      %p198 = por %p196, %p197
      %p200 = scmp.ne.s32.totalorder %s185, %s199
      %p201 = scmp.eq.s32.totalorder %s28, 0
      %p202 = por %p200, %p201
      %s204 = sadd.s32 %s203, 1
      %p207 = scmp.eq.s32.totalorder %s22, 1
      %p208 = scmp.ne.s32.totalorder %s203, %s205
      %p209 = scmp.eq.s32.totalorder %s22, 0
      %p210 = por %p208, %p209
      %p211 = scmp.ne.s32.totalorder %s203, %s205
      %p212 = scmp.eq.s32.totalorder %s27, 1
      %p213 = por %p211, %p212
      %p214 = scmp.ne.s32.totalorder %s205, %s206
      %p215 = scmp.eq.s32.totalorder %s27, 0
      %p216 = por %p214, %p215
      %p217 = scmp.ne.s32.totalorder %s205, %s206
      %p218 = scmp.eq.s32.totalorder %s28, 1
      %p219 = por %p217, %p218
      %p221 = scmp.ne.s32.totalorder %s206, %s220
      %p222 = scmp.eq.s32.totalorder %s28, 0
      %p223 = por %p221, %p222
      %s225 = sadd.s32 %s224, 1
      %p228 = scmp.eq.s32.totalorder %s22, 1
      %p229 = scmp.ne.s32.totalorder %s224, %s226
      %p230 = scmp.eq.s32.totalorder %s22, 0
      %p231 = por %p229, %p230
      %p232 = scmp.ne.s32.totalorder %s224, %s226
      %p233 = scmp.eq.s32.totalorder %s27, 1
      %p234 = por %p232, %p233
      %p235 = scmp.ne.s32.totalorder %s226, %s227
      %p236 = scmp.eq.s32.totalorder %s27, 0
      %p237 = por %p235, %p236
      %p238 = scmp.ne.s32.totalorder %s226, %s227
      %p239 = scmp.eq.s32.totalorder %s28, 1
      %p240 = por %p238, %p239
      %p242 = scmp.ne.s32.totalorder %s227, %s241
      %p243 = scmp.eq.s32.totalorder %s28, 0
      %p244 = por %p242, %p243
      %s246 = sadd.s32 %s245, 1
      %p249 = scmp.eq.s32.totalorder %s22, 1
      %p250 = scmp.ne.s32.totalorder %s245, %s247
      %p251 = scmp.eq.s32.totalorder %s22, 0
      %p252 = por %p250, %p251
      %p253 = scmp.ne.s32.totalorder %s245, %s247
      %p254 = scmp.eq.s32.totalorder %s27, 1
      %p255 = por %p253, %p254
      %p256 = scmp.ne.s32.totalorder %s247, %s248
      %p257 = scmp.eq.s32.totalorder %s27, 0
      %p258 = por %p256, %p257
      %p259 = scmp.ne.s32.totalorder %s247, %s248
      %p260 = scmp.eq.s32.totalorder %s28, 1
      %p261 = por %p259, %p260
      %p263 = scmp.ne.s32.totalorder %s248, %s262
      %p264 = scmp.eq.s32.totalorder %s28, 0
      %p265 = por %p263, %p264
      %s267 = sadd.s32 %s266, 1
      %p270 = scmp.eq.s32.totalorder %s22, 1
      %p271 = scmp.ne.s32.totalorder %s266, %s268
      %p272 = scmp.eq.s32.totalorder %s22, 0
      %p273 = por %p271, %p272
      %p274 = scmp.ne.s32.totalorder %s266, %s268
      %p275 = scmp.eq.s32.totalorder %s27, 1
      %p276 = por %p274, %p275
      %p277 = scmp.ne.s32.totalorder %s268, %s269
      %p278 = scmp.eq.s32.totalorder %s27, 0
      %p279 = por %p277, %p278
      %p280 = scmp.ne.s32.totalorder %s268, %s269
      %p281 = scmp.eq.s32.totalorder %s28, 1
      %p282 = por %p280, %p281
      %p284 = scmp.ne.s32.totalorder %s269, %s283
      %p285 = scmp.eq.s32.totalorder %s28, 0
      %p286 = por %p284, %p285
      %s288 = sadd.s32 %s287, 1
      %p291 = scmp.eq.s32.totalorder %s22, 1
      %p292 = scmp.ne.s32.totalorder %s287, %s289
      %p293 = scmp.eq.s32.totalorder %s22, 0
      %p294 = por %p292, %p293
      %p295 = scmp.ne.s32.totalorder %s287, %s289
      %p296 = scmp.eq.s32.totalorder %s27, 1
      %p297 = por %p295, %p296
      %p298 = scmp.ne.s32.totalorder %s289, %s290
      %p299 = scmp.eq.s32.totalorder %s27, 0
      %p300 = por %p298, %p299
      %p301 = scmp.ne.s32.totalorder %s289, %s290
      %p302 = scmp.eq.s32.totalorder %s28, 1
      %p303 = por %p301, %p302
      %p305 = scmp.ne.s32.totalorder %s290, %s304
      %p306 = scmp.eq.s32.totalorder %s28, 0
      %p307 = por %p305, %p306
      %s308 = ssub.s32 %s22, %s29
      %p309 = scmp.eq.s32.totalorder %s308, 0
      %s311 = sadd.s32 %s310, 1
      %s312 = scalar_select %p309, %s310, %s311
      %p315 = pneg %p309
      %p316 = scmp.eq.s32.totalorder %s22, 1
      %p317 = por %p315, %p316
      %p318 = scmp.ne.s32.totalorder %s310, %s313
      %p319 = scmp.eq.s32.totalorder %s22, 0
      %p320 = por %p318, %p319
      %p321 = scmp.ne.s32.totalorder %s310, %s313
      %p322 = scmp.eq.s32.totalorder %s27, 1
      %p323 = por %p321, %p322
      %p324 = scmp.ne.s32.totalorder %s313, %s314
      %p325 = scmp.eq.s32.totalorder %s27, 0
      %p326 = por %p324, %p325
      %p327 = scmp.ne.s32.totalorder %s313, %s314
      %p328 = scmp.eq.s32.totalorder %s28, 1
      %p329 = por %p327, %p328
      %p331 = scmp.ne.s32.totalorder %s314, %s330
      %p332 = scmp.eq.s32.totalorder %s28, 0
      %p333 = por %p331, %p332
      %p334 = scmp.le.s32.totalorder 1, %s22
      %p335 = scmp.lt.s32.totalorder %s22, 3
      %p336 = pnand %p334, %p335
      %p337 = pneg %p336
      // Predicated region
      $region9: #{cifarnet_forward.1} parent=5 // pred_check
        _
      $region10: #{cifarnet_forward.1} parent=5 // pred_check_branch
        %339 = sbr.rel (%p336) target = $region12
      $region11: #{cifarnet_forward.1} parent=5 // pred_region
        %s340 = ssub.s32 %s22, 1
        // Predicated region
        $region13: #{cifarnet_forward.1} parent=11 // pred_check
          %p341 = pneg %p69
        $region14: #{cifarnet_forward.1} parent=11 // pred_check_branch
          %343 = sbr.rel (%p341) target = $region16
        $region15: #{cifarnet_forward.1} parent=11 // pred_region
          _
        $region16: #{cifarnet_forward.1} parent=11 // pred_fallthru
          _
        // Predicated region
        $region17: #{cifarnet_forward.1} parent=11 // pred_check
          %p344 = pneg %p90
        $region18: #{cifarnet_forward.1} parent=11 // pred_check_branch
          %346 = sbr.rel (%p344) target = $region20
        $region19: #{cifarnet_forward.1} parent=11 // pred_region
          _
        $region20: #{cifarnet_forward.1} parent=11 // pred_fallthru
          _
        // Predicated region
        $region21: #{cifarnet_forward.1} parent=11 // pred_check
          %p347 = pneg %p111
        $region22: #{cifarnet_forward.1} parent=11 // pred_check_branch
          %349 = sbr.rel (%p347) target = $region24
        $region23: #{cifarnet_forward.1} parent=11 // pred_region
          _
        $region24: #{cifarnet_forward.1} parent=11 // pred_fallthru
          _
        // Predicated region
        $region25: #{cifarnet_forward.1} parent=11 // pred_check
          %p350 = pneg %p132
        $region26: #{cifarnet_forward.1} parent=11 // pred_check_branch
          %352 = sbr.rel (%p350) target = $region28
        $region27: #{cifarnet_forward.1} parent=11 // pred_region
          _
        $region28: #{cifarnet_forward.1} parent=11 // pred_fallthru
          _
        // Predicated region
        $region29: #{cifarnet_forward.1} parent=11 // pred_check
          %p353 = pneg %p153
        $region30: #{cifarnet_forward.1} parent=11 // pred_check_branch
          %355 = sbr.rel (%p353) target = $region32
        $region31: #{cifarnet_forward.1} parent=11 // pred_region
          _
        $region32: #{cifarnet_forward.1} parent=11 // pred_fallthru
          _
        // Predicated region
        $region33: #{cifarnet_forward.1} parent=11 // pred_check
          %p356 = pneg %p174
        $region34: #{cifarnet_forward.1} parent=11 // pred_check_branch
          %358 = sbr.rel (%p356) target = $region36
        $region35: #{cifarnet_forward.1} parent=11 // pred_region
          _
        $region36: #{cifarnet_forward.1} parent=11 // pred_fallthru
          _
        // Predicated region
        $region37: #{cifarnet_forward.1} parent=11 // pred_check
          %p359 = pneg %p195
        $region38: #{cifarnet_forward.1} parent=11 // pred_check_branch
          %361 = sbr.rel (%p359) target = $region40
        $region39: #{cifarnet_forward.1} parent=11 // pred_region
          _
        $region40: #{cifarnet_forward.1} parent=11 // pred_fallthru
          _
        // Predicated region
        $region41: #{cifarnet_forward.1} parent=11 // pred_check
          %p362 = pneg %p216
        $region42: #{cifarnet_forward.1} parent=11 // pred_check_branch
          %364 = sbr.rel (%p362) target = $region44
        $region43: #{cifarnet_forward.1} parent=11 // pred_region
          _
        $region44: #{cifarnet_forward.1} parent=11 // pred_fallthru
          _
        // Predicated region
        $region45: #{cifarnet_forward.1} parent=11 // pred_check
          %p365 = pneg %p237
        $region46: #{cifarnet_forward.1} parent=11 // pred_check_branch
          %367 = sbr.rel (%p365) target = $region48
        $region47: #{cifarnet_forward.1} parent=11 // pred_region
          _
        $region48: #{cifarnet_forward.1} parent=11 // pred_fallthru
          _
        // Predicated region
        $region49: #{cifarnet_forward.1} parent=11 // pred_check
          %p368 = pneg %p258
        $region50: #{cifarnet_forward.1} parent=11 // pred_check_branch
          %370 = sbr.rel (%p368) target = $region52
        $region51: #{cifarnet_forward.1} parent=11 // pred_region
          _
        $region52: #{cifarnet_forward.1} parent=11 // pred_fallthru
          _
        // Predicated region
        $region53: #{cifarnet_forward.1} parent=11 // pred_check
          %p371 = pneg %p279
        $region54: #{cifarnet_forward.1} parent=11 // pred_check_branch
          %373 = sbr.rel (%p371) target = $region56
        $region55: #{cifarnet_forward.1} parent=11 // pred_region
          _
        $region56: #{cifarnet_forward.1} parent=11 // pred_fallthru
          _
        // Predicated region
        $region57: #{cifarnet_forward.1} parent=11 // pred_check
          %p374 = pneg %p300
        $region58: #{cifarnet_forward.1} parent=11 // pred_check_branch
          %376 = sbr.rel (%p374) target = $region60
        $region59: #{cifarnet_forward.1} parent=11 // pred_region
          _
        $region60: #{cifarnet_forward.1} parent=11 // pred_fallthru
          _
      $region12: #{cifarnet_forward.1} parent=5 // pred_fallthru
        _
      %p377 = scmp.lt.s32.totalorder %s22, 2
      // Predicated region
      $region61: #{cifarnet_forward.1} parent=5 // pred_check
        %p378 = pneg %p377
      $region62: #{cifarnet_forward.1} parent=5 // pred_check_branch
        %380 = sbr.rel (%p378) target = $region64
      $region63: #{cifarnet_forward.1} parent=5 // pred_region
        // Predicated region
        $region65: #{cifarnet_forward.1} parent=63 // pred_check
          %p381 = pneg %p42
        $region66: #{cifarnet_forward.1} parent=63 // pred_check_branch
          %383 = sbr.rel (%p381) target = $region68
        $region67: #{cifarnet_forward.1} parent=63 // pred_region
          %p384 = scmp.lt.s32.totalorder %s22, 1
          %s385 = scalar_select %p384, %s22, 1
          %s386 = smul.addr %s385, 8
          %s387 = smul.addr %s386, 4
          %s388 = scalar_lea.vmem %s0, %s387
        $region68: #{cifarnet_forward.1} parent=63 // pred_fallthru
          _
      $region64: #{cifarnet_forward.1} parent=5 // pred_fallthru
        _
      %p389 = scmp.le.s32.totalorder 1, %s22
      %p390 = scmp.lt.s32.totalorder %s22, 3
      %p391 = pnand %p389, %p390
      %p392 = pneg %p391
      // Predicated region
      $region69: #{cifarnet_forward.1} parent=5 // pred_check
        _
      $region70: #{cifarnet_forward.1} parent=5 // pred_check_branch
        %394 = sbr.rel (%p391) target = $region72
      $region71: #{cifarnet_forward.1} parent=5 // pred_region
        %s395 = ssub.s32 %s22, 1
        %p396 = scmp.lt.s32.totalorder %s27, 1
        %s397 = scalar_select %p396, %s27, 1
        %s398 = smul.addr %s397, 8
        %s399 = smul.addr %s398, 4
        %s400 = scalar_lea.vmem %s0, %s399
        %p401 = pneg %p48
        %p402 = pneg %p45
        %p403 = pneg %p69
        %p404 = pneg %p66
        %p405 = pneg %p90
        %p406 = pneg %p87
        %p407 = pneg %p111
        %p408 = pneg %p108
        %p409 = pneg %p132
        %p410 = pneg %p129
        %p411 = pneg %p153
        %p412 = pneg %p150
        %p413 = pneg %p174
        %p414 = pneg %p171
        %p415 = pneg %p195
        %p416 = pneg %p192
        %p417 = pneg %p216
        %p418 = pneg %p213
        %p419 = pneg %p237
        %p420 = pneg %p234
        %p421 = pneg %p258
        %p422 = pneg %p255
        %p423 = pneg %p279
        %p424 = pneg %p276
        %p425 = pneg %p300
        %p426 = pneg %p297
        %p427 = pneg %p326
        %p428 = pneg %p323
        %s429 = sand.u32 %s313, 1
        %s430 = scalar_lea.sflag [#allocation3], %s429
        %s431 = sand.u32 %s313, 1
        %s432 = scalar_lea.vmem [#allocation2], %s431
        %p433 = scmp.lt.s32.totalorder %s27, 1
        %s434 = scalar_select %p433, %s27, 1
        %s435 = smul.addr %s434, 8
        %s436 = smul.addr %s435, 4
        %s437 = scalar_lea.vmem %s0, %s436
        %v438 = vld [vmem:[%s437] sm:$0x77]
        %v439 = vld [vmem:[%s437 + $0x8] sm:$0x77]
        %v440 = vld [vmem:[%s437 + $0x10] sm:$0x77]
        %v441 = vld [vmem:[%s437 + $0x18] sm:$0x77]
        %v442 = vld [vmem:[%s1] sm:$0x3f]
        %v443 = vld [vmem:[%s1 + $0x8] sm:$0x3f]
        %v444 = vld [vmem:[%s1 + $0x10] sm:$0x3f]
        %v445 = vld [vmem:[%s1 + $0x18] sm:$0x3f]
        %v446 = vld [vmem:[%s1 + $0x20] sm:$0x3f]
        %v447 = vld [vmem:[%s1 + $0x28] sm:$0x3f]
        %v448 = vld [vmem:[%s1 + $0x30] sm:$0x3f]
        %v449 = vld [vmem:[%s1 + $0x38] sm:$0x3f]
        %v450 = vld [vmem:[%s1 + $0x40] sm:$0x3f]
        %v451 = vld [vmem:[%s1 + $0x48] sm:$0x3f]
        %v452 = vld [vmem:[%s1 + $0x50] sm:$0x3f]
        %v453 = vld [vmem:[%s1 + $0x58] sm:$0x3f]
        %v454 = vld [vmem:[%s1 + $0x60] sm:$0x3f]
        %v455 = vld [vmem:[%s1 + $0x68] sm:$0x3f]
        %v456 = vld [vmem:[%s1 + $0x70] sm:$0x3f]
        %v457 = vld [vmem:[%s1 + $0x78] sm:$0x3f]
        %v458 = vld [vmem:[%s1 + $0x80] sm:$0x3f]
        %v459 = vld [vmem:[%s1 + $0x88] sm:$0x3f]
        %v460 = vld [vmem:[%s1 + $0x90] sm:$0x3f]
        %v461 = vld [vmem:[%s1 + $0x98] sm:$0x3f]
        %v462 = vld [vmem:[%s1 + $0xa0] sm:$0x3f]
        %v463 = vld [vmem:[%s1 + $0xa8] sm:$0x3f]
        %v464 = vld [vmem:[%s1 + $0xb0] sm:$0x3f]
        %v465 = vld [vmem:[%s1 + $0xb8] sm:$0x3f]
        %v466 = vld [vmem:[%s1 + $0xc0] sm:$0x3f]
        %471 = vst [vmem:[#allocation1] ss:$2 sm:$0xff] %v438
        %s472 = scalar_lea.vmem [#allocation1], 16
        %473 = vst [vmem:[%s472] ss:$2 sm:$0xff] %v439
        %s474 = scalar_lea.vmem [#allocation1], 32
        %475 = vst [vmem:[%s474] ss:$2 sm:$0xff] %v440
        %s476 = scalar_lea.vmem [#allocation1], 48
        %477 = vst [vmem:[%s476] ss:$2 sm:$0xff] %v441
        %v478 = vld.sshfl [vmem:[#allocation1] sm:$0xff pattern:$0x75316420]
        %v479 = vld.sshfl [vmem:[#allocation1 + $0x8] sm:$0xff pattern:$0x75316420]
        %v480 = vld.sshfl [vmem:[#allocation1 + $0x10] sm:$0xff pattern:$0x75316420]
        %v481 = vld.sshfl [vmem:[#allocation1 + $0x18] sm:$0xff pattern:$0x75316420]
        %v482 = vld.sshfl [vmem:[#allocation1 + $0x20] sm:$0xff pattern:$0x75316420]
        %v483 = vld.sshfl [vmem:[#allocation1 + $0x28] sm:$0xff pattern:$0x75316420]
        %v484 = vld.sshfl [vmem:[#allocation1 + $0x30] sm:$0xff pattern:$0x75316420]
        %485 = vrot.lane.b32.xlu0 %v478, 127
        %v486 = vpop.permute.xlu0 %485
        %487 = vrot.lane.b32.xlu0 %v479, 127
        %v488 = vpop.permute.xlu0 %487
        %489 = vrot.lane.b32.xlu0 %v480, 127
        %v490 = vpop.permute.xlu0 %489
        %491 = vrot.lane.b32.xlu0 %v481, 127
        %v492 = vpop.permute.xlu0 %491
        %493 = vrot.lane.b32.xlu0 %v482, 127
        %v494 = vpop.permute.xlu0 %493
        %495 = vrot.lane.b32.xlu0 %v483, 127
        %v496 = vpop.permute.xlu0 %495
        %497 = vrot.lane.b32.xlu0 %v484, 127
        %v498 = vpop.permute.xlu0 %497
        %vm499 = vcmask 1039360
        %v500 = vsel %vm499, %v486, %v488
        %v501 = vsel %vm499, %v488, %v490
        %v502 = vsel %vm499, %v490, %v492
        %v503 = vsel %vm499, %v492, %v494
        %v504 = vsel %vm499, %v494, %v496
        %v505 = vsel %vm499, %v496, %v498
        %vm506 = vcmask 23552
        %v508 = vsel %vm506, %v443, 0
        %vm510 = vcmask 1042432
        %v511 = vsel %vm510, %v500, 0
        %v513 = vsel %vm510, %v501, 0
        %v515 = vsel %vm510, %v502, 0
        %v517 = vsel %vm510, %v503, 0
        %v519 = vsel %vm510, %v504, 0
        %v521 = vsel %vm510, %v505, 0
        %v523 = vsel %vm510, %v498, 0
        %525 = vmatpush.msra.mxu0 0.0
        %526 = vmatpush.msra.mxu0 0.0
        %527 = vmatpush.msra.mxu0 0.0
        %528 = vmatpush.msra.mxu0 0.0
        %529 = vmatpush.msra.mxu0 0.0
        %530 = vmatpush.msra.mxu0 0.0
        %531 = vmatpush.msra.mxu0 0.0
        %532 = vmatpush.msra.mxu0 0.0
        %533 = vmatpush.msra.mxu0 0.0
        %534 = vmatpush.msra.mxu0 0.0
        %535 = vmatpush.msra.mxu0 0.0
        %536 = vmatpush.msra.mxu0 0.0
        %537 = vmatpush.msra.mxu0 0.0
        %538 = vmatpush.msra.mxu0 0.0
        %539 = vmatpush.msra.mxu0 0.0
        %540 = vmatpush.msra.mxu0 %v511
        %541 = vmatmul.f32.gmra.mxu0 %v508
        %v542 = vpop.f32.mrf.mxu0
        %v543 = vadd.f32 0.0, %v542
        %544 = vdwg.mxu0
        %545 = vmatpush.msra.mxu0 0.0
        %546 = vmatpush.msra.mxu0 0.0
        %547 = vmatpush.msra.mxu0 0.0
        %548 = vmatpush.msra.mxu0 0.0
        %549 = vmatpush.msra.mxu0 0.0
        %550 = vmatpush.msra.mxu0 0.0
        %551 = vmatpush.msra.mxu0 0.0
        %552 = vmatpush.msra.mxu0 0.0
        %553 = vmatpush.msra.mxu0 0.0
        %554 = vmatpush.msra.mxu0 0.0
        %555 = vmatpush.msra.mxu0 0.0
        %556 = vmatpush.msra.mxu0 0.0
        %557 = vmatpush.msra.mxu0 0.0
        %558 = vmatpush.msra.mxu0 0.0
        %559 = vmatpush.msra.mxu0 0.0
        %560 = vmatpush.msra.mxu0 %v513
        %561 = vmatmul.f32.gmra.mxu0 %v508
        %v562 = vpop.f32.mrf.mxu0
        %v563 = vadd.f32 0.0, %v562
        %564 = vdwg.mxu0
        %565 = vmatpush.msra.mxu0 0.0
        %566 = vmatpush.msra.mxu0 0.0
        %567 = vmatpush.msra.mxu0 0.0
        %568 = vmatpush.msra.mxu0 0.0
        %569 = vmatpush.msra.mxu0 0.0
        %570 = vmatpush.msra.mxu0 0.0
        %571 = vmatpush.msra.mxu0 0.0
        %572 = vmatpush.msra.mxu0 0.0
        %573 = vmatpush.msra.mxu0 0.0
        %574 = vmatpush.msra.mxu0 0.0
        %575 = vmatpush.msra.mxu0 0.0
        %576 = vmatpush.msra.mxu0 0.0
        %577 = vmatpush.msra.mxu0 0.0
        %578 = vmatpush.msra.mxu0 0.0
        %579 = vmatpush.msra.mxu0 0.0
        %580 = vmatpush.msra.mxu0 %v515
        %581 = vmatmul.f32.gmra.mxu0 %v508
        %v582 = vpop.f32.mrf.mxu0
        %v583 = vadd.f32 0.0, %v582
        %584 = vdwg.mxu0
        %585 = vmatpush.msra.mxu0 0.0
        %586 = vmatpush.msra.mxu0 0.0
        %587 = vmatpush.msra.mxu0 0.0
        %588 = vmatpush.msra.mxu0 0.0
        %589 = vmatpush.msra.mxu0 0.0
        %590 = vmatpush.msra.mxu0 0.0
        %591 = vmatpush.msra.mxu0 0.0
        %592 = vmatpush.msra.mxu0 0.0
        %593 = vmatpush.msra.mxu0 0.0
        %594 = vmatpush.msra.mxu0 0.0
        %595 = vmatpush.msra.mxu0 0.0
        %596 = vmatpush.msra.mxu0 0.0
        %597 = vmatpush.msra.mxu0 0.0
        %598 = vmatpush.msra.mxu0 0.0
        %599 = vmatpush.msra.mxu0 0.0
        %600 = vmatpush.msra.mxu0 %v517
        %601 = vmatmul.f32.gmra.mxu0 %v508
        %v602 = vpop.f32.mrf.mxu0
        %v603 = vadd.f32 0.0, %v602
        %604 = vdwg.mxu0
        %605 = vmatpush.msra.mxu0 0.0
        %606 = vmatpush.msra.mxu0 0.0
        %607 = vmatpush.msra.mxu0 0.0
        %608 = vmatpush.msra.mxu0 0.0
        %609 = vmatpush.msra.mxu0 0.0
        %610 = vmatpush.msra.mxu0 0.0
        %611 = vmatpush.msra.mxu0 0.0
        %612 = vmatpush.msra.mxu0 0.0
        %613 = vmatpush.msra.mxu0 0.0
        %614 = vmatpush.msra.mxu0 0.0
        %615 = vmatpush.msra.mxu0 0.0
        %616 = vmatpush.msra.mxu0 0.0
        %617 = vmatpush.msra.mxu0 0.0
        %618 = vmatpush.msra.mxu0 0.0
        %619 = vmatpush.msra.mxu0 0.0
        %620 = vmatpush.msra.mxu0 %v519
        %621 = vmatmul.f32.gmra.mxu0 %v508
        %v622 = vpop.f32.mrf.mxu0
        %v623 = vadd.f32 0.0, %v622
        %624 = vdwg.mxu0
        %625 = vmatpush.msra.mxu0 0.0
        %626 = vmatpush.msra.mxu0 0.0
        %627 = vmatpush.msra.mxu0 0.0
        %628 = vmatpush.msra.mxu0 0.0
        %629 = vmatpush.msra.mxu0 0.0
        %630 = vmatpush.msra.mxu0 0.0
        %631 = vmatpush.msra.mxu0 0.0
        %632 = vmatpush.msra.mxu0 0.0
        %633 = vmatpush.msra.mxu0 0.0
        %634 = vmatpush.msra.mxu0 0.0
        %635 = vmatpush.msra.mxu0 0.0
        %636 = vmatpush.msra.mxu0 0.0
        %637 = vmatpush.msra.mxu0 0.0
        %638 = vmatpush.msra.mxu0 0.0
        %639 = vmatpush.msra.mxu0 0.0
        %640 = vmatpush.msra.mxu0 %v521
        %641 = vmatmul.f32.gmra.mxu0 %v508
        %v642 = vpop.f32.mrf.mxu0
        %v643 = vadd.f32 0.0, %v642
        %644 = vdwg.mxu0
        %645 = vmatpush.msra.mxu0 0.0
        %646 = vmatpush.msra.mxu0 0.0
        %647 = vmatpush.msra.mxu0 0.0
        %648 = vmatpush.msra.mxu0 0.0
        %649 = vmatpush.msra.mxu0 0.0
        %650 = vmatpush.msra.mxu0 0.0
        %651 = vmatpush.msra.mxu0 0.0
        %652 = vmatpush.msra.mxu0 0.0
        %653 = vmatpush.msra.mxu0 0.0
        %654 = vmatpush.msra.mxu0 0.0
        %655 = vmatpush.msra.mxu0 0.0
        %656 = vmatpush.msra.mxu0 0.0
        %657 = vmatpush.msra.mxu0 0.0
        %658 = vmatpush.msra.mxu0 0.0
        %659 = vmatpush.msra.mxu0 0.0
        %660 = vmatpush.msra.mxu0 %v523
        %661 = vmatmul.f32.gmra.mxu0 %v508
        %v662 = vpop.f32.mrf.mxu0
        %v663 = vadd.f32 0.0, %v662
        %664 = vdwg.mxu0
        %665 = vst [vmem:[#allocation1] ss:$2 sm:$0xff] %v438
        %s666 = scalar_lea.vmem [#allocation1], 16
        %667 = vst [vmem:[%s666] ss:$2 sm:$0xff] %v439
        %s668 = scalar_lea.vmem [#allocation1], 32
        %669 = vst [vmem:[%s668] ss:$2 sm:$0xff] %v440
        %s670 = scalar_lea.vmem [#allocation1], 48
        %671 = vst [vmem:[%s670] ss:$2 sm:$0xff] %v441
        %v672 = vld.sshfl [vmem:[#allocation1] sm:$0xff pattern:$0x75316420]
        %v673 = vld.sshfl [vmem:[#allocation1 + $0x8] sm:$0xff pattern:$0x75316420]
        %v674 = vld.sshfl [vmem:[#allocation1 + $0x10] sm:$0xff pattern:$0x75316420]
        %v675 = vld.sshfl [vmem:[#allocation1 + $0x18] sm:$0xff pattern:$0x75316420]
        %v676 = vld.sshfl [vmem:[#allocation1 + $0x20] sm:$0xff pattern:$0x75316420]
        %v677 = vld.sshfl [vmem:[#allocation1 + $0x28] sm:$0xff pattern:$0x75316420]
        %v678 = vld.sshfl [vmem:[#allocation1 + $0x30] sm:$0xff pattern:$0x75316420]
        %v680 = vsel %vm506, %v442, 0
        %v682 = vsel %vm510, %v672, 0
        %v684 = vsel %vm510, %v673, 0
        %v686 = vsel %vm510, %v674, 0
        %v688 = vsel %vm510, %v675, 0
        %v690 = vsel %vm510, %v676, 0
        %v692 = vsel %vm510, %v677, 0
        %v694 = vsel %vm510, %v678, 0
        %696 = vmatpush.msra.mxu0 0.0
        %697 = vmatpush.msra.mxu0 0.0
        %698 = vmatpush.msra.mxu0 0.0
        %699 = vmatpush.msra.mxu0 0.0
        %700 = vmatpush.msra.mxu0 0.0
        %701 = vmatpush.msra.mxu0 0.0
        %702 = vmatpush.msra.mxu0 0.0
        %703 = vmatpush.msra.mxu0 0.0
        %704 = vmatpush.msra.mxu0 0.0
        %705 = vmatpush.msra.mxu0 0.0
        %706 = vmatpush.msra.mxu0 0.0
        %707 = vmatpush.msra.mxu0 0.0
        %708 = vmatpush.msra.mxu0 0.0
        %709 = vmatpush.msra.mxu0 0.0
        %710 = vmatpush.msra.mxu0 0.0
        %711 = vmatpush.msra.mxu0 %v682
        %712 = vmatmul.f32.gmra.mxu0 %v680
        %v713 = vpop.f32.mrf.mxu0
        %v714 = vadd.f32 %v543, %v713
        %715 = vdwg.mxu0
        %716 = vmatpush.msra.mxu0 0.0
        %717 = vmatpush.msra.mxu0 0.0
        %718 = vmatpush.msra.mxu0 0.0
        %719 = vmatpush.msra.mxu0 0.0
        %720 = vmatpush.msra.mxu0 0.0
        %721 = vmatpush.msra.mxu0 0.0
        %722 = vmatpush.msra.mxu0 0.0
        %723 = vmatpush.msra.mxu0 0.0
        %724 = vmatpush.msra.mxu0 0.0
        %725 = vmatpush.msra.mxu0 0.0
        %726 = vmatpush.msra.mxu0 0.0
        %727 = vmatpush.msra.mxu0 0.0
        %728 = vmatpush.msra.mxu0 0.0
        %729 = vmatpush.msra.mxu0 0.0
        %730 = vmatpush.msra.mxu0 0.0
        %731 = vmatpush.msra.mxu0 %v684
        %732 = vmatmul.f32.gmra.mxu0 %v680
        %v733 = vpop.f32.mrf.mxu0
        %v734 = vadd.f32 %v563, %v733
        %735 = vdwg.mxu0
        %736 = vmatpush.msra.mxu0 0.0
        %737 = vmatpush.msra.mxu0 0.0
        %738 = vmatpush.msra.mxu0 0.0
        %739 = vmatpush.msra.mxu0 0.0
        %740 = vmatpush.msra.mxu0 0.0
        %741 = vmatpush.msra.mxu0 0.0
        %742 = vmatpush.msra.mxu0 0.0
        %743 = vmatpush.msra.mxu0 0.0
        %744 = vmatpush.msra.mxu0 0.0
        %745 = vmatpush.msra.mxu0 0.0
        %746 = vmatpush.msra.mxu0 0.0
        %747 = vmatpush.msra.mxu0 0.0
        %748 = vmatpush.msra.mxu0 0.0
        %749 = vmatpush.msra.mxu0 0.0
        %750 = vmatpush.msra.mxu0 0.0
        %751 = vmatpush.msra.mxu0 %v686
        %752 = vmatmul.f32.gmra.mxu0 %v680
        %v753 = vpop.f32.mrf.mxu0
        %v754 = vadd.f32 %v583, %v753
        %755 = vdwg.mxu0
        %756 = vmatpush.msra.mxu0 0.0
        %757 = vmatpush.msra.mxu0 0.0
        %758 = vmatpush.msra.mxu0 0.0
        %759 = vmatpush.msra.mxu0 0.0
        %760 = vmatpush.msra.mxu0 0.0
        %761 = vmatpush.msra.mxu0 0.0
        %762 = vmatpush.msra.mxu0 0.0
        %763 = vmatpush.msra.mxu0 0.0
        %764 = vmatpush.msra.mxu0 0.0
        %765 = vmatpush.msra.mxu0 0.0
        %766 = vmatpush.msra.mxu0 0.0
        %767 = vmatpush.msra.mxu0 0.0
        %768 = vmatpush.msra.mxu0 0.0
        %769 = vmatpush.msra.mxu0 0.0
        %770 = vmatpush.msra.mxu0 0.0
        %771 = vmatpush.msra.mxu0 %v688
        %772 = vmatmul.f32.gmra.mxu0 %v680
        %v773 = vpop.f32.mrf.mxu0
        %v774 = vadd.f32 %v603, %v773
        %775 = vdwg.mxu0
        %776 = vmatpush.msra.mxu0 0.0
        %777 = vmatpush.msra.mxu0 0.0
        %778 = vmatpush.msra.mxu0 0.0
        %779 = vmatpush.msra.mxu0 0.0
        %780 = vmatpush.msra.mxu0 0.0
        %781 = vmatpush.msra.mxu0 0.0
        %782 = vmatpush.msra.mxu0 0.0
        %783 = vmatpush.msra.mxu0 0.0
        %784 = vmatpush.msra.mxu0 0.0
        %785 = vmatpush.msra.mxu0 0.0
        %786 = vmatpush.msra.mxu0 0.0
        %787 = vmatpush.msra.mxu0 0.0
        %788 = vmatpush.msra.mxu0 0.0
        %789 = vmatpush.msra.mxu0 0.0
        %790 = vmatpush.msra.mxu0 0.0
        %791 = vmatpush.msra.mxu0 %v690
        %792 = vmatmul.f32.gmra.mxu0 %v680
        %v793 = vpop.f32.mrf.mxu0
        %v794 = vadd.f32 %v623, %v793
        %795 = vdwg.mxu0
        %796 = vmatpush.msra.mxu0 0.0
        %797 = vmatpush.msra.mxu0 0.0
        %798 = vmatpush.msra.mxu0 0.0
        %799 = vmatpush.msra.mxu0 0.0
        %800 = vmatpush.msra.mxu0 0.0
        %801 = vmatpush.msra.mxu0 0.0
        %802 = vmatpush.msra.mxu0 0.0
        %803 = vmatpush.msra.mxu0 0.0
        %804 = vmatpush.msra.mxu0 0.0
        %805 = vmatpush.msra.mxu0 0.0
        %806 = vmatpush.msra.mxu0 0.0
        %807 = vmatpush.msra.mxu0 0.0
        %808 = vmatpush.msra.mxu0 0.0
        %809 = vmatpush.msra.mxu0 0.0
        %810 = vmatpush.msra.mxu0 0.0
        %811 = vmatpush.msra.mxu0 %v692
        %812 = vmatmul.f32.gmra.mxu0 %v680
        %v813 = vpop.f32.mrf.mxu0
        %v814 = vadd.f32 %v643, %v813
        %815 = vdwg.mxu0
        %816 = vmatpush.msra.mxu0 0.0
        %817 = vmatpush.msra.mxu0 0.0
        %818 = vmatpush.msra.mxu0 0.0
        %819 = vmatpush.msra.mxu0 0.0
        %820 = vmatpush.msra.mxu0 0.0
        %821 = vmatpush.msra.mxu0 0.0
        %822 = vmatpush.msra.mxu0 0.0
        %823 = vmatpush.msra.mxu0 0.0
        %824 = vmatpush.msra.mxu0 0.0
        %825 = vmatpush.msra.mxu0 0.0
        %826 = vmatpush.msra.mxu0 0.0
        %827 = vmatpush.msra.mxu0 0.0
        %828 = vmatpush.msra.mxu0 0.0
        %829 = vmatpush.msra.mxu0 0.0
        %830 = vmatpush.msra.mxu0 0.0
        %831 = vmatpush.msra.mxu0 %v694
        %832 = vmatmul.f32.gmra.mxu0 %v680
        %v833 = vpop.f32.mrf.mxu0
        %v834 = vadd.f32 %v663, %v833
        %835 = vdwg.mxu0
        %836 = vst [vmem:[#allocation1] ss:$2 sm:$0xff] %v438
        %s837 = scalar_lea.vmem [#allocation1], 16
        %838 = vst [vmem:[%s837] ss:$2 sm:$0xff] %v439
        %s839 = scalar_lea.vmem [#allocation1], 32
        %840 = vst [vmem:[%s839] ss:$2 sm:$0xff] %v440
        %s841 = scalar_lea.vmem [#allocation1], 48
        %842 = vst [vmem:[%s841] ss:$2 sm:$0xff] %v441
        %v843 = vld.sshfl [vmem:[#allocation1] sm:$0xff pattern:$0x75316420]
        %v844 = vld.sshfl [vmem:[#allocation1 + $0x8] sm:$0xff pattern:$0x75316420]
        %v845 = vld.sshfl [vmem:[#allocation1 + $0x10] sm:$0xff pattern:$0x75316420]
        %v846 = vld.sshfl [vmem:[#allocation1 + $0x18] sm:$0xff pattern:$0x75316420]
        %v847 = vld.sshfl [vmem:[#allocation1 + $0x20] sm:$0xff pattern:$0x75316420]
        %v848 = vld.sshfl [vmem:[#allocation1 + $0x28] sm:$0xff pattern:$0x75316420]
        %v849 = vld.sshfl [vmem:[#allocation1 + $0x30] sm:$0xff pattern:$0x75316420]
        %850 = vrot.lane.b32.xlu0 %v843, 126
        %v851 = vpop.permute.xlu0 %850
        %852 = vrot.lane.b32.xlu0 %v844, 126
        %v853 = vpop.permute.xlu0 %852
        %854 = vrot.lane.b32.xlu0 %v845, 126
        %v855 = vpop.permute.xlu0 %854
        %856 = vrot.lane.b32.xlu0 %v846, 126
        %v857 = vpop.permute.xlu0 %856
        %858 = vrot.lane.b32.xlu0 %v847, 126
        %v859 = vpop.permute.xlu0 %858
        %860 = vrot.lane.b32.xlu0 %v848, 126
        %v861 = vpop.permute.xlu0 %860
        %862 = vrot.lane.b32.xlu0 %v849, 126
        %v863 = vpop.permute.xlu0 %862
        %vm864 = vcmask 1031168
        %v865 = vsel %vm864, %v851, %v853
        %v866 = vsel %vm864, %v853, %v855
        %v867 = vsel %vm864, %v855, %v857
        %v868 = vsel %vm864, %v857, %v859
        %v869 = vsel %vm864, %v859, %v861
        %v870 = vsel %vm864, %v861, %v863
        %v872 = vsel %vm506, %v444, 0
        %v874 = vsel %vm510, %v865, 0
        %v876 = vsel %vm510, %v866, 0
        %v878 = vsel %vm510, %v867, 0
        %v880 = vsel %vm510, %v868, 0
        %v882 = vsel %vm510, %v869, 0
        %v884 = vsel %vm510, %v870, 0
        %v886 = vsel %vm510, %v863, 0
        %888 = vmatpush.msra.mxu0 0.0
        %889 = vmatpush.msra.mxu0 0.0
        %890 = vmatpush.msra.mxu0 0.0
        %891 = vmatpush.msra.mxu0 0.0
        %892 = vmatpush.msra.mxu0 0.0
        %893 = vmatpush.msra.mxu0 0.0
        %894 = vmatpush.msra.mxu0 0.0
        %895 = vmatpush.msra.mxu0 0.0
        %896 = vmatpush.msra.mxu0 0.0
        %897 = vmatpush.msra.mxu0 0.0
        %898 = vmatpush.msra.mxu0 0.0
        %899 = vmatpush.msra.mxu0 0.0
        %900 = vmatpush.msra.mxu0 0.0
        %901 = vmatpush.msra.mxu0 0.0
        %902 = vmatpush.msra.mxu0 0.0
        %903 = vmatpush.msra.mxu0 %v874
        %904 = vmatmul.f32.gmra.mxu0 %v872
        %v905 = vpop.f32.mrf.mxu0
        %v906 = vadd.f32 0.0, %v905
        %907 = vdwg.mxu0
        %908 = vmatpush.msra.mxu0 0.0
        %909 = vmatpush.msra.mxu0 0.0
        %910 = vmatpush.msra.mxu0 0.0
        %911 = vmatpush.msra.mxu0 0.0
        %912 = vmatpush.msra.mxu0 0.0
        %913 = vmatpush.msra.mxu0 0.0
        %914 = vmatpush.msra.mxu0 0.0
        %915 = vmatpush.msra.mxu0 0.0
        %916 = vmatpush.msra.mxu0 0.0
        %917 = vmatpush.msra.mxu0 0.0
        %918 = vmatpush.msra.mxu0 0.0
        %919 = vmatpush.msra.mxu0 0.0
        %920 = vmatpush.msra.mxu0 0.0
        %921 = vmatpush.msra.mxu0 0.0
        %922 = vmatpush.msra.mxu0 0.0
        %923 = vmatpush.msra.mxu0 %v876
        %924 = vmatmul.f32.gmra.mxu0 %v872
        %v925 = vpop.f32.mrf.mxu0
        %v926 = vadd.f32 0.0, %v925
        %927 = vdwg.mxu0
        %928 = vmatpush.msra.mxu0 0.0
        %929 = vmatpush.msra.mxu0 0.0
        %930 = vmatpush.msra.mxu0 0.0
        %931 = vmatpush.msra.mxu0 0.0
        %932 = vmatpush.msra.mxu0 0.0
        %933 = vmatpush.msra.mxu0 0.0
        %934 = vmatpush.msra.mxu0 0.0
        %935 = vmatpush.msra.mxu0 0.0
        %936 = vmatpush.msra.mxu0 0.0
        %937 = vmatpush.msra.mxu0 0.0
        %938 = vmatpush.msra.mxu0 0.0
        %939 = vmatpush.msra.mxu0 0.0
        %940 = vmatpush.msra.mxu0 0.0
        %941 = vmatpush.msra.mxu0 0.0
        %942 = vmatpush.msra.mxu0 0.0
        %943 = vmatpush.msra.mxu0 %v878
        %944 = vmatmul.f32.gmra.mxu0 %v872
        %v945 = vpop.f32.mrf.mxu0
        %v946 = vadd.f32 0.0, %v945
        %947 = vdwg.mxu0
        %948 = vmatpush.msra.mxu0 0.0
        %949 = vmatpush.msra.mxu0 0.0
        %950 = vmatpush.msra.mxu0 0.0
        %951 = vmatpush.msra.mxu0 0.0
        %952 = vmatpush.msra.mxu0 0.0
        %953 = vmatpush.msra.mxu0 0.0
        %954 = vmatpush.msra.mxu0 0.0
        %955 = vmatpush.msra.mxu0 0.0
        %956 = vmatpush.msra.mxu0 0.0
        %957 = vmatpush.msra.mxu0 0.0
        %958 = vmatpush.msra.mxu0 0.0
        %959 = vmatpush.msra.mxu0 0.0
        %960 = vmatpush.msra.mxu0 0.0
        %961 = vmatpush.msra.mxu0 0.0
        %962 = vmatpush.msra.mxu0 0.0
        %963 = vmatpush.msra.mxu0 %v880
        %964 = vmatmul.f32.gmra.mxu0 %v872
        %v965 = vpop.f32.mrf.mxu0
        %v966 = vadd.f32 0.0, %v965
        %967 = vdwg.mxu0
        %968 = vmatpush.msra.mxu0 0.0
        %969 = vmatpush.msra.mxu0 0.0
        %970 = vmatpush.msra.mxu0 0.0
        %971 = vmatpush.msra.mxu0 0.0
        %972 = vmatpush.msra.mxu0 0.0
        %973 = vmatpush.msra.mxu0 0.0
        %974 = vmatpush.msra.mxu0 0.0
        %975 = vmatpush.msra.mxu0 0.0
        %976 = vmatpush.msra.mxu0 0.0
        %977 = vmatpush.msra.mxu0 0.0
        %978 = vmatpush.msra.mxu0 0.0
        %979 = vmatpush.msra.mxu0 0.0
        %980 = vmatpush.msra.mxu0 0.0
        %981 = vmatpush.msra.mxu0 0.0
        %982 = vmatpush.msra.mxu0 0.0
        %983 = vmatpush.msra.mxu0 %v882
        %984 = vmatmul.f32.gmra.mxu0 %v872
        %v985 = vpop.f32.mrf.mxu0
        %v986 = vadd.f32 0.0, %v985
        %987 = vdwg.mxu0
        %988 = vmatpush.msra.mxu0 0.0
        %989 = vmatpush.msra.mxu0 0.0
        %990 = vmatpush.msra.mxu0 0.0
        %991 = vmatpush.msra.mxu0 0.0
        %992 = vmatpush.msra.mxu0 0.0
        %993 = vmatpush.msra.mxu0 0.0
        %994 = vmatpush.msra.mxu0 0.0
        %995 = vmatpush.msra.mxu0 0.0
        %996 = vmatpush.msra.mxu0 0.0
        %997 = vmatpush.msra.mxu0 0.0
        %998 = vmatpush.msra.mxu0 0.0
        %999 = vmatpush.msra.mxu0 0.0
        %1000 = vmatpush.msra.mxu0 0.0
        %1001 = vmatpush.msra.mxu0 0.0
        %1002 = vmatpush.msra.mxu0 0.0
        %1003 = vmatpush.msra.mxu0 %v884
        %1004 = vmatmul.f32.gmra.mxu0 %v872
        %v1005 = vpop.f32.mrf.mxu0
        %v1006 = vadd.f32 0.0, %v1005
        %1007 = vdwg.mxu0
        %1008 = vmatpush.msra.mxu0 0.0
        %1009 = vmatpush.msra.mxu0 0.0
        %1010 = vmatpush.msra.mxu0 0.0
        %1011 = vmatpush.msra.mxu0 0.0
        %1012 = vmatpush.msra.mxu0 0.0
        %1013 = vmatpush.msra.mxu0 0.0
        %1014 = vmatpush.msra.mxu0 0.0
        %1015 = vmatpush.msra.mxu0 0.0
        %1016 = vmatpush.msra.mxu0 0.0
        %1017 = vmatpush.msra.mxu0 0.0
        %1018 = vmatpush.msra.mxu0 0.0
        %1019 = vmatpush.msra.mxu0 0.0
        %1020 = vmatpush.msra.mxu0 0.0
        %1021 = vmatpush.msra.mxu0 0.0
        %1022 = vmatpush.msra.mxu0 0.0
        %1023 = vmatpush.msra.mxu0 %v886
        %1024 = vmatmul.f32.gmra.mxu0 %v872
        %v1025 = vpop.f32.mrf.mxu0
        %v1026 = vadd.f32 0.0, %v1025
        %1027 = vdwg.mxu0
        %v1028 = vadd.f32 %v714, %v906
        %v1029 = vadd.f32 %v734, %v926
        %v1030 = vadd.f32 %v754, %v946
        %v1031 = vadd.f32 %v774, %v966
        %v1032 = vadd.f32 %v794, %v986
        %v1033 = vadd.f32 %v814, %v1006
        %v1034 = vadd.f32 %v834, %v1026
        %1035 = vst [vmem:[#allocation1] ss:$2 sm:$0xff] %v438
        %s1036 = scalar_lea.vmem [#allocation1], 16
        %1037 = vst [vmem:[%s1036] ss:$2 sm:$0xff] %v439
        %s1038 = scalar_lea.vmem [#allocation1], 32
        %1039 = vst [vmem:[%s1038] ss:$2 sm:$0xff] %v440
        %s1040 = scalar_lea.vmem [#allocation1], 48
        %1041 = vst [vmem:[%s1040] ss:$2 sm:$0xff] %v441
        %v1042 = vld.sshfl [vmem:[#allocation1] sm:$0xff pattern:$0x75316420]
        %v1043 = vld.sshfl [vmem:[#allocation1 + $0x8] sm:$0xff pattern:$0x75316420]
        %v1044 = vld.sshfl [vmem:[#allocation1 + $0x10] sm:$0xff pattern:$0x75316420]
        %v1045 = vld.sshfl [vmem:[#allocation1 + $0x18] sm:$0xff pattern:$0x75316420]
        %v1046 = vld.sshfl [vmem:[#allocation1 + $0x20] sm:$0xff pattern:$0x75316420]
        %v1047 = vld.sshfl [vmem:[#allocation1 + $0x28] sm:$0xff pattern:$0x75316420]
        %v1048 = vld.sshfl [vmem:[#allocation1 + $0x30] sm:$0xff pattern:$0x75316420]
        %1049 = vrot.lane.b32.xlu0 %v1042, 125
        %v1050 = vpop.permute.xlu0 %1049
        %1051 = vrot.lane.b32.xlu0 %v1043, 125
        %v1052 = vpop.permute.xlu0 %1051
        %1053 = vrot.lane.b32.xlu0 %v1044, 125
        %v1054 = vpop.permute.xlu0 %1053
        %1055 = vrot.lane.b32.xlu0 %v1045, 125
        %v1056 = vpop.permute.xlu0 %1055
        %1057 = vrot.lane.b32.xlu0 %v1046, 125
        %v1058 = vpop.permute.xlu0 %1057
        %1059 = vrot.lane.b32.xlu0 %v1047, 125
        %v1060 = vpop.permute.xlu0 %1059
        %1061 = vrot.lane.b32.xlu0 %v1048, 125
        %v1062 = vpop.permute.xlu0 %1061
        %vm1063 = vcmask 1022976
        %v1064 = vsel %vm1063, %v1050, %v1052
        %v1065 = vsel %vm1063, %v1052, %v1054
        %v1066 = vsel %vm1063, %v1054, %v1056
        %v1067 = vsel %vm1063, %v1056, %v1058
        %v1068 = vsel %vm1063, %v1058, %v1060
        %v1069 = vsel %vm1063, %v1060, %v1062
        %v1071 = vsel %vm506, %v445, 0
        %v1073 = vsel %vm510, %v1064, 0
        %v1075 = vsel %vm510, %v1065, 0
        %v1077 = vsel %vm510, %v1066, 0
        %v1079 = vsel %vm510, %v1067, 0
        %v1081 = vsel %vm510, %v1068, 0
        %v1083 = vsel %vm510, %v1069, 0
        %v1085 = vsel %vm510, %v1062, 0
        %1087 = vmatpush.msra.mxu0 0.0
        %1088 = vmatpush.msra.mxu0 0.0
        %1089 = vmatpush.msra.mxu0 0.0
        %1090 = vmatpush.msra.mxu0 0.0
        %1091 = vmatpush.msra.mxu0 0.0
        %1092 = vmatpush.msra.mxu0 0.0
        %1093 = vmatpush.msra.mxu0 0.0
        %1094 = vmatpush.msra.mxu0 0.0
        %1095 = vmatpush.msra.mxu0 0.0
        %1096 = vmatpush.msra.mxu0 0.0
        %1097 = vmatpush.msra.mxu0 0.0
        %1098 = vmatpush.msra.mxu0 0.0
        %1099 = vmatpush.msra.mxu0 0.0
        %1100 = vmatpush.msra.mxu0 0.0
        %1101 = vmatpush.msra.mxu0 0.0
        %1102 = vmatpush.msra.mxu0 %v1073
        %1103 = vmatmul.f32.gmra.mxu0 %v1071
        %v1104 = vpop.f32.mrf.mxu0
        %v1105 = vadd.f32 0.0, %v1104
        %1106 = vdwg.mxu0
        %1107 = vmatpush.msra.mxu0 0.0
        %1108 = vmatpush.msra.mxu0 0.0
        %1109 = vmatpush.msra.mxu0 0.0
        %1110 = vmatpush.msra.mxu0 0.0
        %1111 = vmatpush.msra.mxu0 0.0
        %1112 = vmatpush.msra.mxu0 0.0
        %1113 = vmatpush.msra.mxu0 0.0
        %1114 = vmatpush.msra.mxu0 0.0
        %1115 = vmatpush.msra.mxu0 0.0
        %1116 = vmatpush.msra.mxu0 0.0
        %1117 = vmatpush.msra.mxu0 0.0
        %1118 = vmatpush.msra.mxu0 0.0
        %1119 = vmatpush.msra.mxu0 0.0
        %1120 = vmatpush.msra.mxu0 0.0
        %1121 = vmatpush.msra.mxu0 0.0
        %1122 = vmatpush.msra.mxu0 %v1075
        %1123 = vmatmul.f32.gmra.mxu0 %v1071
        %v1124 = vpop.f32.mrf.mxu0
        %v1125 = vadd.f32 0.0, %v1124
        %1126 = vdwg.mxu0
        %1127 = vmatpush.msra.mxu0 0.0
        %1128 = vmatpush.msra.mxu0 0.0
        %1129 = vmatpush.msra.mxu0 0.0
        %1130 = vmatpush.msra.mxu0 0.0
        %1131 = vmatpush.msra.mxu0 0.0
        %1132 = vmatpush.msra.mxu0 0.0
        %1133 = vmatpush.msra.mxu0 0.0
        %1134 = vmatpush.msra.mxu0 0.0
        %1135 = vmatpush.msra.mxu0 0.0
        %1136 = vmatpush.msra.mxu0 0.0
        %1137 = vmatpush.msra.mxu0 0.0
        %1138 = vmatpush.msra.mxu0 0.0
        %1139 = vmatpush.msra.mxu0 0.0
        %1140 = vmatpush.msra.mxu0 0.0
        %1141 = vmatpush.msra.mxu0 0.0
        %1142 = vmatpush.msra.mxu0 %v1077
        %1143 = vmatmul.f32.gmra.mxu0 %v1071
        %v1144 = vpop.f32.mrf.mxu0
        %v1145 = vadd.f32 0.0, %v1144
        %1146 = vdwg.mxu0
        %1147 = vmatpush.msra.mxu0 0.0
        %1148 = vmatpush.msra.mxu0 0.0
        %1149 = vmatpush.msra.mxu0 0.0
        %1150 = vmatpush.msra.mxu0 0.0
        %1151 = vmatpush.msra.mxu0 0.0
        %1152 = vmatpush.msra.mxu0 0.0
        %1153 = vmatpush.msra.mxu0 0.0
        %1154 = vmatpush.msra.mxu0 0.0
        %1155 = vmatpush.msra.mxu0 0.0
        %1156 = vmatpush.msra.mxu0 0.0
        %1157 = vmatpush.msra.mxu0 0.0
        %1158 = vmatpush.msra.mxu0 0.0
        %1159 = vmatpush.msra.mxu0 0.0
        %1160 = vmatpush.msra.mxu0 0.0
        %1161 = vmatpush.msra.mxu0 0.0
        %1162 = vmatpush.msra.mxu0 %v1079
        %1163 = vmatmul.f32.gmra.mxu0 %v1071
        %v1164 = vpop.f32.mrf.mxu0
        %v1165 = vadd.f32 0.0, %v1164
        %1166 = vdwg.mxu0
        %1167 = vmatpush.msra.mxu0 0.0
        %1168 = vmatpush.msra.mxu0 0.0
        %1169 = vmatpush.msra.mxu0 0.0
        %1170 = vmatpush.msra.mxu0 0.0
        %1171 = vmatpush.msra.mxu0 0.0
        %1172 = vmatpush.msra.mxu0 0.0
        %1173 = vmatpush.msra.mxu0 0.0
        %1174 = vmatpush.msra.mxu0 0.0
        %1175 = vmatpush.msra.mxu0 0.0
        %1176 = vmatpush.msra.mxu0 0.0
        %1177 = vmatpush.msra.mxu0 0.0
        %1178 = vmatpush.msra.mxu0 0.0
        %1179 = vmatpush.msra.mxu0 0.0
        %1180 = vmatpush.msra.mxu0 0.0
        %1181 = vmatpush.msra.mxu0 0.0
        %1182 = vmatpush.msra.mxu0 %v1081
        %1183 = vmatmul.f32.gmra.mxu0 %v1071
        %v1184 = vpop.f32.mrf.mxu0
        %v1185 = vadd.f32 0.0, %v1184
        %1186 = vdwg.mxu0
        %1187 = vmatpush.msra.mxu0 0.0
        %1188 = vmatpush.msra.mxu0 0.0
        %1189 = vmatpush.msra.mxu0 0.0
        %1190 = vmatpush.msra.mxu0 0.0
        %1191 = vmatpush.msra.mxu0 0.0
        %1192 = vmatpush.msra.mxu0 0.0
        %1193 = vmatpush.msra.mxu0 0.0
        %1194 = vmatpush.msra.mxu0 0.0
        %1195 = vmatpush.msra.mxu0 0.0
        %1196 = vmatpush.msra.mxu0 0.0
        %1197 = vmatpush.msra.mxu0 0.0
        %1198 = vmatpush.msra.mxu0 0.0
        %1199 = vmatpush.msra.mxu0 0.0
        %1200 = vmatpush.msra.mxu0 0.0
        %1201 = vmatpush.msra.mxu0 0.0
        %1202 = vmatpush.msra.mxu0 %v1083
        %1203 = vmatmul.f32.gmra.mxu0 %v1071
        %v1204 = vpop.f32.mrf.mxu0
        %v1205 = vadd.f32 0.0, %v1204
        %1206 = vdwg.mxu0
        %1207 = vmatpush.msra.mxu0 0.0
        %1208 = vmatpush.msra.mxu0 0.0
        %1209 = vmatpush.msra.mxu0 0.0
        %1210 = vmatpush.msra.mxu0 0.0
        %1211 = vmatpush.msra.mxu0 0.0
        %1212 = vmatpush.msra.mxu0 0.0
        %1213 = vmatpush.msra.mxu0 0.0
        %1214 = vmatpush.msra.mxu0 0.0
        %1215 = vmatpush.msra.mxu0 0.0
        %1216 = vmatpush.msra.mxu0 0.0
        %1217 = vmatpush.msra.mxu0 0.0
        %1218 = vmatpush.msra.mxu0 0.0
        %1219 = vmatpush.msra.mxu0 0.0
        %1220 = vmatpush.msra.mxu0 0.0
        %1221 = vmatpush.msra.mxu0 0.0
        %1222 = vmatpush.msra.mxu0 %v1085
        %1223 = vmatmul.f32.gmra.mxu0 %v1071
        %v1224 = vpop.f32.mrf.mxu0
        %v1225 = vadd.f32 0.0, %v1224
        %1226 = vdwg.mxu0
        %v1227 = vadd.f32 %v1028, %v1105
        %v1228 = vadd.f32 %v1029, %v1125
        %v1229 = vadd.f32 %v1030, %v1145
        %v1230 = vadd.f32 %v1031, %v1165
        %v1231 = vadd.f32 %v1032, %v1185
        %v1232 = vadd.f32 %v1033, %v1205
        %v1233 = vadd.f32 %v1034, %v1225
        %1234 = vst [vmem:[#allocation1] ss:$2 sm:$0xff] %v438
        %s1235 = scalar_lea.vmem [#allocation1], 16
        %1236 = vst [vmem:[%s1235] ss:$2 sm:$0xff] %v439
        %s1237 = scalar_lea.vmem [#allocation1], 32
        %1238 = vst [vmem:[%s1237] ss:$2 sm:$0xff] %v440
        %s1239 = scalar_lea.vmem [#allocation1], 48
        %1240 = vst [vmem:[%s1239] ss:$2 sm:$0xff] %v441
        %v1241 = vld.sshfl [vmem:[#allocation1] sm:$0xff pattern:$0x75316420]
        %v1242 = vld.sshfl [vmem:[#allocation1 + $0x8] sm:$0xff pattern:$0x75316420]
        %v1243 = vld.sshfl [vmem:[#allocation1 + $0x10] sm:$0xff pattern:$0x75316420]
        %v1244 = vld.sshfl [vmem:[#allocation1 + $0x18] sm:$0xff pattern:$0x75316420]
        %v1245 = vld.sshfl [vmem:[#allocation1 + $0x20] sm:$0xff pattern:$0x75316420]
        %v1246 = vld.sshfl [vmem:[#allocation1 + $0x28] sm:$0xff pattern:$0x75316420]
        %v1247 = vld.sshfl [vmem:[#allocation1 + $0x30] sm:$0xff pattern:$0x75316420]
        %1248 = vrot.lane.b32.xlu0 %v1241, 124
        %v1249 = vpop.permute.xlu0 %1248
        %1250 = vrot.lane.b32.xlu0 %v1242, 124
        %v1251 = vpop.permute.xlu0 %1250
        %1252 = vrot.lane.b32.xlu0 %v1243, 124
        %v1253 = vpop.permute.xlu0 %1252
        %1254 = vrot.lane.b32.xlu0 %v1244, 124
        %v1255 = vpop.permute.xlu0 %1254
        %1256 = vrot.lane.b32.xlu0 %v1245, 124
        %v1257 = vpop.permute.xlu0 %1256
        %1258 = vrot.lane.b32.xlu0 %v1246, 124
        %v1259 = vpop.permute.xlu0 %1258
        %1260 = vrot.lane.b32.xlu0 %v1247, 124
        %v1261 = vpop.permute.xlu0 %1260
        %vm1262 = vcmask 1014784
        %v1263 = vsel %vm1262, %v1249, %v1251
        %v1264 = vsel %vm1262, %v1251, %v1253
        %v1265 = vsel %vm1262, %v1253, %v1255
        %v1266 = vsel %vm1262, %v1255, %v1257
        %v1267 = vsel %vm1262, %v1257, %v1259
        %v1268 = vsel %vm1262, %v1259, %v1261
        %v1270 = vsel %vm506, %v446, 0
        %v1272 = vsel %vm510, %v1263, 0
        %v1274 = vsel %vm510, %v1264, 0
        %v1276 = vsel %vm510, %v1265, 0
        %v1278 = vsel %vm510, %v1266, 0
        %v1280 = vsel %vm510, %v1267, 0
        %v1282 = vsel %vm510, %v1268, 0
        %v1284 = vsel %vm510, %v1261, 0
        %1286 = vmatpush.msra.mxu0 0.0
        %1287 = vmatpush.msra.mxu0 0.0
        %1288 = vmatpush.msra.mxu0 0.0
        %1289 = vmatpush.msra.mxu0 0.0
        %1290 = vmatpush.msra.mxu0 0.0
        %1291 = vmatpush.msra.mxu0 0.0
        %1292 = vmatpush.msra.mxu0 0.0
        %1293 = vmatpush.msra.mxu0 0.0
        %1294 = vmatpush.msra.mxu0 0.0
        %1295 = vmatpush.msra.mxu0 0.0
        %1296 = vmatpush.msra.mxu0 0.0
        %1297 = vmatpush.msra.mxu0 0.0
        %1298 = vmatpush.msra.mxu0 0.0
        %1299 = vmatpush.msra.mxu0 0.0
        %1300 = vmatpush.msra.mxu0 0.0
        %1301 = vmatpush.msra.mxu0 %v1272
        %1302 = vmatmul.f32.gmra.mxu0 %v1270
        %v1303 = vpop.f32.mrf.mxu0
        %v1304 = vadd.f32 0.0, %v1303
        %1305 = vdwg.mxu0
        %1306 = vmatpush.msra.mxu0 0.0
        %1307 = vmatpush.msra.mxu0 0.0
        %1308 = vmatpush.msra.mxu0 0.0
        %1309 = vmatpush.msra.mxu0 0.0
        %1310 = vmatpush.msra.mxu0 0.0
        %1311 = vmatpush.msra.mxu0 0.0
        %1312 = vmatpush.msra.mxu0 0.0
        %1313 = vmatpush.msra.mxu0 0.0
        %1314 = vmatpush.msra.mxu0 0.0
        %1315 = vmatpush.msra.mxu0 0.0
        %1316 = vmatpush.msra.mxu0 0.0
        %1317 = vmatpush.msra.mxu0 0.0
        %1318 = vmatpush.msra.mxu0 0.0
        %1319 = vmatpush.msra.mxu0 0.0
        %1320 = vmatpush.msra.mxu0 0.0
        %1321 = vmatpush.msra.mxu0 %v1274
        %1322 = vmatmul.f32.gmra.mxu0 %v1270
        %v1323 = vpop.f32.mrf.mxu0
        %v1324 = vadd.f32 0.0, %v1323
        %1325 = vdwg.mxu0
        %1326 = vmatpush.msra.mxu0 0.0
        %1327 = vmatpush.msra.mxu0 0.0
        %1328 = vmatpush.msra.mxu0 0.0
        %1329 = vmatpush.msra.mxu0 0.0
        %1330 = vmatpush.msra.mxu0 0.0
        %1331 = vmatpush.msra.mxu0 0.0
        %1332 = vmatpush.msra.mxu0 0.0
        %1333 = vmatpush.msra.mxu0 0.0
        %1334 = vmatpush.msra.mxu0 0.0
        %1335 = vmatpush.msra.mxu0 0.0
        %1336 = vmatpush.msra.mxu0 0.0
        %1337 = vmatpush.msra.mxu0 0.0
        %1338 = vmatpush.msra.mxu0 0.0
        %1339 = vmatpush.msra.mxu0 0.0
        %1340 = vmatpush.msra.mxu0 0.0
        %1341 = vmatpush.msra.mxu0 %v1276
        %1342 = vmatmul.f32.gmra.mxu0 %v1270
        %v1343 = vpop.f32.mrf.mxu0
        %v1344 = vadd.f32 0.0, %v1343
        %1345 = vdwg.mxu0
        %1346 = vmatpush.msra.mxu0 0.0
        %1347 = vmatpush.msra.mxu0 0.0
        %1348 = vmatpush.msra.mxu0 0.0
        %1349 = vmatpush.msra.mxu0 0.0
        %1350 = vmatpush.msra.mxu0 0.0
        %1351 = vmatpush.msra.mxu0 0.0
        %1352 = vmatpush.msra.mxu0 0.0
        %1353 = vmatpush.msra.mxu0 0.0
        %1354 = vmatpush.msra.mxu0 0.0
        %1355 = vmatpush.msra.mxu0 0.0
        %1356 = vmatpush.msra.mxu0 0.0
        %1357 = vmatpush.msra.mxu0 0.0
        %1358 = vmatpush.msra.mxu0 0.0
        %1359 = vmatpush.msra.mxu0 0.0
        %1360 = vmatpush.msra.mxu0 0.0
        %1361 = vmatpush.msra.mxu0 %v1278
        %1362 = vmatmul.f32.gmra.mxu0 %v1270
        %v1363 = vpop.f32.mrf.mxu0
        %v1364 = vadd.f32 0.0, %v1363
        %1365 = vdwg.mxu0
        %1366 = vmatpush.msra.mxu0 0.0
        %1367 = vmatpush.msra.mxu0 0.0
        %1368 = vmatpush.msra.mxu0 0.0
        %1369 = vmatpush.msra.mxu0 0.0
        %1370 = vmatpush.msra.mxu0 0.0
        %1371 = vmatpush.msra.mxu0 0.0
        %1372 = vmatpush.msra.mxu0 0.0
        %1373 = vmatpush.msra.mxu0 0.0
        %1374 = vmatpush.msra.mxu0 0.0
        %1375 = vmatpush.msra.mxu0 0.0
        %1376 = vmatpush.msra.mxu0 0.0
        %1377 = vmatpush.msra.mxu0 0.0
        %1378 = vmatpush.msra.mxu0 0.0
        %1379 = vmatpush.msra.mxu0 0.0
        %1380 = vmatpush.msra.mxu0 0.0
        %1381 = vmatpush.msra.mxu0 %v1280
        %1382 = vmatmul.f32.gmra.mxu0 %v1270
        %v1383 = vpop.f32.mrf.mxu0
        %v1384 = vadd.f32 0.0, %v1383
        %1385 = vdwg.mxu0
        %1386 = vmatpush.msra.mxu0 0.0
        %1387 = vmatpush.msra.mxu0 0.0
        %1388 = vmatpush.msra.mxu0 0.0
        %1389 = vmatpush.msra.mxu0 0.0
        %1390 = vmatpush.msra.mxu0 0.0
        %1391 = vmatpush.msra.mxu0 0.0
        %1392 = vmatpush.msra.mxu0 0.0
        %1393 = vmatpush.msra.mxu0 0.0
        %1394 = vmatpush.msra.mxu0 0.0
        %1395 = vmatpush.msra.mxu0 0.0
        %1396 = vmatpush.msra.mxu0 0.0
        %1397 = vmatpush.msra.mxu0 0.0
        %1398 = vmatpush.msra.mxu0 0.0
        %1399 = vmatpush.msra.mxu0 0.0
        %1400 = vmatpush.msra.mxu0 0.0
        %1401 = vmatpush.msra.mxu0 %v1282
        %1402 = vmatmul.f32.gmra.mxu0 %v1270
        %v1403 = vpop.f32.mrf.mxu0
        %v1404 = vadd.f32 0.0, %v1403
        %1405 = vdwg.mxu0
        %1406 = vmatpush.msra.mxu0 0.0
        %1407 = vmatpush.msra.mxu0 0.0
        %1408 = vmatpush.msra.mxu0 0.0
        %1409 = vmatpush.msra.mxu0 0.0
        %1410 = vmatpush.msra.mxu0 0.0
        %1411 = vmatpush.msra.mxu0 0.0
        %1412 = vmatpush.msra.mxu0 0.0
        %1413 = vmatpush.msra.mxu0 0.0
        %1414 = vmatpush.msra.mxu0 0.0
        %1415 = vmatpush.msra.mxu0 0.0
        %1416 = vmatpush.msra.mxu0 0.0
        %1417 = vmatpush.msra.mxu0 0.0
        %1418 = vmatpush.msra.mxu0 0.0
        %1419 = vmatpush.msra.mxu0 0.0
        %1420 = vmatpush.msra.mxu0 0.0
        %1421 = vmatpush.msra.mxu0 %v1284
        %1422 = vmatmul.f32.gmra.mxu0 %v1270
        %v1423 = vpop.f32.mrf.mxu0
        %v1424 = vadd.f32 0.0, %v1423
        %1425 = vdwg.mxu0
        %v1426 = vadd.f32 %v1227, %v1304
        %v1427 = vadd.f32 %v1228, %v1324
        %v1428 = vadd.f32 %v1229, %v1344
        %v1429 = vadd.f32 %v1230, %v1364
        %v1430 = vadd.f32 %v1231, %v1384
        %v1431 = vadd.f32 %v1232, %v1404
        %v1432 = vadd.f32 %v1233, %v1424
        %1433 = vst [vmem:[#allocation1] ss:$2 sm:$0xff] %v438
        %s1434 = scalar_lea.vmem [#allocation1], 16
        %1435 = vst [vmem:[%s1434] ss:$2 sm:$0xff] %v439
        %s1436 = scalar_lea.vmem [#allocation1], 32
        %1437 = vst [vmem:[%s1436] ss:$2 sm:$0xff] %v440
        %s1438 = scalar_lea.vmem [#allocation1], 48
        %1439 = vst [vmem:[%s1438] ss:$2 sm:$0xff] %v441
        %v1440 = vld.sshfl [vmem:[#allocation1] sm:$0xff pattern:$0x75316420]
        %v1441 = vld.sshfl [vmem:[#allocation1 + $0x8] sm:$0xff pattern:$0x75316420]
        %v1442 = vld.sshfl [vmem:[#allocation1 + $0x10] sm:$0xff pattern:$0x75316420]
        %v1443 = vld.sshfl [vmem:[#allocation1 + $0x18] sm:$0xff pattern:$0x75316420]
        %v1444 = vld.sshfl [vmem:[#allocation1 + $0x20] sm:$0xff pattern:$0x75316420]
        %v1445 = vld.sshfl [vmem:[#allocation1 + $0x28] sm:$0xff pattern:$0x75316420]
        %v1446 = vld.sshfl [vmem:[#allocation1 + $0x30] sm:$0xff pattern:$0x75316420]
        %v1447 = vld.sshfl [vmem:[#allocation1 + $0x38] sm:$0xff pattern:$0x75316420]
        %1448 = vrot.lane.b32.xlu0 %v1440, 96
        %v1449 = vpop.permute.xlu0 %1448
        %1450 = vrot.lane.b32.xlu0 %v1441, 96
        %v1451 = vpop.permute.xlu0 %1450
        %1452 = vrot.lane.b32.xlu0 %v1442, 96
        %v1453 = vpop.permute.xlu0 %1452
        %1454 = vrot.lane.b32.xlu0 %v1443, 96
        %v1455 = vpop.permute.xlu0 %1454
        %1456 = vrot.lane.b32.xlu0 %v1444, 96
        %v1457 = vpop.permute.xlu0 %1456
        %1458 = vrot.lane.b32.xlu0 %v1445, 96
        %v1459 = vpop.permute.xlu0 %1458
        %1460 = vrot.lane.b32.xlu0 %v1446, 96
        %v1461 = vpop.permute.xlu0 %1460
        %1462 = vrot.lane.b32.xlu0 %v1447, 96
        %v1463 = vpop.permute.xlu0 %1462
        %vm1464 = vcmask 785408
        %v1465 = vsel %vm1464, %v1449, %v1451
        %v1466 = vsel %vm1464, %v1451, %v1453
        %v1467 = vsel %vm1464, %v1453, %v1455
        %v1468 = vsel %vm1464, %v1455, %v1457
        %v1469 = vsel %vm1464, %v1457, %v1459
        %v1470 = vsel %vm1464, %v1459, %v1461
        %v1471 = vsel %vm1464, %v1461, %v1463
        %v1473 = vsel %vm506, %v447, 0
        %v1475 = vsel %vm510, %v1465, 0
        %v1477 = vsel %vm510, %v1466, 0
        %v1479 = vsel %vm510, %v1467, 0
        %v1481 = vsel %vm510, %v1468, 0
        %v1483 = vsel %vm510, %v1469, 0
        %v1485 = vsel %vm510, %v1470, 0
        %v1487 = vsel %vm510, %v1471, 0
        %1489 = vmatpush.msra.mxu0 0.0
        %1490 = vmatpush.msra.mxu0 0.0
        %1491 = vmatpush.msra.mxu0 0.0
        %1492 = vmatpush.msra.mxu0 0.0
        %1493 = vmatpush.msra.mxu0 0.0
        %1494 = vmatpush.msra.mxu0 0.0
        %1495 = vmatpush.msra.mxu0 0.0
        %1496 = vmatpush.msra.mxu0 0.0
        %1497 = vmatpush.msra.mxu0 0.0
        %1498 = vmatpush.msra.mxu0 0.0
        %1499 = vmatpush.msra.mxu0 0.0
        %1500 = vmatpush.msra.mxu0 0.0
        %1501 = vmatpush.msra.mxu0 0.0
        %1502 = vmatpush.msra.mxu0 0.0
        %1503 = vmatpush.msra.mxu0 0.0
        %1504 = vmatpush.msra.mxu0 %v1475
        %1505 = vmatmul.f32.gmra.mxu0 %v1473
        %v1506 = vpop.f32.mrf.mxu0
        %v1507 = vadd.f32 0.0, %v1506
        %1508 = vdwg.mxu0
        %1509 = vmatpush.msra.mxu0 0.0
        %1510 = vmatpush.msra.mxu0 0.0
        %1511 = vmatpush.msra.mxu0 0.0
        %1512 = vmatpush.msra.mxu0 0.0
        %1513 = vmatpush.msra.mxu0 0.0
        %1514 = vmatpush.msra.mxu0 0.0
        %1515 = vmatpush.msra.mxu0 0.0
        %1516 = vmatpush.msra.mxu0 0.0
        %1517 = vmatpush.msra.mxu0 0.0
        %1518 = vmatpush.msra.mxu0 0.0
        %1519 = vmatpush.msra.mxu0 0.0
        %1520 = vmatpush.msra.mxu0 0.0
        %1521 = vmatpush.msra.mxu0 0.0
        %1522 = vmatpush.msra.mxu0 0.0
        %1523 = vmatpush.msra.mxu0 0.0
        %1524 = vmatpush.msra.mxu0 %v1477
        %1525 = vmatmul.f32.gmra.mxu0 %v1473
        %v1526 = vpop.f32.mrf.mxu0
        %v1527 = vadd.f32 0.0, %v1526
        %1528 = vdwg.mxu0
        %1529 = vmatpush.msra.mxu0 0.0
        %1530 = vmatpush.msra.mxu0 0.0
        %1531 = vmatpush.msra.mxu0 0.0
        %1532 = vmatpush.msra.mxu0 0.0
        %1533 = vmatpush.msra.mxu0 0.0
        %1534 = vmatpush.msra.mxu0 0.0
        %1535 = vmatpush.msra.mxu0 0.0
        %1536 = vmatpush.msra.mxu0 0.0
        %1537 = vmatpush.msra.mxu0 0.0
        %1538 = vmatpush.msra.mxu0 0.0
        %1539 = vmatpush.msra.mxu0 0.0
        %1540 = vmatpush.msra.mxu0 0.0
        %1541 = vmatpush.msra.mxu0 0.0
        %1542 = vmatpush.msra.mxu0 0.0
        %1543 = vmatpush.msra.mxu0 0.0
        %1544 = vmatpush.msra.mxu0 %v1479
        %1545 = vmatmul.f32.gmra.mxu0 %v1473
        %v1546 = vpop.f32.mrf.mxu0
        %v1547 = vadd.f32 0.0, %v1546
        %1548 = vdwg.mxu0
        %1549 = vmatpush.msra.mxu0 0.0
        %1550 = vmatpush.msra.mxu0 0.0
        %1551 = vmatpush.msra.mxu0 0.0
        %1552 = vmatpush.msra.mxu0 0.0
        %1553 = vmatpush.msra.mxu0 0.0
        %1554 = vmatpush.msra.mxu0 0.0
        %1555 = vmatpush.msra.mxu0 0.0
        %1556 = vmatpush.msra.mxu0 0.0
        %1557 = vmatpush.msra.mxu0 0.0
        %1558 = vmatpush.msra.mxu0 0.0
        %1559 = vmatpush.msra.mxu0 0.0
        %1560 = vmatpush.msra.mxu0 0.0
        %1561 = vmatpush.msra.mxu0 0.0
        %1562 = vmatpush.msra.mxu0 0.0
        %1563 = vmatpush.msra.mxu0 0.0
        %1564 = vmatpush.msra.mxu0 %v1481
        %1565 = vmatmul.f32.gmra.mxu0 %v1473
        %v1566 = vpop.f32.mrf.mxu0
        %v1567 = vadd.f32 0.0, %v1566
        %1568 = vdwg.mxu0
        %1569 = vmatpush.msra.mxu0 0.0
        %1570 = vmatpush.msra.mxu0 0.0
        %1571 = vmatpush.msra.mxu0 0.0
        %1572 = vmatpush.msra.mxu0 0.0
        %1573 = vmatpush.msra.mxu0 0.0
        %1574 = vmatpush.msra.mxu0 0.0
        %1575 = vmatpush.msra.mxu0 0.0
        %1576 = vmatpush.msra.mxu0 0.0
        %1577 = vmatpush.msra.mxu0 0.0
        %1578 = vmatpush.msra.mxu0 0.0
        %1579 = vmatpush.msra.mxu0 0.0
        %1580 = vmatpush.msra.mxu0 0.0
        %1581 = vmatpush.msra.mxu0 0.0
        %1582 = vmatpush.msra.mxu0 0.0
        %1583 = vmatpush.msra.mxu0 0.0
        %1584 = vmatpush.msra.mxu0 %v1483
        %1585 = vmatmul.f32.gmra.mxu0 %v1473
        %v1586 = vpop.f32.mrf.mxu0
        %v1587 = vadd.f32 0.0, %v1586
        %1588 = vdwg.mxu0
        %1589 = vmatpush.msra.mxu0 0.0
        %1590 = vmatpush.msra.mxu0 0.0
        %1591 = vmatpush.msra.mxu0 0.0
        %1592 = vmatpush.msra.mxu0 0.0
        %1593 = vmatpush.msra.mxu0 0.0
        %1594 = vmatpush.msra.mxu0 0.0
        %1595 = vmatpush.msra.mxu0 0.0
        %1596 = vmatpush.msra.mxu0 0.0
        %1597 = vmatpush.msra.mxu0 0.0
        %1598 = vmatpush.msra.mxu0 0.0
        %1599 = vmatpush.msra.mxu0 0.0
        %1600 = vmatpush.msra.mxu0 0.0
        %1601 = vmatpush.msra.mxu0 0.0
        %1602 = vmatpush.msra.mxu0 0.0
        %1603 = vmatpush.msra.mxu0 0.0
        %1604 = vmatpush.msra.mxu0 %v1485
        %1605 = vmatmul.f32.gmra.mxu0 %v1473
        %v1606 = vpop.f32.mrf.mxu0
        %v1607 = vadd.f32 0.0, %v1606
        %1608 = vdwg.mxu0
        %1609 = vmatpush.msra.mxu0 0.0
        %1610 = vmatpush.msra.mxu0 0.0
        %1611 = vmatpush.msra.mxu0 0.0
        %1612 = vmatpush.msra.mxu0 0.0
        %1613 = vmatpush.msra.mxu0 0.0
        %1614 = vmatpush.msra.mxu0 0.0
        %1615 = vmatpush.msra.mxu0 0.0
        %1616 = vmatpush.msra.mxu0 0.0
        %1617 = vmatpush.msra.mxu0 0.0
        %1618 = vmatpush.msra.mxu0 0.0
        %1619 = vmatpush.msra.mxu0 0.0
        %1620 = vmatpush.msra.mxu0 0.0
        %1621 = vmatpush.msra.mxu0 0.0
        %1622 = vmatpush.msra.mxu0 0.0
        %1623 = vmatpush.msra.mxu0 0.0
        %1624 = vmatpush.msra.mxu0 %v1487
        %1625 = vmatmul.f32.gmra.mxu0 %v1473
        %v1626 = vpop.f32.mrf.mxu0
        %v1627 = vadd.f32 0.0, %v1626
        %1628 = vdwg.mxu0
        %v1629 = vadd.f32 %v1426, %v1507
        %v1630 = vadd.f32 %v1427, %v1527
        %v1631 = vadd.f32 %v1428, %v1547
        %v1632 = vadd.f32 %v1429, %v1567
        %v1633 = vadd.f32 %v1430, %v1587
        %v1634 = vadd.f32 %v1431, %v1607
        %v1635 = vadd.f32 %v1432, %v1627
        %1636 = vst [vmem:[#allocation1] ss:$2 sm:$0xff] %v438
        %s1637 = scalar_lea.vmem [#allocation1], 16
        %1638 = vst [vmem:[%s1637] ss:$2 sm:$0xff] %v439
        %s1639 = scalar_lea.vmem [#allocation1], 32
        %1640 = vst [vmem:[%s1639] ss:$2 sm:$0xff] %v440
        %s1641 = scalar_lea.vmem [#allocation1], 48
        %1642 = vst [vmem:[%s1641] ss:$2 sm:$0xff] %v441
        %v1643 = vld.sshfl [vmem:[#allocation1] sm:$0xff pattern:$0x75316420]
        %v1644 = vld.sshfl [vmem:[#allocation1 + $0x8] sm:$0xff pattern:$0x75316420]
        %v1645 = vld.sshfl [vmem:[#allocation1 + $0x10] sm:$0xff pattern:$0x75316420]
        %v1646 = vld.sshfl [vmem:[#allocation1 + $0x18] sm:$0xff pattern:$0x75316420]
        %v1647 = vld.sshfl [vmem:[#allocation1 + $0x20] sm:$0xff pattern:$0x75316420]
        %v1648 = vld.sshfl [vmem:[#allocation1 + $0x28] sm:$0xff pattern:$0x75316420]
        %v1649 = vld.sshfl [vmem:[#allocation1 + $0x30] sm:$0xff pattern:$0x75316420]
        %v1650 = vld.sshfl [vmem:[#allocation1 + $0x38] sm:$0xff pattern:$0x75316420]
        %1651 = vrot.lane.b32.xlu0 %v1643, 95
        %v1652 = vpop.permute.xlu0 %1651
        %1653 = vrot.lane.b32.xlu0 %v1644, 95
        %v1654 = vpop.permute.xlu0 %1653
        %1655 = vrot.lane.b32.xlu0 %v1645, 95
        %v1656 = vpop.permute.xlu0 %1655
        %1657 = vrot.lane.b32.xlu0 %v1646, 95
        %v1658 = vpop.permute.xlu0 %1657
        %1659 = vrot.lane.b32.xlu0 %v1647, 95
        %v1660 = vpop.permute.xlu0 %1659
        %1661 = vrot.lane.b32.xlu0 %v1648, 95
        %v1662 = vpop.permute.xlu0 %1661
        %1663 = vrot.lane.b32.xlu0 %v1649, 95
        %v1664 = vpop.permute.xlu0 %1663
        %1665 = vrot.lane.b32.xlu0 %v1650, 95
        %v1666 = vpop.permute.xlu0 %1665
        %vm1667 = vcmask 777216
        %v1668 = vsel %vm1667, %v1652, %v1654
        %v1669 = vsel %vm1667, %v1654, %v1656
        %v1670 = vsel %vm1667, %v1656, %v1658
        %v1671 = vsel %vm1667, %v1658, %v1660
        %v1672 = vsel %vm1667, %v1660, %v1662
        %v1673 = vsel %vm1667, %v1662, %v1664
        %v1674 = vsel %vm1667, %v1664, %v1666
        %v1676 = vsel %vm506, %v448, 0
        %v1678 = vsel %vm510, %v1668, 0
        %v1680 = vsel %vm510, %v1669, 0
        %v1682 = vsel %vm510, %v1670, 0
        %v1684 = vsel %vm510, %v1671, 0
        %v1686 = vsel %vm510, %v1672, 0
        %v1688 = vsel %vm510, %v1673, 0
        %v1690 = vsel %vm510, %v1674, 0
        %1692 = vmatpush.msra.mxu0 0.0
        %1693 = vmatpush.msra.mxu0 0.0
        %1694 = vmatpush.msra.mxu0 0.0
        %1695 = vmatpush.msra.mxu0 0.0
        %1696 = vmatpush.msra.mxu0 0.0
        %1697 = vmatpush.msra.mxu0 0.0
        %1698 = vmatpush.msra.mxu0 0.0
        %1699 = vmatpush.msra.mxu0 0.0
        %1700 = vmatpush.msra.mxu0 0.0
        %1701 = vmatpush.msra.mxu0 0.0
        %1702 = vmatpush.msra.mxu0 0.0
        %1703 = vmatpush.msra.mxu0 0.0
        %1704 = vmatpush.msra.mxu0 0.0
        %1705 = vmatpush.msra.mxu0 0.0
        %1706 = vmatpush.msra.mxu0 0.0
        %1707 = vmatpush.msra.mxu0 %v1678
        %1708 = vmatmul.f32.gmra.mxu0 %v1676
        %v1709 = vpop.f32.mrf.mxu0
        %v1710 = vadd.f32 0.0, %v1709
        %1711 = vdwg.mxu0
        %1712 = vmatpush.msra.mxu0 0.0
        %1713 = vmatpush.msra.mxu0 0.0
        %1714 = vmatpush.msra.mxu0 0.0
        %1715 = vmatpush.msra.mxu0 0.0
        %1716 = vmatpush.msra.mxu0 0.0
        %1717 = vmatpush.msra.mxu0 0.0
        %1718 = vmatpush.msra.mxu0 0.0
        %1719 = vmatpush.msra.mxu0 0.0
        %1720 = vmatpush.msra.mxu0 0.0
        %1721 = vmatpush.msra.mxu0 0.0
        %1722 = vmatpush.msra.mxu0 0.0
        %1723 = vmatpush.msra.mxu0 0.0
        %1724 = vmatpush.msra.mxu0 0.0
        %1725 = vmatpush.msra.mxu0 0.0
        %1726 = vmatpush.msra.mxu0 0.0
        %1727 = vmatpush.msra.mxu0 %v1680
        %1728 = vmatmul.f32.gmra.mxu0 %v1676
        %v1729 = vpop.f32.mrf.mxu0
        %v1730 = vadd.f32 0.0, %v1729
        %1731 = vdwg.mxu0
        %1732 = vmatpush.msra.mxu0 0.0
        %1733 = vmatpush.msra.mxu0 0.0
        %1734 = vmatpush.msra.mxu0 0.0
        %1735 = vmatpush.msra.mxu0 0.0
        %1736 = vmatpush.msra.mxu0 0.0
        %1737 = vmatpush.msra.mxu0 0.0
        %1738 = vmatpush.msra.mxu0 0.0
        %1739 = vmatpush.msra.mxu0 0.0
        %1740 = vmatpush.msra.mxu0 0.0
        %1741 = vmatpush.msra.mxu0 0.0
        %1742 = vmatpush.msra.mxu0 0.0
        %1743 = vmatpush.msra.mxu0 0.0
        %1744 = vmatpush.msra.mxu0 0.0
        %1745 = vmatpush.msra.mxu0 0.0
        %1746 = vmatpush.msra.mxu0 0.0
        %1747 = vmatpush.msra.mxu0 %v1682
        %1748 = vmatmul.f32.gmra.mxu0 %v1676
        %v1749 = vpop.f32.mrf.mxu0
        %v1750 = vadd.f32 0.0, %v1749
        %1751 = vdwg.mxu0
        %1752 = vmatpush.msra.mxu0 0.0
        %1753 = vmatpush.msra.mxu0 0.0
        %1754 = vmatpush.msra.mxu0 0.0
        %1755 = vmatpush.msra.mxu0 0.0
        %1756 = vmatpush.msra.mxu0 0.0
        %1757 = vmatpush.msra.mxu0 0.0
        %1758 = vmatpush.msra.mxu0 0.0
        %1759 = vmatpush.msra.mxu0 0.0
        %1760 = vmatpush.msra.mxu0 0.0
        %1761 = vmatpush.msra.mxu0 0.0
        %1762 = vmatpush.msra.mxu0 0.0
        %1763 = vmatpush.msra.mxu0 0.0
        %1764 = vmatpush.msra.mxu0 0.0
        %1765 = vmatpush.msra.mxu0 0.0
        %1766 = vmatpush.msra.mxu0 0.0
        %1767 = vmatpush.msra.mxu0 %v1684
        %1768 = vmatmul.f32.gmra.mxu0 %v1676
        %v1769 = vpop.f32.mrf.mxu0
        %v1770 = vadd.f32 0.0, %v1769
        %1771 = vdwg.mxu0
        %1772 = vmatpush.msra.mxu0 0.0
        %1773 = vmatpush.msra.mxu0 0.0
        %1774 = vmatpush.msra.mxu0 0.0
        %1775 = vmatpush.msra.mxu0 0.0
        %1776 = vmatpush.msra.mxu0 0.0
        %1777 = vmatpush.msra.mxu0 0.0
        %1778 = vmatpush.msra.mxu0 0.0
        %1779 = vmatpush.msra.mxu0 0.0
        %1780 = vmatpush.msra.mxu0 0.0
        %1781 = vmatpush.msra.mxu0 0.0
        %1782 = vmatpush.msra.mxu0 0.0
        %1783 = vmatpush.msra.mxu0 0.0
        %1784 = vmatpush.msra.mxu0 0.0
        %1785 = vmatpush.msra.mxu0 0.0
        %1786 = vmatpush.msra.mxu0 0.0
        %1787 = vmatpush.msra.mxu0 %v1686
        %1788 = vmatmul.f32.gmra.mxu0 %v1676
        %v1789 = vpop.f32.mrf.mxu0
        %v1790 = vadd.f32 0.0, %v1789
        %1791 = vdwg.mxu0
        %1792 = vmatpush.msra.mxu0 0.0
        %1793 = vmatpush.msra.mxu0 0.0
        %1794 = vmatpush.msra.mxu0 0.0
        %1795 = vmatpush.msra.mxu0 0.0
        %1796 = vmatpush.msra.mxu0 0.0
        %1797 = vmatpush.msra.mxu0 0.0
        %1798 = vmatpush.msra.mxu0 0.0
        %1799 = vmatpush.msra.mxu0 0.0
        %1800 = vmatpush.msra.mxu0 0.0
        %1801 = vmatpush.msra.mxu0 0.0
        %1802 = vmatpush.msra.mxu0 0.0
        %1803 = vmatpush.msra.mxu0 0.0
        %1804 = vmatpush.msra.mxu0 0.0
        %1805 = vmatpush.msra.mxu0 0.0
        %1806 = vmatpush.msra.mxu0 0.0
        %1807 = vmatpush.msra.mxu0 %v1688
        %1808 = vmatmul.f32.gmra.mxu0 %v1676
        %v1809 = vpop.f32.mrf.mxu0
        %v1810 = vadd.f32 0.0, %v1809
        %1811 = vdwg.mxu0
        %1812 = vmatpush.msra.mxu0 0.0
        %1813 = vmatpush.msra.mxu0 0.0
        %1814 = vmatpush.msra.mxu0 0.0
        %1815 = vmatpush.msra.mxu0 0.0
        %1816 = vmatpush.msra.mxu0 0.0
        %1817 = vmatpush.msra.mxu0 0.0
        %1818 = vmatpush.msra.mxu0 0.0
        %1819 = vmatpush.msra.mxu0 0.0
        %1820 = vmatpush.msra.mxu0 0.0
        %1821 = vmatpush.msra.mxu0 0.0
        %1822 = vmatpush.msra.mxu0 0.0
        %1823 = vmatpush.msra.mxu0 0.0
        %1824 = vmatpush.msra.mxu0 0.0
        %1825 = vmatpush.msra.mxu0 0.0
        %1826 = vmatpush.msra.mxu0 0.0
        %1827 = vmatpush.msra.mxu0 %v1690
        %1828 = vmatmul.f32.gmra.mxu0 %v1676
        %v1829 = vpop.f32.mrf.mxu0
        %v1830 = vadd.f32 0.0, %v1829
        %1831 = vdwg.mxu0
        %v1832 = vadd.f32 %v1629, %v1710
        %v1833 = vadd.f32 %v1630, %v1730
        %v1834 = vadd.f32 %v1631, %v1750
        %v1835 = vadd.f32 %v1632, %v1770
        %v1836 = vadd.f32 %v1633, %v1790
        %v1837 = vadd.f32 %v1634, %v1810
        %v1838 = vadd.f32 %v1635, %v1830
        %1839 = vst [vmem:[#allocation1] ss:$2 sm:$0xff] %v438
        %s1840 = scalar_lea.vmem [#allocation1], 16
        %1841 = vst [vmem:[%s1840] ss:$2 sm:$0xff] %v439
        %s1842 = scalar_lea.vmem [#allocation1], 32
        %1843 = vst [vmem:[%s1842] ss:$2 sm:$0xff] %v440
        %s1844 = scalar_lea.vmem [#allocation1], 48
        %1845 = vst [vmem:[%s1844] ss:$2 sm:$0xff] %v441
        %v1846 = vld.sshfl [vmem:[#allocation1] sm:$0xff pattern:$0x75316420]
        %v1847 = vld.sshfl [vmem:[#allocation1 + $0x8] sm:$0xff pattern:$0x75316420]
        %v1848 = vld.sshfl [vmem:[#allocation1 + $0x10] sm:$0xff pattern:$0x75316420]
        %v1849 = vld.sshfl [vmem:[#allocation1 + $0x18] sm:$0xff pattern:$0x75316420]
        %v1850 = vld.sshfl [vmem:[#allocation1 + $0x20] sm:$0xff pattern:$0x75316420]
        %v1851 = vld.sshfl [vmem:[#allocation1 + $0x28] sm:$0xff pattern:$0x75316420]
        %v1852 = vld.sshfl [vmem:[#allocation1 + $0x30] sm:$0xff pattern:$0x75316420]
        %v1853 = vld.sshfl [vmem:[#allocation1 + $0x38] sm:$0xff pattern:$0x75316420]
        %1854 = vrot.lane.b32.xlu0 %v1846, 94
        %v1855 = vpop.permute.xlu0 %1854
        %1856 = vrot.lane.b32.xlu0 %v1847, 94
        %v1857 = vpop.permute.xlu0 %1856
        %1858 = vrot.lane.b32.xlu0 %v1848, 94
        %v1859 = vpop.permute.xlu0 %1858
        %1860 = vrot.lane.b32.xlu0 %v1849, 94
        %v1861 = vpop.permute.xlu0 %1860
        %1862 = vrot.lane.b32.xlu0 %v1850, 94
        %v1863 = vpop.permute.xlu0 %1862
        %1864 = vrot.lane.b32.xlu0 %v1851, 94
        %v1865 = vpop.permute.xlu0 %1864
        %1866 = vrot.lane.b32.xlu0 %v1852, 94
        %v1867 = vpop.permute.xlu0 %1866
        %1868 = vrot.lane.b32.xlu0 %v1853, 94
        %v1869 = vpop.permute.xlu0 %1868
        %vm1870 = vcmask 769024
        %v1871 = vsel %vm1870, %v1855, %v1857
        %v1872 = vsel %vm1870, %v1857, %v1859
        %v1873 = vsel %vm1870, %v1859, %v1861
        %v1874 = vsel %vm1870, %v1861, %v1863
        %v1875 = vsel %vm1870, %v1863, %v1865
        %v1876 = vsel %vm1870, %v1865, %v1867
        %v1877 = vsel %vm1870, %v1867, %v1869
        %v1879 = vsel %vm506, %v449, 0
        %v1881 = vsel %vm510, %v1871, 0
        %v1883 = vsel %vm510, %v1872, 0
        %v1885 = vsel %vm510, %v1873, 0
        %v1887 = vsel %vm510, %v1874, 0
        %v1889 = vsel %vm510, %v1875, 0
        %v1891 = vsel %vm510, %v1876, 0
        %v1893 = vsel %vm510, %v1877, 0
        %1895 = vmatpush.msra.mxu0 0.0
        %1896 = vmatpush.msra.mxu0 0.0
        %1897 = vmatpush.msra.mxu0 0.0
        %1898 = vmatpush.msra.mxu0 0.0
        %1899 = vmatpush.msra.mxu0 0.0
        %1900 = vmatpush.msra.mxu0 0.0
        %1901 = vmatpush.msra.mxu0 0.0
        %1902 = vmatpush.msra.mxu0 0.0
        %1903 = vmatpush.msra.mxu0 0.0
        %1904 = vmatpush.msra.mxu0 0.0
        %1905 = vmatpush.msra.mxu0 0.0
        %1906 = vmatpush.msra.mxu0 0.0
        %1907 = vmatpush.msra.mxu0 0.0
        %1908 = vmatpush.msra.mxu0 0.0
        %1909 = vmatpush.msra.mxu0 0.0
        %1910 = vmatpush.msra.mxu0 %v1881
        %1911 = vmatmul.f32.gmra.mxu0 %v1879
        %v1912 = vpop.f32.mrf.mxu0
        %v1913 = vadd.f32 0.0, %v1912
        %1914 = vdwg.mxu0
        %1915 = vmatpush.msra.mxu0 0.0
        %1916 = vmatpush.msra.mxu0 0.0
        %1917 = vmatpush.msra.mxu0 0.0
        %1918 = vmatpush.msra.mxu0 0.0
        %1919 = vmatpush.msra.mxu0 0.0
        %1920 = vmatpush.msra.mxu0 0.0
        %1921 = vmatpush.msra.mxu0 0.0
        %1922 = vmatpush.msra.mxu0 0.0
        %1923 = vmatpush.msra.mxu0 0.0
        %1924 = vmatpush.msra.mxu0 0.0
        %1925 = vmatpush.msra.mxu0 0.0
        %1926 = vmatpush.msra.mxu0 0.0
        %1927 = vmatpush.msra.mxu0 0.0
        %1928 = vmatpush.msra.mxu0 0.0
        %1929 = vmatpush.msra.mxu0 0.0
        %1930 = vmatpush.msra.mxu0 %v1883
        %1931 = vmatmul.f32.gmra.mxu0 %v1879
        %v1932 = vpop.f32.mrf.mxu0
        %v1933 = vadd.f32 0.0, %v1932
        %1934 = vdwg.mxu0
        %1935 = vmatpush.msra.mxu0 0.0
        %1936 = vmatpush.msra.mxu0 0.0
        %1937 = vmatpush.msra.mxu0 0.0
        %1938 = vmatpush.msra.mxu0 0.0
        %1939 = vmatpush.msra.mxu0 0.0
        %1940 = vmatpush.msra.mxu0 0.0
        %1941 = vmatpush.msra.mxu0 0.0
        %1942 = vmatpush.msra.mxu0 0.0
        %1943 = vmatpush.msra.mxu0 0.0
        %1944 = vmatpush.msra.mxu0 0.0
        %1945 = vmatpush.msra.mxu0 0.0
        %1946 = vmatpush.msra.mxu0 0.0
        %1947 = vmatpush.msra.mxu0 0.0
        %1948 = vmatpush.msra.mxu0 0.0
        %1949 = vmatpush.msra.mxu0 0.0
        %1950 = vmatpush.msra.mxu0 %v1885
        %1951 = vmatmul.f32.gmra.mxu0 %v1879
        %v1952 = vpop.f32.mrf.mxu0
        %v1953 = vadd.f32 0.0, %v1952
        %1954 = vdwg.mxu0
        %1955 = vmatpush.msra.mxu0 0.0
        %1956 = vmatpush.msra.mxu0 0.0
        %1957 = vmatpush.msra.mxu0 0.0
        %1958 = vmatpush.msra.mxu0 0.0
        %1959 = vmatpush.msra.mxu0 0.0
        %1960 = vmatpush.msra.mxu0 0.0
        %1961 = vmatpush.msra.mxu0 0.0
        %1962 = vmatpush.msra.mxu0 0.0
        %1963 = vmatpush.msra.mxu0 0.0
        %1964 = vmatpush.msra.mxu0 0.0
        %1965 = vmatpush.msra.mxu0 0.0
        %1966 = vmatpush.msra.mxu0 0.0
        %1967 = vmatpush.msra.mxu0 0.0
        %1968 = vmatpush.msra.mxu0 0.0
        %1969 = vmatpush.msra.mxu0 0.0
        %1970 = vmatpush.msra.mxu0 %v1887
        %1971 = vmatmul.f32.gmra.mxu0 %v1879
        %v1972 = vpop.f32.mrf.mxu0
        %v1973 = vadd.f32 0.0, %v1972
        %1974 = vdwg.mxu0
        %1975 = vmatpush.msra.mxu0 0.0
        %1976 = vmatpush.msra.mxu0 0.0
        %1977 = vmatpush.msra.mxu0 0.0
        %1978 = vmatpush.msra.mxu0 0.0
        %1979 = vmatpush.msra.mxu0 0.0
        %1980 = vmatpush.msra.mxu0 0.0
        %1981 = vmatpush.msra.mxu0 0.0
        %1982 = vmatpush.msra.mxu0 0.0
        %1983 = vmatpush.msra.mxu0 0.0
        %1984 = vmatpush.msra.mxu0 0.0
        %1985 = vmatpush.msra.mxu0 0.0
        %1986 = vmatpush.msra.mxu0 0.0
        %1987 = vmatpush.msra.mxu0 0.0
        %1988 = vmatpush.msra.mxu0 0.0
        %1989 = vmatpush.msra.mxu0 0.0
        %1990 = vmatpush.msra.mxu0 %v1889
        %1991 = vmatmul.f32.gmra.mxu0 %v1879
        %v1992 = vpop.f32.mrf.mxu0
        %v1993 = vadd.f32 0.0, %v1992
        %1994 = vdwg.mxu0
        %1995 = vmatpush.msra.mxu0 0.0
        %1996 = vmatpush.msra.mxu0 0.0
        %1997 = vmatpush.msra.mxu0 0.0
        %1998 = vmatpush.msra.mxu0 0.0
        %1999 = vmatpush.msra.mxu0 0.0
        %2000 = vmatpush.msra.mxu0 0.0
        %2001 = vmatpush.msra.mxu0 0.0
        %2002 = vmatpush.msra.mxu0 0.0
        %2003 = vmatpush.msra.mxu0 0.0
        %2004 = vmatpush.msra.mxu0 0.0
        %2005 = vmatpush.msra.mxu0 0.0
        %2006 = vmatpush.msra.mxu0 0.0
        %2007 = vmatpush.msra.mxu0 0.0
        %2008 = vmatpush.msra.mxu0 0.0
        %2009 = vmatpush.msra.mxu0 0.0
        %2010 = vmatpush.msra.mxu0 %v1891
        %2011 = vmatmul.f32.gmra.mxu0 %v1879
        %v2012 = vpop.f32.mrf.mxu0
        %v2013 = vadd.f32 0.0, %v2012
        %2014 = vdwg.mxu0
        %2015 = vmatpush.msra.mxu0 0.0
        %2016 = vmatpush.msra.mxu0 0.0
        %2017 = vmatpush.msra.mxu0 0.0
        %2018 = vmatpush.msra.mxu0 0.0
        %2019 = vmatpush.msra.mxu0 0.0
        %2020 = vmatpush.msra.mxu0 0.0
        %2021 = vmatpush.msra.mxu0 0.0
        %2022 = vmatpush.msra.mxu0 0.0
        %2023 = vmatpush.msra.mxu0 0.0
        %2024 = vmatpush.msra.mxu0 0.0
        %2025 = vmatpush.msra.mxu0 0.0
        %2026 = vmatpush.msra.mxu0 0.0
        %2027 = vmatpush.msra.mxu0 0.0
        %2028 = vmatpush.msra.mxu0 0.0
        %2029 = vmatpush.msra.mxu0 0.0
        %2030 = vmatpush.msra.mxu0 %v1893
        %2031 = vmatmul.f32.gmra.mxu0 %v1879
        %v2032 = vpop.f32.mrf.mxu0
        %v2033 = vadd.f32 0.0, %v2032
        %2034 = vdwg.mxu0
        %v2035 = vadd.f32 %v1832, %v1913
        %v2036 = vadd.f32 %v1833, %v1933
        %v2037 = vadd.f32 %v1834, %v1953
        %v2038 = vadd.f32 %v1835, %v1973
        %v2039 = vadd.f32 %v1836, %v1993
        %v2040 = vadd.f32 %v1837, %v2013
        %v2041 = vadd.f32 %v1838, %v2033
        %2042 = vst [vmem:[#allocation1] ss:$2 sm:$0xff] %v438
        %s2043 = scalar_lea.vmem [#allocation1], 16
        %2044 = vst [vmem:[%s2043] ss:$2 sm:$0xff] %v439
        %s2045 = scalar_lea.vmem [#allocation1], 32
        %2046 = vst [vmem:[%s2045] ss:$2 sm:$0xff] %v440
        %s2047 = scalar_lea.vmem [#allocation1], 48
        %2048 = vst [vmem:[%s2047] ss:$2 sm:$0xff] %v441
        %v2049 = vld.sshfl [vmem:[#allocation1] sm:$0xff pattern:$0x75316420]
        %v2050 = vld.sshfl [vmem:[#allocation1 + $0x8] sm:$0xff pattern:$0x75316420]
        %v2051 = vld.sshfl [vmem:[#allocation1 + $0x10] sm:$0xff pattern:$0x75316420]
        %v2052 = vld.sshfl [vmem:[#allocation1 + $0x18] sm:$0xff pattern:$0x75316420]
        %v2053 = vld.sshfl [vmem:[#allocation1 + $0x20] sm:$0xff pattern:$0x75316420]
        %v2054 = vld.sshfl [vmem:[#allocation1 + $0x28] sm:$0xff pattern:$0x75316420]
        %v2055 = vld.sshfl [vmem:[#allocation1 + $0x30] sm:$0xff pattern:$0x75316420]
        %v2056 = vld.sshfl [vmem:[#allocation1 + $0x38] sm:$0xff pattern:$0x75316420]
        %2057 = vrot.lane.b32.xlu0 %v2049, 93
        %v2058 = vpop.permute.xlu0 %2057
        %2059 = vrot.lane.b32.xlu0 %v2050, 93
        %v2060 = vpop.permute.xlu0 %2059
        %2061 = vrot.lane.b32.xlu0 %v2051, 93
        %v2062 = vpop.permute.xlu0 %2061
        %2063 = vrot.lane.b32.xlu0 %v2052, 93
        %v2064 = vpop.permute.xlu0 %2063
        %2065 = vrot.lane.b32.xlu0 %v2053, 93
        %v2066 = vpop.permute.xlu0 %2065
        %2067 = vrot.lane.b32.xlu0 %v2054, 93
        %v2068 = vpop.permute.xlu0 %2067
        %2069 = vrot.lane.b32.xlu0 %v2055, 93
        %v2070 = vpop.permute.xlu0 %2069
        %2071 = vrot.lane.b32.xlu0 %v2056, 93
        %v2072 = vpop.permute.xlu0 %2071
        %vm2073 = vcmask 760832
        %v2074 = vsel %vm2073, %v2058, %v2060
        %v2075 = vsel %vm2073, %v2060, %v2062
        %v2076 = vsel %vm2073, %v2062, %v2064
        %v2077 = vsel %vm2073, %v2064, %v2066
        %v2078 = vsel %vm2073, %v2066, %v2068
        %v2079 = vsel %vm2073, %v2068, %v2070
        %v2080 = vsel %vm2073, %v2070, %v2072
        %v2082 = vsel %vm506, %v450, 0
        %v2084 = vsel %vm510, %v2074, 0
        %v2086 = vsel %vm510, %v2075, 0
        %v2088 = vsel %vm510, %v2076, 0
        %v2090 = vsel %vm510, %v2077, 0
        %v2092 = vsel %vm510, %v2078, 0
        %v2094 = vsel %vm510, %v2079, 0
        %v2096 = vsel %vm510, %v2080, 0
        %2098 = vmatpush.msra.mxu0 0.0
        %2099 = vmatpush.msra.mxu0 0.0
        %2100 = vmatpush.msra.mxu0 0.0
        %2101 = vmatpush.msra.mxu0 0.0
        %2102 = vmatpush.msra.mxu0 0.0
        %2103 = vmatpush.msra.mxu0 0.0
        %2104 = vmatpush.msra.mxu0 0.0
        %2105 = vmatpush.msra.mxu0 0.0
        %2106 = vmatpush.msra.mxu0 0.0
        %2107 = vmatpush.msra.mxu0 0.0
        %2108 = vmatpush.msra.mxu0 0.0
        %2109 = vmatpush.msra.mxu0 0.0
        %2110 = vmatpush.msra.mxu0 0.0
        %2111 = vmatpush.msra.mxu0 0.0
        %2112 = vmatpush.msra.mxu0 0.0
        %2113 = vmatpush.msra.mxu0 %v2084
        %2114 = vmatmul.f32.gmra.mxu0 %v2082
        %v2115 = vpop.f32.mrf.mxu0
        %v2116 = vadd.f32 0.0, %v2115
        %2117 = vdwg.mxu0
        %2118 = vmatpush.msra.mxu0 0.0
        %2119 = vmatpush.msra.mxu0 0.0
        %2120 = vmatpush.msra.mxu0 0.0
        %2121 = vmatpush.msra.mxu0 0.0
        %2122 = vmatpush.msra.mxu0 0.0
        %2123 = vmatpush.msra.mxu0 0.0
        %2124 = vmatpush.msra.mxu0 0.0
        %2125 = vmatpush.msra.mxu0 0.0
        %2126 = vmatpush.msra.mxu0 0.0
        %2127 = vmatpush.msra.mxu0 0.0
        %2128 = vmatpush.msra.mxu0 0.0
        %2129 = vmatpush.msra.mxu0 0.0
        %2130 = vmatpush.msra.mxu0 0.0
        %2131 = vmatpush.msra.mxu0 0.0
        %2132 = vmatpush.msra.mxu0 0.0
        %2133 = vmatpush.msra.mxu0 %v2086
        %2134 = vmatmul.f32.gmra.mxu0 %v2082
        %v2135 = vpop.f32.mrf.mxu0
        %v2136 = vadd.f32 0.0, %v2135
        %2137 = vdwg.mxu0
        %2138 = vmatpush.msra.mxu0 0.0
        %2139 = vmatpush.msra.mxu0 0.0
        %2140 = vmatpush.msra.mxu0 0.0
        %2141 = vmatpush.msra.mxu0 0.0
        %2142 = vmatpush.msra.mxu0 0.0
        %2143 = vmatpush.msra.mxu0 0.0
        %2144 = vmatpush.msra.mxu0 0.0
        %2145 = vmatpush.msra.mxu0 0.0
        %2146 = vmatpush.msra.mxu0 0.0
        %2147 = vmatpush.msra.mxu0 0.0
        %2148 = vmatpush.msra.mxu0 0.0
        %2149 = vmatpush.msra.mxu0 0.0
        %2150 = vmatpush.msra.mxu0 0.0
        %2151 = vmatpush.msra.mxu0 0.0
        %2152 = vmatpush.msra.mxu0 0.0
        %2153 = vmatpush.msra.mxu0 %v2088
        %2154 = vmatmul.f32.gmra.mxu0 %v2082
        %v2155 = vpop.f32.mrf.mxu0
        %v2156 = vadd.f32 0.0, %v2155
        %2157 = vdwg.mxu0
        %2158 = vmatpush.msra.mxu0 0.0
        %2159 = vmatpush.msra.mxu0 0.0
        %2160 = vmatpush.msra.mxu0 0.0
        %2161 = vmatpush.msra.mxu0 0.0
        %2162 = vmatpush.msra.mxu0 0.0
        %2163 = vmatpush.msra.mxu0 0.0
        %2164 = vmatpush.msra.mxu0 0.0
        %2165 = vmatpush.msra.mxu0 0.0
        %2166 = vmatpush.msra.mxu0 0.0
        %2167 = vmatpush.msra.mxu0 0.0
        %2168 = vmatpush.msra.mxu0 0.0
        %2169 = vmatpush.msra.mxu0 0.0
        %2170 = vmatpush.msra.mxu0 0.0
        %2171 = vmatpush.msra.mxu0 0.0
        %2172 = vmatpush.msra.mxu0 0.0
        %2173 = vmatpush.msra.mxu0 %v2090
        %2174 = vmatmul.f32.gmra.mxu0 %v2082
        %v2175 = vpop.f32.mrf.mxu0
        %v2176 = vadd.f32 0.0, %v2175
        %2177 = vdwg.mxu0
        %2178 = vmatpush.msra.mxu0 0.0
        %2179 = vmatpush.msra.mxu0 0.0
        %2180 = vmatpush.msra.mxu0 0.0
        %2181 = vmatpush.msra.mxu0 0.0
        %2182 = vmatpush.msra.mxu0 0.0
        %2183 = vmatpush.msra.mxu0 0.0
        %2184 = vmatpush.msra.mxu0 0.0
        %2185 = vmatpush.msra.mxu0 0.0
        %2186 = vmatpush.msra.mxu0 0.0
        %2187 = vmatpush.msra.mxu0 0.0
        %2188 = vmatpush.msra.mxu0 0.0
        %2189 = vmatpush.msra.mxu0 0.0
        %2190 = vmatpush.msra.mxu0 0.0
        %2191 = vmatpush.msra.mxu0 0.0
        %2192 = vmatpush.msra.mxu0 0.0
        %2193 = vmatpush.msra.mxu0 %v2092
        %2194 = vmatmul.f32.gmra.mxu0 %v2082
        %v2195 = vpop.f32.mrf.mxu0
        %v2196 = vadd.f32 0.0, %v2195
        %2197 = vdwg.mxu0
        %2198 = vmatpush.msra.mxu0 0.0
        %2199 = vmatpush.msra.mxu0 0.0
        %2200 = vmatpush.msra.mxu0 0.0
        %2201 = vmatpush.msra.mxu0 0.0
        %2202 = vmatpush.msra.mxu0 0.0
        %2203 = vmatpush.msra.mxu0 0.0
        %2204 = vmatpush.msra.mxu0 0.0
        %2205 = vmatpush.msra.mxu0 0.0
        %2206 = vmatpush.msra.mxu0 0.0
        %2207 = vmatpush.msra.mxu0 0.0
        %2208 = vmatpush.msra.mxu0 0.0
        %2209 = vmatpush.msra.mxu0 0.0
        %2210 = vmatpush.msra.mxu0 0.0
        %2211 = vmatpush.msra.mxu0 0.0
        %2212 = vmatpush.msra.mxu0 0.0
        %2213 = vmatpush.msra.mxu0 %v2094
        %2214 = vmatmul.f32.gmra.mxu0 %v2082
        %v2215 = vpop.f32.mrf.mxu0
        %v2216 = vadd.f32 0.0, %v2215
        %2217 = vdwg.mxu0
        %2218 = vmatpush.msra.mxu0 0.0
        %2219 = vmatpush.msra.mxu0 0.0
        %2220 = vmatpush.msra.mxu0 0.0
        %2221 = vmatpush.msra.mxu0 0.0
        %2222 = vmatpush.msra.mxu0 0.0
        %2223 = vmatpush.msra.mxu0 0.0
        %2224 = vmatpush.msra.mxu0 0.0
        %2225 = vmatpush.msra.mxu0 0.0
        %2226 = vmatpush.msra.mxu0 0.0
        %2227 = vmatpush.msra.mxu0 0.0
        %2228 = vmatpush.msra.mxu0 0.0
        %2229 = vmatpush.msra.mxu0 0.0
        %2230 = vmatpush.msra.mxu0 0.0
        %2231 = vmatpush.msra.mxu0 0.0
        %2232 = vmatpush.msra.mxu0 0.0
        %2233 = vmatpush.msra.mxu0 %v2096
        %2234 = vmatmul.f32.gmra.mxu0 %v2082
        %v2235 = vpop.f32.mrf.mxu0
        %v2236 = vadd.f32 0.0, %v2235
        %2237 = vdwg.mxu0
        %v2238 = vadd.f32 %v2035, %v2116
        %v2239 = vadd.f32 %v2036, %v2136
        %v2240 = vadd.f32 %v2037, %v2156
        %v2241 = vadd.f32 %v2038, %v2176
        %v2242 = vadd.f32 %v2039, %v2196
        %v2243 = vadd.f32 %v2040, %v2216
        %v2244 = vadd.f32 %v2041, %v2236
        %2245 = vst [vmem:[#allocation1] ss:$2 sm:$0xff] %v438
        %s2246 = scalar_lea.vmem [#allocation1], 16
        %2247 = vst [vmem:[%s2246] ss:$2 sm:$0xff] %v439
        %s2248 = scalar_lea.vmem [#allocation1], 32
        %2249 = vst [vmem:[%s2248] ss:$2 sm:$0xff] %v440
        %s2250 = scalar_lea.vmem [#allocation1], 48
        %2251 = vst [vmem:[%s2250] ss:$2 sm:$0xff] %v441
        %v2252 = vld.sshfl [vmem:[#allocation1] sm:$0xff pattern:$0x75316420]
        %v2253 = vld.sshfl [vmem:[#allocation1 + $0x8] sm:$0xff pattern:$0x75316420]
        %v2254 = vld.sshfl [vmem:[#allocation1 + $0x10] sm:$0xff pattern:$0x75316420]
        %v2255 = vld.sshfl [vmem:[#allocation1 + $0x18] sm:$0xff pattern:$0x75316420]
        %v2256 = vld.sshfl [vmem:[#allocation1 + $0x20] sm:$0xff pattern:$0x75316420]
        %v2257 = vld.sshfl [vmem:[#allocation1 + $0x28] sm:$0xff pattern:$0x75316420]
        %v2258 = vld.sshfl [vmem:[#allocation1 + $0x30] sm:$0xff pattern:$0x75316420]
        %v2259 = vld.sshfl [vmem:[#allocation1 + $0x38] sm:$0xff pattern:$0x75316420]
        %2260 = vrot.lane.b32.xlu0 %v2252, 92
        %v2261 = vpop.permute.xlu0 %2260
        %2262 = vrot.lane.b32.xlu0 %v2253, 92
        %v2263 = vpop.permute.xlu0 %2262
        %2264 = vrot.lane.b32.xlu0 %v2254, 92
        %v2265 = vpop.permute.xlu0 %2264
        %2266 = vrot.lane.b32.xlu0 %v2255, 92
        %v2267 = vpop.permute.xlu0 %2266
        %2268 = vrot.lane.b32.xlu0 %v2256, 92
        %v2269 = vpop.permute.xlu0 %2268
        %2270 = vrot.lane.b32.xlu0 %v2257, 92
        %v2271 = vpop.permute.xlu0 %2270
        %2272 = vrot.lane.b32.xlu0 %v2258, 92
        %v2273 = vpop.permute.xlu0 %2272
        %2274 = vrot.lane.b32.xlu0 %v2259, 92
        %v2275 = vpop.permute.xlu0 %2274
        %vm2276 = vcmask 752640
        %v2277 = vsel %vm2276, %v2261, %v2263
        %v2278 = vsel %vm2276, %v2263, %v2265
        %v2279 = vsel %vm2276, %v2265, %v2267
        %v2280 = vsel %vm2276, %v2267, %v2269
        %v2281 = vsel %vm2276, %v2269, %v2271
        %v2282 = vsel %vm2276, %v2271, %v2273
        %v2283 = vsel %vm2276, %v2273, %v2275
        %v2285 = vsel %vm506, %v451, 0
        %v2287 = vsel %vm510, %v2277, 0
        %v2289 = vsel %vm510, %v2278, 0
        %v2291 = vsel %vm510, %v2279, 0
        %v2293 = vsel %vm510, %v2280, 0
        %v2295 = vsel %vm510, %v2281, 0
        %v2297 = vsel %vm510, %v2282, 0
        %v2299 = vsel %vm510, %v2283, 0
        %2301 = vmatpush.msra.mxu0 0.0
        %2302 = vmatpush.msra.mxu0 0.0
        %2303 = vmatpush.msra.mxu0 0.0
        %2304 = vmatpush.msra.mxu0 0.0
        %2305 = vmatpush.msra.mxu0 0.0
        %2306 = vmatpush.msra.mxu0 0.0
        %2307 = vmatpush.msra.mxu0 0.0
        %2308 = vmatpush.msra.mxu0 0.0
        %2309 = vmatpush.msra.mxu0 0.0
        %2310 = vmatpush.msra.mxu0 0.0
        %2311 = vmatpush.msra.mxu0 0.0
        %2312 = vmatpush.msra.mxu0 0.0
        %2313 = vmatpush.msra.mxu0 0.0
        %2314 = vmatpush.msra.mxu0 0.0
        %2315 = vmatpush.msra.mxu0 0.0
        %2316 = vmatpush.msra.mxu0 %v2287
        %2317 = vmatmul.f32.gmra.mxu0 %v2285
        %v2318 = vpop.f32.mrf.mxu0
        %v2319 = vadd.f32 0.0, %v2318
        %2320 = vdwg.mxu0
        %2321 = vmatpush.msra.mxu0 0.0
        %2322 = vmatpush.msra.mxu0 0.0
        %2323 = vmatpush.msra.mxu0 0.0
        %2324 = vmatpush.msra.mxu0 0.0
        %2325 = vmatpush.msra.mxu0 0.0
        %2326 = vmatpush.msra.mxu0 0.0
        %2327 = vmatpush.msra.mxu0 0.0
        %2328 = vmatpush.msra.mxu0 0.0
        %2329 = vmatpush.msra.mxu0 0.0
        %2330 = vmatpush.msra.mxu0 0.0
        %2331 = vmatpush.msra.mxu0 0.0
        %2332 = vmatpush.msra.mxu0 0.0
        %2333 = vmatpush.msra.mxu0 0.0
        %2334 = vmatpush.msra.mxu0 0.0
        %2335 = vmatpush.msra.mxu0 0.0
        %2336 = vmatpush.msra.mxu0 %v2289
        %2337 = vmatmul.f32.gmra.mxu0 %v2285
        %v2338 = vpop.f32.mrf.mxu0
        %v2339 = vadd.f32 0.0, %v2338
        %2340 = vdwg.mxu0
        %2341 = vmatpush.msra.mxu0 0.0
        %2342 = vmatpush.msra.mxu0 0.0
        %2343 = vmatpush.msra.mxu0 0.0
        %2344 = vmatpush.msra.mxu0 0.0
        %2345 = vmatpush.msra.mxu0 0.0
        %2346 = vmatpush.msra.mxu0 0.0
        %2347 = vmatpush.msra.mxu0 0.0
        %2348 = vmatpush.msra.mxu0 0.0
        %2349 = vmatpush.msra.mxu0 0.0
        %2350 = vmatpush.msra.mxu0 0.0
        %2351 = vmatpush.msra.mxu0 0.0
        %2352 = vmatpush.msra.mxu0 0.0
        %2353 = vmatpush.msra.mxu0 0.0
        %2354 = vmatpush.msra.mxu0 0.0
        %2355 = vmatpush.msra.mxu0 0.0
        %2356 = vmatpush.msra.mxu0 %v2291
        %2357 = vmatmul.f32.gmra.mxu0 %v2285
        %v2358 = vpop.f32.mrf.mxu0
        %v2359 = vadd.f32 0.0, %v2358
        %2360 = vdwg.mxu0
        %2361 = vmatpush.msra.mxu0 0.0
        %2362 = vmatpush.msra.mxu0 0.0
        %2363 = vmatpush.msra.mxu0 0.0
        %2364 = vmatpush.msra.mxu0 0.0
        %2365 = vmatpush.msra.mxu0 0.0
        %2366 = vmatpush.msra.mxu0 0.0
        %2367 = vmatpush.msra.mxu0 0.0
        %2368 = vmatpush.msra.mxu0 0.0
        %2369 = vmatpush.msra.mxu0 0.0
        %2370 = vmatpush.msra.mxu0 0.0
        %2371 = vmatpush.msra.mxu0 0.0
        %2372 = vmatpush.msra.mxu0 0.0
        %2373 = vmatpush.msra.mxu0 0.0
        %2374 = vmatpush.msra.mxu0 0.0
        %2375 = vmatpush.msra.mxu0 0.0
        %2376 = vmatpush.msra.mxu0 %v2293
        %2377 = vmatmul.f32.gmra.mxu0 %v2285
        %v2378 = vpop.f32.mrf.mxu0
        %v2379 = vadd.f32 0.0, %v2378
        %2380 = vdwg.mxu0
        %2381 = vmatpush.msra.mxu0 0.0
        %2382 = vmatpush.msra.mxu0 0.0
        %2383 = vmatpush.msra.mxu0 0.0
        %2384 = vmatpush.msra.mxu0 0.0
        %2385 = vmatpush.msra.mxu0 0.0
        %2386 = vmatpush.msra.mxu0 0.0
        %2387 = vmatpush.msra.mxu0 0.0
        %2388 = vmatpush.msra.mxu0 0.0
        %2389 = vmatpush.msra.mxu0 0.0
        %2390 = vmatpush.msra.mxu0 0.0
        %2391 = vmatpush.msra.mxu0 0.0
        %2392 = vmatpush.msra.mxu0 0.0
        %2393 = vmatpush.msra.mxu0 0.0
        %2394 = vmatpush.msra.mxu0 0.0
        %2395 = vmatpush.msra.mxu0 0.0
        %2396 = vmatpush.msra.mxu0 %v2295
        %2397 = vmatmul.f32.gmra.mxu0 %v2285
        %v2398 = vpop.f32.mrf.mxu0
        %v2399 = vadd.f32 0.0, %v2398
        %2400 = vdwg.mxu0
        %2401 = vmatpush.msra.mxu0 0.0
        %2402 = vmatpush.msra.mxu0 0.0
        %2403 = vmatpush.msra.mxu0 0.0
        %2404 = vmatpush.msra.mxu0 0.0
        %2405 = vmatpush.msra.mxu0 0.0
        %2406 = vmatpush.msra.mxu0 0.0
        %2407 = vmatpush.msra.mxu0 0.0
        %2408 = vmatpush.msra.mxu0 0.0
        %2409 = vmatpush.msra.mxu0 0.0
        %2410 = vmatpush.msra.mxu0 0.0
        %2411 = vmatpush.msra.mxu0 0.0
        %2412 = vmatpush.msra.mxu0 0.0
        %2413 = vmatpush.msra.mxu0 0.0
        %2414 = vmatpush.msra.mxu0 0.0
        %2415 = vmatpush.msra.mxu0 0.0
        %2416 = vmatpush.msra.mxu0 %v2297
        %2417 = vmatmul.f32.gmra.mxu0 %v2285
        %v2418 = vpop.f32.mrf.mxu0
        %v2419 = vadd.f32 0.0, %v2418
        %2420 = vdwg.mxu0
        %2421 = vmatpush.msra.mxu0 0.0
        %2422 = vmatpush.msra.mxu0 0.0
        %2423 = vmatpush.msra.mxu0 0.0
        %2424 = vmatpush.msra.mxu0 0.0
        %2425 = vmatpush.msra.mxu0 0.0
        %2426 = vmatpush.msra.mxu0 0.0
        %2427 = vmatpush.msra.mxu0 0.0
        %2428 = vmatpush.msra.mxu0 0.0
        %2429 = vmatpush.msra.mxu0 0.0
        %2430 = vmatpush.msra.mxu0 0.0
        %2431 = vmatpush.msra.mxu0 0.0
        %2432 = vmatpush.msra.mxu0 0.0
        %2433 = vmatpush.msra.mxu0 0.0
        %2434 = vmatpush.msra.mxu0 0.0
        %2435 = vmatpush.msra.mxu0 0.0
        %2436 = vmatpush.msra.mxu0 %v2299
        %2437 = vmatmul.f32.gmra.mxu0 %v2285
        %v2438 = vpop.f32.mrf.mxu0
        %v2439 = vadd.f32 0.0, %v2438
        %2440 = vdwg.mxu0
        %v2441 = vadd.f32 %v2238, %v2319
        %v2442 = vadd.f32 %v2239, %v2339
        %v2443 = vadd.f32 %v2240, %v2359
        %v2444 = vadd.f32 %v2241, %v2379
        %v2445 = vadd.f32 %v2242, %v2399
        %v2446 = vadd.f32 %v2243, %v2419
        %v2447 = vadd.f32 %v2244, %v2439
        %2448 = vst [vmem:[#allocation1] ss:$2 sm:$0xff] %v438
        %s2449 = scalar_lea.vmem [#allocation1], 16
        %2450 = vst [vmem:[%s2449] ss:$2 sm:$0xff] %v439
        %s2451 = scalar_lea.vmem [#allocation1], 32
        %2452 = vst [vmem:[%s2451] ss:$2 sm:$0xff] %v440
        %s2453 = scalar_lea.vmem [#allocation1], 48
        %2454 = vst [vmem:[%s2453] ss:$2 sm:$0xff] %v441
        %v2455 = vld.sshfl [vmem:[#allocation1] sm:$0xff pattern:$0x75316420]
        %v2456 = vld.sshfl [vmem:[#allocation1 + $0x8] sm:$0xff pattern:$0x75316420]
        %v2457 = vld.sshfl [vmem:[#allocation1 + $0x10] sm:$0xff pattern:$0x75316420]
        %v2458 = vld.sshfl [vmem:[#allocation1 + $0x18] sm:$0xff pattern:$0x75316420]
        %v2459 = vld.sshfl [vmem:[#allocation1 + $0x20] sm:$0xff pattern:$0x75316420]
        %v2460 = vld.sshfl [vmem:[#allocation1 + $0x28] sm:$0xff pattern:$0x75316420]
        %v2461 = vld.sshfl [vmem:[#allocation1 + $0x30] sm:$0xff pattern:$0x75316420]
        %v2462 = vld.sshfl [vmem:[#allocation1 + $0x38] sm:$0xff pattern:$0x75316420]
        %2463 = vrot.lane.b32.xlu0 %v2455, 64
        %v2464 = vpop.permute.xlu0 %2463
        %2465 = vrot.lane.b32.xlu0 %v2456, 64
        %v2466 = vpop.permute.xlu0 %2465
        %2467 = vrot.lane.b32.xlu0 %v2457, 64
        %v2468 = vpop.permute.xlu0 %2467
        %2469 = vrot.lane.b32.xlu0 %v2458, 64
        %v2470 = vpop.permute.xlu0 %2469
        %2471 = vrot.lane.b32.xlu0 %v2459, 64
        %v2472 = vpop.permute.xlu0 %2471
        %2473 = vrot.lane.b32.xlu0 %v2460, 64
        %v2474 = vpop.permute.xlu0 %2473
        %2475 = vrot.lane.b32.xlu0 %v2461, 64
        %v2476 = vpop.permute.xlu0 %2475
        %2477 = vrot.lane.b32.xlu0 %v2462, 64
        %v2478 = vpop.permute.xlu0 %2477
        %vm2479 = vcmask 523264
        %v2480 = vsel %vm2479, %v2464, %v2466
        %v2481 = vsel %vm2479, %v2466, %v2468
        %v2482 = vsel %vm2479, %v2468, %v2470
        %v2483 = vsel %vm2479, %v2470, %v2472
        %v2484 = vsel %vm2479, %v2472, %v2474
        %v2485 = vsel %vm2479, %v2474, %v2476
        %v2486 = vsel %vm2479, %v2476, %v2478
        %v2488 = vsel %vm506, %v452, 0
        %v2490 = vsel %vm510, %v2480, 0
        %v2492 = vsel %vm510, %v2481, 0
        %v2494 = vsel %vm510, %v2482, 0
        %v2496 = vsel %vm510, %v2483, 0
        %v2498 = vsel %vm510, %v2484, 0
        %v2500 = vsel %vm510, %v2485, 0
        %v2502 = vsel %vm510, %v2486, 0
        %2504 = vmatpush.msra.mxu0 0.0
        %2505 = vmatpush.msra.mxu0 0.0
        %2506 = vmatpush.msra.mxu0 0.0
        %2507 = vmatpush.msra.mxu0 0.0
        %2508 = vmatpush.msra.mxu0 0.0
        %2509 = vmatpush.msra.mxu0 0.0
        %2510 = vmatpush.msra.mxu0 0.0
        %2511 = vmatpush.msra.mxu0 0.0
        %2512 = vmatpush.msra.mxu0 0.0
        %2513 = vmatpush.msra.mxu0 0.0
        %2514 = vmatpush.msra.mxu0 0.0
        %2515 = vmatpush.msra.mxu0 0.0
        %2516 = vmatpush.msra.mxu0 0.0
        %2517 = vmatpush.msra.mxu0 0.0
        %2518 = vmatpush.msra.mxu0 0.0
        %2519 = vmatpush.msra.mxu0 %v2490
        %2520 = vmatmul.f32.gmra.mxu0 %v2488
        %v2521 = vpop.f32.mrf.mxu0
        %v2522 = vadd.f32 0.0, %v2521
        %2523 = vdwg.mxu0
        %2524 = vmatpush.msra.mxu0 0.0
        %2525 = vmatpush.msra.mxu0 0.0
        %2526 = vmatpush.msra.mxu0 0.0
        %2527 = vmatpush.msra.mxu0 0.0
        %2528 = vmatpush.msra.mxu0 0.0
        %2529 = vmatpush.msra.mxu0 0.0
        %2530 = vmatpush.msra.mxu0 0.0
        %2531 = vmatpush.msra.mxu0 0.0
        %2532 = vmatpush.msra.mxu0 0.0
        %2533 = vmatpush.msra.mxu0 0.0
        %2534 = vmatpush.msra.mxu0 0.0
        %2535 = vmatpush.msra.mxu0 0.0
        %2536 = vmatpush.msra.mxu0 0.0
        %2537 = vmatpush.msra.mxu0 0.0
        %2538 = vmatpush.msra.mxu0 0.0
        %2539 = vmatpush.msra.mxu0 %v2492
        %2540 = vmatmul.f32.gmra.mxu0 %v2488
        %v2541 = vpop.f32.mrf.mxu0
        %v2542 = vadd.f32 0.0, %v2541
        %2543 = vdwg.mxu0
        %2544 = vmatpush.msra.mxu0 0.0
        %2545 = vmatpush.msra.mxu0 0.0
        %2546 = vmatpush.msra.mxu0 0.0
        %2547 = vmatpush.msra.mxu0 0.0
        %2548 = vmatpush.msra.mxu0 0.0
        %2549 = vmatpush.msra.mxu0 0.0
        %2550 = vmatpush.msra.mxu0 0.0
        %2551 = vmatpush.msra.mxu0 0.0
        %2552 = vmatpush.msra.mxu0 0.0
        %2553 = vmatpush.msra.mxu0 0.0
        %2554 = vmatpush.msra.mxu0 0.0
        %2555 = vmatpush.msra.mxu0 0.0
        %2556 = vmatpush.msra.mxu0 0.0
        %2557 = vmatpush.msra.mxu0 0.0
        %2558 = vmatpush.msra.mxu0 0.0
        %2559 = vmatpush.msra.mxu0 %v2494
        %2560 = vmatmul.f32.gmra.mxu0 %v2488
        %v2561 = vpop.f32.mrf.mxu0
        %v2562 = vadd.f32 0.0, %v2561
        %2563 = vdwg.mxu0
        %2564 = vmatpush.msra.mxu0 0.0
        %2565 = vmatpush.msra.mxu0 0.0
        %2566 = vmatpush.msra.mxu0 0.0
        %2567 = vmatpush.msra.mxu0 0.0
        %2568 = vmatpush.msra.mxu0 0.0
        %2569 = vmatpush.msra.mxu0 0.0
        %2570 = vmatpush.msra.mxu0 0.0
        %2571 = vmatpush.msra.mxu0 0.0
        %2572 = vmatpush.msra.mxu0 0.0
        %2573 = vmatpush.msra.mxu0 0.0
        %2574 = vmatpush.msra.mxu0 0.0
        %2575 = vmatpush.msra.mxu0 0.0
        %2576 = vmatpush.msra.mxu0 0.0
        %2577 = vmatpush.msra.mxu0 0.0
        %2578 = vmatpush.msra.mxu0 0.0
        %2579 = vmatpush.msra.mxu0 %v2496
        %2580 = vmatmul.f32.gmra.mxu0 %v2488
        %v2581 = vpop.f32.mrf.mxu0
        %v2582 = vadd.f32 0.0, %v2581
        %2583 = vdwg.mxu0
        %2584 = vmatpush.msra.mxu0 0.0
        %2585 = vmatpush.msra.mxu0 0.0
        %2586 = vmatpush.msra.mxu0 0.0
        %2587 = vmatpush.msra.mxu0 0.0
        %2588 = vmatpush.msra.mxu0 0.0
        %2589 = vmatpush.msra.mxu0 0.0
        %2590 = vmatpush.msra.mxu0 0.0
        %2591 = vmatpush.msra.mxu0 0.0
        %2592 = vmatpush.msra.mxu0 0.0
        %2593 = vmatpush.msra.mxu0 0.0
        %2594 = vmatpush.msra.mxu0 0.0
        %2595 = vmatpush.msra.mxu0 0.0
        %2596 = vmatpush.msra.mxu0 0.0
        %2597 = vmatpush.msra.mxu0 0.0
        %2598 = vmatpush.msra.mxu0 0.0
        %2599 = vmatpush.msra.mxu0 %v2498
        %2600 = vmatmul.f32.gmra.mxu0 %v2488
        %v2601 = vpop.f32.mrf.mxu0
        %v2602 = vadd.f32 0.0, %v2601
        %2603 = vdwg.mxu0
        %2604 = vmatpush.msra.mxu0 0.0
        %2605 = vmatpush.msra.mxu0 0.0
        %2606 = vmatpush.msra.mxu0 0.0
        %2607 = vmatpush.msra.mxu0 0.0
        %2608 = vmatpush.msra.mxu0 0.0
        %2609 = vmatpush.msra.mxu0 0.0
        %2610 = vmatpush.msra.mxu0 0.0
        %2611 = vmatpush.msra.mxu0 0.0
        %2612 = vmatpush.msra.mxu0 0.0
        %2613 = vmatpush.msra.mxu0 0.0
        %2614 = vmatpush.msra.mxu0 0.0
        %2615 = vmatpush.msra.mxu0 0.0
        %2616 = vmatpush.msra.mxu0 0.0
        %2617 = vmatpush.msra.mxu0 0.0
        %2618 = vmatpush.msra.mxu0 0.0
        %2619 = vmatpush.msra.mxu0 %v2500
        %2620 = vmatmul.f32.gmra.mxu0 %v2488
        %v2621 = vpop.f32.mrf.mxu0
        %v2622 = vadd.f32 0.0, %v2621
        %2623 = vdwg.mxu0
        %2624 = vmatpush.msra.mxu0 0.0
        %2625 = vmatpush.msra.mxu0 0.0
        %2626 = vmatpush.msra.mxu0 0.0
        %2627 = vmatpush.msra.mxu0 0.0
        %2628 = vmatpush.msra.mxu0 0.0
        %2629 = vmatpush.msra.mxu0 0.0
        %2630 = vmatpush.msra.mxu0 0.0
        %2631 = vmatpush.msra.mxu0 0.0
        %2632 = vmatpush.msra.mxu0 0.0
        %2633 = vmatpush.msra.mxu0 0.0
        %2634 = vmatpush.msra.mxu0 0.0
        %2635 = vmatpush.msra.mxu0 0.0
        %2636 = vmatpush.msra.mxu0 0.0
        %2637 = vmatpush.msra.mxu0 0.0
        %2638 = vmatpush.msra.mxu0 0.0
        %2639 = vmatpush.msra.mxu0 %v2502
        %2640 = vmatmul.f32.gmra.mxu0 %v2488
        %v2641 = vpop.f32.mrf.mxu0
        %v2642 = vadd.f32 0.0, %v2641
        %2643 = vdwg.mxu0
        %v2644 = vadd.f32 %v2441, %v2522
        %v2645 = vadd.f32 %v2442, %v2542
        %v2646 = vadd.f32 %v2443, %v2562
        %v2647 = vadd.f32 %v2444, %v2582
        %v2648 = vadd.f32 %v2445, %v2602
        %v2649 = vadd.f32 %v2446, %v2622
        %v2650 = vadd.f32 %v2447, %v2642
        %2651 = vst [vmem:[#allocation1] ss:$2 sm:$0xff] %v438
        %s2652 = scalar_lea.vmem [#allocation1], 16
        %2653 = vst [vmem:[%s2652] ss:$2 sm:$0xff] %v439
        %s2654 = scalar_lea.vmem [#allocation1], 32
        %2655 = vst [vmem:[%s2654] ss:$2 sm:$0xff] %v440
        %s2656 = scalar_lea.vmem [#allocation1], 48
        %2657 = vst [vmem:[%s2656] ss:$2 sm:$0xff] %v441
        %v2658 = vld.sshfl [vmem:[#allocation1] sm:$0xff pattern:$0x75316420]
        %v2659 = vld.sshfl [vmem:[#allocation1 + $0x8] sm:$0xff pattern:$0x75316420]
        %v2660 = vld.sshfl [vmem:[#allocation1 + $0x10] sm:$0xff pattern:$0x75316420]
        %v2661 = vld.sshfl [vmem:[#allocation1 + $0x18] sm:$0xff pattern:$0x75316420]
        %v2662 = vld.sshfl [vmem:[#allocation1 + $0x20] sm:$0xff pattern:$0x75316420]
        %v2663 = vld.sshfl [vmem:[#allocation1 + $0x28] sm:$0xff pattern:$0x75316420]
        %v2664 = vld.sshfl [vmem:[#allocation1 + $0x30] sm:$0xff pattern:$0x75316420]
        %v2665 = vld.sshfl [vmem:[#allocation1 + $0x38] sm:$0xff pattern:$0x75316420]
        %2666 = vrot.lane.b32.xlu0 %v2658, 63
        %v2667 = vpop.permute.xlu0 %2666
        %2668 = vrot.lane.b32.xlu0 %v2659, 63
        %v2669 = vpop.permute.xlu0 %2668
        %2670 = vrot.lane.b32.xlu0 %v2660, 63
        %v2671 = vpop.permute.xlu0 %2670
        %2672 = vrot.lane.b32.xlu0 %v2661, 63
        %v2673 = vpop.permute.xlu0 %2672
        %2674 = vrot.lane.b32.xlu0 %v2662, 63
        %v2675 = vpop.permute.xlu0 %2674
        %2676 = vrot.lane.b32.xlu0 %v2663, 63
        %v2677 = vpop.permute.xlu0 %2676
        %2678 = vrot.lane.b32.xlu0 %v2664, 63
        %v2679 = vpop.permute.xlu0 %2678
        %2680 = vrot.lane.b32.xlu0 %v2665, 63
        %v2681 = vpop.permute.xlu0 %2680
        %vm2682 = vcmask 515072
        %v2683 = vsel %vm2682, %v2667, %v2669
        %v2684 = vsel %vm2682, %v2669, %v2671
        %v2685 = vsel %vm2682, %v2671, %v2673
        %v2686 = vsel %vm2682, %v2673, %v2675
        %v2687 = vsel %vm2682, %v2675, %v2677
        %v2688 = vsel %vm2682, %v2677, %v2679
        %v2689 = vsel %vm2682, %v2679, %v2681
        %v2691 = vsel %vm506, %v453, 0
        %v2693 = vsel %vm510, %v2683, 0
        %v2695 = vsel %vm510, %v2684, 0
        %v2697 = vsel %vm510, %v2685, 0
        %v2699 = vsel %vm510, %v2686, 0
        %v2701 = vsel %vm510, %v2687, 0
        %v2703 = vsel %vm510, %v2688, 0
        %v2705 = vsel %vm510, %v2689, 0
        %2707 = vmatpush.msra.mxu0 0.0
        %2708 = vmatpush.msra.mxu0 0.0
        %2709 = vmatpush.msra.mxu0 0.0
        %2710 = vmatpush.msra.mxu0 0.0
        %2711 = vmatpush.msra.mxu0 0.0
        %2712 = vmatpush.msra.mxu0 0.0
        %2713 = vmatpush.msra.mxu0 0.0
        %2714 = vmatpush.msra.mxu0 0.0
        %2715 = vmatpush.msra.mxu0 0.0
        %2716 = vmatpush.msra.mxu0 0.0
        %2717 = vmatpush.msra.mxu0 0.0
        %2718 = vmatpush.msra.mxu0 0.0
        %2719 = vmatpush.msra.mxu0 0.0
        %2720 = vmatpush.msra.mxu0 0.0
        %2721 = vmatpush.msra.mxu0 0.0
        %2722 = vmatpush.msra.mxu0 %v2693
        %2723 = vmatmul.f32.gmra.mxu0 %v2691
        %v2724 = vpop.f32.mrf.mxu0
        %v2725 = vadd.f32 0.0, %v2724
        %2726 = vdwg.mxu0
        %2727 = vmatpush.msra.mxu0 0.0
        %2728 = vmatpush.msra.mxu0 0.0
        %2729 = vmatpush.msra.mxu0 0.0
        %2730 = vmatpush.msra.mxu0 0.0
        %2731 = vmatpush.msra.mxu0 0.0
        %2732 = vmatpush.msra.mxu0 0.0
        %2733 = vmatpush.msra.mxu0 0.0
        %2734 = vmatpush.msra.mxu0 0.0
        %2735 = vmatpush.msra.mxu0 0.0
        %2736 = vmatpush.msra.mxu0 0.0
        %2737 = vmatpush.msra.mxu0 0.0
        %2738 = vmatpush.msra.mxu0 0.0
        %2739 = vmatpush.msra.mxu0 0.0
        %2740 = vmatpush.msra.mxu0 0.0
        %2741 = vmatpush.msra.mxu0 0.0
        %2742 = vmatpush.msra.mxu0 %v2695
        %2743 = vmatmul.f32.gmra.mxu0 %v2691
        %v2744 = vpop.f32.mrf.mxu0
        %v2745 = vadd.f32 0.0, %v2744
        %2746 = vdwg.mxu0
        %2747 = vmatpush.msra.mxu0 0.0
        %2748 = vmatpush.msra.mxu0 0.0
        %2749 = vmatpush.msra.mxu0 0.0
        %2750 = vmatpush.msra.mxu0 0.0
        %2751 = vmatpush.msra.mxu0 0.0
        %2752 = vmatpush.msra.mxu0 0.0
        %2753 = vmatpush.msra.mxu0 0.0
        %2754 = vmatpush.msra.mxu0 0.0
        %2755 = vmatpush.msra.mxu0 0.0
        %2756 = vmatpush.msra.mxu0 0.0
        %2757 = vmatpush.msra.mxu0 0.0
        %2758 = vmatpush.msra.mxu0 0.0
        %2759 = vmatpush.msra.mxu0 0.0
        %2760 = vmatpush.msra.mxu0 0.0
        %2761 = vmatpush.msra.mxu0 0.0
        %2762 = vmatpush.msra.mxu0 %v2697
        %2763 = vmatmul.f32.gmra.mxu0 %v2691
        %v2764 = vpop.f32.mrf.mxu0
        %v2765 = vadd.f32 0.0, %v2764
        %2766 = vdwg.mxu0
        %2767 = vmatpush.msra.mxu0 0.0
        %2768 = vmatpush.msra.mxu0 0.0
        %2769 = vmatpush.msra.mxu0 0.0
        %2770 = vmatpush.msra.mxu0 0.0
        %2771 = vmatpush.msra.mxu0 0.0
        %2772 = vmatpush.msra.mxu0 0.0
        %2773 = vmatpush.msra.mxu0 0.0
        %2774 = vmatpush.msra.mxu0 0.0
        %2775 = vmatpush.msra.mxu0 0.0
        %2776 = vmatpush.msra.mxu0 0.0
        %2777 = vmatpush.msra.mxu0 0.0
        %2778 = vmatpush.msra.mxu0 0.0
        %2779 = vmatpush.msra.mxu0 0.0
        %2780 = vmatpush.msra.mxu0 0.0
        %2781 = vmatpush.msra.mxu0 0.0
        %2782 = vmatpush.msra.mxu0 %v2699
        %2783 = vmatmul.f32.gmra.mxu0 %v2691
        %v2784 = vpop.f32.mrf.mxu0
        %v2785 = vadd.f32 0.0, %v2784
        %2786 = vdwg.mxu0
        %2787 = vmatpush.msra.mxu0 0.0
        %2788 = vmatpush.msra.mxu0 0.0
        %2789 = vmatpush.msra.mxu0 0.0
        %2790 = vmatpush.msra.mxu0 0.0
        %2791 = vmatpush.msra.mxu0 0.0
        %2792 = vmatpush.msra.mxu0 0.0
        %2793 = vmatpush.msra.mxu0 0.0
        %2794 = vmatpush.msra.mxu0 0.0
        %2795 = vmatpush.msra.mxu0 0.0
        %2796 = vmatpush.msra.mxu0 0.0
        %2797 = vmatpush.msra.mxu0 0.0
        %2798 = vmatpush.msra.mxu0 0.0
        %2799 = vmatpush.msra.mxu0 0.0
        %2800 = vmatpush.msra.mxu0 0.0
        %2801 = vmatpush.msra.mxu0 0.0
        %2802 = vmatpush.msra.mxu0 %v2701
        %2803 = vmatmul.f32.gmra.mxu0 %v2691
        %v2804 = vpop.f32.mrf.mxu0
        %v2805 = vadd.f32 0.0, %v2804
        %2806 = vdwg.mxu0
        %2807 = vmatpush.msra.mxu0 0.0
        %2808 = vmatpush.msra.mxu0 0.0
        %2809 = vmatpush.msra.mxu0 0.0
        %2810 = vmatpush.msra.mxu0 0.0
        %2811 = vmatpush.msra.mxu0 0.0
        %2812 = vmatpush.msra.mxu0 0.0
        %2813 = vmatpush.msra.mxu0 0.0
        %2814 = vmatpush.msra.mxu0 0.0
        %2815 = vmatpush.msra.mxu0 0.0
        %2816 = vmatpush.msra.mxu0 0.0
        %2817 = vmatpush.msra.mxu0 0.0
        %2818 = vmatpush.msra.mxu0 0.0
        %2819 = vmatpush.msra.mxu0 0.0
        %2820 = vmatpush.msra.mxu0 0.0
        %2821 = vmatpush.msra.mxu0 0.0
        %2822 = vmatpush.msra.mxu0 %v2703
        %2823 = vmatmul.f32.gmra.mxu0 %v2691
        %v2824 = vpop.f32.mrf.mxu0
        %v2825 = vadd.f32 0.0, %v2824
        %2826 = vdwg.mxu0
        %2827 = vmatpush.msra.mxu0 0.0
        %2828 = vmatpush.msra.mxu0 0.0
        %2829 = vmatpush.msra.mxu0 0.0
        %2830 = vmatpush.msra.mxu0 0.0
        %2831 = vmatpush.msra.mxu0 0.0
        %2832 = vmatpush.msra.mxu0 0.0
        %2833 = vmatpush.msra.mxu0 0.0
        %2834 = vmatpush.msra.mxu0 0.0
        %2835 = vmatpush.msra.mxu0 0.0
        %2836 = vmatpush.msra.mxu0 0.0
        %2837 = vmatpush.msra.mxu0 0.0
        %2838 = vmatpush.msra.mxu0 0.0
        %2839 = vmatpush.msra.mxu0 0.0
        %2840 = vmatpush.msra.mxu0 0.0
        %2841 = vmatpush.msra.mxu0 0.0
        %2842 = vmatpush.msra.mxu0 %v2705
        %2843 = vmatmul.f32.gmra.mxu0 %v2691
        %v2844 = vpop.f32.mrf.mxu0
        %v2845 = vadd.f32 0.0, %v2844
        %2846 = vdwg.mxu0
        %v2847 = vadd.f32 %v2644, %v2725
        %v2848 = vadd.f32 %v2645, %v2745
        %v2849 = vadd.f32 %v2646, %v2765
        %v2850 = vadd.f32 %v2647, %v2785
        %v2851 = vadd.f32 %v2648, %v2805
        %v2852 = vadd.f32 %v2649, %v2825
        %v2853 = vadd.f32 %v2650, %v2845
        %2854 = vst [vmem:[#allocation1] ss:$2 sm:$0xff] %v438
        %s2855 = scalar_lea.vmem [#allocation1], 16
        %2856 = vst [vmem:[%s2855] ss:$2 sm:$0xff] %v439
        %s2857 = scalar_lea.vmem [#allocation1], 32
        %2858 = vst [vmem:[%s2857] ss:$2 sm:$0xff] %v440
        %s2859 = scalar_lea.vmem [#allocation1], 48
        %2860 = vst [vmem:[%s2859] ss:$2 sm:$0xff] %v441
        %v2861 = vld.sshfl [vmem:[#allocation1] sm:$0xff pattern:$0x75316420]
        %v2862 = vld.sshfl [vmem:[#allocation1 + $0x8] sm:$0xff pattern:$0x75316420]
        %v2863 = vld.sshfl [vmem:[#allocation1 + $0x10] sm:$0xff pattern:$0x75316420]
        %v2864 = vld.sshfl [vmem:[#allocation1 + $0x18] sm:$0xff pattern:$0x75316420]
        %v2865 = vld.sshfl [vmem:[#allocation1 + $0x20] sm:$0xff pattern:$0x75316420]
        %v2866 = vld.sshfl [vmem:[#allocation1 + $0x28] sm:$0xff pattern:$0x75316420]
        %v2867 = vld.sshfl [vmem:[#allocation1 + $0x30] sm:$0xff pattern:$0x75316420]
        %v2868 = vld.sshfl [vmem:[#allocation1 + $0x38] sm:$0xff pattern:$0x75316420]
        %2869 = vrot.lane.b32.xlu0 %v2861, 62
        %v2870 = vpop.permute.xlu0 %2869
        %2871 = vrot.lane.b32.xlu0 %v2862, 62
        %v2872 = vpop.permute.xlu0 %2871
        %2873 = vrot.lane.b32.xlu0 %v2863, 62
        %v2874 = vpop.permute.xlu0 %2873
        %2875 = vrot.lane.b32.xlu0 %v2864, 62
        %v2876 = vpop.permute.xlu0 %2875
        %2877 = vrot.lane.b32.xlu0 %v2865, 62
        %v2878 = vpop.permute.xlu0 %2877
        %2879 = vrot.lane.b32.xlu0 %v2866, 62
        %v2880 = vpop.permute.xlu0 %2879
        %2881 = vrot.lane.b32.xlu0 %v2867, 62
        %v2882 = vpop.permute.xlu0 %2881
        %2883 = vrot.lane.b32.xlu0 %v2868, 62
        %v2884 = vpop.permute.xlu0 %2883
        %vm2885 = vcmask 506880
        %v2886 = vsel %vm2885, %v2870, %v2872
        %v2887 = vsel %vm2885, %v2872, %v2874
        %v2888 = vsel %vm2885, %v2874, %v2876
        %v2889 = vsel %vm2885, %v2876, %v2878
        %v2890 = vsel %vm2885, %v2878, %v2880
        %v2891 = vsel %vm2885, %v2880, %v2882
        %v2892 = vsel %vm2885, %v2882, %v2884
        %v2894 = vsel %vm506, %v454, 0
        %v2896 = vsel %vm510, %v2886, 0
        %v2898 = vsel %vm510, %v2887, 0
        %v2900 = vsel %vm510, %v2888, 0
        %v2902 = vsel %vm510, %v2889, 0
        %v2904 = vsel %vm510, %v2890, 0
        %v2906 = vsel %vm510, %v2891, 0
        %v2908 = vsel %vm510, %v2892, 0
        %2910 = vmatpush.msra.mxu0 0.0
        %2911 = vmatpush.msra.mxu0 0.0
        %2912 = vmatpush.msra.mxu0 0.0
        %2913 = vmatpush.msra.mxu0 0.0
        %2914 = vmatpush.msra.mxu0 0.0
        %2915 = vmatpush.msra.mxu0 0.0
        %2916 = vmatpush.msra.mxu0 0.0
        %2917 = vmatpush.msra.mxu0 0.0
        %2918 = vmatpush.msra.mxu0 0.0
        %2919 = vmatpush.msra.mxu0 0.0
        %2920 = vmatpush.msra.mxu0 0.0
        %2921 = vmatpush.msra.mxu0 0.0
        %2922 = vmatpush.msra.mxu0 0.0
        %2923 = vmatpush.msra.mxu0 0.0
        %2924 = vmatpush.msra.mxu0 0.0
        %2925 = vmatpush.msra.mxu0 %v2896
        %2926 = vmatmul.f32.gmra.mxu0 %v2894
        %v2927 = vpop.f32.mrf.mxu0
        %v2928 = vadd.f32 0.0, %v2927
        %2929 = vdwg.mxu0
        %2930 = vmatpush.msra.mxu0 0.0
        %2931 = vmatpush.msra.mxu0 0.0
        %2932 = vmatpush.msra.mxu0 0.0
        %2933 = vmatpush.msra.mxu0 0.0
        %2934 = vmatpush.msra.mxu0 0.0
        %2935 = vmatpush.msra.mxu0 0.0
        %2936 = vmatpush.msra.mxu0 0.0
        %2937 = vmatpush.msra.mxu0 0.0
        %2938 = vmatpush.msra.mxu0 0.0
        %2939 = vmatpush.msra.mxu0 0.0
        %2940 = vmatpush.msra.mxu0 0.0
        %2941 = vmatpush.msra.mxu0 0.0
        %2942 = vmatpush.msra.mxu0 0.0
        %2943 = vmatpush.msra.mxu0 0.0
        %2944 = vmatpush.msra.mxu0 0.0
        %2945 = vmatpush.msra.mxu0 %v2898
        %2946 = vmatmul.f32.gmra.mxu0 %v2894
        %v2947 = vpop.f32.mrf.mxu0
        %v2948 = vadd.f32 0.0, %v2947
        %2949 = vdwg.mxu0
        %2950 = vmatpush.msra.mxu0 0.0
        %2951 = vmatpush.msra.mxu0 0.0
        %2952 = vmatpush.msra.mxu0 0.0
        %2953 = vmatpush.msra.mxu0 0.0
        %2954 = vmatpush.msra.mxu0 0.0
        %2955 = vmatpush.msra.mxu0 0.0
        %2956 = vmatpush.msra.mxu0 0.0
        %2957 = vmatpush.msra.mxu0 0.0
        %2958 = vmatpush.msra.mxu0 0.0
        %2959 = vmatpush.msra.mxu0 0.0
        %2960 = vmatpush.msra.mxu0 0.0
        %2961 = vmatpush.msra.mxu0 0.0
        %2962 = vmatpush.msra.mxu0 0.0
        %2963 = vmatpush.msra.mxu0 0.0
        %2964 = vmatpush.msra.mxu0 0.0
        %2965 = vmatpush.msra.mxu0 %v2900
        %2966 = vmatmul.f32.gmra.mxu0 %v2894
        %v2967 = vpop.f32.mrf.mxu0
        %v2968 = vadd.f32 0.0, %v2967
        %2969 = vdwg.mxu0
        %2970 = vmatpush.msra.mxu0 0.0
        %2971 = vmatpush.msra.mxu0 0.0
        %2972 = vmatpush.msra.mxu0 0.0
        %2973 = vmatpush.msra.mxu0 0.0
        %2974 = vmatpush.msra.mxu0 0.0
        %2975 = vmatpush.msra.mxu0 0.0
        %2976 = vmatpush.msra.mxu0 0.0
        %2977 = vmatpush.msra.mxu0 0.0
        %2978 = vmatpush.msra.mxu0 0.0
        %2979 = vmatpush.msra.mxu0 0.0
        %2980 = vmatpush.msra.mxu0 0.0
        %2981 = vmatpush.msra.mxu0 0.0
        %2982 = vmatpush.msra.mxu0 0.0
        %2983 = vmatpush.msra.mxu0 0.0
        %2984 = vmatpush.msra.mxu0 0.0
        %2985 = vmatpush.msra.mxu0 %v2902
        %2986 = vmatmul.f32.gmra.mxu0 %v2894
        %v2987 = vpop.f32.mrf.mxu0
        %v2988 = vadd.f32 0.0, %v2987
        %2989 = vdwg.mxu0
        %2990 = vmatpush.msra.mxu0 0.0
        %2991 = vmatpush.msra.mxu0 0.0
        %2992 = vmatpush.msra.mxu0 0.0
        %2993 = vmatpush.msra.mxu0 0.0
        %2994 = vmatpush.msra.mxu0 0.0
        %2995 = vmatpush.msra.mxu0 0.0
        %2996 = vmatpush.msra.mxu0 0.0
        %2997 = vmatpush.msra.mxu0 0.0
        %2998 = vmatpush.msra.mxu0 0.0
        %2999 = vmatpush.msra.mxu0 0.0
        %3000 = vmatpush.msra.mxu0 0.0
        %3001 = vmatpush.msra.mxu0 0.0
        %3002 = vmatpush.msra.mxu0 0.0
        %3003 = vmatpush.msra.mxu0 0.0
        %3004 = vmatpush.msra.mxu0 0.0
        %3005 = vmatpush.msra.mxu0 %v2904
        %3006 = vmatmul.f32.gmra.mxu0 %v2894
        %v3007 = vpop.f32.mrf.mxu0
        %v3008 = vadd.f32 0.0, %v3007
        %3009 = vdwg.mxu0
        %3010 = vmatpush.msra.mxu0 0.0
        %3011 = vmatpush.msra.mxu0 0.0
        %3012 = vmatpush.msra.mxu0 0.0
        %3013 = vmatpush.msra.mxu0 0.0
        %3014 = vmatpush.msra.mxu0 0.0
        %3015 = vmatpush.msra.mxu0 0.0
        %3016 = vmatpush.msra.mxu0 0.0
        %3017 = vmatpush.msra.mxu0 0.0
        %3018 = vmatpush.msra.mxu0 0.0
        %3019 = vmatpush.msra.mxu0 0.0
        %3020 = vmatpush.msra.mxu0 0.0
        %3021 = vmatpush.msra.mxu0 0.0
        %3022 = vmatpush.msra.mxu0 0.0
        %3023 = vmatpush.msra.mxu0 0.0
        %3024 = vmatpush.msra.mxu0 0.0
        %3025 = vmatpush.msra.mxu0 %v2906
        %3026 = vmatmul.f32.gmra.mxu0 %v2894
        %v3027 = vpop.f32.mrf.mxu0
        %v3028 = vadd.f32 0.0, %v3027
        %3029 = vdwg.mxu0
        %3030 = vmatpush.msra.mxu0 0.0
        %3031 = vmatpush.msra.mxu0 0.0
        %3032 = vmatpush.msra.mxu0 0.0
        %3033 = vmatpush.msra.mxu0 0.0
        %3034 = vmatpush.msra.mxu0 0.0
        %3035 = vmatpush.msra.mxu0 0.0
        %3036 = vmatpush.msra.mxu0 0.0
        %3037 = vmatpush.msra.mxu0 0.0
        %3038 = vmatpush.msra.mxu0 0.0
        %3039 = vmatpush.msra.mxu0 0.0
        %3040 = vmatpush.msra.mxu0 0.0
        %3041 = vmatpush.msra.mxu0 0.0
        %3042 = vmatpush.msra.mxu0 0.0
        %3043 = vmatpush.msra.mxu0 0.0
        %3044 = vmatpush.msra.mxu0 0.0
        %3045 = vmatpush.msra.mxu0 %v2908
        %3046 = vmatmul.f32.gmra.mxu0 %v2894
        %v3047 = vpop.f32.mrf.mxu0
        %v3048 = vadd.f32 0.0, %v3047
        %3049 = vdwg.mxu0
        %v3050 = vadd.f32 %v2847, %v2928
        %v3051 = vadd.f32 %v2848, %v2948
        %v3052 = vadd.f32 %v2849, %v2968
        %v3053 = vadd.f32 %v2850, %v2988
        %v3054 = vadd.f32 %v2851, %v3008
        %v3055 = vadd.f32 %v2852, %v3028
        %v3056 = vadd.f32 %v2853, %v3048
        %3057 = vst [vmem:[#allocation1] ss:$2 sm:$0xff] %v438
        %s3058 = scalar_lea.vmem [#allocation1], 16
        %3059 = vst [vmem:[%s3058] ss:$2 sm:$0xff] %v439
        %s3060 = scalar_lea.vmem [#allocation1], 32
        %3061 = vst [vmem:[%s3060] ss:$2 sm:$0xff] %v440
        %s3062 = scalar_lea.vmem [#allocation1], 48
        %3063 = vst [vmem:[%s3062] ss:$2 sm:$0xff] %v441
        %v3064 = vld.sshfl [vmem:[#allocation1] sm:$0xff pattern:$0x75316420]
        %v3065 = vld.sshfl [vmem:[#allocation1 + $0x8] sm:$0xff pattern:$0x75316420]
        %v3066 = vld.sshfl [vmem:[#allocation1 + $0x10] sm:$0xff pattern:$0x75316420]
        %v3067 = vld.sshfl [vmem:[#allocation1 + $0x18] sm:$0xff pattern:$0x75316420]
        %v3068 = vld.sshfl [vmem:[#allocation1 + $0x20] sm:$0xff pattern:$0x75316420]
        %v3069 = vld.sshfl [vmem:[#allocation1 + $0x28] sm:$0xff pattern:$0x75316420]
        %v3070 = vld.sshfl [vmem:[#allocation1 + $0x30] sm:$0xff pattern:$0x75316420]
        %v3071 = vld.sshfl [vmem:[#allocation1 + $0x38] sm:$0xff pattern:$0x75316420]
        %3072 = vrot.lane.b32.xlu0 %v3064, 61
        %v3073 = vpop.permute.xlu0 %3072
        %3074 = vrot.lane.b32.xlu0 %v3065, 61
        %v3075 = vpop.permute.xlu0 %3074
        %3076 = vrot.lane.b32.xlu0 %v3066, 61
        %v3077 = vpop.permute.xlu0 %3076
        %3078 = vrot.lane.b32.xlu0 %v3067, 61
        %v3079 = vpop.permute.xlu0 %3078
        %3080 = vrot.lane.b32.xlu0 %v3068, 61
        %v3081 = vpop.permute.xlu0 %3080
        %3082 = vrot.lane.b32.xlu0 %v3069, 61
        %v3083 = vpop.permute.xlu0 %3082
        %3084 = vrot.lane.b32.xlu0 %v3070, 61
        %v3085 = vpop.permute.xlu0 %3084
        %3086 = vrot.lane.b32.xlu0 %v3071, 61
        %v3087 = vpop.permute.xlu0 %3086
        %vm3088 = vcmask 498688
        %v3089 = vsel %vm3088, %v3073, %v3075
        %v3090 = vsel %vm3088, %v3075, %v3077
        %v3091 = vsel %vm3088, %v3077, %v3079
        %v3092 = vsel %vm3088, %v3079, %v3081
        %v3093 = vsel %vm3088, %v3081, %v3083
        %v3094 = vsel %vm3088, %v3083, %v3085
        %v3095 = vsel %vm3088, %v3085, %v3087
        %v3097 = vsel %vm506, %v455, 0
        %v3099 = vsel %vm510, %v3089, 0
        %v3101 = vsel %vm510, %v3090, 0
        %v3103 = vsel %vm510, %v3091, 0
        %v3105 = vsel %vm510, %v3092, 0
        %v3107 = vsel %vm510, %v3093, 0
        %v3109 = vsel %vm510, %v3094, 0
        %v3111 = vsel %vm510, %v3095, 0
        %3113 = vmatpush.msra.mxu0 0.0
        %3114 = vmatpush.msra.mxu0 0.0
        %3115 = vmatpush.msra.mxu0 0.0
        %3116 = vmatpush.msra.mxu0 0.0
        %3117 = vmatpush.msra.mxu0 0.0
        %3118 = vmatpush.msra.mxu0 0.0
        %3119 = vmatpush.msra.mxu0 0.0
        %3120 = vmatpush.msra.mxu0 0.0
        %3121 = vmatpush.msra.mxu0 0.0
        %3122 = vmatpush.msra.mxu0 0.0
        %3123 = vmatpush.msra.mxu0 0.0
        %3124 = vmatpush.msra.mxu0 0.0
        %3125 = vmatpush.msra.mxu0 0.0
        %3126 = vmatpush.msra.mxu0 0.0
        %3127 = vmatpush.msra.mxu0 0.0
        %3128 = vmatpush.msra.mxu0 %v3099
        %3129 = vmatmul.f32.gmra.mxu0 %v3097
        %v3130 = vpop.f32.mrf.mxu0
        %v3131 = vadd.f32 0.0, %v3130
        %3132 = vdwg.mxu0
        %3133 = vmatpush.msra.mxu0 0.0
        %3134 = vmatpush.msra.mxu0 0.0
        %3135 = vmatpush.msra.mxu0 0.0
        %3136 = vmatpush.msra.mxu0 0.0
        %3137 = vmatpush.msra.mxu0 0.0
        %3138 = vmatpush.msra.mxu0 0.0
        %3139 = vmatpush.msra.mxu0 0.0
        %3140 = vmatpush.msra.mxu0 0.0
        %3141 = vmatpush.msra.mxu0 0.0
        %3142 = vmatpush.msra.mxu0 0.0
        %3143 = vmatpush.msra.mxu0 0.0
        %3144 = vmatpush.msra.mxu0 0.0
        %3145 = vmatpush.msra.mxu0 0.0
        %3146 = vmatpush.msra.mxu0 0.0
        %3147 = vmatpush.msra.mxu0 0.0
        %3148 = vmatpush.msra.mxu0 %v3101
        %3149 = vmatmul.f32.gmra.mxu0 %v3097
        %v3150 = vpop.f32.mrf.mxu0
        %v3151 = vadd.f32 0.0, %v3150
        %3152 = vdwg.mxu0
        %3153 = vmatpush.msra.mxu0 0.0
        %3154 = vmatpush.msra.mxu0 0.0
        %3155 = vmatpush.msra.mxu0 0.0
        %3156 = vmatpush.msra.mxu0 0.0
        %3157 = vmatpush.msra.mxu0 0.0
        %3158 = vmatpush.msra.mxu0 0.0
        %3159 = vmatpush.msra.mxu0 0.0
        %3160 = vmatpush.msra.mxu0 0.0
        %3161 = vmatpush.msra.mxu0 0.0
        %3162 = vmatpush.msra.mxu0 0.0
        %3163 = vmatpush.msra.mxu0 0.0
        %3164 = vmatpush.msra.mxu0 0.0
        %3165 = vmatpush.msra.mxu0 0.0
        %3166 = vmatpush.msra.mxu0 0.0
        %3167 = vmatpush.msra.mxu0 0.0
        %3168 = vmatpush.msra.mxu0 %v3103
        %3169 = vmatmul.f32.gmra.mxu0 %v3097
        %v3170 = vpop.f32.mrf.mxu0
        %v3171 = vadd.f32 0.0, %v3170
        %3172 = vdwg.mxu0
        %3173 = vmatpush.msra.mxu0 0.0
        %3174 = vmatpush.msra.mxu0 0.0
        %3175 = vmatpush.msra.mxu0 0.0
        %3176 = vmatpush.msra.mxu0 0.0
        %3177 = vmatpush.msra.mxu0 0.0
        %3178 = vmatpush.msra.mxu0 0.0
        %3179 = vmatpush.msra.mxu0 0.0
        %3180 = vmatpush.msra.mxu0 0.0
        %3181 = vmatpush.msra.mxu0 0.0
        %3182 = vmatpush.msra.mxu0 0.0
        %3183 = vmatpush.msra.mxu0 0.0
        %3184 = vmatpush.msra.mxu0 0.0
        %3185 = vmatpush.msra.mxu0 0.0
        %3186 = vmatpush.msra.mxu0 0.0
        %3187 = vmatpush.msra.mxu0 0.0
        %3188 = vmatpush.msra.mxu0 %v3105
        %3189 = vmatmul.f32.gmra.mxu0 %v3097
        %v3190 = vpop.f32.mrf.mxu0
        %v3191 = vadd.f32 0.0, %v3190
        %3192 = vdwg.mxu0
        %3193 = vmatpush.msra.mxu0 0.0
        %3194 = vmatpush.msra.mxu0 0.0
        %3195 = vmatpush.msra.mxu0 0.0
        %3196 = vmatpush.msra.mxu0 0.0
        %3197 = vmatpush.msra.mxu0 0.0
        %3198 = vmatpush.msra.mxu0 0.0
        %3199 = vmatpush.msra.mxu0 0.0
        %3200 = vmatpush.msra.mxu0 0.0
        %3201 = vmatpush.msra.mxu0 0.0
        %3202 = vmatpush.msra.mxu0 0.0
        %3203 = vmatpush.msra.mxu0 0.0
        %3204 = vmatpush.msra.mxu0 0.0
        %3205 = vmatpush.msra.mxu0 0.0
        %3206 = vmatpush.msra.mxu0 0.0
        %3207 = vmatpush.msra.mxu0 0.0
        %3208 = vmatpush.msra.mxu0 %v3107
        %3209 = vmatmul.f32.gmra.mxu0 %v3097
        %v3210 = vpop.f32.mrf.mxu0
        %v3211 = vadd.f32 0.0, %v3210
        %3212 = vdwg.mxu0
        %3213 = vmatpush.msra.mxu0 0.0
        %3214 = vmatpush.msra.mxu0 0.0
        %3215 = vmatpush.msra.mxu0 0.0
        %3216 = vmatpush.msra.mxu0 0.0
        %3217 = vmatpush.msra.mxu0 0.0
        %3218 = vmatpush.msra.mxu0 0.0
        %3219 = vmatpush.msra.mxu0 0.0
        %3220 = vmatpush.msra.mxu0 0.0
        %3221 = vmatpush.msra.mxu0 0.0
        %3222 = vmatpush.msra.mxu0 0.0
        %3223 = vmatpush.msra.mxu0 0.0
        %3224 = vmatpush.msra.mxu0 0.0
        %3225 = vmatpush.msra.mxu0 0.0
        %3226 = vmatpush.msra.mxu0 0.0
        %3227 = vmatpush.msra.mxu0 0.0
        %3228 = vmatpush.msra.mxu0 %v3109
        %3229 = vmatmul.f32.gmra.mxu0 %v3097
        %v3230 = vpop.f32.mrf.mxu0
        %v3231 = vadd.f32 0.0, %v3230
        %3232 = vdwg.mxu0
        %3233 = vmatpush.msra.mxu0 0.0
        %3234 = vmatpush.msra.mxu0 0.0
        %3235 = vmatpush.msra.mxu0 0.0
        %3236 = vmatpush.msra.mxu0 0.0
        %3237 = vmatpush.msra.mxu0 0.0
        %3238 = vmatpush.msra.mxu0 0.0
        %3239 = vmatpush.msra.mxu0 0.0
        %3240 = vmatpush.msra.mxu0 0.0
        %3241 = vmatpush.msra.mxu0 0.0
        %3242 = vmatpush.msra.mxu0 0.0
        %3243 = vmatpush.msra.mxu0 0.0
        %3244 = vmatpush.msra.mxu0 0.0
        %3245 = vmatpush.msra.mxu0 0.0
        %3246 = vmatpush.msra.mxu0 0.0
        %3247 = vmatpush.msra.mxu0 0.0
        %3248 = vmatpush.msra.mxu0 %v3111
        %3249 = vmatmul.f32.gmra.mxu0 %v3097
        %v3250 = vpop.f32.mrf.mxu0
        %v3251 = vadd.f32 0.0, %v3250
        %3252 = vdwg.mxu0
        %v3253 = vadd.f32 %v3050, %v3131
        %v3254 = vadd.f32 %v3051, %v3151
        %v3255 = vadd.f32 %v3052, %v3171
        %v3256 = vadd.f32 %v3053, %v3191
        %v3257 = vadd.f32 %v3054, %v3211
        %v3258 = vadd.f32 %v3055, %v3231
        %v3259 = vadd.f32 %v3056, %v3251
        %3260 = vst [vmem:[#allocation1] ss:$2 sm:$0xff] %v438
        %s3261 = scalar_lea.vmem [#allocation1], 16
        %3262 = vst [vmem:[%s3261] ss:$2 sm:$0xff] %v439
        %s3263 = scalar_lea.vmem [#allocation1], 32
        %3264 = vst [vmem:[%s3263] ss:$2 sm:$0xff] %v440
        %s3265 = scalar_lea.vmem [#allocation1], 48
        %3266 = vst [vmem:[%s3265] ss:$2 sm:$0xff] %v441
        %v3267 = vld.sshfl [vmem:[#allocation1] sm:$0xff pattern:$0x75316420]
        %v3268 = vld.sshfl [vmem:[#allocation1 + $0x8] sm:$0xff pattern:$0x75316420]
        %v3269 = vld.sshfl [vmem:[#allocation1 + $0x10] sm:$0xff pattern:$0x75316420]
        %v3270 = vld.sshfl [vmem:[#allocation1 + $0x18] sm:$0xff pattern:$0x75316420]
        %v3271 = vld.sshfl [vmem:[#allocation1 + $0x20] sm:$0xff pattern:$0x75316420]
        %v3272 = vld.sshfl [vmem:[#allocation1 + $0x28] sm:$0xff pattern:$0x75316420]
        %v3273 = vld.sshfl [vmem:[#allocation1 + $0x30] sm:$0xff pattern:$0x75316420]
        %v3274 = vld.sshfl [vmem:[#allocation1 + $0x38] sm:$0xff pattern:$0x75316420]
        %3275 = vrot.lane.b32.xlu0 %v3267, 60
        %v3276 = vpop.permute.xlu0 %3275
        %3277 = vrot.lane.b32.xlu0 %v3268, 60
        %v3278 = vpop.permute.xlu0 %3277
        %3279 = vrot.lane.b32.xlu0 %v3269, 60
        %v3280 = vpop.permute.xlu0 %3279
        %3281 = vrot.lane.b32.xlu0 %v3270, 60
        %v3282 = vpop.permute.xlu0 %3281
        %3283 = vrot.lane.b32.xlu0 %v3271, 60
        %v3284 = vpop.permute.xlu0 %3283
        %3285 = vrot.lane.b32.xlu0 %v3272, 60
        %v3286 = vpop.permute.xlu0 %3285
        %3287 = vrot.lane.b32.xlu0 %v3273, 60
        %v3288 = vpop.permute.xlu0 %3287
        %3289 = vrot.lane.b32.xlu0 %v3274, 60
        %v3290 = vpop.permute.xlu0 %3289
        %vm3291 = vcmask 490496
        %v3292 = vsel %vm3291, %v3276, %v3278
        %v3293 = vsel %vm3291, %v3278, %v3280
        %v3294 = vsel %vm3291, %v3280, %v3282
        %v3295 = vsel %vm3291, %v3282, %v3284
        %v3296 = vsel %vm3291, %v3284, %v3286
        %v3297 = vsel %vm3291, %v3286, %v3288
        %v3298 = vsel %vm3291, %v3288, %v3290
        %v3300 = vsel %vm506, %v456, 0
        %v3302 = vsel %vm510, %v3292, 0
        %v3304 = vsel %vm510, %v3293, 0
        %v3306 = vsel %vm510, %v3294, 0
        %v3308 = vsel %vm510, %v3295, 0
        %v3310 = vsel %vm510, %v3296, 0
        %v3312 = vsel %vm510, %v3297, 0
        %v3314 = vsel %vm510, %v3298, 0
        %3316 = vmatpush.msra.mxu0 0.0
        %3317 = vmatpush.msra.mxu0 0.0
        %3318 = vmatpush.msra.mxu0 0.0
        %3319 = vmatpush.msra.mxu0 0.0
        %3320 = vmatpush.msra.mxu0 0.0
        %3321 = vmatpush.msra.mxu0 0.0
        %3322 = vmatpush.msra.mxu0 0.0
        %3323 = vmatpush.msra.mxu0 0.0
        %3324 = vmatpush.msra.mxu0 0.0
        %3325 = vmatpush.msra.mxu0 0.0
        %3326 = vmatpush.msra.mxu0 0.0
        %3327 = vmatpush.msra.mxu0 0.0
        %3328 = vmatpush.msra.mxu0 0.0
        %3329 = vmatpush.msra.mxu0 0.0
        %3330 = vmatpush.msra.mxu0 0.0
        %3331 = vmatpush.msra.mxu0 %v3302
        %3332 = vmatmul.f32.gmra.mxu0 %v3300
        %v3333 = vpop.f32.mrf.mxu0
        %v3334 = vadd.f32 0.0, %v3333
        %3335 = vdwg.mxu0
        %3336 = vmatpush.msra.mxu0 0.0
        %3337 = vmatpush.msra.mxu0 0.0
        %3338 = vmatpush.msra.mxu0 0.0
        %3339 = vmatpush.msra.mxu0 0.0
        %3340 = vmatpush.msra.mxu0 0.0
        %3341 = vmatpush.msra.mxu0 0.0
        %3342 = vmatpush.msra.mxu0 0.0
        %3343 = vmatpush.msra.mxu0 0.0
        %3344 = vmatpush.msra.mxu0 0.0
        %3345 = vmatpush.msra.mxu0 0.0
        %3346 = vmatpush.msra.mxu0 0.0
        %3347 = vmatpush.msra.mxu0 0.0
        %3348 = vmatpush.msra.mxu0 0.0
        %3349 = vmatpush.msra.mxu0 0.0
        %3350 = vmatpush.msra.mxu0 0.0
        %3351 = vmatpush.msra.mxu0 %v3304
        %3352 = vmatmul.f32.gmra.mxu0 %v3300
        %v3353 = vpop.f32.mrf.mxu0
        %v3354 = vadd.f32 0.0, %v3353
        %3355 = vdwg.mxu0
        %3356 = vmatpush.msra.mxu0 0.0
        %3357 = vmatpush.msra.mxu0 0.0
        %3358 = vmatpush.msra.mxu0 0.0
        %3359 = vmatpush.msra.mxu0 0.0
        %3360 = vmatpush.msra.mxu0 0.0
        %3361 = vmatpush.msra.mxu0 0.0
        %3362 = vmatpush.msra.mxu0 0.0
        %3363 = vmatpush.msra.mxu0 0.0
        %3364 = vmatpush.msra.mxu0 0.0
        %3365 = vmatpush.msra.mxu0 0.0
        %3366 = vmatpush.msra.mxu0 0.0
        %3367 = vmatpush.msra.mxu0 0.0
        %3368 = vmatpush.msra.mxu0 0.0
        %3369 = vmatpush.msra.mxu0 0.0
        %3370 = vmatpush.msra.mxu0 0.0
        %3371 = vmatpush.msra.mxu0 %v3306
        %3372 = vmatmul.f32.gmra.mxu0 %v3300
        %v3373 = vpop.f32.mrf.mxu0
        %v3374 = vadd.f32 0.0, %v3373
        %3375 = vdwg.mxu0
        %3376 = vmatpush.msra.mxu0 0.0
        %3377 = vmatpush.msra.mxu0 0.0
        %3378 = vmatpush.msra.mxu0 0.0
        %3379 = vmatpush.msra.mxu0 0.0
        %3380 = vmatpush.msra.mxu0 0.0
        %3381 = vmatpush.msra.mxu0 0.0
        %3382 = vmatpush.msra.mxu0 0.0
        %3383 = vmatpush.msra.mxu0 0.0
        %3384 = vmatpush.msra.mxu0 0.0
        %3385 = vmatpush.msra.mxu0 0.0
        %3386 = vmatpush.msra.mxu0 0.0
        %3387 = vmatpush.msra.mxu0 0.0
        %3388 = vmatpush.msra.mxu0 0.0
        %3389 = vmatpush.msra.mxu0 0.0
        %3390 = vmatpush.msra.mxu0 0.0
        %3391 = vmatpush.msra.mxu0 %v3308
        %3392 = vmatmul.f32.gmra.mxu0 %v3300
        %v3393 = vpop.f32.mrf.mxu0
        %v3394 = vadd.f32 0.0, %v3393
        %3395 = vdwg.mxu0
        %3396 = vmatpush.msra.mxu0 0.0
        %3397 = vmatpush.msra.mxu0 0.0
        %3398 = vmatpush.msra.mxu0 0.0
        %3399 = vmatpush.msra.mxu0 0.0
        %3400 = vmatpush.msra.mxu0 0.0
        %3401 = vmatpush.msra.mxu0 0.0
        %3402 = vmatpush.msra.mxu0 0.0
        %3403 = vmatpush.msra.mxu0 0.0
        %3404 = vmatpush.msra.mxu0 0.0
        %3405 = vmatpush.msra.mxu0 0.0
        %3406 = vmatpush.msra.mxu0 0.0
        %3407 = vmatpush.msra.mxu0 0.0
        %3408 = vmatpush.msra.mxu0 0.0
        %3409 = vmatpush.msra.mxu0 0.0
        %3410 = vmatpush.msra.mxu0 0.0
        %3411 = vmatpush.msra.mxu0 %v3310
        %3412 = vmatmul.f32.gmra.mxu0 %v3300
        %v3413 = vpop.f32.mrf.mxu0
        %v3414 = vadd.f32 0.0, %v3413
        %3415 = vdwg.mxu0
        %3416 = vmatpush.msra.mxu0 0.0
        %3417 = vmatpush.msra.mxu0 0.0
        %3418 = vmatpush.msra.mxu0 0.0
        %3419 = vmatpush.msra.mxu0 0.0
        %3420 = vmatpush.msra.mxu0 0.0
        %3421 = vmatpush.msra.mxu0 0.0
        %3422 = vmatpush.msra.mxu0 0.0
        %3423 = vmatpush.msra.mxu0 0.0
        %3424 = vmatpush.msra.mxu0 0.0
        %3425 = vmatpush.msra.mxu0 0.0
        %3426 = vmatpush.msra.mxu0 0.0
        %3427 = vmatpush.msra.mxu0 0.0
        %3428 = vmatpush.msra.mxu0 0.0
        %3429 = vmatpush.msra.mxu0 0.0
        %3430 = vmatpush.msra.mxu0 0.0
        %3431 = vmatpush.msra.mxu0 %v3312
        %3432 = vmatmul.f32.gmra.mxu0 %v3300
        %v3433 = vpop.f32.mrf.mxu0
        %v3434 = vadd.f32 0.0, %v3433
        %3435 = vdwg.mxu0
        %3436 = vmatpush.msra.mxu0 0.0
        %3437 = vmatpush.msra.mxu0 0.0
        %3438 = vmatpush.msra.mxu0 0.0
        %3439 = vmatpush.msra.mxu0 0.0
        %3440 = vmatpush.msra.mxu0 0.0
        %3441 = vmatpush.msra.mxu0 0.0
        %3442 = vmatpush.msra.mxu0 0.0
        %3443 = vmatpush.msra.mxu0 0.0
        %3444 = vmatpush.msra.mxu0 0.0
        %3445 = vmatpush.msra.mxu0 0.0
        %3446 = vmatpush.msra.mxu0 0.0
        %3447 = vmatpush.msra.mxu0 0.0
        %3448 = vmatpush.msra.mxu0 0.0
        %3449 = vmatpush.msra.mxu0 0.0
        %3450 = vmatpush.msra.mxu0 0.0
        %3451 = vmatpush.msra.mxu0 %v3314
        %3452 = vmatmul.f32.gmra.mxu0 %v3300
        %v3453 = vpop.f32.mrf.mxu0
        %v3454 = vadd.f32 0.0, %v3453
        %3455 = vdwg.mxu0
        %v3456 = vadd.f32 %v3253, %v3334
        %v3457 = vadd.f32 %v3254, %v3354
        %v3458 = vadd.f32 %v3255, %v3374
        %v3459 = vadd.f32 %v3256, %v3394
        %v3460 = vadd.f32 %v3257, %v3414
        %v3461 = vadd.f32 %v3258, %v3434
        %v3462 = vadd.f32 %v3259, %v3454
        %3463 = vst [vmem:[#allocation1] ss:$2 sm:$0xff] %v438
        %s3464 = scalar_lea.vmem [#allocation1], 16
        %3465 = vst [vmem:[%s3464] ss:$2 sm:$0xff] %v439
        %s3466 = scalar_lea.vmem [#allocation1], 32
        %3467 = vst [vmem:[%s3466] ss:$2 sm:$0xff] %v440
        %s3468 = scalar_lea.vmem [#allocation1], 48
        %3469 = vst [vmem:[%s3468] ss:$2 sm:$0xff] %v441
        %v3470 = vld.sshfl [vmem:[#allocation1] sm:$0xff pattern:$0x75316420]
        %v3471 = vld.sshfl [vmem:[#allocation1 + $0x8] sm:$0xff pattern:$0x75316420]
        %v3472 = vld.sshfl [vmem:[#allocation1 + $0x10] sm:$0xff pattern:$0x75316420]
        %v3473 = vld.sshfl [vmem:[#allocation1 + $0x18] sm:$0xff pattern:$0x75316420]
        %v3474 = vld.sshfl [vmem:[#allocation1 + $0x20] sm:$0xff pattern:$0x75316420]
        %v3475 = vld.sshfl [vmem:[#allocation1 + $0x28] sm:$0xff pattern:$0x75316420]
        %v3476 = vld.sshfl [vmem:[#allocation1 + $0x30] sm:$0xff pattern:$0x75316420]
        %v3477 = vld.sshfl [vmem:[#allocation1 + $0x38] sm:$0xff pattern:$0x75316420]
        %3478 = vrot.lane.b32.xlu0 %v3470, 32
        %v3479 = vpop.permute.xlu0 %3478
        %3480 = vrot.lane.b32.xlu0 %v3471, 32
        %v3481 = vpop.permute.xlu0 %3480
        %3482 = vrot.lane.b32.xlu0 %v3472, 32
        %v3483 = vpop.permute.xlu0 %3482
        %3484 = vrot.lane.b32.xlu0 %v3473, 32
        %v3485 = vpop.permute.xlu0 %3484
        %3486 = vrot.lane.b32.xlu0 %v3474, 32
        %v3487 = vpop.permute.xlu0 %3486
        %3488 = vrot.lane.b32.xlu0 %v3475, 32
        %v3489 = vpop.permute.xlu0 %3488
        %3490 = vrot.lane.b32.xlu0 %v3476, 32
        %v3491 = vpop.permute.xlu0 %3490
        %3492 = vrot.lane.b32.xlu0 %v3477, 32
        %v3493 = vpop.permute.xlu0 %3492
        %vm3494 = vcmask 261120
        %v3495 = vsel %vm3494, %v3479, %v3481
        %v3496 = vsel %vm3494, %v3481, %v3483
        %v3497 = vsel %vm3494, %v3483, %v3485
        %v3498 = vsel %vm3494, %v3485, %v3487
        %v3499 = vsel %vm3494, %v3487, %v3489
        %v3500 = vsel %vm3494, %v3489, %v3491
        %v3501 = vsel %vm3494, %v3491, %v3493
        %v3503 = vsel %vm506, %v457, 0
        %v3505 = vsel %vm510, %v3495, 0
        %v3507 = vsel %vm510, %v3496, 0
        %v3509 = vsel %vm510, %v3497, 0
        %v3511 = vsel %vm510, %v3498, 0
        %v3513 = vsel %vm510, %v3499, 0
        %v3515 = vsel %vm510, %v3500, 0
        %v3517 = vsel %vm510, %v3501, 0
        %3519 = vmatpush.msra.mxu0 0.0
        %3520 = vmatpush.msra.mxu0 0.0
        %3521 = vmatpush.msra.mxu0 0.0
        %3522 = vmatpush.msra.mxu0 0.0
        %3523 = vmatpush.msra.mxu0 0.0
        %3524 = vmatpush.msra.mxu0 0.0
        %3525 = vmatpush.msra.mxu0 0.0
        %3526 = vmatpush.msra.mxu0 0.0
        %3527 = vmatpush.msra.mxu0 0.0
        %3528 = vmatpush.msra.mxu0 0.0
        %3529 = vmatpush.msra.mxu0 0.0
        %3530 = vmatpush.msra.mxu0 0.0
        %3531 = vmatpush.msra.mxu0 0.0
        %3532 = vmatpush.msra.mxu0 0.0
        %3533 = vmatpush.msra.mxu0 0.0
        %3534 = vmatpush.msra.mxu0 %v3505
        %3535 = vmatmul.f32.gmra.mxu0 %v3503
        %v3536 = vpop.f32.mrf.mxu0
        %v3537 = vadd.f32 0.0, %v3536
        %3538 = vdwg.mxu0
        %3539 = vmatpush.msra.mxu0 0.0
        %3540 = vmatpush.msra.mxu0 0.0
        %3541 = vmatpush.msra.mxu0 0.0
        %3542 = vmatpush.msra.mxu0 0.0
        %3543 = vmatpush.msra.mxu0 0.0
        %3544 = vmatpush.msra.mxu0 0.0
        %3545 = vmatpush.msra.mxu0 0.0
        %3546 = vmatpush.msra.mxu0 0.0
        %3547 = vmatpush.msra.mxu0 0.0
        %3548 = vmatpush.msra.mxu0 0.0
        %3549 = vmatpush.msra.mxu0 0.0
        %3550 = vmatpush.msra.mxu0 0.0
        %3551 = vmatpush.msra.mxu0 0.0
        %3552 = vmatpush.msra.mxu0 0.0
        %3553 = vmatpush.msra.mxu0 0.0
        %3554 = vmatpush.msra.mxu0 %v3507
        %3555 = vmatmul.f32.gmra.mxu0 %v3503
        %v3556 = vpop.f32.mrf.mxu0
        %v3557 = vadd.f32 0.0, %v3556
        %3558 = vdwg.mxu0
        %3559 = vmatpush.msra.mxu0 0.0
        %3560 = vmatpush.msra.mxu0 0.0
        %3561 = vmatpush.msra.mxu0 0.0
        %3562 = vmatpush.msra.mxu0 0.0
        %3563 = vmatpush.msra.mxu0 0.0
        %3564 = vmatpush.msra.mxu0 0.0
        %3565 = vmatpush.msra.mxu0 0.0
        %3566 = vmatpush.msra.mxu0 0.0
        %3567 = vmatpush.msra.mxu0 0.0
        %3568 = vmatpush.msra.mxu0 0.0
        %3569 = vmatpush.msra.mxu0 0.0
        %3570 = vmatpush.msra.mxu0 0.0
        %3571 = vmatpush.msra.mxu0 0.0
        %3572 = vmatpush.msra.mxu0 0.0
        %3573 = vmatpush.msra.mxu0 0.0
        %3574 = vmatpush.msra.mxu0 %v3509
        %3575 = vmatmul.f32.gmra.mxu0 %v3503
        %v3576 = vpop.f32.mrf.mxu0
        %v3577 = vadd.f32 0.0, %v3576
        %3578 = vdwg.mxu0
        %3579 = vmatpush.msra.mxu0 0.0
        %3580 = vmatpush.msra.mxu0 0.0
        %3581 = vmatpush.msra.mxu0 0.0
        %3582 = vmatpush.msra.mxu0 0.0
        %3583 = vmatpush.msra.mxu0 0.0
        %3584 = vmatpush.msra.mxu0 0.0
        %3585 = vmatpush.msra.mxu0 0.0
        %3586 = vmatpush.msra.mxu0 0.0
        %3587 = vmatpush.msra.mxu0 0.0
        %3588 = vmatpush.msra.mxu0 0.0
        %3589 = vmatpush.msra.mxu0 0.0
        %3590 = vmatpush.msra.mxu0 0.0
        %3591 = vmatpush.msra.mxu0 0.0
        %3592 = vmatpush.msra.mxu0 0.0
        %3593 = vmatpush.msra.mxu0 0.0
        %3594 = vmatpush.msra.mxu0 %v3511
        %3595 = vmatmul.f32.gmra.mxu0 %v3503
        %v3596 = vpop.f32.mrf.mxu0
        %v3597 = vadd.f32 0.0, %v3596
        %3598 = vdwg.mxu0
        %3599 = vmatpush.msra.mxu0 0.0
        %3600 = vmatpush.msra.mxu0 0.0
        %3601 = vmatpush.msra.mxu0 0.0
        %3602 = vmatpush.msra.mxu0 0.0
        %3603 = vmatpush.msra.mxu0 0.0
        %3604 = vmatpush.msra.mxu0 0.0
        %3605 = vmatpush.msra.mxu0 0.0
        %3606 = vmatpush.msra.mxu0 0.0
        %3607 = vmatpush.msra.mxu0 0.0
        %3608 = vmatpush.msra.mxu0 0.0
        %3609 = vmatpush.msra.mxu0 0.0
        %3610 = vmatpush.msra.mxu0 0.0
        %3611 = vmatpush.msra.mxu0 0.0
        %3612 = vmatpush.msra.mxu0 0.0
        %3613 = vmatpush.msra.mxu0 0.0
        %3614 = vmatpush.msra.mxu0 %v3513
        %3615 = vmatmul.f32.gmra.mxu0 %v3503
        %v3616 = vpop.f32.mrf.mxu0
        %v3617 = vadd.f32 0.0, %v3616
        %3618 = vdwg.mxu0
        %3619 = vmatpush.msra.mxu0 0.0
        %3620 = vmatpush.msra.mxu0 0.0
        %3621 = vmatpush.msra.mxu0 0.0
        %3622 = vmatpush.msra.mxu0 0.0
        %3623 = vmatpush.msra.mxu0 0.0
        %3624 = vmatpush.msra.mxu0 0.0
        %3625 = vmatpush.msra.mxu0 0.0
        %3626 = vmatpush.msra.mxu0 0.0
        %3627 = vmatpush.msra.mxu0 0.0
        %3628 = vmatpush.msra.mxu0 0.0
        %3629 = vmatpush.msra.mxu0 0.0
        %3630 = vmatpush.msra.mxu0 0.0
        %3631 = vmatpush.msra.mxu0 0.0
        %3632 = vmatpush.msra.mxu0 0.0
        %3633 = vmatpush.msra.mxu0 0.0
        %3634 = vmatpush.msra.mxu0 %v3515
        %3635 = vmatmul.f32.gmra.mxu0 %v3503
        %v3636 = vpop.f32.mrf.mxu0
        %v3637 = vadd.f32 0.0, %v3636
        %3638 = vdwg.mxu0
        %3639 = vmatpush.msra.mxu0 0.0
        %3640 = vmatpush.msra.mxu0 0.0
        %3641 = vmatpush.msra.mxu0 0.0
        %3642 = vmatpush.msra.mxu0 0.0
        %3643 = vmatpush.msra.mxu0 0.0
        %3644 = vmatpush.msra.mxu0 0.0
        %3645 = vmatpush.msra.mxu0 0.0
        %3646 = vmatpush.msra.mxu0 0.0
        %3647 = vmatpush.msra.mxu0 0.0
        %3648 = vmatpush.msra.mxu0 0.0
        %3649 = vmatpush.msra.mxu0 0.0
        %3650 = vmatpush.msra.mxu0 0.0
        %3651 = vmatpush.msra.mxu0 0.0
        %3652 = vmatpush.msra.mxu0 0.0
        %3653 = vmatpush.msra.mxu0 0.0
        %3654 = vmatpush.msra.mxu0 %v3517
        %3655 = vmatmul.f32.gmra.mxu0 %v3503
        %v3656 = vpop.f32.mrf.mxu0
        %v3657 = vadd.f32 0.0, %v3656
        %3658 = vdwg.mxu0
        %v3659 = vadd.f32 %v3456, %v3537
        %v3660 = vadd.f32 %v3457, %v3557
        %v3661 = vadd.f32 %v3458, %v3577
        %v3662 = vadd.f32 %v3459, %v3597
        %v3663 = vadd.f32 %v3460, %v3617
        %v3664 = vadd.f32 %v3461, %v3637
        %v3665 = vadd.f32 %v3462, %v3657
        %3666 = vst [vmem:[#allocation1] ss:$2 sm:$0xff] %v438
        %s3667 = scalar_lea.vmem [#allocation1], 16
        %3668 = vst [vmem:[%s3667] ss:$2 sm:$0xff] %v439
        %s3669 = scalar_lea.vmem [#allocation1], 32
        %3670 = vst [vmem:[%s3669] ss:$2 sm:$0xff] %v440
        %s3671 = scalar_lea.vmem [#allocation1], 48
        %3672 = vst [vmem:[%s3671] ss:$2 sm:$0xff] %v441
        %v3673 = vld.sshfl [vmem:[#allocation1] sm:$0xff pattern:$0x75316420]
        %v3674 = vld.sshfl [vmem:[#allocation1 + $0x8] sm:$0xff pattern:$0x75316420]
        %v3675 = vld.sshfl [vmem:[#allocation1 + $0x10] sm:$0xff pattern:$0x75316420]
        %v3676 = vld.sshfl [vmem:[#allocation1 + $0x18] sm:$0xff pattern:$0x75316420]
        %v3677 = vld.sshfl [vmem:[#allocation1 + $0x20] sm:$0xff pattern:$0x75316420]
        %v3678 = vld.sshfl [vmem:[#allocation1 + $0x28] sm:$0xff pattern:$0x75316420]
        %v3679 = vld.sshfl [vmem:[#allocation1 + $0x30] sm:$0xff pattern:$0x75316420]
        %v3680 = vld.sshfl [vmem:[#allocation1 + $0x38] sm:$0xff pattern:$0x75316420]
        %3681 = vrot.lane.b32.xlu0 %v3673, 31
        %v3682 = vpop.permute.xlu0 %3681
        %3683 = vrot.lane.b32.xlu0 %v3674, 31
        %v3684 = vpop.permute.xlu0 %3683
        %3685 = vrot.lane.b32.xlu0 %v3675, 31
        %v3686 = vpop.permute.xlu0 %3685
        %3687 = vrot.lane.b32.xlu0 %v3676, 31
        %v3688 = vpop.permute.xlu0 %3687
        %3689 = vrot.lane.b32.xlu0 %v3677, 31
        %v3690 = vpop.permute.xlu0 %3689
        %3691 = vrot.lane.b32.xlu0 %v3678, 31
        %v3692 = vpop.permute.xlu0 %3691
        %3693 = vrot.lane.b32.xlu0 %v3679, 31
        %v3694 = vpop.permute.xlu0 %3693
        %3695 = vrot.lane.b32.xlu0 %v3680, 31
        %v3696 = vpop.permute.xlu0 %3695
        %vm3697 = vcmask 252928
        %v3698 = vsel %vm3697, %v3682, %v3684
        %v3699 = vsel %vm3697, %v3684, %v3686
        %v3700 = vsel %vm3697, %v3686, %v3688
        %v3701 = vsel %vm3697, %v3688, %v3690
        %v3702 = vsel %vm3697, %v3690, %v3692
        %v3703 = vsel %vm3697, %v3692, %v3694
        %v3704 = vsel %vm3697, %v3694, %v3696
        %v3706 = vsel %vm506, %v458, 0
        %v3708 = vsel %vm510, %v3698, 0
        %v3710 = vsel %vm510, %v3699, 0
        %v3712 = vsel %vm510, %v3700, 0
        %v3714 = vsel %vm510, %v3701, 0
        %v3716 = vsel %vm510, %v3702, 0
        %v3718 = vsel %vm510, %v3703, 0
        %v3720 = vsel %vm510, %v3704, 0
        %3722 = vmatpush.msra.mxu0 0.0
        %3723 = vmatpush.msra.mxu0 0.0
        %3724 = vmatpush.msra.mxu0 0.0
        %3725 = vmatpush.msra.mxu0 0.0
        %3726 = vmatpush.msra.mxu0 0.0
        %3727 = vmatpush.msra.mxu0 0.0
        %3728 = vmatpush.msra.mxu0 0.0
        %3729 = vmatpush.msra.mxu0 0.0
        %3730 = vmatpush.msra.mxu0 0.0
        %3731 = vmatpush.msra.mxu0 0.0
        %3732 = vmatpush.msra.mxu0 0.0
        %3733 = vmatpush.msra.mxu0 0.0
        %3734 = vmatpush.msra.mxu0 0.0
        %3735 = vmatpush.msra.mxu0 0.0
        %3736 = vmatpush.msra.mxu0 0.0
        %3737 = vmatpush.msra.mxu0 %v3708
        %3738 = vmatmul.f32.gmra.mxu0 %v3706
        %v3739 = vpop.f32.mrf.mxu0
        %v3740 = vadd.f32 0.0, %v3739
        %3741 = vdwg.mxu0
        %3742 = vmatpush.msra.mxu0 0.0
        %3743 = vmatpush.msra.mxu0 0.0
        %3744 = vmatpush.msra.mxu0 0.0
        %3745 = vmatpush.msra.mxu0 0.0
        %3746 = vmatpush.msra.mxu0 0.0
        %3747 = vmatpush.msra.mxu0 0.0
        %3748 = vmatpush.msra.mxu0 0.0
        %3749 = vmatpush.msra.mxu0 0.0
        %3750 = vmatpush.msra.mxu0 0.0
        %3751 = vmatpush.msra.mxu0 0.0
        %3752 = vmatpush.msra.mxu0 0.0
        %3753 = vmatpush.msra.mxu0 0.0
        %3754 = vmatpush.msra.mxu0 0.0
        %3755 = vmatpush.msra.mxu0 0.0
        %3756 = vmatpush.msra.mxu0 0.0
        %3757 = vmatpush.msra.mxu0 %v3710
        %3758 = vmatmul.f32.gmra.mxu0 %v3706
        %v3759 = vpop.f32.mrf.mxu0
        %v3760 = vadd.f32 0.0, %v3759
        %3761 = vdwg.mxu0
        %3762 = vmatpush.msra.mxu0 0.0
        %3763 = vmatpush.msra.mxu0 0.0
        %3764 = vmatpush.msra.mxu0 0.0
        %3765 = vmatpush.msra.mxu0 0.0
        %3766 = vmatpush.msra.mxu0 0.0
        %3767 = vmatpush.msra.mxu0 0.0
        %3768 = vmatpush.msra.mxu0 0.0
        %3769 = vmatpush.msra.mxu0 0.0
        %3770 = vmatpush.msra.mxu0 0.0
        %3771 = vmatpush.msra.mxu0 0.0
        %3772 = vmatpush.msra.mxu0 0.0
        %3773 = vmatpush.msra.mxu0 0.0
        %3774 = vmatpush.msra.mxu0 0.0
        %3775 = vmatpush.msra.mxu0 0.0
        %3776 = vmatpush.msra.mxu0 0.0
        %3777 = vmatpush.msra.mxu0 %v3712
        %3778 = vmatmul.f32.gmra.mxu0 %v3706
        %v3779 = vpop.f32.mrf.mxu0
        %v3780 = vadd.f32 0.0, %v3779
        %3781 = vdwg.mxu0
        %3782 = vmatpush.msra.mxu0 0.0
        %3783 = vmatpush.msra.mxu0 0.0
        %3784 = vmatpush.msra.mxu0 0.0
        %3785 = vmatpush.msra.mxu0 0.0
        %3786 = vmatpush.msra.mxu0 0.0
        %3787 = vmatpush.msra.mxu0 0.0
        %3788 = vmatpush.msra.mxu0 0.0
        %3789 = vmatpush.msra.mxu0 0.0
        %3790 = vmatpush.msra.mxu0 0.0
        %3791 = vmatpush.msra.mxu0 0.0
        %3792 = vmatpush.msra.mxu0 0.0
        %3793 = vmatpush.msra.mxu0 0.0
        %3794 = vmatpush.msra.mxu0 0.0
        %3795 = vmatpush.msra.mxu0 0.0
        %3796 = vmatpush.msra.mxu0 0.0
        %3797 = vmatpush.msra.mxu0 %v3714
        %3798 = vmatmul.f32.gmra.mxu0 %v3706
        %v3799 = vpop.f32.mrf.mxu0
        %v3800 = vadd.f32 0.0, %v3799
        %3801 = vdwg.mxu0
        %3802 = vmatpush.msra.mxu0 0.0
        %3803 = vmatpush.msra.mxu0 0.0
        %3804 = vmatpush.msra.mxu0 0.0
        %3805 = vmatpush.msra.mxu0 0.0
        %3806 = vmatpush.msra.mxu0 0.0
        %3807 = vmatpush.msra.mxu0 0.0
        %3808 = vmatpush.msra.mxu0 0.0
        %3809 = vmatpush.msra.mxu0 0.0
        %3810 = vmatpush.msra.mxu0 0.0
        %3811 = vmatpush.msra.mxu0 0.0
        %3812 = vmatpush.msra.mxu0 0.0
        %3813 = vmatpush.msra.mxu0 0.0
        %3814 = vmatpush.msra.mxu0 0.0
        %3815 = vmatpush.msra.mxu0 0.0
        %3816 = vmatpush.msra.mxu0 0.0
        %3817 = vmatpush.msra.mxu0 %v3716
        %3818 = vmatmul.f32.gmra.mxu0 %v3706
        %v3819 = vpop.f32.mrf.mxu0
        %v3820 = vadd.f32 0.0, %v3819
        %3821 = vdwg.mxu0
        %3822 = vmatpush.msra.mxu0 0.0
        %3823 = vmatpush.msra.mxu0 0.0
        %3824 = vmatpush.msra.mxu0 0.0
        %3825 = vmatpush.msra.mxu0 0.0
        %3826 = vmatpush.msra.mxu0 0.0
        %3827 = vmatpush.msra.mxu0 0.0
        %3828 = vmatpush.msra.mxu0 0.0
        %3829 = vmatpush.msra.mxu0 0.0
        %3830 = vmatpush.msra.mxu0 0.0
        %3831 = vmatpush.msra.mxu0 0.0
        %3832 = vmatpush.msra.mxu0 0.0
        %3833 = vmatpush.msra.mxu0 0.0
        %3834 = vmatpush.msra.mxu0 0.0
        %3835 = vmatpush.msra.mxu0 0.0
        %3836 = vmatpush.msra.mxu0 0.0
        %3837 = vmatpush.msra.mxu0 %v3718
        %3838 = vmatmul.f32.gmra.mxu0 %v3706
        %v3839 = vpop.f32.mrf.mxu0
        %v3840 = vadd.f32 0.0, %v3839
        %3841 = vdwg.mxu0
        %3842 = vmatpush.msra.mxu0 0.0
        %3843 = vmatpush.msra.mxu0 0.0
        %3844 = vmatpush.msra.mxu0 0.0
        %3845 = vmatpush.msra.mxu0 0.0
        %3846 = vmatpush.msra.mxu0 0.0
        %3847 = vmatpush.msra.mxu0 0.0
        %3848 = vmatpush.msra.mxu0 0.0
        %3849 = vmatpush.msra.mxu0 0.0
        %3850 = vmatpush.msra.mxu0 0.0
        %3851 = vmatpush.msra.mxu0 0.0
        %3852 = vmatpush.msra.mxu0 0.0
        %3853 = vmatpush.msra.mxu0 0.0
        %3854 = vmatpush.msra.mxu0 0.0
        %3855 = vmatpush.msra.mxu0 0.0
        %3856 = vmatpush.msra.mxu0 0.0
        %3857 = vmatpush.msra.mxu0 %v3720
        %3858 = vmatmul.f32.gmra.mxu0 %v3706
        %v3859 = vpop.f32.mrf.mxu0
        %v3860 = vadd.f32 0.0, %v3859
        %3861 = vdwg.mxu0
        %v3862 = vadd.f32 %v3659, %v3740
        %v3863 = vadd.f32 %v3660, %v3760
        %v3864 = vadd.f32 %v3661, %v3780
        %v3865 = vadd.f32 %v3662, %v3800
        %v3866 = vadd.f32 %v3663, %v3820
        %v3867 = vadd.f32 %v3664, %v3840
        %v3868 = vadd.f32 %v3665, %v3860
        %3869 = vst [vmem:[#allocation1] ss:$2 sm:$0xff] %v438
        %s3870 = scalar_lea.vmem [#allocation1], 16
        %3871 = vst [vmem:[%s3870] ss:$2 sm:$0xff] %v439
        %s3872 = scalar_lea.vmem [#allocation1], 32
        %3873 = vst [vmem:[%s3872] ss:$2 sm:$0xff] %v440
        %s3874 = scalar_lea.vmem [#allocation1], 48
        %3875 = vst [vmem:[%s3874] ss:$2 sm:$0xff] %v441
        %v3876 = vld.sshfl [vmem:[#allocation1] sm:$0xff pattern:$0x75316420]
        %v3877 = vld.sshfl [vmem:[#allocation1 + $0x8] sm:$0xff pattern:$0x75316420]
        %v3878 = vld.sshfl [vmem:[#allocation1 + $0x10] sm:$0xff pattern:$0x75316420]
        %v3879 = vld.sshfl [vmem:[#allocation1 + $0x18] sm:$0xff pattern:$0x75316420]
        %v3880 = vld.sshfl [vmem:[#allocation1 + $0x20] sm:$0xff pattern:$0x75316420]
        %v3881 = vld.sshfl [vmem:[#allocation1 + $0x28] sm:$0xff pattern:$0x75316420]
        %v3882 = vld.sshfl [vmem:[#allocation1 + $0x30] sm:$0xff pattern:$0x75316420]
        %v3883 = vld.sshfl [vmem:[#allocation1 + $0x38] sm:$0xff pattern:$0x75316420]
        %3884 = vrot.lane.b32.xlu0 %v3876, 30
        %v3885 = vpop.permute.xlu0 %3884
        %3886 = vrot.lane.b32.xlu0 %v3877, 30
        %v3887 = vpop.permute.xlu0 %3886
        %3888 = vrot.lane.b32.xlu0 %v3878, 30
        %v3889 = vpop.permute.xlu0 %3888
        %3890 = vrot.lane.b32.xlu0 %v3879, 30
        %v3891 = vpop.permute.xlu0 %3890
        %3892 = vrot.lane.b32.xlu0 %v3880, 30
        %v3893 = vpop.permute.xlu0 %3892
        %3894 = vrot.lane.b32.xlu0 %v3881, 30
        %v3895 = vpop.permute.xlu0 %3894
        %3896 = vrot.lane.b32.xlu0 %v3882, 30
        %v3897 = vpop.permute.xlu0 %3896
        %3898 = vrot.lane.b32.xlu0 %v3883, 30
        %v3899 = vpop.permute.xlu0 %3898
        %vm3900 = vcmask 244736
        %v3901 = vsel %vm3900, %v3885, %v3887
        %v3902 = vsel %vm3900, %v3887, %v3889
        %v3903 = vsel %vm3900, %v3889, %v3891
        %v3904 = vsel %vm3900, %v3891, %v3893
        %v3905 = vsel %vm3900, %v3893, %v3895
        %v3906 = vsel %vm3900, %v3895, %v3897
        %v3907 = vsel %vm3900, %v3897, %v3899
        %v3909 = vsel %vm506, %v459, 0
        %v3911 = vsel %vm510, %v3901, 0
        %v3913 = vsel %vm510, %v3902, 0
        %v3915 = vsel %vm510, %v3903, 0
        %v3917 = vsel %vm510, %v3904, 0
        %v3919 = vsel %vm510, %v3905, 0
        %v3921 = vsel %vm510, %v3906, 0
        %v3923 = vsel %vm510, %v3907, 0
        %3925 = vmatpush.msra.mxu0 0.0
        %3926 = vmatpush.msra.mxu0 0.0
        %3927 = vmatpush.msra.mxu0 0.0
        %3928 = vmatpush.msra.mxu0 0.0
        %3929 = vmatpush.msra.mxu0 0.0
        %3930 = vmatpush.msra.mxu0 0.0
        %3931 = vmatpush.msra.mxu0 0.0
        %3932 = vmatpush.msra.mxu0 0.0
        %3933 = vmatpush.msra.mxu0 0.0
        %3934 = vmatpush.msra.mxu0 0.0
        %3935 = vmatpush.msra.mxu0 0.0
        %3936 = vmatpush.msra.mxu0 0.0
        %3937 = vmatpush.msra.mxu0 0.0
        %3938 = vmatpush.msra.mxu0 0.0
        %3939 = vmatpush.msra.mxu0 0.0
        %3940 = vmatpush.msra.mxu0 %v3911
        %3941 = vmatmul.f32.gmra.mxu0 %v3909
        %v3942 = vpop.f32.mrf.mxu0
        %v3943 = vadd.f32 0.0, %v3942
        %3944 = vdwg.mxu0
        %3945 = vmatpush.msra.mxu0 0.0
        %3946 = vmatpush.msra.mxu0 0.0
        %3947 = vmatpush.msra.mxu0 0.0
        %3948 = vmatpush.msra.mxu0 0.0
        %3949 = vmatpush.msra.mxu0 0.0
        %3950 = vmatpush.msra.mxu0 0.0
        %3951 = vmatpush.msra.mxu0 0.0
        %3952 = vmatpush.msra.mxu0 0.0
        %3953 = vmatpush.msra.mxu0 0.0
        %3954 = vmatpush.msra.mxu0 0.0
        %3955 = vmatpush.msra.mxu0 0.0
        %3956 = vmatpush.msra.mxu0 0.0
        %3957 = vmatpush.msra.mxu0 0.0
        %3958 = vmatpush.msra.mxu0 0.0
        %3959 = vmatpush.msra.mxu0 0.0
        %3960 = vmatpush.msra.mxu0 %v3913
        %3961 = vmatmul.f32.gmra.mxu0 %v3909
        %v3962 = vpop.f32.mrf.mxu0
        %v3963 = vadd.f32 0.0, %v3962
        %3964 = vdwg.mxu0
        %3965 = vmatpush.msra.mxu0 0.0
        %3966 = vmatpush.msra.mxu0 0.0
        %3967 = vmatpush.msra.mxu0 0.0
        %3968 = vmatpush.msra.mxu0 0.0
        %3969 = vmatpush.msra.mxu0 0.0
        %3970 = vmatpush.msra.mxu0 0.0
        %3971 = vmatpush.msra.mxu0 0.0
        %3972 = vmatpush.msra.mxu0 0.0
        %3973 = vmatpush.msra.mxu0 0.0
        %3974 = vmatpush.msra.mxu0 0.0
        %3975 = vmatpush.msra.mxu0 0.0
        %3976 = vmatpush.msra.mxu0 0.0
        %3977 = vmatpush.msra.mxu0 0.0
        %3978 = vmatpush.msra.mxu0 0.0
        %3979 = vmatpush.msra.mxu0 0.0
        %3980 = vmatpush.msra.mxu0 %v3915
        %3981 = vmatmul.f32.gmra.mxu0 %v3909
        %v3982 = vpop.f32.mrf.mxu0
        %v3983 = vadd.f32 0.0, %v3982
        %3984 = vdwg.mxu0
        %3985 = vmatpush.msra.mxu0 0.0
        %3986 = vmatpush.msra.mxu0 0.0
        %3987 = vmatpush.msra.mxu0 0.0
        %3988 = vmatpush.msra.mxu0 0.0
        %3989 = vmatpush.msra.mxu0 0.0
        %3990 = vmatpush.msra.mxu0 0.0
        %3991 = vmatpush.msra.mxu0 0.0
        %3992 = vmatpush.msra.mxu0 0.0
        %3993 = vmatpush.msra.mxu0 0.0
        %3994 = vmatpush.msra.mxu0 0.0
        %3995 = vmatpush.msra.mxu0 0.0
        %3996 = vmatpush.msra.mxu0 0.0
        %3997 = vmatpush.msra.mxu0 0.0
        %3998 = vmatpush.msra.mxu0 0.0
        %3999 = vmatpush.msra.mxu0 0.0
        %4000 = vmatpush.msra.mxu0 %v3917
        %4001 = vmatmul.f32.gmra.mxu0 %v3909
        %v4002 = vpop.f32.mrf.mxu0
        %v4003 = vadd.f32 0.0, %v4002
        %4004 = vdwg.mxu0
        %4005 = vmatpush.msra.mxu0 0.0
        %4006 = vmatpush.msra.mxu0 0.0
        %4007 = vmatpush.msra.mxu0 0.0
        %4008 = vmatpush.msra.mxu0 0.0
        %4009 = vmatpush.msra.mxu0 0.0
        %4010 = vmatpush.msra.mxu0 0.0
        %4011 = vmatpush.msra.mxu0 0.0
        %4012 = vmatpush.msra.mxu0 0.0
        %4013 = vmatpush.msra.mxu0 0.0
        %4014 = vmatpush.msra.mxu0 0.0
        %4015 = vmatpush.msra.mxu0 0.0
        %4016 = vmatpush.msra.mxu0 0.0
        %4017 = vmatpush.msra.mxu0 0.0
        %4018 = vmatpush.msra.mxu0 0.0
        %4019 = vmatpush.msra.mxu0 0.0
        %4020 = vmatpush.msra.mxu0 %v3919
        %4021 = vmatmul.f32.gmra.mxu0 %v3909
        %v4022 = vpop.f32.mrf.mxu0
        %v4023 = vadd.f32 0.0, %v4022
        %4024 = vdwg.mxu0
        %4025 = vmatpush.msra.mxu0 0.0
        %4026 = vmatpush.msra.mxu0 0.0
        %4027 = vmatpush.msra.mxu0 0.0
        %4028 = vmatpush.msra.mxu0 0.0
        %4029 = vmatpush.msra.mxu0 0.0
        %4030 = vmatpush.msra.mxu0 0.0
        %4031 = vmatpush.msra.mxu0 0.0
        %4032 = vmatpush.msra.mxu0 0.0
        %4033 = vmatpush.msra.mxu0 0.0
        %4034 = vmatpush.msra.mxu0 0.0
        %4035 = vmatpush.msra.mxu0 0.0
        %4036 = vmatpush.msra.mxu0 0.0
        %4037 = vmatpush.msra.mxu0 0.0
        %4038 = vmatpush.msra.mxu0 0.0
        %4039 = vmatpush.msra.mxu0 0.0
        %4040 = vmatpush.msra.mxu0 %v3921
        %4041 = vmatmul.f32.gmra.mxu0 %v3909
        %v4042 = vpop.f32.mrf.mxu0
        %v4043 = vadd.f32 0.0, %v4042
        %4044 = vdwg.mxu0
        %4045 = vmatpush.msra.mxu0 0.0
        %4046 = vmatpush.msra.mxu0 0.0
        %4047 = vmatpush.msra.mxu0 0.0
        %4048 = vmatpush.msra.mxu0 0.0
        %4049 = vmatpush.msra.mxu0 0.0
        %4050 = vmatpush.msra.mxu0 0.0
        %4051 = vmatpush.msra.mxu0 0.0
        %4052 = vmatpush.msra.mxu0 0.0
        %4053 = vmatpush.msra.mxu0 0.0
        %4054 = vmatpush.msra.mxu0 0.0
        %4055 = vmatpush.msra.mxu0 0.0
        %4056 = vmatpush.msra.mxu0 0.0
        %4057 = vmatpush.msra.mxu0 0.0
        %4058 = vmatpush.msra.mxu0 0.0
        %4059 = vmatpush.msra.mxu0 0.0
        %4060 = vmatpush.msra.mxu0 %v3923
        %4061 = vmatmul.f32.gmra.mxu0 %v3909
        %v4062 = vpop.f32.mrf.mxu0
        %v4063 = vadd.f32 0.0, %v4062
        %4064 = vdwg.mxu0
        %v4065 = vadd.f32 %v3862, %v3943
        %v4066 = vadd.f32 %v3863, %v3963
        %v4067 = vadd.f32 %v3864, %v3983
        %v4068 = vadd.f32 %v3865, %v4003
        %v4069 = vadd.f32 %v3866, %v4023
        %v4070 = vadd.f32 %v3867, %v4043
        %v4071 = vadd.f32 %v3868, %v4063
        %4072 = vst [vmem:[#allocation1] ss:$2 sm:$0xff] %v438
        %s4073 = scalar_lea.vmem [#allocation1], 16
        %4074 = vst [vmem:[%s4073] ss:$2 sm:$0xff] %v439
        %s4075 = scalar_lea.vmem [#allocation1], 32
        %4076 = vst [vmem:[%s4075] ss:$2 sm:$0xff] %v440
        %s4077 = scalar_lea.vmem [#allocation1], 48
        %4078 = vst [vmem:[%s4077] ss:$2 sm:$0xff] %v441
        %v4079 = vld.sshfl [vmem:[#allocation1] sm:$0xff pattern:$0x75316420]
        %v4080 = vld.sshfl [vmem:[#allocation1 + $0x8] sm:$0xff pattern:$0x75316420]
        %v4081 = vld.sshfl [vmem:[#allocation1 + $0x10] sm:$0xff pattern:$0x75316420]
        %v4082 = vld.sshfl [vmem:[#allocation1 + $0x18] sm:$0xff pattern:$0x75316420]
        %v4083 = vld.sshfl [vmem:[#allocation1 + $0x20] sm:$0xff pattern:$0x75316420]
        %v4084 = vld.sshfl [vmem:[#allocation1 + $0x28] sm:$0xff pattern:$0x75316420]
        %v4085 = vld.sshfl [vmem:[#allocation1 + $0x30] sm:$0xff pattern:$0x75316420]
        %v4086 = vld.sshfl [vmem:[#allocation1 + $0x38] sm:$0xff pattern:$0x75316420]
        %4087 = vrot.lane.b32.xlu0 %v4079, 29
        %v4088 = vpop.permute.xlu0 %4087
        %4089 = vrot.lane.b32.xlu0 %v4080, 29
        %v4090 = vpop.permute.xlu0 %4089
        %4091 = vrot.lane.b32.xlu0 %v4081, 29
        %v4092 = vpop.permute.xlu0 %4091
        %4093 = vrot.lane.b32.xlu0 %v4082, 29
        %v4094 = vpop.permute.xlu0 %4093
        %4095 = vrot.lane.b32.xlu0 %v4083, 29
        %v4096 = vpop.permute.xlu0 %4095
        %4097 = vrot.lane.b32.xlu0 %v4084, 29
        %v4098 = vpop.permute.xlu0 %4097
        %4099 = vrot.lane.b32.xlu0 %v4085, 29
        %v4100 = vpop.permute.xlu0 %4099
        %4101 = vrot.lane.b32.xlu0 %v4086, 29
        %v4102 = vpop.permute.xlu0 %4101
        %vm4103 = vcmask 236544
        %v4104 = vsel %vm4103, %v4088, %v4090
        %v4105 = vsel %vm4103, %v4090, %v4092
        %v4106 = vsel %vm4103, %v4092, %v4094
        %v4107 = vsel %vm4103, %v4094, %v4096
        %v4108 = vsel %vm4103, %v4096, %v4098
        %v4109 = vsel %vm4103, %v4098, %v4100
        %v4110 = vsel %vm4103, %v4100, %v4102
        %v4112 = vsel %vm506, %v460, 0
        %v4114 = vsel %vm510, %v4104, 0
        %v4116 = vsel %vm510, %v4105, 0
        %v4118 = vsel %vm510, %v4106, 0
        %v4120 = vsel %vm510, %v4107, 0
        %v4122 = vsel %vm510, %v4108, 0
        %v4124 = vsel %vm510, %v4109, 0
        %v4126 = vsel %vm510, %v4110, 0
        %4128 = vmatpush.msra.mxu0 0.0
        %4129 = vmatpush.msra.mxu0 0.0
        %4130 = vmatpush.msra.mxu0 0.0
        %4131 = vmatpush.msra.mxu0 0.0
        %4132 = vmatpush.msra.mxu0 0.0
        %4133 = vmatpush.msra.mxu0 0.0
        %4134 = vmatpush.msra.mxu0 0.0
        %4135 = vmatpush.msra.mxu0 0.0
        %4136 = vmatpush.msra.mxu0 0.0
        %4137 = vmatpush.msra.mxu0 0.0
        %4138 = vmatpush.msra.mxu0 0.0
        %4139 = vmatpush.msra.mxu0 0.0
        %4140 = vmatpush.msra.mxu0 0.0
        %4141 = vmatpush.msra.mxu0 0.0
        %4142 = vmatpush.msra.mxu0 0.0
        %4143 = vmatpush.msra.mxu0 %v4114
        %4144 = vmatmul.f32.gmra.mxu0 %v4112
        %v4145 = vpop.f32.mrf.mxu0
        %v4146 = vadd.f32 0.0, %v4145
        %4147 = vdwg.mxu0
        %4148 = vmatpush.msra.mxu0 0.0
        %4149 = vmatpush.msra.mxu0 0.0
        %4150 = vmatpush.msra.mxu0 0.0
        %4151 = vmatpush.msra.mxu0 0.0
        %4152 = vmatpush.msra.mxu0 0.0
        %4153 = vmatpush.msra.mxu0 0.0
        %4154 = vmatpush.msra.mxu0 0.0
        %4155 = vmatpush.msra.mxu0 0.0
        %4156 = vmatpush.msra.mxu0 0.0
        %4157 = vmatpush.msra.mxu0 0.0
        %4158 = vmatpush.msra.mxu0 0.0
        %4159 = vmatpush.msra.mxu0 0.0
        %4160 = vmatpush.msra.mxu0 0.0
        %4161 = vmatpush.msra.mxu0 0.0
        %4162 = vmatpush.msra.mxu0 0.0
        %4163 = vmatpush.msra.mxu0 %v4116
        %4164 = vmatmul.f32.gmra.mxu0 %v4112
        %v4165 = vpop.f32.mrf.mxu0
        %v4166 = vadd.f32 0.0, %v4165
        %4167 = vdwg.mxu0
        %4168 = vmatpush.msra.mxu0 0.0
        %4169 = vmatpush.msra.mxu0 0.0
        %4170 = vmatpush.msra.mxu0 0.0
        %4171 = vmatpush.msra.mxu0 0.0
        %4172 = vmatpush.msra.mxu0 0.0
        %4173 = vmatpush.msra.mxu0 0.0
        %4174 = vmatpush.msra.mxu0 0.0
        %4175 = vmatpush.msra.mxu0 0.0
        %4176 = vmatpush.msra.mxu0 0.0
        %4177 = vmatpush.msra.mxu0 0.0
        %4178 = vmatpush.msra.mxu0 0.0
        %4179 = vmatpush.msra.mxu0 0.0
        %4180 = vmatpush.msra.mxu0 0.0
        %4181 = vmatpush.msra.mxu0 0.0
        %4182 = vmatpush.msra.mxu0 0.0
        %4183 = vmatpush.msra.mxu0 %v4118
        %4184 = vmatmul.f32.gmra.mxu0 %v4112
        %v4185 = vpop.f32.mrf.mxu0
        %v4186 = vadd.f32 0.0, %v4185
        %4187 = vdwg.mxu0
        %4188 = vmatpush.msra.mxu0 0.0
        %4189 = vmatpush.msra.mxu0 0.0
        %4190 = vmatpush.msra.mxu0 0.0
        %4191 = vmatpush.msra.mxu0 0.0
        %4192 = vmatpush.msra.mxu0 0.0
        %4193 = vmatpush.msra.mxu0 0.0
        %4194 = vmatpush.msra.mxu0 0.0
        %4195 = vmatpush.msra.mxu0 0.0
        %4196 = vmatpush.msra.mxu0 0.0
        %4197 = vmatpush.msra.mxu0 0.0
        %4198 = vmatpush.msra.mxu0 0.0
        %4199 = vmatpush.msra.mxu0 0.0
        %4200 = vmatpush.msra.mxu0 0.0
        %4201 = vmatpush.msra.mxu0 0.0
        %4202 = vmatpush.msra.mxu0 0.0
        %4203 = vmatpush.msra.mxu0 %v4120
        %4204 = vmatmul.f32.gmra.mxu0 %v4112
        %v4205 = vpop.f32.mrf.mxu0
        %v4206 = vadd.f32 0.0, %v4205
        %4207 = vdwg.mxu0
        %4208 = vmatpush.msra.mxu0 0.0
        %4209 = vmatpush.msra.mxu0 0.0
        %4210 = vmatpush.msra.mxu0 0.0
        %4211 = vmatpush.msra.mxu0 0.0
        %4212 = vmatpush.msra.mxu0 0.0
        %4213 = vmatpush.msra.mxu0 0.0
        %4214 = vmatpush.msra.mxu0 0.0
        %4215 = vmatpush.msra.mxu0 0.0
        %4216 = vmatpush.msra.mxu0 0.0
        %4217 = vmatpush.msra.mxu0 0.0
        %4218 = vmatpush.msra.mxu0 0.0
        %4219 = vmatpush.msra.mxu0 0.0
        %4220 = vmatpush.msra.mxu0 0.0
        %4221 = vmatpush.msra.mxu0 0.0
        %4222 = vmatpush.msra.mxu0 0.0
        %4223 = vmatpush.msra.mxu0 %v4122
        %4224 = vmatmul.f32.gmra.mxu0 %v4112
        %v4225 = vpop.f32.mrf.mxu0
        %v4226 = vadd.f32 0.0, %v4225
        %4227 = vdwg.mxu0
        %4228 = vmatpush.msra.mxu0 0.0
        %4229 = vmatpush.msra.mxu0 0.0
        %4230 = vmatpush.msra.mxu0 0.0
        %4231 = vmatpush.msra.mxu0 0.0
        %4232 = vmatpush.msra.mxu0 0.0
        %4233 = vmatpush.msra.mxu0 0.0
        %4234 = vmatpush.msra.mxu0 0.0
        %4235 = vmatpush.msra.mxu0 0.0
        %4236 = vmatpush.msra.mxu0 0.0
        %4237 = vmatpush.msra.mxu0 0.0
        %4238 = vmatpush.msra.mxu0 0.0
        %4239 = vmatpush.msra.mxu0 0.0
        %4240 = vmatpush.msra.mxu0 0.0
        %4241 = vmatpush.msra.mxu0 0.0
        %4242 = vmatpush.msra.mxu0 0.0
        %4243 = vmatpush.msra.mxu0 %v4124
        %4244 = vmatmul.f32.gmra.mxu0 %v4112
        %v4245 = vpop.f32.mrf.mxu0
        %v4246 = vadd.f32 0.0, %v4245
        %4247 = vdwg.mxu0
        %4248 = vmatpush.msra.mxu0 0.0
        %4249 = vmatpush.msra.mxu0 0.0
        %4250 = vmatpush.msra.mxu0 0.0
        %4251 = vmatpush.msra.mxu0 0.0
        %4252 = vmatpush.msra.mxu0 0.0
        %4253 = vmatpush.msra.mxu0 0.0
        %4254 = vmatpush.msra.mxu0 0.0
        %4255 = vmatpush.msra.mxu0 0.0
        %4256 = vmatpush.msra.mxu0 0.0
        %4257 = vmatpush.msra.mxu0 0.0
        %4258 = vmatpush.msra.mxu0 0.0
        %4259 = vmatpush.msra.mxu0 0.0
        %4260 = vmatpush.msra.mxu0 0.0
        %4261 = vmatpush.msra.mxu0 0.0
        %4262 = vmatpush.msra.mxu0 0.0
        %4263 = vmatpush.msra.mxu0 %v4126
        %4264 = vmatmul.f32.gmra.mxu0 %v4112
        %v4265 = vpop.f32.mrf.mxu0
        %v4266 = vadd.f32 0.0, %v4265
        %4267 = vdwg.mxu0
        %v4268 = vadd.f32 %v4065, %v4146
        %v4269 = vadd.f32 %v4066, %v4166
        %v4270 = vadd.f32 %v4067, %v4186
        %v4271 = vadd.f32 %v4068, %v4206
        %v4272 = vadd.f32 %v4069, %v4226
        %v4273 = vadd.f32 %v4070, %v4246
        %v4274 = vadd.f32 %v4071, %v4266
        %4275 = vst [vmem:[#allocation1] ss:$2 sm:$0xff] %v438
        %s4276 = scalar_lea.vmem [#allocation1], 16
        %4277 = vst [vmem:[%s4276] ss:$2 sm:$0xff] %v439
        %s4278 = scalar_lea.vmem [#allocation1], 32
        %4279 = vst [vmem:[%s4278] ss:$2 sm:$0xff] %v440
        %s4280 = scalar_lea.vmem [#allocation1], 48
        %4281 = vst [vmem:[%s4280] ss:$2 sm:$0xff] %v441
        %v4282 = vld.sshfl [vmem:[#allocation1] sm:$0xff pattern:$0x75316420]
        %v4283 = vld.sshfl [vmem:[#allocation1 + $0x8] sm:$0xff pattern:$0x75316420]
        %v4284 = vld.sshfl [vmem:[#allocation1 + $0x10] sm:$0xff pattern:$0x75316420]
        %v4285 = vld.sshfl [vmem:[#allocation1 + $0x18] sm:$0xff pattern:$0x75316420]
        %v4286 = vld.sshfl [vmem:[#allocation1 + $0x20] sm:$0xff pattern:$0x75316420]
        %v4287 = vld.sshfl [vmem:[#allocation1 + $0x28] sm:$0xff pattern:$0x75316420]
        %v4288 = vld.sshfl [vmem:[#allocation1 + $0x30] sm:$0xff pattern:$0x75316420]
        %v4289 = vld.sshfl [vmem:[#allocation1 + $0x38] sm:$0xff pattern:$0x75316420]
        %4290 = vrot.lane.b32.xlu0 %v4282, 28
        %v4291 = vpop.permute.xlu0 %4290
        %4292 = vrot.lane.b32.xlu0 %v4283, 28
        %v4293 = vpop.permute.xlu0 %4292
        %4294 = vrot.lane.b32.xlu0 %v4284, 28
        %v4295 = vpop.permute.xlu0 %4294
        %4296 = vrot.lane.b32.xlu0 %v4285, 28
        %v4297 = vpop.permute.xlu0 %4296
        %4298 = vrot.lane.b32.xlu0 %v4286, 28
        %v4299 = vpop.permute.xlu0 %4298
        %4300 = vrot.lane.b32.xlu0 %v4287, 28
        %v4301 = vpop.permute.xlu0 %4300
        %4302 = vrot.lane.b32.xlu0 %v4288, 28
        %v4303 = vpop.permute.xlu0 %4302
        %4304 = vrot.lane.b32.xlu0 %v4289, 28
        %v4305 = vpop.permute.xlu0 %4304
        %vm4306 = vcmask 228352
        %v4307 = vsel %vm4306, %v4291, %v4293
        %v4308 = vsel %vm4306, %v4293, %v4295
        %v4309 = vsel %vm4306, %v4295, %v4297
        %v4310 = vsel %vm4306, %v4297, %v4299
        %v4311 = vsel %vm4306, %v4299, %v4301
        %v4312 = vsel %vm4306, %v4301, %v4303
        %v4313 = vsel %vm4306, %v4303, %v4305
        %v4315 = vsel %vm506, %v461, 0
        %v4317 = vsel %vm510, %v4307, 0
        %v4319 = vsel %vm510, %v4308, 0
        %v4321 = vsel %vm510, %v4309, 0
        %v4323 = vsel %vm510, %v4310, 0
        %v4325 = vsel %vm510, %v4311, 0
        %v4327 = vsel %vm510, %v4312, 0
        %v4329 = vsel %vm510, %v4313, 0
        %4331 = vmatpush.msra.mxu0 0.0
        %4332 = vmatpush.msra.mxu0 0.0
        %4333 = vmatpush.msra.mxu0 0.0
        %4334 = vmatpush.msra.mxu0 0.0
        %4335 = vmatpush.msra.mxu0 0.0
        %4336 = vmatpush.msra.mxu0 0.0
        %4337 = vmatpush.msra.mxu0 0.0
        %4338 = vmatpush.msra.mxu0 0.0
        %4339 = vmatpush.msra.mxu0 0.0
        %4340 = vmatpush.msra.mxu0 0.0
        %4341 = vmatpush.msra.mxu0 0.0
        %4342 = vmatpush.msra.mxu0 0.0
        %4343 = vmatpush.msra.mxu0 0.0
        %4344 = vmatpush.msra.mxu0 0.0
        %4345 = vmatpush.msra.mxu0 0.0
        %4346 = vmatpush.msra.mxu0 %v4317
        %4347 = vmatmul.f32.gmra.mxu0 %v4315
        %v4348 = vpop.f32.mrf.mxu0
        %v4349 = vadd.f32 0.0, %v4348
        %4350 = vdwg.mxu0
        %4351 = vmatpush.msra.mxu0 0.0
        %4352 = vmatpush.msra.mxu0 0.0
        %4353 = vmatpush.msra.mxu0 0.0
        %4354 = vmatpush.msra.mxu0 0.0
        %4355 = vmatpush.msra.mxu0 0.0
        %4356 = vmatpush.msra.mxu0 0.0
        %4357 = vmatpush.msra.mxu0 0.0
        %4358 = vmatpush.msra.mxu0 0.0
        %4359 = vmatpush.msra.mxu0 0.0
        %4360 = vmatpush.msra.mxu0 0.0
        %4361 = vmatpush.msra.mxu0 0.0
        %4362 = vmatpush.msra.mxu0 0.0
        %4363 = vmatpush.msra.mxu0 0.0
        %4364 = vmatpush.msra.mxu0 0.0
        %4365 = vmatpush.msra.mxu0 0.0
        %4366 = vmatpush.msra.mxu0 %v4319
        %4367 = vmatmul.f32.gmra.mxu0 %v4315
        %v4368 = vpop.f32.mrf.mxu0
        %v4369 = vadd.f32 0.0, %v4368
        %4370 = vdwg.mxu0
        %4371 = vmatpush.msra.mxu0 0.0
        %4372 = vmatpush.msra.mxu0 0.0
        %4373 = vmatpush.msra.mxu0 0.0
        %4374 = vmatpush.msra.mxu0 0.0
        %4375 = vmatpush.msra.mxu0 0.0
        %4376 = vmatpush.msra.mxu0 0.0
        %4377 = vmatpush.msra.mxu0 0.0
        %4378 = vmatpush.msra.mxu0 0.0
        %4379 = vmatpush.msra.mxu0 0.0
        %4380 = vmatpush.msra.mxu0 0.0
        %4381 = vmatpush.msra.mxu0 0.0
        %4382 = vmatpush.msra.mxu0 0.0
        %4383 = vmatpush.msra.mxu0 0.0
        %4384 = vmatpush.msra.mxu0 0.0
        %4385 = vmatpush.msra.mxu0 0.0
        %4386 = vmatpush.msra.mxu0 %v4321
        %4387 = vmatmul.f32.gmra.mxu0 %v4315
        %v4388 = vpop.f32.mrf.mxu0
        %v4389 = vadd.f32 0.0, %v4388
        %4390 = vdwg.mxu0
        %4391 = vmatpush.msra.mxu0 0.0
        %4392 = vmatpush.msra.mxu0 0.0
        %4393 = vmatpush.msra.mxu0 0.0
        %4394 = vmatpush.msra.mxu0 0.0
        %4395 = vmatpush.msra.mxu0 0.0
        %4396 = vmatpush.msra.mxu0 0.0
        %4397 = vmatpush.msra.mxu0 0.0
        %4398 = vmatpush.msra.mxu0 0.0
        %4399 = vmatpush.msra.mxu0 0.0
        %4400 = vmatpush.msra.mxu0 0.0
        %4401 = vmatpush.msra.mxu0 0.0
        %4402 = vmatpush.msra.mxu0 0.0
        %4403 = vmatpush.msra.mxu0 0.0
        %4404 = vmatpush.msra.mxu0 0.0
        %4405 = vmatpush.msra.mxu0 0.0
        %4406 = vmatpush.msra.mxu0 %v4323
        %4407 = vmatmul.f32.gmra.mxu0 %v4315
        %v4408 = vpop.f32.mrf.mxu0
        %v4409 = vadd.f32 0.0, %v4408
        %4410 = vdwg.mxu0
        %4411 = vmatpush.msra.mxu0 0.0
        %4412 = vmatpush.msra.mxu0 0.0
        %4413 = vmatpush.msra.mxu0 0.0
        %4414 = vmatpush.msra.mxu0 0.0
        %4415 = vmatpush.msra.mxu0 0.0
        %4416 = vmatpush.msra.mxu0 0.0
        %4417 = vmatpush.msra.mxu0 0.0
        %4418 = vmatpush.msra.mxu0 0.0
        %4419 = vmatpush.msra.mxu0 0.0
        %4420 = vmatpush.msra.mxu0 0.0
        %4421 = vmatpush.msra.mxu0 0.0
        %4422 = vmatpush.msra.mxu0 0.0
        %4423 = vmatpush.msra.mxu0 0.0
        %4424 = vmatpush.msra.mxu0 0.0
        %4425 = vmatpush.msra.mxu0 0.0
        %4426 = vmatpush.msra.mxu0 %v4325
        %4427 = vmatmul.f32.gmra.mxu0 %v4315
        %v4428 = vpop.f32.mrf.mxu0
        %v4429 = vadd.f32 0.0, %v4428
        %4430 = vdwg.mxu0
        %4431 = vmatpush.msra.mxu0 0.0
        %4432 = vmatpush.msra.mxu0 0.0
        %4433 = vmatpush.msra.mxu0 0.0
        %4434 = vmatpush.msra.mxu0 0.0
        %4435 = vmatpush.msra.mxu0 0.0
        %4436 = vmatpush.msra.mxu0 0.0
        %4437 = vmatpush.msra.mxu0 0.0
        %4438 = vmatpush.msra.mxu0 0.0
        %4439 = vmatpush.msra.mxu0 0.0
        %4440 = vmatpush.msra.mxu0 0.0
        %4441 = vmatpush.msra.mxu0 0.0
        %4442 = vmatpush.msra.mxu0 0.0
        %4443 = vmatpush.msra.mxu0 0.0
        %4444 = vmatpush.msra.mxu0 0.0
        %4445 = vmatpush.msra.mxu0 0.0
        %4446 = vmatpush.msra.mxu0 %v4327
        %4447 = vmatmul.f32.gmra.mxu0 %v4315
        %v4448 = vpop.f32.mrf.mxu0
        %v4449 = vadd.f32 0.0, %v4448
        %4450 = vdwg.mxu0
        %4451 = vmatpush.msra.mxu0 0.0
        %4452 = vmatpush.msra.mxu0 0.0
        %4453 = vmatpush.msra.mxu0 0.0
        %4454 = vmatpush.msra.mxu0 0.0
        %4455 = vmatpush.msra.mxu0 0.0
        %4456 = vmatpush.msra.mxu0 0.0
        %4457 = vmatpush.msra.mxu0 0.0
        %4458 = vmatpush.msra.mxu0 0.0
        %4459 = vmatpush.msra.mxu0 0.0
        %4460 = vmatpush.msra.mxu0 0.0
        %4461 = vmatpush.msra.mxu0 0.0
        %4462 = vmatpush.msra.mxu0 0.0
        %4463 = vmatpush.msra.mxu0 0.0
        %4464 = vmatpush.msra.mxu0 0.0
        %4465 = vmatpush.msra.mxu0 0.0
        %4466 = vmatpush.msra.mxu0 %v4329
        %4467 = vmatmul.f32.gmra.mxu0 %v4315
        %v4468 = vpop.f32.mrf.mxu0
        %v4469 = vadd.f32 0.0, %v4468
        %4470 = vdwg.mxu0
        %v4471 = vadd.f32 %v4268, %v4349
        %v4472 = vadd.f32 %v4269, %v4369
        %v4473 = vadd.f32 %v4270, %v4389
        %v4474 = vadd.f32 %v4271, %v4409
        %v4475 = vadd.f32 %v4272, %v4429
        %v4476 = vadd.f32 %v4273, %v4449
        %v4477 = vadd.f32 %v4274, %v4469
        %4478 = vst [vmem:[#allocation1] ss:$2 sm:$0xff] %v438
        %s4479 = scalar_lea.vmem [#allocation1], 16
        %4480 = vst [vmem:[%s4479] ss:$2 sm:$0xff] %v439
        %s4481 = scalar_lea.vmem [#allocation1], 32
        %4482 = vst [vmem:[%s4481] ss:$2 sm:$0xff] %v440
        %s4483 = scalar_lea.vmem [#allocation1], 48
        %4484 = vst [vmem:[%s4483] ss:$2 sm:$0xff] %v441
        %v4485 = vld.sshfl [vmem:[#allocation1 + $0x8] sm:$0xff pattern:$0x75316420]
        %v4486 = vld.sshfl [vmem:[#allocation1 + $0x10] sm:$0xff pattern:$0x75316420]
        %v4487 = vld.sshfl [vmem:[#allocation1 + $0x18] sm:$0xff pattern:$0x75316420]
        %v4488 = vld.sshfl [vmem:[#allocation1 + $0x20] sm:$0xff pattern:$0x75316420]
        %v4489 = vld.sshfl [vmem:[#allocation1 + $0x28] sm:$0xff pattern:$0x75316420]
        %v4490 = vld.sshfl [vmem:[#allocation1 + $0x30] sm:$0xff pattern:$0x75316420]
        %v4491 = vld.sshfl [vmem:[#allocation1 + $0x38] sm:$0xff pattern:$0x75316420]
        %v4493 = vsel %vm506, %v462, 0
        %v4495 = vsel %vm510, %v4485, 0
        %v4497 = vsel %vm510, %v4486, 0
        %v4499 = vsel %vm510, %v4487, 0
        %v4501 = vsel %vm510, %v4488, 0
        %v4503 = vsel %vm510, %v4489, 0
        %v4505 = vsel %vm510, %v4490, 0
        %v4507 = vsel %vm510, %v4491, 0
        %4509 = vmatpush.msra.mxu0 0.0
        %4510 = vmatpush.msra.mxu0 0.0
        %4511 = vmatpush.msra.mxu0 0.0
        %4512 = vmatpush.msra.mxu0 0.0
        %4513 = vmatpush.msra.mxu0 0.0
        %4514 = vmatpush.msra.mxu0 0.0
        %4515 = vmatpush.msra.mxu0 0.0
        %4516 = vmatpush.msra.mxu0 0.0
        %4517 = vmatpush.msra.mxu0 0.0
        %4518 = vmatpush.msra.mxu0 0.0
        %4519 = vmatpush.msra.mxu0 0.0
        %4520 = vmatpush.msra.mxu0 0.0
        %4521 = vmatpush.msra.mxu0 0.0
        %4522 = vmatpush.msra.mxu0 0.0
        %4523 = vmatpush.msra.mxu0 0.0
        %4524 = vmatpush.msra.mxu0 %v4495
        %4525 = vmatmul.f32.gmra.mxu0 %v4493
        %v4526 = vpop.f32.mrf.mxu0
        %v4527 = vadd.f32 0.0, %v4526
        %4528 = vdwg.mxu0
        %4529 = vmatpush.msra.mxu0 0.0
        %4530 = vmatpush.msra.mxu0 0.0
        %4531 = vmatpush.msra.mxu0 0.0
        %4532 = vmatpush.msra.mxu0 0.0
        %4533 = vmatpush.msra.mxu0 0.0
        %4534 = vmatpush.msra.mxu0 0.0
        %4535 = vmatpush.msra.mxu0 0.0
        %4536 = vmatpush.msra.mxu0 0.0
        %4537 = vmatpush.msra.mxu0 0.0
        %4538 = vmatpush.msra.mxu0 0.0
        %4539 = vmatpush.msra.mxu0 0.0
        %4540 = vmatpush.msra.mxu0 0.0
        %4541 = vmatpush.msra.mxu0 0.0
        %4542 = vmatpush.msra.mxu0 0.0
        %4543 = vmatpush.msra.mxu0 0.0
        %4544 = vmatpush.msra.mxu0 %v4497
        %4545 = vmatmul.f32.gmra.mxu0 %v4493
        %v4546 = vpop.f32.mrf.mxu0
        %v4547 = vadd.f32 0.0, %v4546
        %4548 = vdwg.mxu0
        %4549 = vmatpush.msra.mxu0 0.0
        %4550 = vmatpush.msra.mxu0 0.0
        %4551 = vmatpush.msra.mxu0 0.0
        %4552 = vmatpush.msra.mxu0 0.0
        %4553 = vmatpush.msra.mxu0 0.0
        %4554 = vmatpush.msra.mxu0 0.0
        %4555 = vmatpush.msra.mxu0 0.0
        %4556 = vmatpush.msra.mxu0 0.0
        %4557 = vmatpush.msra.mxu0 0.0
        %4558 = vmatpush.msra.mxu0 0.0
        %4559 = vmatpush.msra.mxu0 0.0
        %4560 = vmatpush.msra.mxu0 0.0
        %4561 = vmatpush.msra.mxu0 0.0
        %4562 = vmatpush.msra.mxu0 0.0
        %4563 = vmatpush.msra.mxu0 0.0
        %4564 = vmatpush.msra.mxu0 %v4499
        %4565 = vmatmul.f32.gmra.mxu0 %v4493
        %v4566 = vpop.f32.mrf.mxu0
        %v4567 = vadd.f32 0.0, %v4566
        %4568 = vdwg.mxu0
        %4569 = vmatpush.msra.mxu0 0.0
        %4570 = vmatpush.msra.mxu0 0.0
        %4571 = vmatpush.msra.mxu0 0.0
        %4572 = vmatpush.msra.mxu0 0.0
        %4573 = vmatpush.msra.mxu0 0.0
        %4574 = vmatpush.msra.mxu0 0.0
        %4575 = vmatpush.msra.mxu0 0.0
        %4576 = vmatpush.msra.mxu0 0.0
        %4577 = vmatpush.msra.mxu0 0.0
        %4578 = vmatpush.msra.mxu0 0.0
        %4579 = vmatpush.msra.mxu0 0.0
        %4580 = vmatpush.msra.mxu0 0.0
        %4581 = vmatpush.msra.mxu0 0.0
        %4582 = vmatpush.msra.mxu0 0.0
        %4583 = vmatpush.msra.mxu0 0.0
        %4584 = vmatpush.msra.mxu0 %v4501
        %4585 = vmatmul.f32.gmra.mxu0 %v4493
        %v4586 = vpop.f32.mrf.mxu0
        %v4587 = vadd.f32 0.0, %v4586
        %4588 = vdwg.mxu0
        %4589 = vmatpush.msra.mxu0 0.0
        %4590 = vmatpush.msra.mxu0 0.0
        %4591 = vmatpush.msra.mxu0 0.0
        %4592 = vmatpush.msra.mxu0 0.0
        %4593 = vmatpush.msra.mxu0 0.0
        %4594 = vmatpush.msra.mxu0 0.0
        %4595 = vmatpush.msra.mxu0 0.0
        %4596 = vmatpush.msra.mxu0 0.0
        %4597 = vmatpush.msra.mxu0 0.0
        %4598 = vmatpush.msra.mxu0 0.0
        %4599 = vmatpush.msra.mxu0 0.0
        %4600 = vmatpush.msra.mxu0 0.0
        %4601 = vmatpush.msra.mxu0 0.0
        %4602 = vmatpush.msra.mxu0 0.0
        %4603 = vmatpush.msra.mxu0 0.0
        %4604 = vmatpush.msra.mxu0 %v4503
        %4605 = vmatmul.f32.gmra.mxu0 %v4493
        %v4606 = vpop.f32.mrf.mxu0
        %v4607 = vadd.f32 0.0, %v4606
        %4608 = vdwg.mxu0
        %4609 = vmatpush.msra.mxu0 0.0
        %4610 = vmatpush.msra.mxu0 0.0
        %4611 = vmatpush.msra.mxu0 0.0
        %4612 = vmatpush.msra.mxu0 0.0
        %4613 = vmatpush.msra.mxu0 0.0
        %4614 = vmatpush.msra.mxu0 0.0
        %4615 = vmatpush.msra.mxu0 0.0
        %4616 = vmatpush.msra.mxu0 0.0
        %4617 = vmatpush.msra.mxu0 0.0
        %4618 = vmatpush.msra.mxu0 0.0
        %4619 = vmatpush.msra.mxu0 0.0
        %4620 = vmatpush.msra.mxu0 0.0
        %4621 = vmatpush.msra.mxu0 0.0
        %4622 = vmatpush.msra.mxu0 0.0
        %4623 = vmatpush.msra.mxu0 0.0
        %4624 = vmatpush.msra.mxu0 %v4505
        %4625 = vmatmul.f32.gmra.mxu0 %v4493
        %v4626 = vpop.f32.mrf.mxu0
        %v4627 = vadd.f32 0.0, %v4626
        %4628 = vdwg.mxu0
        %4629 = vmatpush.msra.mxu0 0.0
        %4630 = vmatpush.msra.mxu0 0.0
        %4631 = vmatpush.msra.mxu0 0.0
        %4632 = vmatpush.msra.mxu0 0.0
        %4633 = vmatpush.msra.mxu0 0.0
        %4634 = vmatpush.msra.mxu0 0.0
        %4635 = vmatpush.msra.mxu0 0.0
        %4636 = vmatpush.msra.mxu0 0.0
        %4637 = vmatpush.msra.mxu0 0.0
        %4638 = vmatpush.msra.mxu0 0.0
        %4639 = vmatpush.msra.mxu0 0.0
        %4640 = vmatpush.msra.mxu0 0.0
        %4641 = vmatpush.msra.mxu0 0.0
        %4642 = vmatpush.msra.mxu0 0.0
        %4643 = vmatpush.msra.mxu0 0.0
        %4644 = vmatpush.msra.mxu0 %v4507
        %4645 = vmatmul.f32.gmra.mxu0 %v4493
        %v4646 = vpop.f32.mrf.mxu0
        %v4647 = vadd.f32 0.0, %v4646
        %4648 = vdwg.mxu0
        %v4649 = vadd.f32 %v4471, %v4527
        %v4650 = vadd.f32 %v4472, %v4547
        %v4651 = vadd.f32 %v4473, %v4567
        %v4652 = vadd.f32 %v4474, %v4587
        %v4653 = vadd.f32 %v4475, %v4607
        %v4654 = vadd.f32 %v4476, %v4627
        %v4655 = vadd.f32 %v4477, %v4647
        %4656 = vst [vmem:[#allocation1] ss:$2 sm:$0xff] %v438
        %s4657 = scalar_lea.vmem [#allocation1], 16
        %4658 = vst [vmem:[%s4657] ss:$2 sm:$0xff] %v439
        %s4659 = scalar_lea.vmem [#allocation1], 32
        %4660 = vst [vmem:[%s4659] ss:$2 sm:$0xff] %v440
        %s4661 = scalar_lea.vmem [#allocation1], 48
        %4662 = vst [vmem:[%s4661] ss:$2 sm:$0xff] %v441
        %v4663 = vld.sshfl [vmem:[#allocation1 + $0x8] sm:$0xff pattern:$0x75316420]
        %v4664 = vld.sshfl [vmem:[#allocation1 + $0x10] sm:$0xff pattern:$0x75316420]
        %v4665 = vld.sshfl [vmem:[#allocation1 + $0x18] sm:$0xff pattern:$0x75316420]
        %v4666 = vld.sshfl [vmem:[#allocation1 + $0x20] sm:$0xff pattern:$0x75316420]
        %v4667 = vld.sshfl [vmem:[#allocation1 + $0x28] sm:$0xff pattern:$0x75316420]
        %v4668 = vld.sshfl [vmem:[#allocation1 + $0x30] sm:$0xff pattern:$0x75316420]
        %v4669 = vld.sshfl [vmem:[#allocation1 + $0x38] sm:$0xff pattern:$0x75316420]
        %4670 = vrot.lane.b32.xlu0 %v4663, 127
        %v4671 = vpop.permute.xlu0 %4670
        %4672 = vrot.lane.b32.xlu0 %v4664, 127
        %v4673 = vpop.permute.xlu0 %4672
        %4674 = vrot.lane.b32.xlu0 %v4665, 127
        %v4675 = vpop.permute.xlu0 %4674
        %4676 = vrot.lane.b32.xlu0 %v4666, 127
        %v4677 = vpop.permute.xlu0 %4676
        %4678 = vrot.lane.b32.xlu0 %v4667, 127
        %v4679 = vpop.permute.xlu0 %4678
        %4680 = vrot.lane.b32.xlu0 %v4668, 127
        %v4681 = vpop.permute.xlu0 %4680
        %4682 = vrot.lane.b32.xlu0 %v4669, 127
        %v4683 = vpop.permute.xlu0 %4682
        %v4684 = vsel %vm499, %v4671, %v4673
        %v4685 = vsel %vm499, %v4673, %v4675
        %v4686 = vsel %vm499, %v4675, %v4677
        %v4687 = vsel %vm499, %v4677, %v4679
        %v4688 = vsel %vm499, %v4679, %v4681
        %v4689 = vsel %vm499, %v4681, %v4683
        %v4691 = vsel %vm506, %v463, 0
        %v4693 = vsel %vm510, %v4684, 0
        %v4695 = vsel %vm510, %v4685, 0
        %v4697 = vsel %vm510, %v4686, 0
        %v4699 = vsel %vm510, %v4687, 0
        %v4701 = vsel %vm510, %v4688, 0
        %v4703 = vsel %vm510, %v4689, 0
        %v4705 = vsel %vm510, %v4683, 0
        %4707 = vmatpush.msra.mxu0 0.0
        %4708 = vmatpush.msra.mxu0 0.0
        %4709 = vmatpush.msra.mxu0 0.0
        %4710 = vmatpush.msra.mxu0 0.0
        %4711 = vmatpush.msra.mxu0 0.0
        %4712 = vmatpush.msra.mxu0 0.0
        %4713 = vmatpush.msra.mxu0 0.0
        %4714 = vmatpush.msra.mxu0 0.0
        %4715 = vmatpush.msra.mxu0 0.0
        %4716 = vmatpush.msra.mxu0 0.0
        %4717 = vmatpush.msra.mxu0 0.0
        %4718 = vmatpush.msra.mxu0 0.0
        %4719 = vmatpush.msra.mxu0 0.0
        %4720 = vmatpush.msra.mxu0 0.0
        %4721 = vmatpush.msra.mxu0 0.0
        %4722 = vmatpush.msra.mxu0 %v4693
        %4723 = vmatmul.f32.gmra.mxu0 %v4691
        %v4724 = vpop.f32.mrf.mxu0
        %v4725 = vadd.f32 0.0, %v4724
        %4726 = vdwg.mxu0
        %4727 = vmatpush.msra.mxu0 0.0
        %4728 = vmatpush.msra.mxu0 0.0
        %4729 = vmatpush.msra.mxu0 0.0
        %4730 = vmatpush.msra.mxu0 0.0
        %4731 = vmatpush.msra.mxu0 0.0
        %4732 = vmatpush.msra.mxu0 0.0
        %4733 = vmatpush.msra.mxu0 0.0
        %4734 = vmatpush.msra.mxu0 0.0
        %4735 = vmatpush.msra.mxu0 0.0
        %4736 = vmatpush.msra.mxu0 0.0
        %4737 = vmatpush.msra.mxu0 0.0
        %4738 = vmatpush.msra.mxu0 0.0
        %4739 = vmatpush.msra.mxu0 0.0
        %4740 = vmatpush.msra.mxu0 0.0
        %4741 = vmatpush.msra.mxu0 0.0
        %4742 = vmatpush.msra.mxu0 %v4695
        %4743 = vmatmul.f32.gmra.mxu0 %v4691
        %v4744 = vpop.f32.mrf.mxu0
        %v4745 = vadd.f32 0.0, %v4744
        %4746 = vdwg.mxu0
        %4747 = vmatpush.msra.mxu0 0.0
        %4748 = vmatpush.msra.mxu0 0.0
        %4749 = vmatpush.msra.mxu0 0.0
        %4750 = vmatpush.msra.mxu0 0.0
        %4751 = vmatpush.msra.mxu0 0.0
        %4752 = vmatpush.msra.mxu0 0.0
        %4753 = vmatpush.msra.mxu0 0.0
        %4754 = vmatpush.msra.mxu0 0.0
        %4755 = vmatpush.msra.mxu0 0.0
        %4756 = vmatpush.msra.mxu0 0.0
        %4757 = vmatpush.msra.mxu0 0.0
        %4758 = vmatpush.msra.mxu0 0.0
        %4759 = vmatpush.msra.mxu0 0.0
        %4760 = vmatpush.msra.mxu0 0.0
        %4761 = vmatpush.msra.mxu0 0.0
        %4762 = vmatpush.msra.mxu0 %v4697
        %4763 = vmatmul.f32.gmra.mxu0 %v4691
        %v4764 = vpop.f32.mrf.mxu0
        %v4765 = vadd.f32 0.0, %v4764
        %4766 = vdwg.mxu0
        %4767 = vmatpush.msra.mxu0 0.0
        %4768 = vmatpush.msra.mxu0 0.0
        %4769 = vmatpush.msra.mxu0 0.0
        %4770 = vmatpush.msra.mxu0 0.0
        %4771 = vmatpush.msra.mxu0 0.0
        %4772 = vmatpush.msra.mxu0 0.0
        %4773 = vmatpush.msra.mxu0 0.0
        %4774 = vmatpush.msra.mxu0 0.0
        %4775 = vmatpush.msra.mxu0 0.0
        %4776 = vmatpush.msra.mxu0 0.0
        %4777 = vmatpush.msra.mxu0 0.0
        %4778 = vmatpush.msra.mxu0 0.0
        %4779 = vmatpush.msra.mxu0 0.0
        %4780 = vmatpush.msra.mxu0 0.0
        %4781 = vmatpush.msra.mxu0 0.0
        %4782 = vmatpush.msra.mxu0 %v4699
        %4783 = vmatmul.f32.gmra.mxu0 %v4691
        %v4784 = vpop.f32.mrf.mxu0
        %v4785 = vadd.f32 0.0, %v4784
        %4786 = vdwg.mxu0
        %4787 = vmatpush.msra.mxu0 0.0
        %4788 = vmatpush.msra.mxu0 0.0
        %4789 = vmatpush.msra.mxu0 0.0
        %4790 = vmatpush.msra.mxu0 0.0
        %4791 = vmatpush.msra.mxu0 0.0
        %4792 = vmatpush.msra.mxu0 0.0
        %4793 = vmatpush.msra.mxu0 0.0
        %4794 = vmatpush.msra.mxu0 0.0
        %4795 = vmatpush.msra.mxu0 0.0
        %4796 = vmatpush.msra.mxu0 0.0
        %4797 = vmatpush.msra.mxu0 0.0
        %4798 = vmatpush.msra.mxu0 0.0
        %4799 = vmatpush.msra.mxu0 0.0
        %4800 = vmatpush.msra.mxu0 0.0
        %4801 = vmatpush.msra.mxu0 0.0
        %4802 = vmatpush.msra.mxu0 %v4701
        %4803 = vmatmul.f32.gmra.mxu0 %v4691
        %v4804 = vpop.f32.mrf.mxu0
        %v4805 = vadd.f32 0.0, %v4804
        %4806 = vdwg.mxu0
        %4807 = vmatpush.msra.mxu0 0.0
        %4808 = vmatpush.msra.mxu0 0.0
        %4809 = vmatpush.msra.mxu0 0.0
        %4810 = vmatpush.msra.mxu0 0.0
        %4811 = vmatpush.msra.mxu0 0.0
        %4812 = vmatpush.msra.mxu0 0.0
        %4813 = vmatpush.msra.mxu0 0.0
        %4814 = vmatpush.msra.mxu0 0.0
        %4815 = vmatpush.msra.mxu0 0.0
        %4816 = vmatpush.msra.mxu0 0.0
        %4817 = vmatpush.msra.mxu0 0.0
        %4818 = vmatpush.msra.mxu0 0.0
        %4819 = vmatpush.msra.mxu0 0.0
        %4820 = vmatpush.msra.mxu0 0.0
        %4821 = vmatpush.msra.mxu0 0.0
        %4822 = vmatpush.msra.mxu0 %v4703
        %4823 = vmatmul.f32.gmra.mxu0 %v4691
        %v4824 = vpop.f32.mrf.mxu0
        %v4825 = vadd.f32 0.0, %v4824
        %4826 = vdwg.mxu0
        %4827 = vmatpush.msra.mxu0 0.0
        %4828 = vmatpush.msra.mxu0 0.0
        %4829 = vmatpush.msra.mxu0 0.0
        %4830 = vmatpush.msra.mxu0 0.0
        %4831 = vmatpush.msra.mxu0 0.0
        %4832 = vmatpush.msra.mxu0 0.0
        %4833 = vmatpush.msra.mxu0 0.0
        %4834 = vmatpush.msra.mxu0 0.0
        %4835 = vmatpush.msra.mxu0 0.0
        %4836 = vmatpush.msra.mxu0 0.0
        %4837 = vmatpush.msra.mxu0 0.0
        %4838 = vmatpush.msra.mxu0 0.0
        %4839 = vmatpush.msra.mxu0 0.0
        %4840 = vmatpush.msra.mxu0 0.0
        %4841 = vmatpush.msra.mxu0 0.0
        %4842 = vmatpush.msra.mxu0 %v4705
        %4843 = vmatmul.f32.gmra.mxu0 %v4691
        %v4844 = vpop.f32.mrf.mxu0
        %v4845 = vadd.f32 0.0, %v4844
        %4846 = vdwg.mxu0
        %v4847 = vadd.f32 %v4649, %v4725
        %v4848 = vadd.f32 %v4650, %v4745
        %v4849 = vadd.f32 %v4651, %v4765
        %v4850 = vadd.f32 %v4652, %v4785
        %v4851 = vadd.f32 %v4653, %v4805
        %v4852 = vadd.f32 %v4654, %v4825
        %v4853 = vadd.f32 %v4655, %v4845
        %4854 = vst [vmem:[#allocation1] ss:$2 sm:$0xff] %v438
        %s4855 = scalar_lea.vmem [#allocation1], 16
        %4856 = vst [vmem:[%s4855] ss:$2 sm:$0xff] %v439
        %s4857 = scalar_lea.vmem [#allocation1], 32
        %4858 = vst [vmem:[%s4857] ss:$2 sm:$0xff] %v440
        %s4859 = scalar_lea.vmem [#allocation1], 48
        %4860 = vst [vmem:[%s4859] ss:$2 sm:$0xff] %v441
        %v4861 = vld.sshfl [vmem:[#allocation1 + $0x8] sm:$0xff pattern:$0x75316420]
        %v4862 = vld.sshfl [vmem:[#allocation1 + $0x10] sm:$0xff pattern:$0x75316420]
        %v4863 = vld.sshfl [vmem:[#allocation1 + $0x18] sm:$0xff pattern:$0x75316420]
        %v4864 = vld.sshfl [vmem:[#allocation1 + $0x20] sm:$0xff pattern:$0x75316420]
        %v4865 = vld.sshfl [vmem:[#allocation1 + $0x28] sm:$0xff pattern:$0x75316420]
        %v4866 = vld.sshfl [vmem:[#allocation1 + $0x30] sm:$0xff pattern:$0x75316420]
        %v4867 = vld.sshfl [vmem:[#allocation1 + $0x38] sm:$0xff pattern:$0x75316420]
        %4868 = vrot.lane.b32.xlu0 %v4861, 126
        %v4869 = vpop.permute.xlu0 %4868
        %4870 = vrot.lane.b32.xlu0 %v4862, 126
        %v4871 = vpop.permute.xlu0 %4870
        %4872 = vrot.lane.b32.xlu0 %v4863, 126
        %v4873 = vpop.permute.xlu0 %4872
        %4874 = vrot.lane.b32.xlu0 %v4864, 126
        %v4875 = vpop.permute.xlu0 %4874
        %4876 = vrot.lane.b32.xlu0 %v4865, 126
        %v4877 = vpop.permute.xlu0 %4876
        %4878 = vrot.lane.b32.xlu0 %v4866, 126
        %v4879 = vpop.permute.xlu0 %4878
        %4880 = vrot.lane.b32.xlu0 %v4867, 126
        %v4881 = vpop.permute.xlu0 %4880
        %v4882 = vsel %vm864, %v4869, %v4871
        %v4883 = vsel %vm864, %v4871, %v4873
        %v4884 = vsel %vm864, %v4873, %v4875
        %v4885 = vsel %vm864, %v4875, %v4877
        %v4886 = vsel %vm864, %v4877, %v4879
        %v4887 = vsel %vm864, %v4879, %v4881
        %v4889 = vsel %vm506, %v464, 0
        %v4891 = vsel %vm510, %v4882, 0
        %v4893 = vsel %vm510, %v4883, 0
        %v4895 = vsel %vm510, %v4884, 0
        %v4897 = vsel %vm510, %v4885, 0
        %v4899 = vsel %vm510, %v4886, 0
        %v4901 = vsel %vm510, %v4887, 0
        %v4903 = vsel %vm510, %v4881, 0
        %4905 = vmatpush.msra.mxu0 0.0
        %4906 = vmatpush.msra.mxu0 0.0
        %4907 = vmatpush.msra.mxu0 0.0
        %4908 = vmatpush.msra.mxu0 0.0
        %4909 = vmatpush.msra.mxu0 0.0
        %4910 = vmatpush.msra.mxu0 0.0
        %4911 = vmatpush.msra.mxu0 0.0
        %4912 = vmatpush.msra.mxu0 0.0
        %4913 = vmatpush.msra.mxu0 0.0
        %4914 = vmatpush.msra.mxu0 0.0
        %4915 = vmatpush.msra.mxu0 0.0
        %4916 = vmatpush.msra.mxu0 0.0
        %4917 = vmatpush.msra.mxu0 0.0
        %4918 = vmatpush.msra.mxu0 0.0
        %4919 = vmatpush.msra.mxu0 0.0
        %4920 = vmatpush.msra.mxu0 %v4891
        %4921 = vmatmul.f32.gmra.mxu0 %v4889
        %v4922 = vpop.f32.mrf.mxu0
        %v4923 = vadd.f32 0.0, %v4922
        %4924 = vdwg.mxu0
        %4925 = vmatpush.msra.mxu0 0.0
        %4926 = vmatpush.msra.mxu0 0.0
        %4927 = vmatpush.msra.mxu0 0.0
        %4928 = vmatpush.msra.mxu0 0.0
        %4929 = vmatpush.msra.mxu0 0.0
        %4930 = vmatpush.msra.mxu0 0.0
        %4931 = vmatpush.msra.mxu0 0.0
        %4932 = vmatpush.msra.mxu0 0.0
        %4933 = vmatpush.msra.mxu0 0.0
        %4934 = vmatpush.msra.mxu0 0.0
        %4935 = vmatpush.msra.mxu0 0.0
        %4936 = vmatpush.msra.mxu0 0.0
        %4937 = vmatpush.msra.mxu0 0.0
        %4938 = vmatpush.msra.mxu0 0.0
        %4939 = vmatpush.msra.mxu0 0.0
        %4940 = vmatpush.msra.mxu0 %v4893
        %4941 = vmatmul.f32.gmra.mxu0 %v4889
        %v4942 = vpop.f32.mrf.mxu0
        %v4943 = vadd.f32 0.0, %v4942
        %4944 = vdwg.mxu0
        %4945 = vmatpush.msra.mxu0 0.0
        %4946 = vmatpush.msra.mxu0 0.0
        %4947 = vmatpush.msra.mxu0 0.0
        %4948 = vmatpush.msra.mxu0 0.0
        %4949 = vmatpush.msra.mxu0 0.0
        %4950 = vmatpush.msra.mxu0 0.0
        %4951 = vmatpush.msra.mxu0 0.0
        %4952 = vmatpush.msra.mxu0 0.0
        %4953 = vmatpush.msra.mxu0 0.0
        %4954 = vmatpush.msra.mxu0 0.0
        %4955 = vmatpush.msra.mxu0 0.0
        %4956 = vmatpush.msra.mxu0 0.0
        %4957 = vmatpush.msra.mxu0 0.0
        %4958 = vmatpush.msra.mxu0 0.0
        %4959 = vmatpush.msra.mxu0 0.0
        %4960 = vmatpush.msra.mxu0 %v4895
        %4961 = vmatmul.f32.gmra.mxu0 %v4889
        %v4962 = vpop.f32.mrf.mxu0
        %v4963 = vadd.f32 0.0, %v4962
        %4964 = vdwg.mxu0
        %4965 = vmatpush.msra.mxu0 0.0
        %4966 = vmatpush.msra.mxu0 0.0
        %4967 = vmatpush.msra.mxu0 0.0
        %4968 = vmatpush.msra.mxu0 0.0
        %4969 = vmatpush.msra.mxu0 0.0
        %4970 = vmatpush.msra.mxu0 0.0
        %4971 = vmatpush.msra.mxu0 0.0
        %4972 = vmatpush.msra.mxu0 0.0
        %4973 = vmatpush.msra.mxu0 0.0
        %4974 = vmatpush.msra.mxu0 0.0
        %4975 = vmatpush.msra.mxu0 0.0
        %4976 = vmatpush.msra.mxu0 0.0
        %4977 = vmatpush.msra.mxu0 0.0
        %4978 = vmatpush.msra.mxu0 0.0
        %4979 = vmatpush.msra.mxu0 0.0
        %4980 = vmatpush.msra.mxu0 %v4897
        %4981 = vmatmul.f32.gmra.mxu0 %v4889
        %v4982 = vpop.f32.mrf.mxu0
        %v4983 = vadd.f32 0.0, %v4982
        %4984 = vdwg.mxu0
        %4985 = vmatpush.msra.mxu0 0.0
        %4986 = vmatpush.msra.mxu0 0.0
        %4987 = vmatpush.msra.mxu0 0.0
        %4988 = vmatpush.msra.mxu0 0.0
        %4989 = vmatpush.msra.mxu0 0.0
        %4990 = vmatpush.msra.mxu0 0.0
        %4991 = vmatpush.msra.mxu0 0.0
        %4992 = vmatpush.msra.mxu0 0.0
        %4993 = vmatpush.msra.mxu0 0.0
        %4994 = vmatpush.msra.mxu0 0.0
        %4995 = vmatpush.msra.mxu0 0.0
        %4996 = vmatpush.msra.mxu0 0.0
        %4997 = vmatpush.msra.mxu0 0.0
        %4998 = vmatpush.msra.mxu0 0.0
        %4999 = vmatpush.msra.mxu0 0.0
        %5000 = vmatpush.msra.mxu0 %v4899
        %5001 = vmatmul.f32.gmra.mxu0 %v4889
        %v5002 = vpop.f32.mrf.mxu0
        %v5003 = vadd.f32 0.0, %v5002
        %5004 = vdwg.mxu0
        %5005 = vmatpush.msra.mxu0 0.0
        %5006 = vmatpush.msra.mxu0 0.0
        %5007 = vmatpush.msra.mxu0 0.0
        %5008 = vmatpush.msra.mxu0 0.0
        %5009 = vmatpush.msra.mxu0 0.0
        %5010 = vmatpush.msra.mxu0 0.0
        %5011 = vmatpush.msra.mxu0 0.0
        %5012 = vmatpush.msra.mxu0 0.0
        %5013 = vmatpush.msra.mxu0 0.0
        %5014 = vmatpush.msra.mxu0 0.0
        %5015 = vmatpush.msra.mxu0 0.0
        %5016 = vmatpush.msra.mxu0 0.0
        %5017 = vmatpush.msra.mxu0 0.0
        %5018 = vmatpush.msra.mxu0 0.0
        %5019 = vmatpush.msra.mxu0 0.0
        %5020 = vmatpush.msra.mxu0 %v4901
        %5021 = vmatmul.f32.gmra.mxu0 %v4889
        %v5022 = vpop.f32.mrf.mxu0
        %v5023 = vadd.f32 0.0, %v5022
        %5024 = vdwg.mxu0
        %5025 = vmatpush.msra.mxu0 0.0
        %5026 = vmatpush.msra.mxu0 0.0
        %5027 = vmatpush.msra.mxu0 0.0
        %5028 = vmatpush.msra.mxu0 0.0
        %5029 = vmatpush.msra.mxu0 0.0
        %5030 = vmatpush.msra.mxu0 0.0
        %5031 = vmatpush.msra.mxu0 0.0
        %5032 = vmatpush.msra.mxu0 0.0
        %5033 = vmatpush.msra.mxu0 0.0
        %5034 = vmatpush.msra.mxu0 0.0
        %5035 = vmatpush.msra.mxu0 0.0
        %5036 = vmatpush.msra.mxu0 0.0
        %5037 = vmatpush.msra.mxu0 0.0
        %5038 = vmatpush.msra.mxu0 0.0
        %5039 = vmatpush.msra.mxu0 0.0
        %5040 = vmatpush.msra.mxu0 %v4903
        %5041 = vmatmul.f32.gmra.mxu0 %v4889
        %v5042 = vpop.f32.mrf.mxu0
        %v5043 = vadd.f32 0.0, %v5042
        %5044 = vdwg.mxu0
        %v5045 = vadd.f32 %v4847, %v4923
        %v5046 = vadd.f32 %v4848, %v4943
        %v5047 = vadd.f32 %v4849, %v4963
        %v5048 = vadd.f32 %v4850, %v4983
        %v5049 = vadd.f32 %v4851, %v5003
        %v5050 = vadd.f32 %v4852, %v5023
        %v5051 = vadd.f32 %v4853, %v5043
        %5052 = vst [vmem:[#allocation1] ss:$2 sm:$0xff] %v438
        %s5053 = scalar_lea.vmem [#allocation1], 16
        %5054 = vst [vmem:[%s5053] ss:$2 sm:$0xff] %v439
        %s5055 = scalar_lea.vmem [#allocation1], 32
        %5056 = vst [vmem:[%s5055] ss:$2 sm:$0xff] %v440
        %s5057 = scalar_lea.vmem [#allocation1], 48
        %5058 = vst [vmem:[%s5057] ss:$2 sm:$0xff] %v441
        %v5059 = vld.sshfl [vmem:[#allocation1 + $0x8] sm:$0xff pattern:$0x75316420]
        %v5060 = vld.sshfl [vmem:[#allocation1 + $0x10] sm:$0xff pattern:$0x75316420]
        %v5061 = vld.sshfl [vmem:[#allocation1 + $0x18] sm:$0xff pattern:$0x75316420]
        %v5062 = vld.sshfl [vmem:[#allocation1 + $0x20] sm:$0xff pattern:$0x75316420]
        %v5063 = vld.sshfl [vmem:[#allocation1 + $0x28] sm:$0xff pattern:$0x75316420]
        %v5064 = vld.sshfl [vmem:[#allocation1 + $0x30] sm:$0xff pattern:$0x75316420]
        %v5065 = vld.sshfl [vmem:[#allocation1 + $0x38] sm:$0xff pattern:$0x75316420]
        %5066 = vrot.lane.b32.xlu0 %v5059, 125
        %v5067 = vpop.permute.xlu0 %5066
        %5068 = vrot.lane.b32.xlu0 %v5060, 125
        %v5069 = vpop.permute.xlu0 %5068
        %5070 = vrot.lane.b32.xlu0 %v5061, 125
        %v5071 = vpop.permute.xlu0 %5070
        %5072 = vrot.lane.b32.xlu0 %v5062, 125
        %v5073 = vpop.permute.xlu0 %5072
        %5074 = vrot.lane.b32.xlu0 %v5063, 125
        %v5075 = vpop.permute.xlu0 %5074
        %5076 = vrot.lane.b32.xlu0 %v5064, 125
        %v5077 = vpop.permute.xlu0 %5076
        %5078 = vrot.lane.b32.xlu0 %v5065, 125
        %v5079 = vpop.permute.xlu0 %5078
        %v5080 = vsel %vm1063, %v5067, %v5069
        %v5081 = vsel %vm1063, %v5069, %v5071
        %v5082 = vsel %vm1063, %v5071, %v5073
        %v5083 = vsel %vm1063, %v5073, %v5075
        %v5084 = vsel %vm1063, %v5075, %v5077
        %v5085 = vsel %vm1063, %v5077, %v5079
        %v5087 = vsel %vm506, %v465, 0
        %v5089 = vsel %vm510, %v5080, 0
        %v5091 = vsel %vm510, %v5081, 0
        %v5093 = vsel %vm510, %v5082, 0
        %v5095 = vsel %vm510, %v5083, 0
        %v5097 = vsel %vm510, %v5084, 0
        %v5099 = vsel %vm510, %v5085, 0
        %v5101 = vsel %vm510, %v5079, 0
        %5103 = vmatpush.msra.mxu0 0.0
        %5104 = vmatpush.msra.mxu0 0.0
        %5105 = vmatpush.msra.mxu0 0.0
        %5106 = vmatpush.msra.mxu0 0.0
        %5107 = vmatpush.msra.mxu0 0.0
        %5108 = vmatpush.msra.mxu0 0.0
        %5109 = vmatpush.msra.mxu0 0.0
        %5110 = vmatpush.msra.mxu0 0.0
        %5111 = vmatpush.msra.mxu0 0.0
        %5112 = vmatpush.msra.mxu0 0.0
        %5113 = vmatpush.msra.mxu0 0.0
        %5114 = vmatpush.msra.mxu0 0.0
        %5115 = vmatpush.msra.mxu0 0.0
        %5116 = vmatpush.msra.mxu0 0.0
        %5117 = vmatpush.msra.mxu0 0.0
        %5118 = vmatpush.msra.mxu0 %v5089
        %5119 = vmatmul.f32.gmra.mxu0 %v5087
        %v5120 = vpop.f32.mrf.mxu0
        %v5121 = vadd.f32 0.0, %v5120
        %5122 = vdwg.mxu0
        %5123 = vmatpush.msra.mxu0 0.0
        %5124 = vmatpush.msra.mxu0 0.0
        %5125 = vmatpush.msra.mxu0 0.0
        %5126 = vmatpush.msra.mxu0 0.0
        %5127 = vmatpush.msra.mxu0 0.0
        %5128 = vmatpush.msra.mxu0 0.0
        %5129 = vmatpush.msra.mxu0 0.0
        %5130 = vmatpush.msra.mxu0 0.0
        %5131 = vmatpush.msra.mxu0 0.0
        %5132 = vmatpush.msra.mxu0 0.0
        %5133 = vmatpush.msra.mxu0 0.0
        %5134 = vmatpush.msra.mxu0 0.0
        %5135 = vmatpush.msra.mxu0 0.0
        %5136 = vmatpush.msra.mxu0 0.0
        %5137 = vmatpush.msra.mxu0 0.0
        %5138 = vmatpush.msra.mxu0 %v5091
        %5139 = vmatmul.f32.gmra.mxu0 %v5087
        %v5140 = vpop.f32.mrf.mxu0
        %v5141 = vadd.f32 0.0, %v5140
        %5142 = vdwg.mxu0
        %5143 = vmatpush.msra.mxu0 0.0
        %5144 = vmatpush.msra.mxu0 0.0
        %5145 = vmatpush.msra.mxu0 0.0
        %5146 = vmatpush.msra.mxu0 0.0
        %5147 = vmatpush.msra.mxu0 0.0
        %5148 = vmatpush.msra.mxu0 0.0
        %5149 = vmatpush.msra.mxu0 0.0
        %5150 = vmatpush.msra.mxu0 0.0
        %5151 = vmatpush.msra.mxu0 0.0
        %5152 = vmatpush.msra.mxu0 0.0
        %5153 = vmatpush.msra.mxu0 0.0
        %5154 = vmatpush.msra.mxu0 0.0
        %5155 = vmatpush.msra.mxu0 0.0
        %5156 = vmatpush.msra.mxu0 0.0
        %5157 = vmatpush.msra.mxu0 0.0
        %5158 = vmatpush.msra.mxu0 %v5093
        %5159 = vmatmul.f32.gmra.mxu0 %v5087
        %v5160 = vpop.f32.mrf.mxu0
        %v5161 = vadd.f32 0.0, %v5160
        %5162 = vdwg.mxu0
        %5163 = vmatpush.msra.mxu0 0.0
        %5164 = vmatpush.msra.mxu0 0.0
        %5165 = vmatpush.msra.mxu0 0.0
        %5166 = vmatpush.msra.mxu0 0.0
        %5167 = vmatpush.msra.mxu0 0.0
        %5168 = vmatpush.msra.mxu0 0.0
        %5169 = vmatpush.msra.mxu0 0.0
        %5170 = vmatpush.msra.mxu0 0.0
        %5171 = vmatpush.msra.mxu0 0.0
        %5172 = vmatpush.msra.mxu0 0.0
        %5173 = vmatpush.msra.mxu0 0.0
        %5174 = vmatpush.msra.mxu0 0.0
        %5175 = vmatpush.msra.mxu0 0.0
        %5176 = vmatpush.msra.mxu0 0.0
        %5177 = vmatpush.msra.mxu0 0.0
        %5178 = vmatpush.msra.mxu0 %v5095
        %5179 = vmatmul.f32.gmra.mxu0 %v5087
        %v5180 = vpop.f32.mrf.mxu0
        %v5181 = vadd.f32 0.0, %v5180
        %5182 = vdwg.mxu0
        %5183 = vmatpush.msra.mxu0 0.0
        %5184 = vmatpush.msra.mxu0 0.0
        %5185 = vmatpush.msra.mxu0 0.0
        %5186 = vmatpush.msra.mxu0 0.0
        %5187 = vmatpush.msra.mxu0 0.0
        %5188 = vmatpush.msra.mxu0 0.0
        %5189 = vmatpush.msra.mxu0 0.0
        %5190 = vmatpush.msra.mxu0 0.0
        %5191 = vmatpush.msra.mxu0 0.0
        %5192 = vmatpush.msra.mxu0 0.0
        %5193 = vmatpush.msra.mxu0 0.0
        %5194 = vmatpush.msra.mxu0 0.0
        %5195 = vmatpush.msra.mxu0 0.0
        %5196 = vmatpush.msra.mxu0 0.0
        %5197 = vmatpush.msra.mxu0 0.0
        %5198 = vmatpush.msra.mxu0 %v5097
        %5199 = vmatmul.f32.gmra.mxu0 %v5087
        %v5200 = vpop.f32.mrf.mxu0
        %v5201 = vadd.f32 0.0, %v5200
        %5202 = vdwg.mxu0
        %5203 = vmatpush.msra.mxu0 0.0
        %5204 = vmatpush.msra.mxu0 0.0
        %5205 = vmatpush.msra.mxu0 0.0
        %5206 = vmatpush.msra.mxu0 0.0
        %5207 = vmatpush.msra.mxu0 0.0
        %5208 = vmatpush.msra.mxu0 0.0
        %5209 = vmatpush.msra.mxu0 0.0
        %5210 = vmatpush.msra.mxu0 0.0
        %5211 = vmatpush.msra.mxu0 0.0
        %5212 = vmatpush.msra.mxu0 0.0
        %5213 = vmatpush.msra.mxu0 0.0
        %5214 = vmatpush.msra.mxu0 0.0
        %5215 = vmatpush.msra.mxu0 0.0
        %5216 = vmatpush.msra.mxu0 0.0
        %5217 = vmatpush.msra.mxu0 0.0
        %5218 = vmatpush.msra.mxu0 %v5099
        %5219 = vmatmul.f32.gmra.mxu0 %v5087
        %v5220 = vpop.f32.mrf.mxu0
        %v5221 = vadd.f32 0.0, %v5220
        %5222 = vdwg.mxu0
        %5223 = vmatpush.msra.mxu0 0.0
        %5224 = vmatpush.msra.mxu0 0.0
        %5225 = vmatpush.msra.mxu0 0.0
        %5226 = vmatpush.msra.mxu0 0.0
        %5227 = vmatpush.msra.mxu0 0.0
        %5228 = vmatpush.msra.mxu0 0.0
        %5229 = vmatpush.msra.mxu0 0.0
        %5230 = vmatpush.msra.mxu0 0.0
        %5231 = vmatpush.msra.mxu0 0.0
        %5232 = vmatpush.msra.mxu0 0.0
        %5233 = vmatpush.msra.mxu0 0.0
        %5234 = vmatpush.msra.mxu0 0.0
        %5235 = vmatpush.msra.mxu0 0.0
        %5236 = vmatpush.msra.mxu0 0.0
        %5237 = vmatpush.msra.mxu0 0.0
        %5238 = vmatpush.msra.mxu0 %v5101
        %5239 = vmatmul.f32.gmra.mxu0 %v5087
        %v5240 = vpop.f32.mrf.mxu0
        %v5241 = vadd.f32 0.0, %v5240
        %5242 = vdwg.mxu0
        %v5243 = vadd.f32 %v5045, %v5121
        %v5244 = vadd.f32 %v5046, %v5141
        %v5245 = vadd.f32 %v5047, %v5161
        %v5246 = vadd.f32 %v5048, %v5181
        %v5247 = vadd.f32 %v5049, %v5201
        %v5248 = vadd.f32 %v5050, %v5221
        %v5249 = vadd.f32 %v5051, %v5241
        %5250 = vst [vmem:[#allocation1] ss:$2 sm:$0xff] %v438
        %s5251 = scalar_lea.vmem [#allocation1], 16
        %5252 = vst [vmem:[%s5251] ss:$2 sm:$0xff] %v439
        %s5253 = scalar_lea.vmem [#allocation1], 32
        %5254 = vst [vmem:[%s5253] ss:$2 sm:$0xff] %v440
        %s5255 = scalar_lea.vmem [#allocation1], 48
        %5256 = vst [vmem:[%s5255] ss:$2 sm:$0xff] %v441
        %v5257 = vld.sshfl [vmem:[#allocation1 + $0x8] sm:$0xff pattern:$0x75316420]
        %v5258 = vld.sshfl [vmem:[#allocation1 + $0x10] sm:$0xff pattern:$0x75316420]
        %v5259 = vld.sshfl [vmem:[#allocation1 + $0x18] sm:$0xff pattern:$0x75316420]
        %v5260 = vld.sshfl [vmem:[#allocation1 + $0x20] sm:$0xff pattern:$0x75316420]
        %v5261 = vld.sshfl [vmem:[#allocation1 + $0x28] sm:$0xff pattern:$0x75316420]
        %v5262 = vld.sshfl [vmem:[#allocation1 + $0x30] sm:$0xff pattern:$0x75316420]
        %v5263 = vld.sshfl [vmem:[#allocation1 + $0x38] sm:$0xff pattern:$0x75316420]
        %5264 = vrot.lane.b32.xlu0 %v5257, 124
        %v5265 = vpop.permute.xlu0 %5264
        %5266 = vrot.lane.b32.xlu0 %v5258, 124
        %v5267 = vpop.permute.xlu0 %5266
        %5268 = vrot.lane.b32.xlu0 %v5259, 124
        %v5269 = vpop.permute.xlu0 %5268
        %5270 = vrot.lane.b32.xlu0 %v5260, 124
        %v5271 = vpop.permute.xlu0 %5270
        %5272 = vrot.lane.b32.xlu0 %v5261, 124
        %v5273 = vpop.permute.xlu0 %5272
        %5274 = vrot.lane.b32.xlu0 %v5262, 124
        %v5275 = vpop.permute.xlu0 %5274
        %5276 = vrot.lane.b32.xlu0 %v5263, 124
        %v5277 = vpop.permute.xlu0 %5276
        %v5278 = vsel %vm1262, %v5265, %v5267
        %v5279 = vsel %vm1262, %v5267, %v5269
        %v5280 = vsel %vm1262, %v5269, %v5271
        %v5281 = vsel %vm1262, %v5271, %v5273
        %v5282 = vsel %vm1262, %v5273, %v5275
        %v5283 = vsel %vm1262, %v5275, %v5277
        %v5285 = vsel %vm506, %v466, 0
        %v5287 = vsel %vm510, %v5278, 0
        %v5289 = vsel %vm510, %v5279, 0
        %v5291 = vsel %vm510, %v5280, 0
        %v5293 = vsel %vm510, %v5281, 0
        %v5295 = vsel %vm510, %v5282, 0
        %v5297 = vsel %vm510, %v5283, 0
        %v5299 = vsel %vm510, %v5277, 0
        %5301 = vmatpush.msra.mxu0 0.0
        %5302 = vmatpush.msra.mxu0 0.0
        %5303 = vmatpush.msra.mxu0 0.0
        %5304 = vmatpush.msra.mxu0 0.0
        %5305 = vmatpush.msra.mxu0 0.0
        %5306 = vmatpush.msra.mxu0 0.0
        %5307 = vmatpush.msra.mxu0 0.0
        %5308 = vmatpush.msra.mxu0 0.0
        %5309 = vmatpush.msra.mxu0 0.0
        %5310 = vmatpush.msra.mxu0 0.0
        %5311 = vmatpush.msra.mxu0 0.0
        %5312 = vmatpush.msra.mxu0 0.0
        %5313 = vmatpush.msra.mxu0 0.0
        %5314 = vmatpush.msra.mxu0 0.0
        %5315 = vmatpush.msra.mxu0 0.0
        %5316 = vmatpush.msra.mxu0 %v5287
        %5317 = vmatmul.f32.gmra.mxu0 %v5285
        %v5318 = vpop.f32.mrf.mxu0
        %v5319 = vadd.f32 0.0, %v5318
        %5320 = vdwg.mxu0
        %5321 = vmatpush.msra.mxu0 0.0
        %5322 = vmatpush.msra.mxu0 0.0
        %5323 = vmatpush.msra.mxu0 0.0
        %5324 = vmatpush.msra.mxu0 0.0
        %5325 = vmatpush.msra.mxu0 0.0
        %5326 = vmatpush.msra.mxu0 0.0
        %5327 = vmatpush.msra.mxu0 0.0
        %5328 = vmatpush.msra.mxu0 0.0
        %5329 = vmatpush.msra.mxu0 0.0
        %5330 = vmatpush.msra.mxu0 0.0
        %5331 = vmatpush.msra.mxu0 0.0
        %5332 = vmatpush.msra.mxu0 0.0
        %5333 = vmatpush.msra.mxu0 0.0
        %5334 = vmatpush.msra.mxu0 0.0
        %5335 = vmatpush.msra.mxu0 0.0
        %5336 = vmatpush.msra.mxu0 %v5289
        %5337 = vmatmul.f32.gmra.mxu0 %v5285
        %v5338 = vpop.f32.mrf.mxu0
        %v5339 = vadd.f32 0.0, %v5338
        %5340 = vdwg.mxu0
        %5341 = vmatpush.msra.mxu0 0.0
        %5342 = vmatpush.msra.mxu0 0.0
        %5343 = vmatpush.msra.mxu0 0.0
        %5344 = vmatpush.msra.mxu0 0.0
        %5345 = vmatpush.msra.mxu0 0.0
        %5346 = vmatpush.msra.mxu0 0.0
        %5347 = vmatpush.msra.mxu0 0.0
        %5348 = vmatpush.msra.mxu0 0.0
        %5349 = vmatpush.msra.mxu0 0.0
        %5350 = vmatpush.msra.mxu0 0.0
        %5351 = vmatpush.msra.mxu0 0.0
        %5352 = vmatpush.msra.mxu0 0.0
        %5353 = vmatpush.msra.mxu0 0.0
        %5354 = vmatpush.msra.mxu0 0.0
        %5355 = vmatpush.msra.mxu0 0.0
        %5356 = vmatpush.msra.mxu0 %v5291
        %5357 = vmatmul.f32.gmra.mxu0 %v5285
        %v5358 = vpop.f32.mrf.mxu0
        %v5359 = vadd.f32 0.0, %v5358
        %5360 = vdwg.mxu0
        %5361 = vmatpush.msra.mxu0 0.0
        %5362 = vmatpush.msra.mxu0 0.0
        %5363 = vmatpush.msra.mxu0 0.0
        %5364 = vmatpush.msra.mxu0 0.0
        %5365 = vmatpush.msra.mxu0 0.0
        %5366 = vmatpush.msra.mxu0 0.0
        %5367 = vmatpush.msra.mxu0 0.0
        %5368 = vmatpush.msra.mxu0 0.0
        %5369 = vmatpush.msra.mxu0 0.0
        %5370 = vmatpush.msra.mxu0 0.0
        %5371 = vmatpush.msra.mxu0 0.0
        %5372 = vmatpush.msra.mxu0 0.0
        %5373 = vmatpush.msra.mxu0 0.0
        %5374 = vmatpush.msra.mxu0 0.0
        %5375 = vmatpush.msra.mxu0 0.0
        %5376 = vmatpush.msra.mxu0 %v5293
        %5377 = vmatmul.f32.gmra.mxu0 %v5285
        %v5378 = vpop.f32.mrf.mxu0
        %v5379 = vadd.f32 0.0, %v5378
        %5380 = vdwg.mxu0
        %5381 = vmatpush.msra.mxu0 0.0
        %5382 = vmatpush.msra.mxu0 0.0
        %5383 = vmatpush.msra.mxu0 0.0
        %5384 = vmatpush.msra.mxu0 0.0
        %5385 = vmatpush.msra.mxu0 0.0
        %5386 = vmatpush.msra.mxu0 0.0
        %5387 = vmatpush.msra.mxu0 0.0
        %5388 = vmatpush.msra.mxu0 0.0
        %5389 = vmatpush.msra.mxu0 0.0
        %5390 = vmatpush.msra.mxu0 0.0
        %5391 = vmatpush.msra.mxu0 0.0
        %5392 = vmatpush.msra.mxu0 0.0
        %5393 = vmatpush.msra.mxu0 0.0
        %5394 = vmatpush.msra.mxu0 0.0
        %5395 = vmatpush.msra.mxu0 0.0
        %5396 = vmatpush.msra.mxu0 %v5295
        %5397 = vmatmul.f32.gmra.mxu0 %v5285
        %v5398 = vpop.f32.mrf.mxu0
        %v5399 = vadd.f32 0.0, %v5398
        %5400 = vdwg.mxu0
        %5401 = vmatpush.msra.mxu0 0.0
        %5402 = vmatpush.msra.mxu0 0.0
        %5403 = vmatpush.msra.mxu0 0.0
        %5404 = vmatpush.msra.mxu0 0.0
        %5405 = vmatpush.msra.mxu0 0.0
        %5406 = vmatpush.msra.mxu0 0.0
        %5407 = vmatpush.msra.mxu0 0.0
        %5408 = vmatpush.msra.mxu0 0.0
        %5409 = vmatpush.msra.mxu0 0.0
        %5410 = vmatpush.msra.mxu0 0.0
        %5411 = vmatpush.msra.mxu0 0.0
        %5412 = vmatpush.msra.mxu0 0.0
        %5413 = vmatpush.msra.mxu0 0.0
        %5414 = vmatpush.msra.mxu0 0.0
        %5415 = vmatpush.msra.mxu0 0.0
        %5416 = vmatpush.msra.mxu0 %v5297
        %5417 = vmatmul.f32.gmra.mxu0 %v5285
        %v5418 = vpop.f32.mrf.mxu0
        %v5419 = vadd.f32 0.0, %v5418
        %5420 = vdwg.mxu0
        %5421 = vmatpush.msra.mxu0 0.0
        %5422 = vmatpush.msra.mxu0 0.0
        %5423 = vmatpush.msra.mxu0 0.0
        %5424 = vmatpush.msra.mxu0 0.0
        %5425 = vmatpush.msra.mxu0 0.0
        %5426 = vmatpush.msra.mxu0 0.0
        %5427 = vmatpush.msra.mxu0 0.0
        %5428 = vmatpush.msra.mxu0 0.0
        %5429 = vmatpush.msra.mxu0 0.0
        %5430 = vmatpush.msra.mxu0 0.0
        %5431 = vmatpush.msra.mxu0 0.0
        %5432 = vmatpush.msra.mxu0 0.0
        %5433 = vmatpush.msra.mxu0 0.0
        %5434 = vmatpush.msra.mxu0 0.0
        %5435 = vmatpush.msra.mxu0 0.0
        %5436 = vmatpush.msra.mxu0 %v5299
        %5437 = vmatmul.f32.gmra.mxu0 %v5285
        %v5438 = vpop.f32.mrf.mxu0
        %v5439 = vadd.f32 0.0, %v5438
        %5440 = vdwg.mxu0
        %v5441 = vadd.f32 %v5243, %v5319
        %v5442 = vadd.f32 %v5244, %v5339
        %v5443 = vadd.f32 %v5245, %v5359
        %v5444 = vadd.f32 %v5246, %v5379
        %v5445 = vadd.f32 %v5247, %v5399
        %v5446 = vadd.f32 %v5248, %v5419
        %v5447 = vadd.f32 %v5249, %v5439
        %v5448 = vld [vmem:[%s2] sm:$0x3f]
        %5450 = vset.pattern.permute.xlu0 0
        %5451 = vperm.xlu0 %5450, %v5448
        %v5452 = vpop.permute.xlu0 %5451
        %v5454 = vadd.f32 %v5441, %v5452
        %v5455 = vadd.f32 %v5442, %v5452
        %v5456 = vadd.f32 %v5443, %v5452
        %v5457 = vadd.f32 %v5444, %v5452
        %v5458 = vadd.f32 %v5445, %v5452
        %v5459 = vadd.f32 %v5446, %v5452
        %v5460 = vadd.f32 %v5447, %v5452
        %v5461 = vmax.f32 %v5454, 0.0
        %v5462 = vmax.f32 %v5455, 0.0
        %v5463 = vmax.f32 %v5456, 0.0
        %v5464 = vmax.f32 %v5457, 0.0
        %v5465 = vmax.f32 %v5458, 0.0
        %v5466 = vmax.f32 %v5459, 0.0
        %v5467 = vmax.f32 %v5460, 0.0
        %5475 = vrot.lane.b32.xlu0 %v5461, 127
        %v5476 = vpop.permute.xlu0 %5475
        %5477 = vrot.lane.b32.xlu0 %v5462, 127
        %v5478 = vpop.permute.xlu0 %5477
        %5479 = vrot.lane.b32.xlu0 %v5463, 127
        %v5480 = vpop.permute.xlu0 %5479
        %5481 = vrot.lane.b32.xlu0 %v5464, 127
        %v5482 = vpop.permute.xlu0 %5481
        %5483 = vrot.lane.b32.xlu0 %v5465, 127
        %v5484 = vpop.permute.xlu0 %5483
        %5485 = vrot.lane.b32.xlu0 %v5466, 127
        %v5486 = vpop.permute.xlu0 %5485
        %5487 = vrot.lane.b32.xlu0 %v5467, 127
        %v5488 = vpop.permute.xlu0 %5487
        %v5489 = vsel %vm499, %v5476, %v5478
        %v5490 = vsel %vm499, %v5478, %v5480
        %v5491 = vsel %vm499, %v5480, %v5482
        %v5492 = vsel %vm499, %v5482, %v5484
        %v5493 = vsel %vm499, %v5484, %v5486
        %v5494 = vsel %vm499, %v5486, %v5488
        %v5502 = vmax.f32 %v5461, %v5489
        %v5503 = vmax.f32 %v5462, %v5490
        %v5504 = vmax.f32 %v5463, %v5491
        %v5505 = vmax.f32 %v5464, %v5492
        %v5506 = vmax.f32 %v5465, %v5493
        %v5507 = vmax.f32 %v5466, %v5494
        %v5508 = vmax.f32 %v5467, %v5488
        %5516 = vrot.lane.b32.xlu0 %v5502, 96
        %v5517 = vpop.permute.xlu0 %5516
        %5518 = vrot.lane.b32.xlu0 %v5503, 96
        %v5519 = vpop.permute.xlu0 %5518
        %5520 = vrot.lane.b32.xlu0 %v5504, 96
        %v5521 = vpop.permute.xlu0 %5520
        %5522 = vrot.lane.b32.xlu0 %v5505, 96
        %v5523 = vpop.permute.xlu0 %5522
        %5524 = vrot.lane.b32.xlu0 %v5506, 96
        %v5525 = vpop.permute.xlu0 %5524
        %5526 = vrot.lane.b32.xlu0 %v5507, 96
        %v5527 = vpop.permute.xlu0 %5526
        %5528 = vrot.lane.b32.xlu0 %v5508, 96
        %v5529 = vpop.permute.xlu0 %5528
        %v5530 = vsel %vm1464, %v5517, %v5519
        %v5531 = vsel %vm1464, %v5519, %v5521
        %v5532 = vsel %vm1464, %v5521, %v5523
        %v5533 = vsel %vm1464, %v5523, %v5525
        %v5534 = vsel %vm1464, %v5525, %v5527
        %v5535 = vsel %vm1464, %v5527, %v5529
        %v5543 = vmax.f32 %v5502, %v5530
        %v5544 = vmax.f32 %v5503, %v5531
        %v5545 = vmax.f32 %v5504, %v5532
        %v5546 = vmax.f32 %v5505, %v5533
        %v5547 = vmax.f32 %v5506, %v5534
        %v5548 = vmax.f32 %v5507, %v5535
        %v5549 = vmax.f32 %v5508, %v5529
        %v5550 = vld [vmem:[%s3] sm:$0xff]
        %v5551 = vld [vmem:[%s3 + $0x8] sm:$0xff]
        %v5552 = vld [vmem:[%s3 + $0x10] sm:$0xff]
        %v5553 = vld [vmem:[%s3 + $0x18] sm:$0xff]
        %v5554 = vld [vmem:[%s3 + $0x20] sm:$0xff]
        %v5555 = vld [vmem:[%s3 + $0x28] sm:$0xff]
        %v5556 = vld [vmem:[%s3 + $0x30] sm:$0xff]
        %v5557 = vld [vmem:[%s3 + $0x38] sm:$0xff]
        %v5558 = vld [vmem:[%s3 + $0x40] sm:$0xff]
        %v5559 = vld [vmem:[%s3 + $0x48] sm:$0xff]
        %v5560 = vld [vmem:[%s3 + $0x50] sm:$0xff]
        %v5561 = vld [vmem:[%s3 + $0x58] sm:$0xff]
        %v5562 = vld [vmem:[%s3 + $0x60] sm:$0xff]
        %v5563 = vld [vmem:[%s3 + $0x68] sm:$0xff]
        %v5564 = vld [vmem:[%s3 + $0x70] sm:$0xff]
        %v5565 = vld [vmem:[%s3 + $0x78] sm:$0xff]
        %v5566 = vld [vmem:[%s3 + $0x80] sm:$0xff]
        %v5567 = vld [vmem:[%s3 + $0x88] sm:$0xff]
        %v5568 = vld [vmem:[%s3 + $0x90] sm:$0xff]
        %v5569 = vld [vmem:[%s3 + $0x98] sm:$0xff]
        %v5570 = vld [vmem:[%s3 + $0xa0] sm:$0xff]
        %v5571 = vld [vmem:[%s3 + $0xa8] sm:$0xff]
        %v5572 = vld [vmem:[%s3 + $0xb0] sm:$0xff]
        %v5573 = vld [vmem:[%s3 + $0xb8] sm:$0xff]
        %v5574 = vld [vmem:[%s3 + $0xc0] sm:$0xff]
        %v5575 = vld [vmem:[%s3 + $0xc8] sm:$0xff]
        %v5576 = vld [vmem:[%s3 + $0xd0] sm:$0xff]
        %v5577 = vld [vmem:[%s3 + $0xd8] sm:$0xff]
        %v5578 = vld [vmem:[%s3 + $0xe0] sm:$0xff]
        %v5579 = vld [vmem:[%s3 + $0xe8] sm:$0xff]
        %v5580 = vld [vmem:[%s3 + $0xf0] sm:$0xff]
        %v5581 = vld [vmem:[%s3 + $0xf8] sm:$0xff]
        %v5582 = vld [vmem:[%s3 + $0x100] sm:$0xff]
        %v5583 = vld [vmem:[%s3 + $0x108] sm:$0xff]
        %v5584 = vld [vmem:[%s3 + $0x110] sm:$0xff]
        %v5585 = vld [vmem:[%s3 + $0x118] sm:$0xff]
        %v5586 = vld [vmem:[%s3 + $0x120] sm:$0xff]
        %v5587 = vld [vmem:[%s3 + $0x128] sm:$0xff]
        %v5588 = vld [vmem:[%s3 + $0x130] sm:$0xff]
        %v5589 = vld [vmem:[%s3 + $0x138] sm:$0xff]
        %v5590 = vld [vmem:[%s3 + $0x140] sm:$0xff]
        %v5591 = vld [vmem:[%s3 + $0x148] sm:$0xff]
        %v5592 = vld [vmem:[%s3 + $0x150] sm:$0xff]
        %v5593 = vld [vmem:[%s3 + $0x158] sm:$0xff]
        %v5594 = vld [vmem:[%s3 + $0x160] sm:$0xff]
        %v5595 = vld [vmem:[%s3 + $0x168] sm:$0xff]
        %v5596 = vld [vmem:[%s3 + $0x170] sm:$0xff]
        %v5597 = vld [vmem:[%s3 + $0x178] sm:$0xff]
        %v5598 = vld [vmem:[%s3 + $0x180] sm:$0xff]
        %v5599 = vld [vmem:[%s3 + $0x188] sm:$0xff]
        %v5600 = vld [vmem:[%s3 + $0x190] sm:$0xff]
        %v5601 = vld [vmem:[%s3 + $0x198] sm:$0xff]
        %v5602 = vld [vmem:[%s3 + $0x1a0] sm:$0xff]
        %v5603 = vld [vmem:[%s3 + $0x1a8] sm:$0xff]
        %v5604 = vld [vmem:[%s3 + $0x1b0] sm:$0xff]
        %v5605 = vld [vmem:[%s3 + $0x1b8] sm:$0xff]
        %v5606 = vld [vmem:[%s3 + $0x1c0] sm:$0xff]
        %v5607 = vld [vmem:[%s3 + $0x1c8] sm:$0xff]
        %v5608 = vld [vmem:[%s3 + $0x1d0] sm:$0xff]
        %v5609 = vld [vmem:[%s3 + $0x1d8] sm:$0xff]
        %v5610 = vld [vmem:[%s3 + $0x1e0] sm:$0xff]
        %v5611 = vld [vmem:[%s3 + $0x1e8] sm:$0xff]
        %v5612 = vld [vmem:[%s3 + $0x1f0] sm:$0xff]
        %v5613 = vld [vmem:[%s3 + $0x1f8] sm:$0xff]
        %v5614 = vld [vmem:[%s3 + $0x200] sm:$0xff]
        %v5615 = vld [vmem:[%s3 + $0x208] sm:$0xff]
        %v5616 = vld [vmem:[%s3 + $0x210] sm:$0xff]
        %v5617 = vld [vmem:[%s3 + $0x218] sm:$0xff]
        %v5618 = vld [vmem:[%s3 + $0x220] sm:$0xff]
        %v5619 = vld [vmem:[%s3 + $0x228] sm:$0xff]
        %v5620 = vld [vmem:[%s3 + $0x230] sm:$0xff]
        %v5621 = vld [vmem:[%s3 + $0x238] sm:$0xff]
        %v5622 = vld [vmem:[%s3 + $0x240] sm:$0xff]
        %v5623 = vld [vmem:[%s3 + $0x248] sm:$0xff]
        %v5624 = vld [vmem:[%s3 + $0x250] sm:$0xff]
        %v5625 = vld [vmem:[%s3 + $0x258] sm:$0xff]
        %v5626 = vld [vmem:[%s3 + $0x260] sm:$0xff]
        %v5627 = vld [vmem:[%s3 + $0x268] sm:$0xff]
        %v5628 = vld [vmem:[%s3 + $0x270] sm:$0xff]
        %v5629 = vld [vmem:[%s3 + $0x278] sm:$0xff]
        %v5630 = vld [vmem:[%s3 + $0x280] sm:$0xff]
        %v5631 = vld [vmem:[%s3 + $0x288] sm:$0xff]
        %v5632 = vld [vmem:[%s3 + $0x290] sm:$0xff]
        %v5633 = vld [vmem:[%s3 + $0x298] sm:$0xff]
        %v5634 = vld [vmem:[%s3 + $0x2a0] sm:$0xff]
        %v5635 = vld [vmem:[%s3 + $0x2a8] sm:$0xff]
        %v5636 = vld [vmem:[%s3 + $0x2b0] sm:$0xff]
        %v5637 = vld [vmem:[%s3 + $0x2b8] sm:$0xff]
        %v5638 = vld [vmem:[%s3 + $0x2c0] sm:$0xff]
        %v5639 = vld [vmem:[%s3 + $0x2c8] sm:$0xff]
        %v5640 = vld [vmem:[%s3 + $0x2d0] sm:$0xff]
        %v5641 = vld [vmem:[%s3 + $0x2d8] sm:$0xff]
        %v5642 = vld [vmem:[%s3 + $0x2e0] sm:$0xff]
        %v5643 = vld [vmem:[%s3 + $0x2e8] sm:$0xff]
        %v5644 = vld [vmem:[%s3 + $0x2f0] sm:$0xff]
        %v5645 = vld [vmem:[%s3 + $0x2f8] sm:$0xff]
        %v5646 = vld [vmem:[%s3 + $0x300] sm:$0xff]
        %v5647 = vld [vmem:[%s3 + $0x308] sm:$0xff]
        %v5648 = vld [vmem:[%s3 + $0x310] sm:$0xff]
        %v5649 = vld [vmem:[%s3 + $0x318] sm:$0xff]
        %v5650 = vld [vmem:[%s3 + $0x320] sm:$0xff]
        %v5651 = vld [vmem:[%s3 + $0x328] sm:$0xff]
        %v5652 = vld [vmem:[%s3 + $0x330] sm:$0xff]
        %v5653 = vld [vmem:[%s3 + $0x338] sm:$0xff]
        %v5654 = vld [vmem:[%s3 + $0x340] sm:$0xff]
        %v5655 = vld [vmem:[%s3 + $0x348] sm:$0xff]
        %v5656 = vld [vmem:[%s3 + $0x350] sm:$0xff]
        %v5657 = vld [vmem:[%s3 + $0x358] sm:$0xff]
        %v5658 = vld [vmem:[%s3 + $0x360] sm:$0xff]
        %v5659 = vld [vmem:[%s3 + $0x368] sm:$0xff]
        %v5660 = vld [vmem:[%s3 + $0x370] sm:$0xff]
        %v5661 = vld [vmem:[%s3 + $0x378] sm:$0xff]
        %v5662 = vld [vmem:[%s3 + $0x380] sm:$0xff]
        %v5663 = vld [vmem:[%s3 + $0x388] sm:$0xff]
        %v5664 = vld [vmem:[%s3 + $0x390] sm:$0xff]
        %v5665 = vld [vmem:[%s3 + $0x398] sm:$0xff]
        %v5666 = vld [vmem:[%s3 + $0x3a0] sm:$0xff]
        %v5667 = vld [vmem:[%s3 + $0x3a8] sm:$0xff]
        %v5668 = vld [vmem:[%s3 + $0x3b0] sm:$0xff]
        %v5669 = vld [vmem:[%s3 + $0x3b8] sm:$0xff]
        %v5670 = vld [vmem:[%s3 + $0x3c0] sm:$0xff]
        %v5671 = vld [vmem:[%s3 + $0x3c8] sm:$0xff]
        %v5672 = vld [vmem:[%s3 + $0x3d0] sm:$0xff]
        %v5673 = vld [vmem:[%s3 + $0x3d8] sm:$0xff]
        %v5674 = vld [vmem:[%s3 + $0x3e0] sm:$0xff]
        %v5675 = vld [vmem:[%s3 + $0x3e8] sm:$0xff]
        %v5676 = vld [vmem:[%s3 + $0x3f0] sm:$0xff]
        %v5677 = vld [vmem:[%s3 + $0x3f8] sm:$0xff]
        %v5678 = vld [vmem:[%s3 + $0x400] sm:$0xff]
        %v5679 = vld [vmem:[%s3 + $0x408] sm:$0xff]
        %v5680 = vld [vmem:[%s3 + $0x410] sm:$0xff]
        %v5681 = vld [vmem:[%s3 + $0x418] sm:$0xff]
        %v5682 = vld [vmem:[%s3 + $0x420] sm:$0xff]
        %v5683 = vld [vmem:[%s3 + $0x428] sm:$0xff]
        %v5684 = vld [vmem:[%s3 + $0x430] sm:$0xff]
        %v5685 = vld [vmem:[%s3 + $0x438] sm:$0xff]
        %v5686 = vld [vmem:[%s3 + $0x440] sm:$0xff]
        %v5687 = vld [vmem:[%s3 + $0x448] sm:$0xff]
        %v5688 = vld [vmem:[%s3 + $0x450] sm:$0xff]
        %v5689 = vld [vmem:[%s3 + $0x458] sm:$0xff]
        %v5690 = vld [vmem:[%s3 + $0x460] sm:$0xff]
        %v5691 = vld [vmem:[%s3 + $0x468] sm:$0xff]
        %v5692 = vld [vmem:[%s3 + $0x470] sm:$0xff]
        %v5693 = vld [vmem:[%s3 + $0x478] sm:$0xff]
        %v5694 = vld [vmem:[%s3 + $0x480] sm:$0xff]
        %v5695 = vld [vmem:[%s3 + $0x488] sm:$0xff]
        %v5696 = vld [vmem:[%s3 + $0x490] sm:$0xff]
        %v5697 = vld [vmem:[%s3 + $0x498] sm:$0xff]
        %v5698 = vld [vmem:[%s3 + $0x4a0] sm:$0xff]
        %v5699 = vld [vmem:[%s3 + $0x4a8] sm:$0xff]
        %v5700 = vld [vmem:[%s3 + $0x4b0] sm:$0xff]
        %v5701 = vld [vmem:[%s3 + $0x4b8] sm:$0xff]
        %v5702 = vld [vmem:[%s3 + $0x4c0] sm:$0xff]
        %v5703 = vld [vmem:[%s3 + $0x4c8] sm:$0xff]
        %v5704 = vld [vmem:[%s3 + $0x4d0] sm:$0xff]
        %v5705 = vld [vmem:[%s3 + $0x4d8] sm:$0xff]
        %v5706 = vld [vmem:[%s3 + $0x4e0] sm:$0xff]
        %v5707 = vld [vmem:[%s3 + $0x4e8] sm:$0xff]
        %v5708 = vld [vmem:[%s3 + $0x4f0] sm:$0xff]
        %v5709 = vld [vmem:[%s3 + $0x4f8] sm:$0xff]
        %v5710 = vld [vmem:[%s3 + $0x500] sm:$0xff]
        %v5711 = vld [vmem:[%s3 + $0x508] sm:$0xff]
        %v5712 = vld [vmem:[%s3 + $0x510] sm:$0xff]
        %v5713 = vld [vmem:[%s3 + $0x518] sm:$0xff]
        %v5714 = vld [vmem:[%s3 + $0x520] sm:$0xff]
        %v5715 = vld [vmem:[%s3 + $0x528] sm:$0xff]
        %v5716 = vld [vmem:[%s3 + $0x530] sm:$0xff]
        %v5717 = vld [vmem:[%s3 + $0x538] sm:$0xff]
        %v5718 = vld [vmem:[%s3 + $0x540] sm:$0xff]
        %v5719 = vld [vmem:[%s3 + $0x548] sm:$0xff]
        %v5720 = vld [vmem:[%s3 + $0x550] sm:$0xff]
        %v5721 = vld [vmem:[%s3 + $0x558] sm:$0xff]
        %v5722 = vld [vmem:[%s3 + $0x560] sm:$0xff]
        %v5723 = vld [vmem:[%s3 + $0x568] sm:$0xff]
        %v5724 = vld [vmem:[%s3 + $0x570] sm:$0xff]
        %v5725 = vld [vmem:[%s3 + $0x578] sm:$0xff]
        %v5726 = vld [vmem:[%s3 + $0x580] sm:$0xff]
        %v5727 = vld [vmem:[%s3 + $0x588] sm:$0xff]
        %v5728 = vld [vmem:[%s3 + $0x590] sm:$0xff]
        %v5729 = vld [vmem:[%s3 + $0x598] sm:$0xff]
        %v5730 = vld [vmem:[%s3 + $0x5a0] sm:$0xff]
        %v5731 = vld [vmem:[%s3 + $0x5a8] sm:$0xff]
        %v5732 = vld [vmem:[%s3 + $0x5b0] sm:$0xff]
        %v5733 = vld [vmem:[%s3 + $0x5b8] sm:$0xff]
        %v5734 = vld [vmem:[%s3 + $0x5c0] sm:$0xff]
        %v5735 = vld [vmem:[%s3 + $0x5c8] sm:$0xff]
        %v5736 = vld [vmem:[%s3 + $0x5d0] sm:$0xff]
        %v5737 = vld [vmem:[%s3 + $0x5d8] sm:$0xff]
        %v5738 = vld [vmem:[%s3 + $0x5e0] sm:$0xff]
        %v5739 = vld [vmem:[%s3 + $0x5e8] sm:$0xff]
        %v5740 = vld [vmem:[%s3 + $0x5f0] sm:$0xff]
        %v5741 = vld [vmem:[%s3 + $0x5f8] sm:$0xff]
        %v5742 = vld [vmem:[%s3 + $0x600] sm:$0xff]
        %v5743 = vld [vmem:[%s3 + $0x608] sm:$0xff]
        %v5744 = vld [vmem:[%s3 + $0x610] sm:$0xff]
        %v5745 = vld [vmem:[%s3 + $0x618] sm:$0xff]
        %v5746 = vld [vmem:[%s3 + $0x620] sm:$0xff]
        %v5747 = vld [vmem:[%s3 + $0x628] sm:$0xff]
        %v5748 = vld [vmem:[%s3 + $0x630] sm:$0xff]
        %v5749 = vld [vmem:[%s3 + $0x638] sm:$0xff]
        %v5750 = vld [vmem:[%s3 + $0x640] sm:$0xff]
        %v5751 = vld [vmem:[%s3 + $0x648] sm:$0xff]
        %v5752 = vld [vmem:[%s3 + $0x650] sm:$0xff]
        %v5753 = vld [vmem:[%s3 + $0x658] sm:$0xff]
        %v5754 = vld [vmem:[%s3 + $0x660] sm:$0xff]
        %v5755 = vld [vmem:[%s3 + $0x668] sm:$0xff]
        %v5756 = vld [vmem:[%s3 + $0x670] sm:$0xff]
        %v5757 = vld [vmem:[%s3 + $0x678] sm:$0xff]
        %v5758 = vld [vmem:[%s3 + $0x680] sm:$0xff]
        %v5759 = vld [vmem:[%s3 + $0x688] sm:$0xff]
        %v5760 = vld [vmem:[%s3 + $0x690] sm:$0xff]
        %v5761 = vld [vmem:[%s3 + $0x698] sm:$0xff]
        %v5762 = vld [vmem:[%s3 + $0x6a0] sm:$0xff]
        %v5763 = vld [vmem:[%s3 + $0x6a8] sm:$0xff]
        %v5764 = vld [vmem:[%s3 + $0x6b0] sm:$0x7]
        %v5765 = vld [vmem:[%s3 + $0x6b8] sm:$0x7]
        %vm5766 = vcmask 744448
        %v5768 = vsel %vm5766, %v5549, 0
        %v5771 = vsel %vm510, %v5764, 0
        %v5774 = vsel %vm510, %v5765, 0
        %5776 = vmatpush.msra.mxu0 %v5580
        %5777 = vmatpush.msra.mxu0 %v5578
        %5778 = vmatpush.msra.mxu0 %v5576
        %5779 = vmatpush.msra.mxu0 %v5574
        %5780 = vmatpush.msra.mxu0 %v5572
        %5781 = vmatpush.msra.mxu0 %v5570
        %5782 = vmatpush.msra.mxu0 %v5568
        %5783 = vmatpush.msra.mxu0 %v5566
        %5784 = vmatpush.msra.mxu0 %v5564
        %5785 = vmatpush.msra.mxu0 %v5562
        %5786 = vmatpush.msra.mxu0 %v5560
        %5787 = vmatpush.msra.mxu0 %v5558
        %5788 = vmatpush.msra.mxu0 %v5556
        %5789 = vmatpush.msra.mxu0 %v5554
        %5790 = vmatpush.msra.mxu0 %v5552
        %5791 = vmatpush.msra.mxu0 %v5550
        %5792 = vmatmul.f32.gmra.mxu0 %v5543
        %v5793 = vpop.f32.mrf.mxu0
        %v5794 = vadd.f32 0.0, %v5793
        %5795 = vdwg.mxu0
        %5796 = vmatpush.msra.mxu0 %v5612
        %5797 = vmatpush.msra.mxu0 %v5610
        %5798 = vmatpush.msra.mxu0 %v5608
        %5799 = vmatpush.msra.mxu0 %v5606
        %5800 = vmatpush.msra.mxu0 %v5604
        %5801 = vmatpush.msra.mxu0 %v5602
        %5802 = vmatpush.msra.mxu0 %v5600
        %5803 = vmatpush.msra.mxu0 %v5598
        %5804 = vmatpush.msra.mxu0 %v5596
        %5805 = vmatpush.msra.mxu0 %v5594
        %5806 = vmatpush.msra.mxu0 %v5592
        %5807 = vmatpush.msra.mxu0 %v5590
        %5808 = vmatpush.msra.mxu0 %v5588
        %5809 = vmatpush.msra.mxu0 %v5586
        %5810 = vmatpush.msra.mxu0 %v5584
        %5811 = vmatpush.msra.mxu0 %v5582
        %5812 = vmatmul.f32.gmra.mxu0 %v5544
        %v5813 = vpop.f32.mrf.mxu0
        %v5814 = vadd.f32 %v5794, %v5813
        %5815 = vdwg.mxu0
        %5816 = vmatpush.msra.mxu0 %v5644
        %5817 = vmatpush.msra.mxu0 %v5642
        %5818 = vmatpush.msra.mxu0 %v5640
        %5819 = vmatpush.msra.mxu0 %v5638
        %5820 = vmatpush.msra.mxu0 %v5636
        %5821 = vmatpush.msra.mxu0 %v5634
        %5822 = vmatpush.msra.mxu0 %v5632
        %5823 = vmatpush.msra.mxu0 %v5630
        %5824 = vmatpush.msra.mxu0 %v5628
        %5825 = vmatpush.msra.mxu0 %v5626
        %5826 = vmatpush.msra.mxu0 %v5624
        %5827 = vmatpush.msra.mxu0 %v5622
        %5828 = vmatpush.msra.mxu0 %v5620
        %5829 = vmatpush.msra.mxu0 %v5618
        %5830 = vmatpush.msra.mxu0 %v5616
        %5831 = vmatpush.msra.mxu0 %v5614
        %5832 = vmatmul.f32.gmra.mxu0 %v5545
        %v5833 = vpop.f32.mrf.mxu0
        %v5834 = vadd.f32 %v5814, %v5833
        %5835 = vdwg.mxu0
        %5836 = vmatpush.msra.mxu0 %v5676
        %5837 = vmatpush.msra.mxu0 %v5674
        %5838 = vmatpush.msra.mxu0 %v5672
        %5839 = vmatpush.msra.mxu0 %v5670
        %5840 = vmatpush.msra.mxu0 %v5668
        %5841 = vmatpush.msra.mxu0 %v5666
        %5842 = vmatpush.msra.mxu0 %v5664
        %5843 = vmatpush.msra.mxu0 %v5662
        %5844 = vmatpush.msra.mxu0 %v5660
        %5845 = vmatpush.msra.mxu0 %v5658
        %5846 = vmatpush.msra.mxu0 %v5656
        %5847 = vmatpush.msra.mxu0 %v5654
        %5848 = vmatpush.msra.mxu0 %v5652
        %5849 = vmatpush.msra.mxu0 %v5650
        %5850 = vmatpush.msra.mxu0 %v5648
        %5851 = vmatpush.msra.mxu0 %v5646
        %5852 = vmatmul.f32.gmra.mxu0 %v5546
        %v5853 = vpop.f32.mrf.mxu0
        %v5854 = vadd.f32 %v5834, %v5853
        %5855 = vdwg.mxu0
        %5856 = vmatpush.msra.mxu0 %v5708
        %5857 = vmatpush.msra.mxu0 %v5706
        %5858 = vmatpush.msra.mxu0 %v5704
        %5859 = vmatpush.msra.mxu0 %v5702
        %5860 = vmatpush.msra.mxu0 %v5700
        %5861 = vmatpush.msra.mxu0 %v5698
        %5862 = vmatpush.msra.mxu0 %v5696
        %5863 = vmatpush.msra.mxu0 %v5694
        %5864 = vmatpush.msra.mxu0 %v5692
        %5865 = vmatpush.msra.mxu0 %v5690
        %5866 = vmatpush.msra.mxu0 %v5688
        %5867 = vmatpush.msra.mxu0 %v5686
        %5868 = vmatpush.msra.mxu0 %v5684
        %5869 = vmatpush.msra.mxu0 %v5682
        %5870 = vmatpush.msra.mxu0 %v5680
        %5871 = vmatpush.msra.mxu0 %v5678
        %5872 = vmatmul.f32.gmra.mxu0 %v5547
        %v5873 = vpop.f32.mrf.mxu0
        %v5874 = vadd.f32 %v5854, %v5873
        %5875 = vdwg.mxu0
        %5876 = vmatpush.msra.mxu0 %v5740
        %5877 = vmatpush.msra.mxu0 %v5738
        %5878 = vmatpush.msra.mxu0 %v5736
        %5879 = vmatpush.msra.mxu0 %v5734
        %5880 = vmatpush.msra.mxu0 %v5732
        %5881 = vmatpush.msra.mxu0 %v5730
        %5882 = vmatpush.msra.mxu0 %v5728
        %5883 = vmatpush.msra.mxu0 %v5726
        %5884 = vmatpush.msra.mxu0 %v5724
        %5885 = vmatpush.msra.mxu0 %v5722
        %5886 = vmatpush.msra.mxu0 %v5720
        %5887 = vmatpush.msra.mxu0 %v5718
        %5888 = vmatpush.msra.mxu0 %v5716
        %5889 = vmatpush.msra.mxu0 %v5714
        %5890 = vmatpush.msra.mxu0 %v5712
        %5891 = vmatpush.msra.mxu0 %v5710
        %5892 = vmatmul.f32.gmra.mxu0 %v5548
        %v5893 = vpop.f32.mrf.mxu0
        %v5894 = vadd.f32 %v5874, %v5893
        %5895 = vdwg.mxu0
        %5896 = vmatpush.msra.mxu0 0.0
        %5897 = vmatpush.msra.mxu0 0.0
        %5898 = vmatpush.msra.mxu0 0.0
        %5899 = vmatpush.msra.mxu0 0.0
        %5900 = vmatpush.msra.mxu0 %v5771
        %5901 = vmatpush.msra.mxu0 %v5762
        %5902 = vmatpush.msra.mxu0 %v5760
        %5903 = vmatpush.msra.mxu0 %v5758
        %5904 = vmatpush.msra.mxu0 %v5756
        %5905 = vmatpush.msra.mxu0 %v5754
        %5906 = vmatpush.msra.mxu0 %v5752
        %5907 = vmatpush.msra.mxu0 %v5750
        %5908 = vmatpush.msra.mxu0 %v5748
        %5909 = vmatpush.msra.mxu0 %v5746
        %5910 = vmatpush.msra.mxu0 %v5744
        %5911 = vmatpush.msra.mxu0 %v5742
        %5912 = vmatmul.f32.gmra.mxu0 %v5768
        %v5913 = vpop.f32.mrf.mxu0
        %v5914 = vadd.f32 %v5894, %v5913
        %5915 = vdwg.mxu0
        %5916 = vmatpush.msra.mxu0 %v5581
        %5917 = vmatpush.msra.mxu0 %v5579
        %5918 = vmatpush.msra.mxu0 %v5577
        %5919 = vmatpush.msra.mxu0 %v5575
        %5920 = vmatpush.msra.mxu0 %v5573
        %5921 = vmatpush.msra.mxu0 %v5571
        %5922 = vmatpush.msra.mxu0 %v5569
        %5923 = vmatpush.msra.mxu0 %v5567
        %5924 = vmatpush.msra.mxu0 %v5565
        %5925 = vmatpush.msra.mxu0 %v5563
        %5926 = vmatpush.msra.mxu0 %v5561
        %5927 = vmatpush.msra.mxu0 %v5559
        %5928 = vmatpush.msra.mxu0 %v5557
        %5929 = vmatpush.msra.mxu0 %v5555
        %5930 = vmatpush.msra.mxu0 %v5553
        %5931 = vmatpush.msra.mxu0 %v5551
        %5932 = vmatmul.f32.gmra.mxu0 %v5543
        %v5933 = vpop.f32.mrf.mxu0
        %v5934 = vadd.f32 0.0, %v5933
        %5935 = vdwg.mxu0
        %5936 = vmatpush.msra.mxu0 %v5613
        %5937 = vmatpush.msra.mxu0 %v5611
        %5938 = vmatpush.msra.mxu0 %v5609
        %5939 = vmatpush.msra.mxu0 %v5607
        %5940 = vmatpush.msra.mxu0 %v5605
        %5941 = vmatpush.msra.mxu0 %v5603
        %5942 = vmatpush.msra.mxu0 %v5601
        %5943 = vmatpush.msra.mxu0 %v5599
        %5944 = vmatpush.msra.mxu0 %v5597
        %5945 = vmatpush.msra.mxu0 %v5595
        %5946 = vmatpush.msra.mxu0 %v5593
        %5947 = vmatpush.msra.mxu0 %v5591
        %5948 = vmatpush.msra.mxu0 %v5589
        %5949 = vmatpush.msra.mxu0 %v5587
        %5950 = vmatpush.msra.mxu0 %v5585
        %5951 = vmatpush.msra.mxu0 %v5583
        %5952 = vmatmul.f32.gmra.mxu0 %v5544
        %v5953 = vpop.f32.mrf.mxu0
        %v5954 = vadd.f32 %v5934, %v5953
        %5955 = vdwg.mxu0
        %5956 = vmatpush.msra.mxu0 %v5645
        %5957 = vmatpush.msra.mxu0 %v5643
        %5958 = vmatpush.msra.mxu0 %v5641
        %5959 = vmatpush.msra.mxu0 %v5639
        %5960 = vmatpush.msra.mxu0 %v5637
        %5961 = vmatpush.msra.mxu0 %v5635
        %5962 = vmatpush.msra.mxu0 %v5633
        %5963 = vmatpush.msra.mxu0 %v5631
        %5964 = vmatpush.msra.mxu0 %v5629
        %5965 = vmatpush.msra.mxu0 %v5627
        %5966 = vmatpush.msra.mxu0 %v5625
        %5967 = vmatpush.msra.mxu0 %v5623
        %5968 = vmatpush.msra.mxu0 %v5621
        %5969 = vmatpush.msra.mxu0 %v5619
        %5970 = vmatpush.msra.mxu0 %v5617
        %5971 = vmatpush.msra.mxu0 %v5615
        %5972 = vmatmul.f32.gmra.mxu0 %v5545
        %v5973 = vpop.f32.mrf.mxu0
        %v5974 = vadd.f32 %v5954, %v5973
        %5975 = vdwg.mxu0
        %5976 = vmatpush.msra.mxu0 %v5677
        %5977 = vmatpush.msra.mxu0 %v5675
        %5978 = vmatpush.msra.mxu0 %v5673
        %5979 = vmatpush.msra.mxu0 %v5671
        %5980 = vmatpush.msra.mxu0 %v5669
        %5981 = vmatpush.msra.mxu0 %v5667
        %5982 = vmatpush.msra.mxu0 %v5665
        %5983 = vmatpush.msra.mxu0 %v5663
        %5984 = vmatpush.msra.mxu0 %v5661
        %5985 = vmatpush.msra.mxu0 %v5659
        %5986 = vmatpush.msra.mxu0 %v5657
        %5987 = vmatpush.msra.mxu0 %v5655
        %5988 = vmatpush.msra.mxu0 %v5653
        %5989 = vmatpush.msra.mxu0 %v5651
        %5990 = vmatpush.msra.mxu0 %v5649
        %5991 = vmatpush.msra.mxu0 %v5647
        %5992 = vmatmul.f32.gmra.mxu0 %v5546
        %v5993 = vpop.f32.mrf.mxu0
        %v5994 = vadd.f32 %v5974, %v5993
        %5995 = vdwg.mxu0
        %5996 = vmatpush.msra.mxu0 %v5709
        %5997 = vmatpush.msra.mxu0 %v5707
        %5998 = vmatpush.msra.mxu0 %v5705
        %5999 = vmatpush.msra.mxu0 %v5703
        %6000 = vmatpush.msra.mxu0 %v5701
        %6001 = vmatpush.msra.mxu0 %v5699
        %6002 = vmatpush.msra.mxu0 %v5697
        %6003 = vmatpush.msra.mxu0 %v5695
        %6004 = vmatpush.msra.mxu0 %v5693
        %6005 = vmatpush.msra.mxu0 %v5691
        %6006 = vmatpush.msra.mxu0 %v5689
        %6007 = vmatpush.msra.mxu0 %v5687
        %6008 = vmatpush.msra.mxu0 %v5685
        %6009 = vmatpush.msra.mxu0 %v5683
        %6010 = vmatpush.msra.mxu0 %v5681
        %6011 = vmatpush.msra.mxu0 %v5679
        %6012 = vmatmul.f32.gmra.mxu0 %v5547
        %v6013 = vpop.f32.mrf.mxu0
        %v6014 = vadd.f32 %v5994, %v6013
        %6015 = vdwg.mxu0
        %6016 = vmatpush.msra.mxu0 %v5741
        %6017 = vmatpush.msra.mxu0 %v5739
        %6018 = vmatpush.msra.mxu0 %v5737
        %6019 = vmatpush.msra.mxu0 %v5735
        %6020 = vmatpush.msra.mxu0 %v5733
        %6021 = vmatpush.msra.mxu0 %v5731
        %6022 = vmatpush.msra.mxu0 %v5729
        %6023 = vmatpush.msra.mxu0 %v5727
        %6024 = vmatpush.msra.mxu0 %v5725
        %6025 = vmatpush.msra.mxu0 %v5723
        %6026 = vmatpush.msra.mxu0 %v5721
        %6027 = vmatpush.msra.mxu0 %v5719
        %6028 = vmatpush.msra.mxu0 %v5717
        %6029 = vmatpush.msra.mxu0 %v5715
        %6030 = vmatpush.msra.mxu0 %v5713
        %6031 = vmatpush.msra.mxu0 %v5711
        %6032 = vmatmul.f32.gmra.mxu0 %v5548
        %v6033 = vpop.f32.mrf.mxu0
        %v6034 = vadd.f32 %v6014, %v6033
        %6035 = vdwg.mxu0
        %6036 = vmatpush.msra.mxu0 0.0
        %6037 = vmatpush.msra.mxu0 0.0
        %6038 = vmatpush.msra.mxu0 0.0
        %6039 = vmatpush.msra.mxu0 0.0
        %6040 = vmatpush.msra.mxu0 %v5774
        %6041 = vmatpush.msra.mxu0 %v5763
        %6042 = vmatpush.msra.mxu0 %v5761
        %6043 = vmatpush.msra.mxu0 %v5759
        %6044 = vmatpush.msra.mxu0 %v5757
        %6045 = vmatpush.msra.mxu0 %v5755
        %6046 = vmatpush.msra.mxu0 %v5753
        %6047 = vmatpush.msra.mxu0 %v5751
        %6048 = vmatpush.msra.mxu0 %v5749
        %6049 = vmatpush.msra.mxu0 %v5747
        %6050 = vmatpush.msra.mxu0 %v5745
        %6051 = vmatpush.msra.mxu0 %v5743
        %6052 = vmatmul.f32.gmra.mxu0 %v5768
        %v6053 = vpop.f32.mrf.mxu0
        %v6054 = vadd.f32 %v6034, %v6053
        %6055 = vdwg.mxu0
        %v6056 = vld [vmem:[%s4] sm:$0xff]
        %v6057 = vld [vmem:[%s4 + $0x8] sm:$0xff]
        %v6058 = vld [vmem:[%s4 + $0x10] sm:$0xff]
        %v6059 = vld [vmem:[%s4 + $0x18] sm:$0xff]
        %v6060 = vld [vmem:[%s4 + $0x20] sm:$0xff]
        %v6061 = vld [vmem:[%s4 + $0x28] sm:$0xff]
        %v6062 = vld [vmem:[%s4 + $0x30] sm:$0xff]
        %v6063 = vld [vmem:[%s4 + $0x38] sm:$0xff]
        %v6064 = vld [vmem:[%s4 + $0x40] sm:$0xff]
        %v6065 = vld [vmem:[%s4 + $0x48] sm:$0xff]
        %v6066 = vld [vmem:[%s4 + $0x50] sm:$0xff]
        %v6067 = vld [vmem:[%s4 + $0x58] sm:$0xff]
        %v6068 = vld [vmem:[%s4 + $0x60] sm:$0xff]
        %v6069 = vld [vmem:[%s4 + $0x68] sm:$0xff]
        %v6070 = vld [vmem:[%s4 + $0x70] sm:$0xff]
        %v6071 = vld [vmem:[%s4 + $0x78] sm:$0xff]
        %v6072 = vld [vmem:[%s4 + $0x80] sm:$0xff]
        %v6073 = vld [vmem:[%s4 + $0x88] sm:$0xff]
        %v6074 = vld [vmem:[%s4 + $0x90] sm:$0xff]
        %v6075 = vld [vmem:[%s4 + $0x98] sm:$0xff]
        %v6076 = vld [vmem:[%s4 + $0xa0] sm:$0xff]
        %v6077 = vld [vmem:[%s4 + $0xa8] sm:$0xff]
        %v6078 = vld [vmem:[%s4 + $0xb0] sm:$0xff]
        %v6079 = vld [vmem:[%s4 + $0xb8] sm:$0xff]
        %v6080 = vld [vmem:[%s4 + $0xc0] sm:$0xff]
        %v6081 = vld [vmem:[%s4 + $0xc8] sm:$0xff]
        %v6082 = vld [vmem:[%s4 + $0xd0] sm:$0xff]
        %v6083 = vld [vmem:[%s4 + $0xd8] sm:$0xff]
        %v6084 = vld [vmem:[%s4 + $0xe0] sm:$0xff]
        %v6085 = vld [vmem:[%s4 + $0xe8] sm:$0xff]
        %v6086 = vld [vmem:[%s4 + $0xf0] sm:$0xff]
        %v6087 = vld [vmem:[%s4 + $0xf8] sm:$0xff]
        %v6088 = vld [vmem:[%s4 + $0x100] sm:$0xff]
        %v6089 = vld [vmem:[%s4 + $0x108] sm:$0xff]
        %v6090 = vld [vmem:[%s4 + $0x110] sm:$0xff]
        %v6091 = vld [vmem:[%s4 + $0x118] sm:$0xff]
        %v6092 = vld [vmem:[%s4 + $0x120] sm:$0xff]
        %v6093 = vld [vmem:[%s4 + $0x128] sm:$0xff]
        %v6094 = vld [vmem:[%s4 + $0x130] sm:$0xff]
        %v6095 = vld [vmem:[%s4 + $0x138] sm:$0xff]
        %v6096 = vld [vmem:[%s4 + $0x140] sm:$0xff]
        %v6097 = vld [vmem:[%s4 + $0x148] sm:$0xff]
        %v6098 = vld [vmem:[%s4 + $0x150] sm:$0xff]
        %v6099 = vld [vmem:[%s4 + $0x158] sm:$0xff]
        %v6100 = vld [vmem:[%s4 + $0x160] sm:$0xff]
        %v6101 = vld [vmem:[%s4 + $0x168] sm:$0xff]
        %v6102 = vld [vmem:[%s4 + $0x170] sm:$0xff]
        %v6103 = vld [vmem:[%s4 + $0x178] sm:$0xff]
        %v6104 = vld [vmem:[%s4 + $0x180] sm:$0xff]
        %v6105 = vld [vmem:[%s4 + $0x188] sm:$0xff]
        %6108 = vrot.lane.b32.xlu0 %v5914, 127
        %v6109 = vpop.permute.xlu0 %6108
        %6110 = vrot.lane.b32.xlu0 %v6054, 127
        %v6111 = vpop.permute.xlu0 %6110
        %v6112 = vsel %vm499, %v6109, %v6111
        %vm6113 = vcmask 48128
        %v6115 = vsel %vm6113, %v6058, 0
        %v6118 = vsel %vm6113, %v6059, 0
        %vm6120 = vcmask 1045504
        %v6121 = vsel %vm6120, %v6112, 0
        %v6123 = vsel %vm6120, %v6111, 0
        %6125 = vmatpush.msra.mxu0 0.0
        %6126 = vmatpush.msra.mxu0 0.0
        %6127 = vmatpush.msra.mxu0 0.0
        %6128 = vmatpush.msra.mxu0 0.0
        %6129 = vmatpush.msra.mxu0 0.0
        %6130 = vmatpush.msra.mxu0 0.0
        %6131 = vmatpush.msra.mxu0 0.0
        %6132 = vmatpush.msra.mxu0 0.0
        %6133 = vmatpush.msra.mxu0 0.0
        %6134 = vmatpush.msra.mxu0 0.0
        %6135 = vmatpush.msra.mxu0 0.0
        %6136 = vmatpush.msra.mxu0 0.0
        %6137 = vmatpush.msra.mxu0 0.0
        %6138 = vmatpush.msra.mxu0 0.0
        %6139 = vmatpush.msra.mxu0 0.0
        %6140 = vmatpush.msra.mxu0 %v6121
        %6141 = vmatmul.f32.gmra.mxu0 %v6115
        %v6142 = vpop.f32.mrf.mxu0
        %v6143 = vadd.f32 0.0, %v6142
        %6144 = vmatmul.f32.gmra.mxu0 %v6118
        %v6145 = vpop.f32.mrf.mxu0
        %v6146 = vadd.f32 0.0, %v6145
        %6147 = vdwg.mxu0
        %6148 = vmatpush.msra.mxu0 0.0
        %6149 = vmatpush.msra.mxu0 0.0
        %6150 = vmatpush.msra.mxu0 0.0
        %6151 = vmatpush.msra.mxu0 0.0
        %6152 = vmatpush.msra.mxu0 0.0
        %6153 = vmatpush.msra.mxu0 0.0
        %6154 = vmatpush.msra.mxu0 0.0
        %6155 = vmatpush.msra.mxu0 0.0
        %6156 = vmatpush.msra.mxu0 0.0
        %6157 = vmatpush.msra.mxu0 0.0
        %6158 = vmatpush.msra.mxu0 0.0
        %6159 = vmatpush.msra.mxu0 0.0
        %6160 = vmatpush.msra.mxu0 0.0
        %6161 = vmatpush.msra.mxu0 0.0
        %6162 = vmatpush.msra.mxu0 0.0
        %6163 = vmatpush.msra.mxu0 %v6123
        %6164 = vmatmul.f32.gmra.mxu0 %v6115
        %v6165 = vpop.f32.mrf.mxu0
        %v6166 = vadd.f32 0.0, %v6165
        %6167 = vmatmul.f32.gmra.mxu0 %v6118
        %v6168 = vpop.f32.mrf.mxu0
        %v6169 = vadd.f32 0.0, %v6168
        %6170 = vdwg.mxu0
        %v6172 = vsel %vm6113, %v6056, 0
        %v6175 = vsel %vm6113, %v6057, 0
        %v6177 = vsel %vm6120, %v5914, 0
        %v6179 = vsel %vm6120, %v6054, 0
        %6181 = vmatpush.msra.mxu0 0.0
        %6182 = vmatpush.msra.mxu0 0.0
        %6183 = vmatpush.msra.mxu0 0.0
        %6184 = vmatpush.msra.mxu0 0.0
        %6185 = vmatpush.msra.mxu0 0.0
        %6186 = vmatpush.msra.mxu0 0.0
        %6187 = vmatpush.msra.mxu0 0.0
        %6188 = vmatpush.msra.mxu0 0.0
        %6189 = vmatpush.msra.mxu0 0.0
        %6190 = vmatpush.msra.mxu0 0.0
        %6191 = vmatpush.msra.mxu0 0.0
        %6192 = vmatpush.msra.mxu0 0.0
        %6193 = vmatpush.msra.mxu0 0.0
        %6194 = vmatpush.msra.mxu0 0.0
        %6195 = vmatpush.msra.mxu0 0.0
        %6196 = vmatpush.msra.mxu0 %v6177
        %6197 = vmatmul.f32.gmra.mxu0 %v6172
        %v6198 = vpop.f32.mrf.mxu0
        %v6199 = vadd.f32 %v6143, %v6198
        %6200 = vmatmul.f32.gmra.mxu0 %v6175
        %v6201 = vpop.f32.mrf.mxu0
        %v6202 = vadd.f32 %v6146, %v6201
        %6203 = vdwg.mxu0
        %6204 = vmatpush.msra.mxu0 0.0
        %6205 = vmatpush.msra.mxu0 0.0
        %6206 = vmatpush.msra.mxu0 0.0
        %6207 = vmatpush.msra.mxu0 0.0
        %6208 = vmatpush.msra.mxu0 0.0
        %6209 = vmatpush.msra.mxu0 0.0
        %6210 = vmatpush.msra.mxu0 0.0
        %6211 = vmatpush.msra.mxu0 0.0
        %6212 = vmatpush.msra.mxu0 0.0
        %6213 = vmatpush.msra.mxu0 0.0
        %6214 = vmatpush.msra.mxu0 0.0
        %6215 = vmatpush.msra.mxu0 0.0
        %6216 = vmatpush.msra.mxu0 0.0
        %6217 = vmatpush.msra.mxu0 0.0
        %6218 = vmatpush.msra.mxu0 0.0
        %6219 = vmatpush.msra.mxu0 %v6179
        %6220 = vmatmul.f32.gmra.mxu0 %v6172
        %v6221 = vpop.f32.mrf.mxu0
        %v6222 = vadd.f32 %v6166, %v6221
        %6223 = vmatmul.f32.gmra.mxu0 %v6175
        %v6224 = vpop.f32.mrf.mxu0
        %v6225 = vadd.f32 %v6169, %v6224
        %6226 = vdwg.mxu0
        %6227 = vrot.lane.b32.xlu0 %v5914, 126
        %v6228 = vpop.permute.xlu0 %6227
        %6229 = vrot.lane.b32.xlu0 %v6054, 126
        %v6230 = vpop.permute.xlu0 %6229
        %v6231 = vsel %vm864, %v6228, %v6230
        %v6233 = vsel %vm6113, %v6060, 0
        %v6236 = vsel %vm6113, %v6061, 0
        %v6238 = vsel %vm6120, %v6231, 0
        %v6240 = vsel %vm6120, %v6230, 0
        %6242 = vmatpush.msra.mxu0 0.0
        %6243 = vmatpush.msra.mxu0 0.0
        %6244 = vmatpush.msra.mxu0 0.0
        %6245 = vmatpush.msra.mxu0 0.0
        %6246 = vmatpush.msra.mxu0 0.0
        %6247 = vmatpush.msra.mxu0 0.0
        %6248 = vmatpush.msra.mxu0 0.0
        %6249 = vmatpush.msra.mxu0 0.0
        %6250 = vmatpush.msra.mxu0 0.0
        %6251 = vmatpush.msra.mxu0 0.0
        %6252 = vmatpush.msra.mxu0 0.0
        %6253 = vmatpush.msra.mxu0 0.0
        %6254 = vmatpush.msra.mxu0 0.0
        %6255 = vmatpush.msra.mxu0 0.0
        %6256 = vmatpush.msra.mxu0 0.0
        %6257 = vmatpush.msra.mxu0 %v6238
        %6258 = vmatmul.f32.gmra.mxu0 %v6233
        %v6259 = vpop.f32.mrf.mxu0
        %v6260 = vadd.f32 0.0, %v6259
        %6261 = vmatmul.f32.gmra.mxu0 %v6236
        %v6262 = vpop.f32.mrf.mxu0
        %v6263 = vadd.f32 0.0, %v6262
        %6264 = vdwg.mxu0
        %6265 = vmatpush.msra.mxu0 0.0
        %6266 = vmatpush.msra.mxu0 0.0
        %6267 = vmatpush.msra.mxu0 0.0
        %6268 = vmatpush.msra.mxu0 0.0
        %6269 = vmatpush.msra.mxu0 0.0
        %6270 = vmatpush.msra.mxu0 0.0
        %6271 = vmatpush.msra.mxu0 0.0
        %6272 = vmatpush.msra.mxu0 0.0
        %6273 = vmatpush.msra.mxu0 0.0
        %6274 = vmatpush.msra.mxu0 0.0
        %6275 = vmatpush.msra.mxu0 0.0
        %6276 = vmatpush.msra.mxu0 0.0
        %6277 = vmatpush.msra.mxu0 0.0
        %6278 = vmatpush.msra.mxu0 0.0
        %6279 = vmatpush.msra.mxu0 0.0
        %6280 = vmatpush.msra.mxu0 %v6240
        %6281 = vmatmul.f32.gmra.mxu0 %v6233
        %v6282 = vpop.f32.mrf.mxu0
        %v6283 = vadd.f32 0.0, %v6282
        %6284 = vmatmul.f32.gmra.mxu0 %v6236
        %v6285 = vpop.f32.mrf.mxu0
        %v6286 = vadd.f32 0.0, %v6285
        %6287 = vdwg.mxu0
        %v6288 = vadd.f32 %v6199, %v6260
        %v6289 = vadd.f32 %v6222, %v6283
        %v6290 = vadd.f32 %v6202, %v6263
        %v6291 = vadd.f32 %v6225, %v6286
        %6292 = vrot.lane.b32.xlu0 %v5914, 125
        %v6293 = vpop.permute.xlu0 %6292
        %6294 = vrot.lane.b32.xlu0 %v6054, 125
        %v6295 = vpop.permute.xlu0 %6294
        %v6296 = vsel %vm1063, %v6293, %v6295
        %v6298 = vsel %vm6113, %v6062, 0
        %v6301 = vsel %vm6113, %v6063, 0
        %v6303 = vsel %vm6120, %v6296, 0
        %v6305 = vsel %vm6120, %v6295, 0
        %6307 = vmatpush.msra.mxu0 0.0
        %6308 = vmatpush.msra.mxu0 0.0
        %6309 = vmatpush.msra.mxu0 0.0
        %6310 = vmatpush.msra.mxu0 0.0
        %6311 = vmatpush.msra.mxu0 0.0
        %6312 = vmatpush.msra.mxu0 0.0
        %6313 = vmatpush.msra.mxu0 0.0
        %6314 = vmatpush.msra.mxu0 0.0
        %6315 = vmatpush.msra.mxu0 0.0
        %6316 = vmatpush.msra.mxu0 0.0
        %6317 = vmatpush.msra.mxu0 0.0
        %6318 = vmatpush.msra.mxu0 0.0
        %6319 = vmatpush.msra.mxu0 0.0
        %6320 = vmatpush.msra.mxu0 0.0
        %6321 = vmatpush.msra.mxu0 0.0
        %6322 = vmatpush.msra.mxu0 %v6303
        %6323 = vmatmul.f32.gmra.mxu0 %v6298
        %v6324 = vpop.f32.mrf.mxu0
        %v6325 = vadd.f32 0.0, %v6324
        %6326 = vmatmul.f32.gmra.mxu0 %v6301
        %v6327 = vpop.f32.mrf.mxu0
        %v6328 = vadd.f32 0.0, %v6327
        %6329 = vdwg.mxu0
        %6330 = vmatpush.msra.mxu0 0.0
        %6331 = vmatpush.msra.mxu0 0.0
        %6332 = vmatpush.msra.mxu0 0.0
        %6333 = vmatpush.msra.mxu0 0.0
        %6334 = vmatpush.msra.mxu0 0.0
        %6335 = vmatpush.msra.mxu0 0.0
        %6336 = vmatpush.msra.mxu0 0.0
        %6337 = vmatpush.msra.mxu0 0.0
        %6338 = vmatpush.msra.mxu0 0.0
        %6339 = vmatpush.msra.mxu0 0.0
        %6340 = vmatpush.msra.mxu0 0.0
        %6341 = vmatpush.msra.mxu0 0.0
        %6342 = vmatpush.msra.mxu0 0.0
        %6343 = vmatpush.msra.mxu0 0.0
        %6344 = vmatpush.msra.mxu0 0.0
        %6345 = vmatpush.msra.mxu0 %v6305
        %6346 = vmatmul.f32.gmra.mxu0 %v6298
        %v6347 = vpop.f32.mrf.mxu0
        %v6348 = vadd.f32 0.0, %v6347
        %6349 = vmatmul.f32.gmra.mxu0 %v6301
        %v6350 = vpop.f32.mrf.mxu0
        %v6351 = vadd.f32 0.0, %v6350
        %6352 = vdwg.mxu0
        %v6353 = vadd.f32 %v6288, %v6325
        %v6354 = vadd.f32 %v6289, %v6348
        %v6355 = vadd.f32 %v6290, %v6328
        %v6356 = vadd.f32 %v6291, %v6351
        %6357 = vrot.lane.b32.xlu0 %v5914, 124
        %v6358 = vpop.permute.xlu0 %6357
        %6359 = vrot.lane.b32.xlu0 %v6054, 124
        %v6360 = vpop.permute.xlu0 %6359
        %v6361 = vsel %vm1262, %v6358, %v6360
        %v6363 = vsel %vm6113, %v6064, 0
        %v6366 = vsel %vm6113, %v6065, 0
        %v6368 = vsel %vm6120, %v6361, 0
        %v6370 = vsel %vm6120, %v6360, 0
        %6372 = vmatpush.msra.mxu0 0.0
        %6373 = vmatpush.msra.mxu0 0.0
        %6374 = vmatpush.msra.mxu0 0.0
        %6375 = vmatpush.msra.mxu0 0.0
        %6376 = vmatpush.msra.mxu0 0.0
        %6377 = vmatpush.msra.mxu0 0.0
        %6378 = vmatpush.msra.mxu0 0.0
        %6379 = vmatpush.msra.mxu0 0.0
        %6380 = vmatpush.msra.mxu0 0.0
        %6381 = vmatpush.msra.mxu0 0.0
        %6382 = vmatpush.msra.mxu0 0.0
        %6383 = vmatpush.msra.mxu0 0.0
        %6384 = vmatpush.msra.mxu0 0.0
        %6385 = vmatpush.msra.mxu0 0.0
        %6386 = vmatpush.msra.mxu0 0.0
        %6387 = vmatpush.msra.mxu0 %v6368
        %6388 = vmatmul.f32.gmra.mxu0 %v6363
        %v6389 = vpop.f32.mrf.mxu0
        %v6390 = vadd.f32 0.0, %v6389
        %6391 = vmatmul.f32.gmra.mxu0 %v6366
        %v6392 = vpop.f32.mrf.mxu0
        %v6393 = vadd.f32 0.0, %v6392
        %6394 = vdwg.mxu0
        %6395 = vmatpush.msra.mxu0 0.0
        %6396 = vmatpush.msra.mxu0 0.0
        %6397 = vmatpush.msra.mxu0 0.0
        %6398 = vmatpush.msra.mxu0 0.0
        %6399 = vmatpush.msra.mxu0 0.0
        %6400 = vmatpush.msra.mxu0 0.0
        %6401 = vmatpush.msra.mxu0 0.0
        %6402 = vmatpush.msra.mxu0 0.0
        %6403 = vmatpush.msra.mxu0 0.0
        %6404 = vmatpush.msra.mxu0 0.0
        %6405 = vmatpush.msra.mxu0 0.0
        %6406 = vmatpush.msra.mxu0 0.0
        %6407 = vmatpush.msra.mxu0 0.0
        %6408 = vmatpush.msra.mxu0 0.0
        %6409 = vmatpush.msra.mxu0 0.0
        %6410 = vmatpush.msra.mxu0 %v6370
        %6411 = vmatmul.f32.gmra.mxu0 %v6363
        %v6412 = vpop.f32.mrf.mxu0
        %v6413 = vadd.f32 0.0, %v6412
        %6414 = vmatmul.f32.gmra.mxu0 %v6366
        %v6415 = vpop.f32.mrf.mxu0
        %v6416 = vadd.f32 0.0, %v6415
        %6417 = vdwg.mxu0
        %v6418 = vadd.f32 %v6353, %v6390
        %v6419 = vadd.f32 %v6354, %v6413
        %v6420 = vadd.f32 %v6355, %v6393
        %v6421 = vadd.f32 %v6356, %v6416
        %6422 = vrot.lane.b32.xlu0 %v5914, 114
        %v6423 = vpop.permute.xlu0 %6422
        %6424 = vrot.lane.b32.xlu0 %v6054, 114
        %v6425 = vpop.permute.xlu0 %6424
        %vm6426 = vcmask 932864
        %v6427 = vsel %vm6426, %v6423, %v6425
        %v6429 = vsel %vm6113, %v6066, 0
        %v6432 = vsel %vm6113, %v6067, 0
        %v6434 = vsel %vm6120, %v6427, 0
        %v6436 = vsel %vm6120, %v6425, 0
        %6438 = vmatpush.msra.mxu0 0.0
        %6439 = vmatpush.msra.mxu0 0.0
        %6440 = vmatpush.msra.mxu0 0.0
        %6441 = vmatpush.msra.mxu0 0.0
        %6442 = vmatpush.msra.mxu0 0.0
        %6443 = vmatpush.msra.mxu0 0.0
        %6444 = vmatpush.msra.mxu0 0.0
        %6445 = vmatpush.msra.mxu0 0.0
        %6446 = vmatpush.msra.mxu0 0.0
        %6447 = vmatpush.msra.mxu0 0.0
        %6448 = vmatpush.msra.mxu0 0.0
        %6449 = vmatpush.msra.mxu0 0.0
        %6450 = vmatpush.msra.mxu0 0.0
        %6451 = vmatpush.msra.mxu0 0.0
        %6452 = vmatpush.msra.mxu0 0.0
        %6453 = vmatpush.msra.mxu0 %v6434
        %6454 = vmatmul.f32.gmra.mxu0 %v6429
        %v6455 = vpop.f32.mrf.mxu0
        %v6456 = vadd.f32 0.0, %v6455
        %6457 = vmatmul.f32.gmra.mxu0 %v6432
        %v6458 = vpop.f32.mrf.mxu0
        %v6459 = vadd.f32 0.0, %v6458
        %6460 = vdwg.mxu0
        %6461 = vmatpush.msra.mxu0 0.0
        %6462 = vmatpush.msra.mxu0 0.0
        %6463 = vmatpush.msra.mxu0 0.0
        %6464 = vmatpush.msra.mxu0 0.0
        %6465 = vmatpush.msra.mxu0 0.0
        %6466 = vmatpush.msra.mxu0 0.0
        %6467 = vmatpush.msra.mxu0 0.0
        %6468 = vmatpush.msra.mxu0 0.0
        %6469 = vmatpush.msra.mxu0 0.0
        %6470 = vmatpush.msra.mxu0 0.0
        %6471 = vmatpush.msra.mxu0 0.0
        %6472 = vmatpush.msra.mxu0 0.0
        %6473 = vmatpush.msra.mxu0 0.0
        %6474 = vmatpush.msra.mxu0 0.0
        %6475 = vmatpush.msra.mxu0 0.0
        %6476 = vmatpush.msra.mxu0 %v6436
        %6477 = vmatmul.f32.gmra.mxu0 %v6429
        %v6478 = vpop.f32.mrf.mxu0
        %v6479 = vadd.f32 0.0, %v6478
        %6480 = vmatmul.f32.gmra.mxu0 %v6432
        %v6481 = vpop.f32.mrf.mxu0
        %v6482 = vadd.f32 0.0, %v6481
        %6483 = vdwg.mxu0
        %v6484 = vadd.f32 %v6418, %v6456
        %v6485 = vadd.f32 %v6419, %v6479
        %v6486 = vadd.f32 %v6420, %v6459
        %v6487 = vadd.f32 %v6421, %v6482
        %6488 = vrot.lane.b32.xlu0 %v5914, 113
        %v6489 = vpop.permute.xlu0 %6488
        %6490 = vrot.lane.b32.xlu0 %v6054, 113
        %v6491 = vpop.permute.xlu0 %6490
        %vm6492 = vcmask 924672
        %v6493 = vsel %vm6492, %v6489, %v6491
        %v6495 = vsel %vm6113, %v6068, 0
        %v6498 = vsel %vm6113, %v6069, 0
        %v6500 = vsel %vm6120, %v6493, 0
        %v6502 = vsel %vm6120, %v6491, 0
        %6504 = vmatpush.msra.mxu0 0.0
        %6505 = vmatpush.msra.mxu0 0.0
        %6506 = vmatpush.msra.mxu0 0.0
        %6507 = vmatpush.msra.mxu0 0.0
        %6508 = vmatpush.msra.mxu0 0.0
        %6509 = vmatpush.msra.mxu0 0.0
        %6510 = vmatpush.msra.mxu0 0.0
        %6511 = vmatpush.msra.mxu0 0.0
        %6512 = vmatpush.msra.mxu0 0.0
        %6513 = vmatpush.msra.mxu0 0.0
        %6514 = vmatpush.msra.mxu0 0.0
        %6515 = vmatpush.msra.mxu0 0.0
        %6516 = vmatpush.msra.mxu0 0.0
        %6517 = vmatpush.msra.mxu0 0.0
        %6518 = vmatpush.msra.mxu0 0.0
        %6519 = vmatpush.msra.mxu0 %v6500
        %6520 = vmatmul.f32.gmra.mxu0 %v6495
        %v6521 = vpop.f32.mrf.mxu0
        %v6522 = vadd.f32 0.0, %v6521
        %6523 = vmatmul.f32.gmra.mxu0 %v6498
        %v6524 = vpop.f32.mrf.mxu0
        %v6525 = vadd.f32 0.0, %v6524
        %6526 = vdwg.mxu0
        %6527 = vmatpush.msra.mxu0 0.0
        %6528 = vmatpush.msra.mxu0 0.0
        %6529 = vmatpush.msra.mxu0 0.0
        %6530 = vmatpush.msra.mxu0 0.0
        %6531 = vmatpush.msra.mxu0 0.0
        %6532 = vmatpush.msra.mxu0 0.0
        %6533 = vmatpush.msra.mxu0 0.0
        %6534 = vmatpush.msra.mxu0 0.0
        %6535 = vmatpush.msra.mxu0 0.0
        %6536 = vmatpush.msra.mxu0 0.0
        %6537 = vmatpush.msra.mxu0 0.0
        %6538 = vmatpush.msra.mxu0 0.0
        %6539 = vmatpush.msra.mxu0 0.0
        %6540 = vmatpush.msra.mxu0 0.0
        %6541 = vmatpush.msra.mxu0 0.0
        %6542 = vmatpush.msra.mxu0 %v6502
        %6543 = vmatmul.f32.gmra.mxu0 %v6495
        %v6544 = vpop.f32.mrf.mxu0
        %v6545 = vadd.f32 0.0, %v6544
        %6546 = vmatmul.f32.gmra.mxu0 %v6498
        %v6547 = vpop.f32.mrf.mxu0
        %v6548 = vadd.f32 0.0, %v6547
        %6549 = vdwg.mxu0
        %v6550 = vadd.f32 %v6484, %v6522
        %v6551 = vadd.f32 %v6485, %v6545
        %v6552 = vadd.f32 %v6486, %v6525
        %v6553 = vadd.f32 %v6487, %v6548
        %6554 = vrot.lane.b32.xlu0 %v5914, 112
        %v6555 = vpop.permute.xlu0 %6554
        %6556 = vrot.lane.b32.xlu0 %v6054, 112
        %v6557 = vpop.permute.xlu0 %6556
        %vm6558 = vcmask 916480
        %v6559 = vsel %vm6558, %v6555, %v6557
        %v6561 = vsel %vm6113, %v6070, 0
        %v6564 = vsel %vm6113, %v6071, 0
        %v6566 = vsel %vm6120, %v6559, 0
        %v6568 = vsel %vm6120, %v6557, 0
        %6570 = vmatpush.msra.mxu0 0.0
        %6571 = vmatpush.msra.mxu0 0.0
        %6572 = vmatpush.msra.mxu0 0.0
        %6573 = vmatpush.msra.mxu0 0.0
        %6574 = vmatpush.msra.mxu0 0.0
        %6575 = vmatpush.msra.mxu0 0.0
        %6576 = vmatpush.msra.mxu0 0.0
        %6577 = vmatpush.msra.mxu0 0.0
        %6578 = vmatpush.msra.mxu0 0.0
        %6579 = vmatpush.msra.mxu0 0.0
        %6580 = vmatpush.msra.mxu0 0.0
        %6581 = vmatpush.msra.mxu0 0.0
        %6582 = vmatpush.msra.mxu0 0.0
        %6583 = vmatpush.msra.mxu0 0.0
        %6584 = vmatpush.msra.mxu0 0.0
        %6585 = vmatpush.msra.mxu0 %v6566
        %6586 = vmatmul.f32.gmra.mxu0 %v6561
        %v6587 = vpop.f32.mrf.mxu0
        %v6588 = vadd.f32 0.0, %v6587
        %6589 = vmatmul.f32.gmra.mxu0 %v6564
        %v6590 = vpop.f32.mrf.mxu0
        %v6591 = vadd.f32 0.0, %v6590
        %6592 = vdwg.mxu0
        %6593 = vmatpush.msra.mxu0 0.0
        %6594 = vmatpush.msra.mxu0 0.0
        %6595 = vmatpush.msra.mxu0 0.0
        %6596 = vmatpush.msra.mxu0 0.0
        %6597 = vmatpush.msra.mxu0 0.0
        %6598 = vmatpush.msra.mxu0 0.0
        %6599 = vmatpush.msra.mxu0 0.0
        %6600 = vmatpush.msra.mxu0 0.0
        %6601 = vmatpush.msra.mxu0 0.0
        %6602 = vmatpush.msra.mxu0 0.0
        %6603 = vmatpush.msra.mxu0 0.0
        %6604 = vmatpush.msra.mxu0 0.0
        %6605 = vmatpush.msra.mxu0 0.0
        %6606 = vmatpush.msra.mxu0 0.0
        %6607 = vmatpush.msra.mxu0 0.0
        %6608 = vmatpush.msra.mxu0 %v6568
        %6609 = vmatmul.f32.gmra.mxu0 %v6561
        %v6610 = vpop.f32.mrf.mxu0
        %v6611 = vadd.f32 0.0, %v6610
        %6612 = vmatmul.f32.gmra.mxu0 %v6564
        %v6613 = vpop.f32.mrf.mxu0
        %v6614 = vadd.f32 0.0, %v6613
        %6615 = vdwg.mxu0
        %v6616 = vadd.f32 %v6550, %v6588
        %v6617 = vadd.f32 %v6551, %v6611
        %v6618 = vadd.f32 %v6552, %v6591
        %v6619 = vadd.f32 %v6553, %v6614
        %6620 = vrot.lane.b32.xlu0 %v5914, 111
        %v6621 = vpop.permute.xlu0 %6620
        %6622 = vrot.lane.b32.xlu0 %v6054, 111
        %v6623 = vpop.permute.xlu0 %6622
        %vm6624 = vcmask 908288
        %v6625 = vsel %vm6624, %v6621, %v6623
        %v6627 = vsel %vm6113, %v6072, 0
        %v6630 = vsel %vm6113, %v6073, 0
        %v6632 = vsel %vm6120, %v6625, 0
        %v6634 = vsel %vm6120, %v6623, 0
        %6636 = vmatpush.msra.mxu0 0.0
        %6637 = vmatpush.msra.mxu0 0.0
        %6638 = vmatpush.msra.mxu0 0.0
        %6639 = vmatpush.msra.mxu0 0.0
        %6640 = vmatpush.msra.mxu0 0.0
        %6641 = vmatpush.msra.mxu0 0.0
        %6642 = vmatpush.msra.mxu0 0.0
        %6643 = vmatpush.msra.mxu0 0.0
        %6644 = vmatpush.msra.mxu0 0.0
        %6645 = vmatpush.msra.mxu0 0.0
        %6646 = vmatpush.msra.mxu0 0.0
        %6647 = vmatpush.msra.mxu0 0.0
        %6648 = vmatpush.msra.mxu0 0.0
        %6649 = vmatpush.msra.mxu0 0.0
        %6650 = vmatpush.msra.mxu0 0.0
        %6651 = vmatpush.msra.mxu0 %v6632
        %6652 = vmatmul.f32.gmra.mxu0 %v6627
        %v6653 = vpop.f32.mrf.mxu0
        %v6654 = vadd.f32 0.0, %v6653
        %6655 = vmatmul.f32.gmra.mxu0 %v6630
        %v6656 = vpop.f32.mrf.mxu0
        %v6657 = vadd.f32 0.0, %v6656
        %6658 = vdwg.mxu0
        %6659 = vmatpush.msra.mxu0 0.0
        %6660 = vmatpush.msra.mxu0 0.0
        %6661 = vmatpush.msra.mxu0 0.0
        %6662 = vmatpush.msra.mxu0 0.0
        %6663 = vmatpush.msra.mxu0 0.0
        %6664 = vmatpush.msra.mxu0 0.0
        %6665 = vmatpush.msra.mxu0 0.0
        %6666 = vmatpush.msra.mxu0 0.0
        %6667 = vmatpush.msra.mxu0 0.0
        %6668 = vmatpush.msra.mxu0 0.0
        %6669 = vmatpush.msra.mxu0 0.0
        %6670 = vmatpush.msra.mxu0 0.0
        %6671 = vmatpush.msra.mxu0 0.0
        %6672 = vmatpush.msra.mxu0 0.0
        %6673 = vmatpush.msra.mxu0 0.0
        %6674 = vmatpush.msra.mxu0 %v6634
        %6675 = vmatmul.f32.gmra.mxu0 %v6627
        %v6676 = vpop.f32.mrf.mxu0
        %v6677 = vadd.f32 0.0, %v6676
        %6678 = vmatmul.f32.gmra.mxu0 %v6630
        %v6679 = vpop.f32.mrf.mxu0
        %v6680 = vadd.f32 0.0, %v6679
        %6681 = vdwg.mxu0
        %v6682 = vadd.f32 %v6616, %v6654
        %v6683 = vadd.f32 %v6617, %v6677
        %v6684 = vadd.f32 %v6618, %v6657
        %v6685 = vadd.f32 %v6619, %v6680
        %6686 = vrot.lane.b32.xlu0 %v5914, 110
        %v6687 = vpop.permute.xlu0 %6686
        %6688 = vrot.lane.b32.xlu0 %v6054, 110
        %v6689 = vpop.permute.xlu0 %6688
        %vm6690 = vcmask 900096
        %v6691 = vsel %vm6690, %v6687, %v6689
        %v6693 = vsel %vm6113, %v6074, 0
        %v6696 = vsel %vm6113, %v6075, 0
        %v6698 = vsel %vm6120, %v6691, 0
        %v6700 = vsel %vm6120, %v6689, 0
        %6702 = vmatpush.msra.mxu0 0.0
        %6703 = vmatpush.msra.mxu0 0.0
        %6704 = vmatpush.msra.mxu0 0.0
        %6705 = vmatpush.msra.mxu0 0.0
        %6706 = vmatpush.msra.mxu0 0.0
        %6707 = vmatpush.msra.mxu0 0.0
        %6708 = vmatpush.msra.mxu0 0.0
        %6709 = vmatpush.msra.mxu0 0.0
        %6710 = vmatpush.msra.mxu0 0.0
        %6711 = vmatpush.msra.mxu0 0.0
        %6712 = vmatpush.msra.mxu0 0.0
        %6713 = vmatpush.msra.mxu0 0.0
        %6714 = vmatpush.msra.mxu0 0.0
        %6715 = vmatpush.msra.mxu0 0.0
        %6716 = vmatpush.msra.mxu0 0.0
        %6717 = vmatpush.msra.mxu0 %v6698
        %6718 = vmatmul.f32.gmra.mxu0 %v6693
        %v6719 = vpop.f32.mrf.mxu0
        %v6720 = vadd.f32 0.0, %v6719
        %6721 = vmatmul.f32.gmra.mxu0 %v6696
        %v6722 = vpop.f32.mrf.mxu0
        %v6723 = vadd.f32 0.0, %v6722
        %6724 = vdwg.mxu0
        %6725 = vmatpush.msra.mxu0 0.0
        %6726 = vmatpush.msra.mxu0 0.0
        %6727 = vmatpush.msra.mxu0 0.0
        %6728 = vmatpush.msra.mxu0 0.0
        %6729 = vmatpush.msra.mxu0 0.0
        %6730 = vmatpush.msra.mxu0 0.0
        %6731 = vmatpush.msra.mxu0 0.0
        %6732 = vmatpush.msra.mxu0 0.0
        %6733 = vmatpush.msra.mxu0 0.0
        %6734 = vmatpush.msra.mxu0 0.0
        %6735 = vmatpush.msra.mxu0 0.0
        %6736 = vmatpush.msra.mxu0 0.0
        %6737 = vmatpush.msra.mxu0 0.0
        %6738 = vmatpush.msra.mxu0 0.0
        %6739 = vmatpush.msra.mxu0 0.0
        %6740 = vmatpush.msra.mxu0 %v6700
        %6741 = vmatmul.f32.gmra.mxu0 %v6693
        %v6742 = vpop.f32.mrf.mxu0
        %v6743 = vadd.f32 0.0, %v6742
        %6744 = vmatmul.f32.gmra.mxu0 %v6696
        %v6745 = vpop.f32.mrf.mxu0
        %v6746 = vadd.f32 0.0, %v6745
        %6747 = vdwg.mxu0
        %v6748 = vadd.f32 %v6682, %v6720
        %v6749 = vadd.f32 %v6683, %v6743
        %v6750 = vadd.f32 %v6684, %v6723
        %v6751 = vadd.f32 %v6685, %v6746
        %6752 = vrot.lane.b32.xlu0 %v5914, 100
        %v6753 = vpop.permute.xlu0 %6752
        %6754 = vrot.lane.b32.xlu0 %v6054, 100
        %v6755 = vpop.permute.xlu0 %6754
        %vm6756 = vcmask 818176
        %v6757 = vsel %vm6756, %v6753, %v6755
        %v6759 = vsel %vm6113, %v6076, 0
        %v6762 = vsel %vm6113, %v6077, 0
        %v6764 = vsel %vm6120, %v6757, 0
        %v6766 = vsel %vm6120, %v6755, 0
        %6768 = vmatpush.msra.mxu0 0.0
        %6769 = vmatpush.msra.mxu0 0.0
        %6770 = vmatpush.msra.mxu0 0.0
        %6771 = vmatpush.msra.mxu0 0.0
        %6772 = vmatpush.msra.mxu0 0.0
        %6773 = vmatpush.msra.mxu0 0.0
        %6774 = vmatpush.msra.mxu0 0.0
        %6775 = vmatpush.msra.mxu0 0.0
        %6776 = vmatpush.msra.mxu0 0.0
        %6777 = vmatpush.msra.mxu0 0.0
        %6778 = vmatpush.msra.mxu0 0.0
        %6779 = vmatpush.msra.mxu0 0.0
        %6780 = vmatpush.msra.mxu0 0.0
        %6781 = vmatpush.msra.mxu0 0.0
        %6782 = vmatpush.msra.mxu0 0.0
        %6783 = vmatpush.msra.mxu0 %v6764
        %6784 = vmatmul.f32.gmra.mxu0 %v6759
        %v6785 = vpop.f32.mrf.mxu0
        %v6786 = vadd.f32 0.0, %v6785
        %6787 = vmatmul.f32.gmra.mxu0 %v6762
        %v6788 = vpop.f32.mrf.mxu0
        %v6789 = vadd.f32 0.0, %v6788
        %6790 = vdwg.mxu0
        %6791 = vmatpush.msra.mxu0 0.0
        %6792 = vmatpush.msra.mxu0 0.0
        %6793 = vmatpush.msra.mxu0 0.0
        %6794 = vmatpush.msra.mxu0 0.0
        %6795 = vmatpush.msra.mxu0 0.0
        %6796 = vmatpush.msra.mxu0 0.0
        %6797 = vmatpush.msra.mxu0 0.0
        %6798 = vmatpush.msra.mxu0 0.0
        %6799 = vmatpush.msra.mxu0 0.0
        %6800 = vmatpush.msra.mxu0 0.0
        %6801 = vmatpush.msra.mxu0 0.0
        %6802 = vmatpush.msra.mxu0 0.0
        %6803 = vmatpush.msra.mxu0 0.0
        %6804 = vmatpush.msra.mxu0 0.0
        %6805 = vmatpush.msra.mxu0 0.0
        %6806 = vmatpush.msra.mxu0 %v6766
        %6807 = vmatmul.f32.gmra.mxu0 %v6759
        %v6808 = vpop.f32.mrf.mxu0
        %v6809 = vadd.f32 0.0, %v6808
        %6810 = vmatmul.f32.gmra.mxu0 %v6762
        %v6811 = vpop.f32.mrf.mxu0
        %v6812 = vadd.f32 0.0, %v6811
        %6813 = vdwg.mxu0
        %v6814 = vadd.f32 %v6748, %v6786
        %v6815 = vadd.f32 %v6749, %v6809
        %v6816 = vadd.f32 %v6750, %v6789
        %v6817 = vadd.f32 %v6751, %v6812
        %6818 = vrot.lane.b32.xlu0 %v5914, 99
        %v6819 = vpop.permute.xlu0 %6818
        %6820 = vrot.lane.b32.xlu0 %v6054, 99
        %v6821 = vpop.permute.xlu0 %6820
        %vm6822 = vcmask 809984
        %v6823 = vsel %vm6822, %v6819, %v6821
        %v6825 = vsel %vm6113, %v6078, 0
        %v6828 = vsel %vm6113, %v6079, 0
        %v6830 = vsel %vm6120, %v6823, 0
        %v6832 = vsel %vm6120, %v6821, 0
        %6834 = vmatpush.msra.mxu0 0.0
        %6835 = vmatpush.msra.mxu0 0.0
        %6836 = vmatpush.msra.mxu0 0.0
        %6837 = vmatpush.msra.mxu0 0.0
        %6838 = vmatpush.msra.mxu0 0.0
        %6839 = vmatpush.msra.mxu0 0.0
        %6840 = vmatpush.msra.mxu0 0.0
        %6841 = vmatpush.msra.mxu0 0.0
        %6842 = vmatpush.msra.mxu0 0.0
        %6843 = vmatpush.msra.mxu0 0.0
        %6844 = vmatpush.msra.mxu0 0.0
        %6845 = vmatpush.msra.mxu0 0.0
        %6846 = vmatpush.msra.mxu0 0.0
        %6847 = vmatpush.msra.mxu0 0.0
        %6848 = vmatpush.msra.mxu0 0.0
        %6849 = vmatpush.msra.mxu0 %v6830
        %6850 = vmatmul.f32.gmra.mxu0 %v6825
        %v6851 = vpop.f32.mrf.mxu0
        %v6852 = vadd.f32 0.0, %v6851
        %6853 = vmatmul.f32.gmra.mxu0 %v6828
        %v6854 = vpop.f32.mrf.mxu0
        %v6855 = vadd.f32 0.0, %v6854
        %6856 = vdwg.mxu0
        %6857 = vmatpush.msra.mxu0 0.0
        %6858 = vmatpush.msra.mxu0 0.0
        %6859 = vmatpush.msra.mxu0 0.0
        %6860 = vmatpush.msra.mxu0 0.0
        %6861 = vmatpush.msra.mxu0 0.0
        %6862 = vmatpush.msra.mxu0 0.0
        %6863 = vmatpush.msra.mxu0 0.0
        %6864 = vmatpush.msra.mxu0 0.0
        %6865 = vmatpush.msra.mxu0 0.0
        %6866 = vmatpush.msra.mxu0 0.0
        %6867 = vmatpush.msra.mxu0 0.0
        %6868 = vmatpush.msra.mxu0 0.0
        %6869 = vmatpush.msra.mxu0 0.0
        %6870 = vmatpush.msra.mxu0 0.0
        %6871 = vmatpush.msra.mxu0 0.0
        %6872 = vmatpush.msra.mxu0 %v6832
        %6873 = vmatmul.f32.gmra.mxu0 %v6825
        %v6874 = vpop.f32.mrf.mxu0
        %v6875 = vadd.f32 0.0, %v6874
        %6876 = vmatmul.f32.gmra.mxu0 %v6828
        %v6877 = vpop.f32.mrf.mxu0
        %v6878 = vadd.f32 0.0, %v6877
        %6879 = vdwg.mxu0
        %v6880 = vadd.f32 %v6814, %v6852
        %v6881 = vadd.f32 %v6815, %v6875
        %v6882 = vadd.f32 %v6816, %v6855
        %v6883 = vadd.f32 %v6817, %v6878
        %6884 = vrot.lane.b32.xlu0 %v5914, 98
        %v6885 = vpop.permute.xlu0 %6884
        %6886 = vrot.lane.b32.xlu0 %v6054, 98
        %v6887 = vpop.permute.xlu0 %6886
        %vm6888 = vcmask 801792
        %v6889 = vsel %vm6888, %v6885, %v6887
        %v6891 = vsel %vm6113, %v6080, 0
        %v6894 = vsel %vm6113, %v6081, 0
        %v6896 = vsel %vm6120, %v6889, 0
        %v6898 = vsel %vm6120, %v6887, 0
        %6900 = vmatpush.msra.mxu0 0.0
        %6901 = vmatpush.msra.mxu0 0.0
        %6902 = vmatpush.msra.mxu0 0.0
        %6903 = vmatpush.msra.mxu0 0.0
        %6904 = vmatpush.msra.mxu0 0.0
        %6905 = vmatpush.msra.mxu0 0.0
        %6906 = vmatpush.msra.mxu0 0.0
        %6907 = vmatpush.msra.mxu0 0.0
        %6908 = vmatpush.msra.mxu0 0.0
        %6909 = vmatpush.msra.mxu0 0.0
        %6910 = vmatpush.msra.mxu0 0.0
        %6911 = vmatpush.msra.mxu0 0.0
        %6912 = vmatpush.msra.mxu0 0.0
        %6913 = vmatpush.msra.mxu0 0.0
        %6914 = vmatpush.msra.mxu0 0.0
        %6915 = vmatpush.msra.mxu0 %v6896
        %6916 = vmatmul.f32.gmra.mxu0 %v6891
        %v6917 = vpop.f32.mrf.mxu0
        %v6918 = vadd.f32 0.0, %v6917
        %6919 = vmatmul.f32.gmra.mxu0 %v6894
        %v6920 = vpop.f32.mrf.mxu0
        %v6921 = vadd.f32 0.0, %v6920
        %6922 = vdwg.mxu0
        %6923 = vmatpush.msra.mxu0 0.0
        %6924 = vmatpush.msra.mxu0 0.0
        %6925 = vmatpush.msra.mxu0 0.0
        %6926 = vmatpush.msra.mxu0 0.0
        %6927 = vmatpush.msra.mxu0 0.0
        %6928 = vmatpush.msra.mxu0 0.0
        %6929 = vmatpush.msra.mxu0 0.0
        %6930 = vmatpush.msra.mxu0 0.0
        %6931 = vmatpush.msra.mxu0 0.0
        %6932 = vmatpush.msra.mxu0 0.0
        %6933 = vmatpush.msra.mxu0 0.0
        %6934 = vmatpush.msra.mxu0 0.0
        %6935 = vmatpush.msra.mxu0 0.0
        %6936 = vmatpush.msra.mxu0 0.0
        %6937 = vmatpush.msra.mxu0 0.0
        %6938 = vmatpush.msra.mxu0 %v6898
        %6939 = vmatmul.f32.gmra.mxu0 %v6891
        %v6940 = vpop.f32.mrf.mxu0
        %v6941 = vadd.f32 0.0, %v6940
        %6942 = vmatmul.f32.gmra.mxu0 %v6894
        %v6943 = vpop.f32.mrf.mxu0
        %v6944 = vadd.f32 0.0, %v6943
        %6945 = vdwg.mxu0
        %v6946 = vadd.f32 %v6880, %v6918
        %v6947 = vadd.f32 %v6881, %v6941
        %v6948 = vadd.f32 %v6882, %v6921
        %v6949 = vadd.f32 %v6883, %v6944
        %6950 = vrot.lane.b32.xlu0 %v5914, 97
        %v6951 = vpop.permute.xlu0 %6950
        %6952 = vrot.lane.b32.xlu0 %v6054, 97
        %v6953 = vpop.permute.xlu0 %6952
        %vm6954 = vcmask 793600
        %v6955 = vsel %vm6954, %v6951, %v6953
        %v6957 = vsel %vm6113, %v6082, 0
        %v6960 = vsel %vm6113, %v6083, 0
        %v6962 = vsel %vm6120, %v6955, 0
        %v6964 = vsel %vm6120, %v6953, 0
        %6966 = vmatpush.msra.mxu0 0.0
        %6967 = vmatpush.msra.mxu0 0.0
        %6968 = vmatpush.msra.mxu0 0.0
        %6969 = vmatpush.msra.mxu0 0.0
        %6970 = vmatpush.msra.mxu0 0.0
        %6971 = vmatpush.msra.mxu0 0.0
        %6972 = vmatpush.msra.mxu0 0.0
        %6973 = vmatpush.msra.mxu0 0.0
        %6974 = vmatpush.msra.mxu0 0.0
        %6975 = vmatpush.msra.mxu0 0.0
        %6976 = vmatpush.msra.mxu0 0.0
        %6977 = vmatpush.msra.mxu0 0.0
        %6978 = vmatpush.msra.mxu0 0.0
        %6979 = vmatpush.msra.mxu0 0.0
        %6980 = vmatpush.msra.mxu0 0.0
        %6981 = vmatpush.msra.mxu0 %v6962
        %6982 = vmatmul.f32.gmra.mxu0 %v6957
        %v6983 = vpop.f32.mrf.mxu0
        %v6984 = vadd.f32 0.0, %v6983
        %6985 = vmatmul.f32.gmra.mxu0 %v6960
        %v6986 = vpop.f32.mrf.mxu0
        %v6987 = vadd.f32 0.0, %v6986
        %6988 = vdwg.mxu0
        %6989 = vmatpush.msra.mxu0 0.0
        %6990 = vmatpush.msra.mxu0 0.0
        %6991 = vmatpush.msra.mxu0 0.0
        %6992 = vmatpush.msra.mxu0 0.0
        %6993 = vmatpush.msra.mxu0 0.0
        %6994 = vmatpush.msra.mxu0 0.0
        %6995 = vmatpush.msra.mxu0 0.0
        %6996 = vmatpush.msra.mxu0 0.0
        %6997 = vmatpush.msra.mxu0 0.0
        %6998 = vmatpush.msra.mxu0 0.0
        %6999 = vmatpush.msra.mxu0 0.0
        %7000 = vmatpush.msra.mxu0 0.0
        %7001 = vmatpush.msra.mxu0 0.0
        %7002 = vmatpush.msra.mxu0 0.0
        %7003 = vmatpush.msra.mxu0 0.0
        %7004 = vmatpush.msra.mxu0 %v6964
        %7005 = vmatmul.f32.gmra.mxu0 %v6957
        %v7006 = vpop.f32.mrf.mxu0
        %v7007 = vadd.f32 0.0, %v7006
        %7008 = vmatmul.f32.gmra.mxu0 %v6960
        %v7009 = vpop.f32.mrf.mxu0
        %v7010 = vadd.f32 0.0, %v7009
        %7011 = vdwg.mxu0
        %v7012 = vadd.f32 %v6946, %v6984
        %v7013 = vadd.f32 %v6947, %v7007
        %v7014 = vadd.f32 %v6948, %v6987
        %v7015 = vadd.f32 %v6949, %v7010
        %7016 = vrot.lane.b32.xlu0 %v5914, 96
        %v7017 = vpop.permute.xlu0 %7016
        %7018 = vrot.lane.b32.xlu0 %v6054, 96
        %v7019 = vpop.permute.xlu0 %7018
        %v7020 = vsel %vm1464, %v7017, %v7019
        %v7022 = vsel %vm6113, %v6084, 0
        %v7025 = vsel %vm6113, %v6085, 0
        %v7027 = vsel %vm6120, %v7020, 0
        %v7029 = vsel %vm6120, %v7019, 0
        %7031 = vmatpush.msra.mxu0 0.0
        %7032 = vmatpush.msra.mxu0 0.0
        %7033 = vmatpush.msra.mxu0 0.0
        %7034 = vmatpush.msra.mxu0 0.0
        %7035 = vmatpush.msra.mxu0 0.0
        %7036 = vmatpush.msra.mxu0 0.0
        %7037 = vmatpush.msra.mxu0 0.0
        %7038 = vmatpush.msra.mxu0 0.0
        %7039 = vmatpush.msra.mxu0 0.0
        %7040 = vmatpush.msra.mxu0 0.0
        %7041 = vmatpush.msra.mxu0 0.0
        %7042 = vmatpush.msra.mxu0 0.0
        %7043 = vmatpush.msra.mxu0 0.0
        %7044 = vmatpush.msra.mxu0 0.0
        %7045 = vmatpush.msra.mxu0 0.0
        %7046 = vmatpush.msra.mxu0 %v7027
        %7047 = vmatmul.f32.gmra.mxu0 %v7022
        %v7048 = vpop.f32.mrf.mxu0
        %v7049 = vadd.f32 0.0, %v7048
        %7050 = vmatmul.f32.gmra.mxu0 %v7025
        %v7051 = vpop.f32.mrf.mxu0
        %v7052 = vadd.f32 0.0, %v7051
        %7053 = vdwg.mxu0
        %7054 = vmatpush.msra.mxu0 0.0
        %7055 = vmatpush.msra.mxu0 0.0
        %7056 = vmatpush.msra.mxu0 0.0
        %7057 = vmatpush.msra.mxu0 0.0
        %7058 = vmatpush.msra.mxu0 0.0
        %7059 = vmatpush.msra.mxu0 0.0
        %7060 = vmatpush.msra.mxu0 0.0
        %7061 = vmatpush.msra.mxu0 0.0
        %7062 = vmatpush.msra.mxu0 0.0
        %7063 = vmatpush.msra.mxu0 0.0
        %7064 = vmatpush.msra.mxu0 0.0
        %7065 = vmatpush.msra.mxu0 0.0
        %7066 = vmatpush.msra.mxu0 0.0
        %7067 = vmatpush.msra.mxu0 0.0
        %7068 = vmatpush.msra.mxu0 0.0
        %7069 = vmatpush.msra.mxu0 %v7029
        %7070 = vmatmul.f32.gmra.mxu0 %v7022
        %v7071 = vpop.f32.mrf.mxu0
        %v7072 = vadd.f32 0.0, %v7071
        %7073 = vmatmul.f32.gmra.mxu0 %v7025
        %v7074 = vpop.f32.mrf.mxu0
        %v7075 = vadd.f32 0.0, %v7074
        %7076 = vdwg.mxu0
        %v7077 = vadd.f32 %v7012, %v7049
        %v7078 = vadd.f32 %v7013, %v7072
        %v7079 = vadd.f32 %v7014, %v7052
        %v7080 = vadd.f32 %v7015, %v7075
        %7081 = vrot.lane.b32.xlu0 %v5914, 86
        %v7082 = vpop.permute.xlu0 %7081
        %7083 = vrot.lane.b32.xlu0 %v6054, 86
        %v7084 = vpop.permute.xlu0 %7083
        %vm7085 = vcmask 703488
        %v7086 = vsel %vm7085, %v7082, %v7084
        %v7088 = vsel %vm6113, %v6086, 0
        %v7091 = vsel %vm6113, %v6087, 0
        %v7093 = vsel %vm6120, %v7086, 0
        %v7095 = vsel %vm6120, %v7084, 0
        %7097 = vmatpush.msra.mxu0 0.0
        %7098 = vmatpush.msra.mxu0 0.0
        %7099 = vmatpush.msra.mxu0 0.0
        %7100 = vmatpush.msra.mxu0 0.0
        %7101 = vmatpush.msra.mxu0 0.0
        %7102 = vmatpush.msra.mxu0 0.0
        %7103 = vmatpush.msra.mxu0 0.0
        %7104 = vmatpush.msra.mxu0 0.0
        %7105 = vmatpush.msra.mxu0 0.0
        %7106 = vmatpush.msra.mxu0 0.0
        %7107 = vmatpush.msra.mxu0 0.0
        %7108 = vmatpush.msra.mxu0 0.0
        %7109 = vmatpush.msra.mxu0 0.0
        %7110 = vmatpush.msra.mxu0 0.0
        %7111 = vmatpush.msra.mxu0 0.0
        %7112 = vmatpush.msra.mxu0 %v7093
        %7113 = vmatmul.f32.gmra.mxu0 %v7088
        %v7114 = vpop.f32.mrf.mxu0
        %v7115 = vadd.f32 0.0, %v7114
        %7116 = vmatmul.f32.gmra.mxu0 %v7091
        %v7117 = vpop.f32.mrf.mxu0
        %v7118 = vadd.f32 0.0, %v7117
        %7119 = vdwg.mxu0
        %7120 = vmatpush.msra.mxu0 0.0
        %7121 = vmatpush.msra.mxu0 0.0
        %7122 = vmatpush.msra.mxu0 0.0
        %7123 = vmatpush.msra.mxu0 0.0
        %7124 = vmatpush.msra.mxu0 0.0
        %7125 = vmatpush.msra.mxu0 0.0
        %7126 = vmatpush.msra.mxu0 0.0
        %7127 = vmatpush.msra.mxu0 0.0
        %7128 = vmatpush.msra.mxu0 0.0
        %7129 = vmatpush.msra.mxu0 0.0
        %7130 = vmatpush.msra.mxu0 0.0
        %7131 = vmatpush.msra.mxu0 0.0
        %7132 = vmatpush.msra.mxu0 0.0
        %7133 = vmatpush.msra.mxu0 0.0
        %7134 = vmatpush.msra.mxu0 0.0
        %7135 = vmatpush.msra.mxu0 %v7095
        %7136 = vmatmul.f32.gmra.mxu0 %v7088
        %v7137 = vpop.f32.mrf.mxu0
        %v7138 = vadd.f32 0.0, %v7137
        %7139 = vmatmul.f32.gmra.mxu0 %v7091
        %v7140 = vpop.f32.mrf.mxu0
        %v7141 = vadd.f32 0.0, %v7140
        %7142 = vdwg.mxu0
        %v7143 = vadd.f32 %v7077, %v7115
        %v7144 = vadd.f32 %v7078, %v7138
        %v7145 = vadd.f32 %v7079, %v7118
        %v7146 = vadd.f32 %v7080, %v7141
        %7147 = vrot.lane.b32.xlu0 %v5914, 85
        %v7148 = vpop.permute.xlu0 %7147
        %7149 = vrot.lane.b32.xlu0 %v6054, 85
        %v7150 = vpop.permute.xlu0 %7149
        %vm7151 = vcmask 695296
        %v7152 = vsel %vm7151, %v7148, %v7150
        %v7154 = vsel %vm6113, %v6088, 0
        %v7157 = vsel %vm6113, %v6089, 0
        %v7159 = vsel %vm6120, %v7152, 0
        %v7161 = vsel %vm6120, %v7150, 0
        %7163 = vmatpush.msra.mxu0 0.0
        %7164 = vmatpush.msra.mxu0 0.0
        %7165 = vmatpush.msra.mxu0 0.0
        %7166 = vmatpush.msra.mxu0 0.0
        %7167 = vmatpush.msra.mxu0 0.0
        %7168 = vmatpush.msra.mxu0 0.0
        %7169 = vmatpush.msra.mxu0 0.0
        %7170 = vmatpush.msra.mxu0 0.0
        %7171 = vmatpush.msra.mxu0 0.0
        %7172 = vmatpush.msra.mxu0 0.0
        %7173 = vmatpush.msra.mxu0 0.0
        %7174 = vmatpush.msra.mxu0 0.0
        %7175 = vmatpush.msra.mxu0 0.0
        %7176 = vmatpush.msra.mxu0 0.0
        %7177 = vmatpush.msra.mxu0 0.0
        %7178 = vmatpush.msra.mxu0 %v7159
        %7179 = vmatmul.f32.gmra.mxu0 %v7154
        %v7180 = vpop.f32.mrf.mxu0
        %v7181 = vadd.f32 0.0, %v7180
        %7182 = vmatmul.f32.gmra.mxu0 %v7157
        %v7183 = vpop.f32.mrf.mxu0
        %v7184 = vadd.f32 0.0, %v7183
        %7185 = vdwg.mxu0
        %7186 = vmatpush.msra.mxu0 0.0
        %7187 = vmatpush.msra.mxu0 0.0
        %7188 = vmatpush.msra.mxu0 0.0
        %7189 = vmatpush.msra.mxu0 0.0
        %7190 = vmatpush.msra.mxu0 0.0
        %7191 = vmatpush.msra.mxu0 0.0
        %7192 = vmatpush.msra.mxu0 0.0
        %7193 = vmatpush.msra.mxu0 0.0
        %7194 = vmatpush.msra.mxu0 0.0
        %7195 = vmatpush.msra.mxu0 0.0
        %7196 = vmatpush.msra.mxu0 0.0
        %7197 = vmatpush.msra.mxu0 0.0
        %7198 = vmatpush.msra.mxu0 0.0
        %7199 = vmatpush.msra.mxu0 0.0
        %7200 = vmatpush.msra.mxu0 0.0
        %7201 = vmatpush.msra.mxu0 %v7161
        %7202 = vmatmul.f32.gmra.mxu0 %v7154
        %v7203 = vpop.f32.mrf.mxu0
        %v7204 = vadd.f32 0.0, %v7203
        %7205 = vmatmul.f32.gmra.mxu0 %v7157
        %v7206 = vpop.f32.mrf.mxu0
        %v7207 = vadd.f32 0.0, %v7206
        %7208 = vdwg.mxu0
        %v7209 = vadd.f32 %v7143, %v7181
        %v7210 = vadd.f32 %v7144, %v7204
        %v7211 = vadd.f32 %v7145, %v7184
        %v7212 = vadd.f32 %v7146, %v7207
        %7213 = vrot.lane.b32.xlu0 %v5914, 84
        %v7214 = vpop.permute.xlu0 %7213
        %7215 = vrot.lane.b32.xlu0 %v6054, 84
        %v7216 = vpop.permute.xlu0 %7215
        %vm7217 = vcmask 687104
        %v7218 = vsel %vm7217, %v7214, %v7216
        %v7220 = vsel %vm6113, %v6090, 0
        %v7223 = vsel %vm6113, %v6091, 0
        %v7225 = vsel %vm6120, %v7218, 0
        %v7227 = vsel %vm6120, %v7216, 0
        %7229 = vmatpush.msra.mxu0 0.0
        %7230 = vmatpush.msra.mxu0 0.0
        %7231 = vmatpush.msra.mxu0 0.0
        %7232 = vmatpush.msra.mxu0 0.0
        %7233 = vmatpush.msra.mxu0 0.0
        %7234 = vmatpush.msra.mxu0 0.0
        %7235 = vmatpush.msra.mxu0 0.0
        %7236 = vmatpush.msra.mxu0 0.0
        %7237 = vmatpush.msra.mxu0 0.0
        %7238 = vmatpush.msra.mxu0 0.0
        %7239 = vmatpush.msra.mxu0 0.0
        %7240 = vmatpush.msra.mxu0 0.0
        %7241 = vmatpush.msra.mxu0 0.0
        %7242 = vmatpush.msra.mxu0 0.0
        %7243 = vmatpush.msra.mxu0 0.0
        %7244 = vmatpush.msra.mxu0 %v7225
        %7245 = vmatmul.f32.gmra.mxu0 %v7220
        %v7246 = vpop.f32.mrf.mxu0
        %v7247 = vadd.f32 0.0, %v7246
        %7248 = vmatmul.f32.gmra.mxu0 %v7223
        %v7249 = vpop.f32.mrf.mxu0
        %v7250 = vadd.f32 0.0, %v7249
        %7251 = vdwg.mxu0
        %7252 = vmatpush.msra.mxu0 0.0
        %7253 = vmatpush.msra.mxu0 0.0
        %7254 = vmatpush.msra.mxu0 0.0
        %7255 = vmatpush.msra.mxu0 0.0
        %7256 = vmatpush.msra.mxu0 0.0
        %7257 = vmatpush.msra.mxu0 0.0
        %7258 = vmatpush.msra.mxu0 0.0
        %7259 = vmatpush.msra.mxu0 0.0
        %7260 = vmatpush.msra.mxu0 0.0
        %7261 = vmatpush.msra.mxu0 0.0
        %7262 = vmatpush.msra.mxu0 0.0
        %7263 = vmatpush.msra.mxu0 0.0
        %7264 = vmatpush.msra.mxu0 0.0
        %7265 = vmatpush.msra.mxu0 0.0
        %7266 = vmatpush.msra.mxu0 0.0
        %7267 = vmatpush.msra.mxu0 %v7227
        %7268 = vmatmul.f32.gmra.mxu0 %v7220
        %v7269 = vpop.f32.mrf.mxu0
        %v7270 = vadd.f32 0.0, %v7269
        %7271 = vmatmul.f32.gmra.mxu0 %v7223
        %v7272 = vpop.f32.mrf.mxu0
        %v7273 = vadd.f32 0.0, %v7272
        %7274 = vdwg.mxu0
        %v7275 = vadd.f32 %v7209, %v7247
        %v7276 = vadd.f32 %v7210, %v7270
        %v7277 = vadd.f32 %v7211, %v7250
        %v7278 = vadd.f32 %v7212, %v7273
        %7279 = vrot.lane.b32.xlu0 %v5914, 83
        %v7280 = vpop.permute.xlu0 %7279
        %7281 = vrot.lane.b32.xlu0 %v6054, 83
        %v7282 = vpop.permute.xlu0 %7281
        %vm7283 = vcmask 678912
        %v7284 = vsel %vm7283, %v7280, %v7282
        %v7286 = vsel %vm6113, %v6092, 0
        %v7289 = vsel %vm6113, %v6093, 0
        %v7291 = vsel %vm6120, %v7284, 0
        %v7293 = vsel %vm6120, %v7282, 0
        %7295 = vmatpush.msra.mxu0 0.0
        %7296 = vmatpush.msra.mxu0 0.0
        %7297 = vmatpush.msra.mxu0 0.0
        %7298 = vmatpush.msra.mxu0 0.0
        %7299 = vmatpush.msra.mxu0 0.0
        %7300 = vmatpush.msra.mxu0 0.0
        %7301 = vmatpush.msra.mxu0 0.0
        %7302 = vmatpush.msra.mxu0 0.0
        %7303 = vmatpush.msra.mxu0 0.0
        %7304 = vmatpush.msra.mxu0 0.0
        %7305 = vmatpush.msra.mxu0 0.0
        %7306 = vmatpush.msra.mxu0 0.0
        %7307 = vmatpush.msra.mxu0 0.0
        %7308 = vmatpush.msra.mxu0 0.0
        %7309 = vmatpush.msra.mxu0 0.0
        %7310 = vmatpush.msra.mxu0 %v7291
        %7311 = vmatmul.f32.gmra.mxu0 %v7286
        %v7312 = vpop.f32.mrf.mxu0
        %v7313 = vadd.f32 0.0, %v7312
        %7314 = vmatmul.f32.gmra.mxu0 %v7289
        %v7315 = vpop.f32.mrf.mxu0
        %v7316 = vadd.f32 0.0, %v7315
        %7317 = vdwg.mxu0
        %7318 = vmatpush.msra.mxu0 0.0
        %7319 = vmatpush.msra.mxu0 0.0
        %7320 = vmatpush.msra.mxu0 0.0
        %7321 = vmatpush.msra.mxu0 0.0
        %7322 = vmatpush.msra.mxu0 0.0
        %7323 = vmatpush.msra.mxu0 0.0
        %7324 = vmatpush.msra.mxu0 0.0
        %7325 = vmatpush.msra.mxu0 0.0
        %7326 = vmatpush.msra.mxu0 0.0
        %7327 = vmatpush.msra.mxu0 0.0
        %7328 = vmatpush.msra.mxu0 0.0
        %7329 = vmatpush.msra.mxu0 0.0
        %7330 = vmatpush.msra.mxu0 0.0
        %7331 = vmatpush.msra.mxu0 0.0
        %7332 = vmatpush.msra.mxu0 0.0
        %7333 = vmatpush.msra.mxu0 %v7293
        %7334 = vmatmul.f32.gmra.mxu0 %v7286
        %v7335 = vpop.f32.mrf.mxu0
        %v7336 = vadd.f32 0.0, %v7335
        %7337 = vmatmul.f32.gmra.mxu0 %v7289
        %v7338 = vpop.f32.mrf.mxu0
        %v7339 = vadd.f32 0.0, %v7338
        %7340 = vdwg.mxu0
        %v7341 = vadd.f32 %v7275, %v7313
        %v7342 = vadd.f32 %v7276, %v7336
        %v7343 = vadd.f32 %v7277, %v7316
        %v7344 = vadd.f32 %v7278, %v7339
        %7345 = vrot.lane.b32.xlu0 %v5914, 82
        %v7346 = vpop.permute.xlu0 %7345
        %7347 = vrot.lane.b32.xlu0 %v6054, 82
        %v7348 = vpop.permute.xlu0 %7347
        %vm7349 = vcmask 670720
        %v7350 = vsel %vm7349, %v7346, %v7348
        %v7352 = vsel %vm6113, %v6094, 0
        %v7355 = vsel %vm6113, %v6095, 0
        %v7357 = vsel %vm6120, %v7350, 0
        %v7359 = vsel %vm6120, %v7348, 0
        %7361 = vmatpush.msra.mxu0 0.0
        %7362 = vmatpush.msra.mxu0 0.0
        %7363 = vmatpush.msra.mxu0 0.0
        %7364 = vmatpush.msra.mxu0 0.0
        %7365 = vmatpush.msra.mxu0 0.0
        %7366 = vmatpush.msra.mxu0 0.0
        %7367 = vmatpush.msra.mxu0 0.0
        %7368 = vmatpush.msra.mxu0 0.0
        %7369 = vmatpush.msra.mxu0 0.0
        %7370 = vmatpush.msra.mxu0 0.0
        %7371 = vmatpush.msra.mxu0 0.0
        %7372 = vmatpush.msra.mxu0 0.0
        %7373 = vmatpush.msra.mxu0 0.0
        %7374 = vmatpush.msra.mxu0 0.0
        %7375 = vmatpush.msra.mxu0 0.0
        %7376 = vmatpush.msra.mxu0 %v7357
        %7377 = vmatmul.f32.gmra.mxu0 %v7352
        %v7378 = vpop.f32.mrf.mxu0
        %v7379 = vadd.f32 0.0, %v7378
        %7380 = vmatmul.f32.gmra.mxu0 %v7355
        %v7381 = vpop.f32.mrf.mxu0
        %v7382 = vadd.f32 0.0, %v7381
        %7383 = vdwg.mxu0
        %7384 = vmatpush.msra.mxu0 0.0
        %7385 = vmatpush.msra.mxu0 0.0
        %7386 = vmatpush.msra.mxu0 0.0
        %7387 = vmatpush.msra.mxu0 0.0
        %7388 = vmatpush.msra.mxu0 0.0
        %7389 = vmatpush.msra.mxu0 0.0
        %7390 = vmatpush.msra.mxu0 0.0
        %7391 = vmatpush.msra.mxu0 0.0
        %7392 = vmatpush.msra.mxu0 0.0
        %7393 = vmatpush.msra.mxu0 0.0
        %7394 = vmatpush.msra.mxu0 0.0
        %7395 = vmatpush.msra.mxu0 0.0
        %7396 = vmatpush.msra.mxu0 0.0
        %7397 = vmatpush.msra.mxu0 0.0
        %7398 = vmatpush.msra.mxu0 0.0
        %7399 = vmatpush.msra.mxu0 %v7359
        %7400 = vmatmul.f32.gmra.mxu0 %v7352
        %v7401 = vpop.f32.mrf.mxu0
        %v7402 = vadd.f32 0.0, %v7401
        %7403 = vmatmul.f32.gmra.mxu0 %v7355
        %v7404 = vpop.f32.mrf.mxu0
        %v7405 = vadd.f32 0.0, %v7404
        %7406 = vdwg.mxu0
        %v7407 = vadd.f32 %v7341, %v7379
        %v7408 = vadd.f32 %v7342, %v7402
        %v7409 = vadd.f32 %v7343, %v7382
        %v7410 = vadd.f32 %v7344, %v7405
        %7411 = vrot.lane.b32.xlu0 %v5914, 72
        %v7412 = vpop.permute.xlu0 %7411
        %7413 = vrot.lane.b32.xlu0 %v6054, 72
        %v7414 = vpop.permute.xlu0 %7413
        %vm7415 = vcmask 588800
        %v7416 = vsel %vm7415, %v7412, %v7414
        %v7418 = vsel %vm6113, %v6096, 0
        %v7421 = vsel %vm6113, %v6097, 0
        %v7423 = vsel %vm6120, %v7416, 0
        %v7425 = vsel %vm6120, %v7414, 0
        %7427 = vmatpush.msra.mxu0 0.0
        %7428 = vmatpush.msra.mxu0 0.0
        %7429 = vmatpush.msra.mxu0 0.0
        %7430 = vmatpush.msra.mxu0 0.0
        %7431 = vmatpush.msra.mxu0 0.0
        %7432 = vmatpush.msra.mxu0 0.0
        %7433 = vmatpush.msra.mxu0 0.0
        %7434 = vmatpush.msra.mxu0 0.0
        %7435 = vmatpush.msra.mxu0 0.0
        %7436 = vmatpush.msra.mxu0 0.0
        %7437 = vmatpush.msra.mxu0 0.0
        %7438 = vmatpush.msra.mxu0 0.0
        %7439 = vmatpush.msra.mxu0 0.0
        %7440 = vmatpush.msra.mxu0 0.0
        %7441 = vmatpush.msra.mxu0 0.0
        %7442 = vmatpush.msra.mxu0 %v7423
        %7443 = vmatmul.f32.gmra.mxu0 %v7418
        %v7444 = vpop.f32.mrf.mxu0
        %v7445 = vadd.f32 0.0, %v7444
        %7446 = vmatmul.f32.gmra.mxu0 %v7421
        %v7447 = vpop.f32.mrf.mxu0
        %v7448 = vadd.f32 0.0, %v7447
        %7449 = vdwg.mxu0
        %7450 = vmatpush.msra.mxu0 0.0
        %7451 = vmatpush.msra.mxu0 0.0
        %7452 = vmatpush.msra.mxu0 0.0
        %7453 = vmatpush.msra.mxu0 0.0
        %7454 = vmatpush.msra.mxu0 0.0
        %7455 = vmatpush.msra.mxu0 0.0
        %7456 = vmatpush.msra.mxu0 0.0
        %7457 = vmatpush.msra.mxu0 0.0
        %7458 = vmatpush.msra.mxu0 0.0
        %7459 = vmatpush.msra.mxu0 0.0
        %7460 = vmatpush.msra.mxu0 0.0
        %7461 = vmatpush.msra.mxu0 0.0
        %7462 = vmatpush.msra.mxu0 0.0
        %7463 = vmatpush.msra.mxu0 0.0
        %7464 = vmatpush.msra.mxu0 0.0
        %7465 = vmatpush.msra.mxu0 %v7425
        %7466 = vmatmul.f32.gmra.mxu0 %v7418
        %v7467 = vpop.f32.mrf.mxu0
        %v7468 = vadd.f32 0.0, %v7467
        %7469 = vmatmul.f32.gmra.mxu0 %v7421
        %v7470 = vpop.f32.mrf.mxu0
        %v7471 = vadd.f32 0.0, %v7470
        %7472 = vdwg.mxu0
        %v7473 = vadd.f32 %v7407, %v7445
        %v7474 = vadd.f32 %v7408, %v7468
        %v7475 = vadd.f32 %v7409, %v7448
        %v7476 = vadd.f32 %v7410, %v7471
        %7477 = vrot.lane.b32.xlu0 %v5914, 71
        %v7478 = vpop.permute.xlu0 %7477
        %7479 = vrot.lane.b32.xlu0 %v6054, 71
        %v7480 = vpop.permute.xlu0 %7479
        %vm7481 = vcmask 580608
        %v7482 = vsel %vm7481, %v7478, %v7480
        %v7484 = vsel %vm6113, %v6098, 0
        %v7487 = vsel %vm6113, %v6099, 0
        %v7489 = vsel %vm6120, %v7482, 0
        %v7491 = vsel %vm6120, %v7480, 0
        %7493 = vmatpush.msra.mxu0 0.0
        %7494 = vmatpush.msra.mxu0 0.0
        %7495 = vmatpush.msra.mxu0 0.0
        %7496 = vmatpush.msra.mxu0 0.0
        %7497 = vmatpush.msra.mxu0 0.0
        %7498 = vmatpush.msra.mxu0 0.0
        %7499 = vmatpush.msra.mxu0 0.0
        %7500 = vmatpush.msra.mxu0 0.0
        %7501 = vmatpush.msra.mxu0 0.0
        %7502 = vmatpush.msra.mxu0 0.0
        %7503 = vmatpush.msra.mxu0 0.0
        %7504 = vmatpush.msra.mxu0 0.0
        %7505 = vmatpush.msra.mxu0 0.0
        %7506 = vmatpush.msra.mxu0 0.0
        %7507 = vmatpush.msra.mxu0 0.0
        %7508 = vmatpush.msra.mxu0 %v7489
        %7509 = vmatmul.f32.gmra.mxu0 %v7484
        %v7510 = vpop.f32.mrf.mxu0
        %v7511 = vadd.f32 0.0, %v7510
        %7512 = vmatmul.f32.gmra.mxu0 %v7487
        %v7513 = vpop.f32.mrf.mxu0
        %v7514 = vadd.f32 0.0, %v7513
        %7515 = vdwg.mxu0
        %7516 = vmatpush.msra.mxu0 0.0
        %7517 = vmatpush.msra.mxu0 0.0
        %7518 = vmatpush.msra.mxu0 0.0
        %7519 = vmatpush.msra.mxu0 0.0
        %7520 = vmatpush.msra.mxu0 0.0
        %7521 = vmatpush.msra.mxu0 0.0
        %7522 = vmatpush.msra.mxu0 0.0
        %7523 = vmatpush.msra.mxu0 0.0
        %7524 = vmatpush.msra.mxu0 0.0
        %7525 = vmatpush.msra.mxu0 0.0
        %7526 = vmatpush.msra.mxu0 0.0
        %7527 = vmatpush.msra.mxu0 0.0
        %7528 = vmatpush.msra.mxu0 0.0
        %7529 = vmatpush.msra.mxu0 0.0
        %7530 = vmatpush.msra.mxu0 0.0
        %7531 = vmatpush.msra.mxu0 %v7491
        %7532 = vmatmul.f32.gmra.mxu0 %v7484
        %v7533 = vpop.f32.mrf.mxu0
        %v7534 = vadd.f32 0.0, %v7533
        %7535 = vmatmul.f32.gmra.mxu0 %v7487
        %v7536 = vpop.f32.mrf.mxu0
        %v7537 = vadd.f32 0.0, %v7536
        %7538 = vdwg.mxu0
        %v7539 = vadd.f32 %v7473, %v7511
        %v7540 = vadd.f32 %v7474, %v7534
        %v7541 = vadd.f32 %v7475, %v7514
        %v7542 = vadd.f32 %v7476, %v7537
        %7543 = vrot.lane.b32.xlu0 %v5914, 70
        %v7544 = vpop.permute.xlu0 %7543
        %7545 = vrot.lane.b32.xlu0 %v6054, 70
        %v7546 = vpop.permute.xlu0 %7545
        %vm7547 = vcmask 572416
        %v7548 = vsel %vm7547, %v7544, %v7546
        %v7550 = vsel %vm6113, %v6100, 0
        %v7553 = vsel %vm6113, %v6101, 0
        %v7555 = vsel %vm6120, %v7548, 0
        %v7557 = vsel %vm6120, %v7546, 0
        %7559 = vmatpush.msra.mxu0 0.0
        %7560 = vmatpush.msra.mxu0 0.0
        %7561 = vmatpush.msra.mxu0 0.0
        %7562 = vmatpush.msra.mxu0 0.0
        %7563 = vmatpush.msra.mxu0 0.0
        %7564 = vmatpush.msra.mxu0 0.0
        %7565 = vmatpush.msra.mxu0 0.0
        %7566 = vmatpush.msra.mxu0 0.0
        %7567 = vmatpush.msra.mxu0 0.0
        %7568 = vmatpush.msra.mxu0 0.0
        %7569 = vmatpush.msra.mxu0 0.0
        %7570 = vmatpush.msra.mxu0 0.0
        %7571 = vmatpush.msra.mxu0 0.0
        %7572 = vmatpush.msra.mxu0 0.0
        %7573 = vmatpush.msra.mxu0 0.0
        %7574 = vmatpush.msra.mxu0 %v7555
        %7575 = vmatmul.f32.gmra.mxu0 %v7550
        %v7576 = vpop.f32.mrf.mxu0
        %v7577 = vadd.f32 0.0, %v7576
        %7578 = vmatmul.f32.gmra.mxu0 %v7553
        %v7579 = vpop.f32.mrf.mxu0
        %v7580 = vadd.f32 0.0, %v7579
        %7581 = vdwg.mxu0
        %7582 = vmatpush.msra.mxu0 0.0
        %7583 = vmatpush.msra.mxu0 0.0
        %7584 = vmatpush.msra.mxu0 0.0
        %7585 = vmatpush.msra.mxu0 0.0
        %7586 = vmatpush.msra.mxu0 0.0
        %7587 = vmatpush.msra.mxu0 0.0
        %7588 = vmatpush.msra.mxu0 0.0
        %7589 = vmatpush.msra.mxu0 0.0
        %7590 = vmatpush.msra.mxu0 0.0
        %7591 = vmatpush.msra.mxu0 0.0
        %7592 = vmatpush.msra.mxu0 0.0
        %7593 = vmatpush.msra.mxu0 0.0
        %7594 = vmatpush.msra.mxu0 0.0
        %7595 = vmatpush.msra.mxu0 0.0
        %7596 = vmatpush.msra.mxu0 0.0
        %7597 = vmatpush.msra.mxu0 %v7557
        %7598 = vmatmul.f32.gmra.mxu0 %v7550
        %v7599 = vpop.f32.mrf.mxu0
        %v7600 = vadd.f32 0.0, %v7599
        %7601 = vmatmul.f32.gmra.mxu0 %v7553
        %v7602 = vpop.f32.mrf.mxu0
        %v7603 = vadd.f32 0.0, %v7602
        %7604 = vdwg.mxu0
        %v7605 = vadd.f32 %v7539, %v7577
        %v7606 = vadd.f32 %v7540, %v7600
        %v7607 = vadd.f32 %v7541, %v7580
        %v7608 = vadd.f32 %v7542, %v7603
        %7609 = vrot.lane.b32.xlu0 %v5914, 69
        %v7610 = vpop.permute.xlu0 %7609
        %7611 = vrot.lane.b32.xlu0 %v6054, 69
        %v7612 = vpop.permute.xlu0 %7611
        %vm7613 = vcmask 564224
        %v7614 = vsel %vm7613, %v7610, %v7612
        %v7616 = vsel %vm6113, %v6102, 0
        %v7619 = vsel %vm6113, %v6103, 0
        %v7621 = vsel %vm6120, %v7614, 0
        %v7623 = vsel %vm6120, %v7612, 0
        %7625 = vmatpush.msra.mxu0 0.0
        %7626 = vmatpush.msra.mxu0 0.0
        %7627 = vmatpush.msra.mxu0 0.0
        %7628 = vmatpush.msra.mxu0 0.0
        %7629 = vmatpush.msra.mxu0 0.0
        %7630 = vmatpush.msra.mxu0 0.0
        %7631 = vmatpush.msra.mxu0 0.0
        %7632 = vmatpush.msra.mxu0 0.0
        %7633 = vmatpush.msra.mxu0 0.0
        %7634 = vmatpush.msra.mxu0 0.0
        %7635 = vmatpush.msra.mxu0 0.0
        %7636 = vmatpush.msra.mxu0 0.0
        %7637 = vmatpush.msra.mxu0 0.0
        %7638 = vmatpush.msra.mxu0 0.0
        %7639 = vmatpush.msra.mxu0 0.0
        %7640 = vmatpush.msra.mxu0 %v7621
        %7641 = vmatmul.f32.gmra.mxu0 %v7616
        %v7642 = vpop.f32.mrf.mxu0
        %v7643 = vadd.f32 0.0, %v7642
        %7644 = vmatmul.f32.gmra.mxu0 %v7619
        %v7645 = vpop.f32.mrf.mxu0
        %v7646 = vadd.f32 0.0, %v7645
        %7647 = vdwg.mxu0
        %7648 = vmatpush.msra.mxu0 0.0
        %7649 = vmatpush.msra.mxu0 0.0
        %7650 = vmatpush.msra.mxu0 0.0
        %7651 = vmatpush.msra.mxu0 0.0
        %7652 = vmatpush.msra.mxu0 0.0
        %7653 = vmatpush.msra.mxu0 0.0
        %7654 = vmatpush.msra.mxu0 0.0
        %7655 = vmatpush.msra.mxu0 0.0
        %7656 = vmatpush.msra.mxu0 0.0
        %7657 = vmatpush.msra.mxu0 0.0
        %7658 = vmatpush.msra.mxu0 0.0
        %7659 = vmatpush.msra.mxu0 0.0
        %7660 = vmatpush.msra.mxu0 0.0
        %7661 = vmatpush.msra.mxu0 0.0
        %7662 = vmatpush.msra.mxu0 0.0
        %7663 = vmatpush.msra.mxu0 %v7623
        %7664 = vmatmul.f32.gmra.mxu0 %v7616
        %v7665 = vpop.f32.mrf.mxu0
        %v7666 = vadd.f32 0.0, %v7665
        %7667 = vmatmul.f32.gmra.mxu0 %v7619
        %v7668 = vpop.f32.mrf.mxu0
        %v7669 = vadd.f32 0.0, %v7668
        %7670 = vdwg.mxu0
        %v7671 = vadd.f32 %v7605, %v7643
        %v7672 = vadd.f32 %v7606, %v7666
        %v7673 = vadd.f32 %v7607, %v7646
        %v7674 = vadd.f32 %v7608, %v7669
        %7675 = vrot.lane.b32.xlu0 %v5914, 68
        %v7676 = vpop.permute.xlu0 %7675
        %7677 = vrot.lane.b32.xlu0 %v6054, 68
        %v7678 = vpop.permute.xlu0 %7677
        %vm7679 = vcmask 556032
        %v7680 = vsel %vm7679, %v7676, %v7678
        %v7682 = vsel %vm6113, %v6104, 0
        %v7685 = vsel %vm6113, %v6105, 0
        %v7687 = vsel %vm6120, %v7680, 0
        %v7689 = vsel %vm6120, %v7678, 0
        %7691 = vmatpush.msra.mxu0 0.0
        %7692 = vmatpush.msra.mxu0 0.0
        %7693 = vmatpush.msra.mxu0 0.0
        %7694 = vmatpush.msra.mxu0 0.0
        %7695 = vmatpush.msra.mxu0 0.0
        %7696 = vmatpush.msra.mxu0 0.0
        %7697 = vmatpush.msra.mxu0 0.0
        %7698 = vmatpush.msra.mxu0 0.0
        %7699 = vmatpush.msra.mxu0 0.0
        %7700 = vmatpush.msra.mxu0 0.0
        %7701 = vmatpush.msra.mxu0 0.0
        %7702 = vmatpush.msra.mxu0 0.0
        %7703 = vmatpush.msra.mxu0 0.0
        %7704 = vmatpush.msra.mxu0 0.0
        %7705 = vmatpush.msra.mxu0 0.0
        %7706 = vmatpush.msra.mxu0 %v7687
        %7707 = vmatmul.f32.gmra.mxu0 %v7682
        %v7708 = vpop.f32.mrf.mxu0
        %v7709 = vadd.f32 0.0, %v7708
        %7710 = vmatmul.f32.gmra.mxu0 %v7685
        %v7711 = vpop.f32.mrf.mxu0
        %v7712 = vadd.f32 0.0, %v7711
        %7713 = vdwg.mxu0
        %7714 = vmatpush.msra.mxu0 0.0
        %7715 = vmatpush.msra.mxu0 0.0
        %7716 = vmatpush.msra.mxu0 0.0
        %7717 = vmatpush.msra.mxu0 0.0
        %7718 = vmatpush.msra.mxu0 0.0
        %7719 = vmatpush.msra.mxu0 0.0
        %7720 = vmatpush.msra.mxu0 0.0
        %7721 = vmatpush.msra.mxu0 0.0
        %7722 = vmatpush.msra.mxu0 0.0
        %7723 = vmatpush.msra.mxu0 0.0
        %7724 = vmatpush.msra.mxu0 0.0
        %7725 = vmatpush.msra.mxu0 0.0
        %7726 = vmatpush.msra.mxu0 0.0
        %7727 = vmatpush.msra.mxu0 0.0
        %7728 = vmatpush.msra.mxu0 0.0
        %7729 = vmatpush.msra.mxu0 %v7689
        %7730 = vmatmul.f32.gmra.mxu0 %v7682
        %v7731 = vpop.f32.mrf.mxu0
        %v7732 = vadd.f32 0.0, %v7731
        %7733 = vmatmul.f32.gmra.mxu0 %v7685
        %v7734 = vpop.f32.mrf.mxu0
        %v7735 = vadd.f32 0.0, %v7734
        %7736 = vdwg.mxu0
        %v7737 = vadd.f32 %v7671, %v7709
        %v7738 = vadd.f32 %v7672, %v7732
        %v7739 = vadd.f32 %v7673, %v7712
        %v7740 = vadd.f32 %v7674, %v7735
        %v7741 = vld [vmem:[%s5] sm:$0xff]
        %v7742 = vld [vmem:[%s5 + $0x8] sm:$0xff]
        %7744 = vset.pattern.permute.xlu0 0
        %7745 = vperm.xlu0 %7744, %v7741
        %v7746 = vpop.permute.xlu0 %7745
        %7749 = vset.pattern.permute.xlu0 0
        %7750 = vperm.xlu0 %7749, %v7742
        %v7751 = vpop.permute.xlu0 %7750
        %v7753 = vadd.f32 %v7737, %v7746
        %v7754 = vadd.f32 %v7738, %v7746
        %v7755 = vadd.f32 %v7739, %v7751
        %v7756 = vadd.f32 %v7740, %v7751
        %v7757 = vmax.f32 %v7753, 0.0
        %v7758 = vmax.f32 %v7754, 0.0
        %v7759 = vmax.f32 %v7755, 0.0
        %v7760 = vmax.f32 %v7756, 0.0
        %7763 = vrot.lane.b32.xlu0 %v7757, 127
        %v7764 = vpop.permute.xlu0 %7763
        %7765 = vrot.lane.b32.xlu0 %v7759, 127
        %v7766 = vpop.permute.xlu0 %7765
        %v7769 = vmax.f32 %v7757, %v7764
        %v7770 = vmax.f32 %v7759, %v7766
        %7773 = vrot.lane.b32.xlu0 %v7758, 127
        %v7774 = vpop.permute.xlu0 %7773
        %7775 = vrot.lane.b32.xlu0 %v7760, 127
        %v7776 = vpop.permute.xlu0 %7775
        %v7777 = vsel %vm499, %v7764, %v7774
        %v7778 = vsel %vm499, %v7766, %v7776
        %v7783 = vmax.f32 %v7757, %v7777
        %v7784 = vmax.f32 %v7758, %v7774
        %v7785 = vmax.f32 %v7759, %v7778
        %v7786 = vmax.f32 %v7760, %v7776
        %7791 = vrot.lane.b32.xlu0 %v7783, 114
        %v7792 = vpop.permute.xlu0 %7791
        %7793 = vrot.lane.b32.xlu0 %v7784, 114
        %v7794 = vpop.permute.xlu0 %7793
        %7795 = vrot.lane.b32.xlu0 %v7785, 114
        %v7796 = vpop.permute.xlu0 %7795
        %7797 = vrot.lane.b32.xlu0 %v7786, 114
        %v7798 = vpop.permute.xlu0 %7797
        %v7799 = vsel %vm6426, %v7792, %v7794
        %v7800 = vsel %vm6426, %v7796, %v7798
        %v7803 = vmax.f32 %v7769, %v7799
        %v7804 = vmax.f32 %v7770, %v7800
        %v7805 = vld [vmem:[%s6] sm:$0xff]
        %v7806 = vld [vmem:[%s6 + $0x8] sm:$0xff]
        %v7807 = vld [vmem:[%s6 + $0x10] sm:$0xff]
        %v7808 = vld [vmem:[%s6 + $0x18] sm:$0xff]
        %v7809 = vld [vmem:[%s6 + $0x20] sm:$0xff]
        %v7810 = vld [vmem:[%s6 + $0x28] sm:$0xff]
        %v7811 = vld [vmem:[%s6 + $0x30] sm:$0xff]
        %v7812 = vld [vmem:[%s6 + $0x38] sm:$0xff]
        %v7813 = vld [vmem:[%s6 + $0x40] sm:$0xff]
        %v7814 = vld [vmem:[%s6 + $0x48] sm:$0xff]
        %v7815 = vld [vmem:[%s6 + $0x50] sm:$0xff]
        %v7816 = vld [vmem:[%s6 + $0x58] sm:$0xff]
        %v7817 = vld [vmem:[%s6 + $0x60] sm:$0xff]
        %v7818 = vld [vmem:[%s6 + $0x68] sm:$0xff]
        %v7819 = vld [vmem:[%s6 + $0x70] sm:$0xff]
        %v7820 = vld [vmem:[%s6 + $0x78] sm:$0x1]
        %vm7821 = vcmask 990208
        %v7823 = vsel %vm7821, %v7803, 0
        %v7826 = vsel %vm7821, %v7804, 0
        %vm7828 = vcmask 1040384
        %v7830 = vsel %vm7828, %v7820, 0
        %7832 = vmatpush.msra.mxu0 %v7830
        %7833 = vmatpush.msra.mxu0 %v7819
        %7834 = vmatpush.msra.mxu0 %v7818
        %7835 = vmatpush.msra.mxu0 %v7817
        %7836 = vmatpush.msra.mxu0 %v7816
        %7837 = vmatpush.msra.mxu0 %v7815
        %7838 = vmatpush.msra.mxu0 %v7814
        %7839 = vmatpush.msra.mxu0 %v7813
        %7840 = vmatpush.msra.mxu0 %v7812
        %7841 = vmatpush.msra.mxu0 %v7811
        %7842 = vmatpush.msra.mxu0 %v7810
        %7843 = vmatpush.msra.mxu0 %v7809
        %7844 = vmatpush.msra.mxu0 %v7808
        %7845 = vmatpush.msra.mxu0 %v7807
        %7846 = vmatpush.msra.mxu0 %v7806
        %7847 = vmatpush.msra.mxu0 %v7805
        %7848 = vmatmul.f32.gmra.mxu0 %v7823
        %v7849 = vpop.f32.mrf.mxu0
        %v7850 = vadd.f32 0.0, %v7849
        %7851 = vmatmul.f32.gmra.mxu0 %v7826
        %v7852 = vpop.f32.mrf.mxu0
        %v7853 = vadd.f32 0.0, %v7852
        %7854 = vdwg.mxu0
        %v7855 = vld [vmem:[%s7] sm:$0xff]
        %v7856 = vld [vmem:[%s7 + $0x8] sm:$0xff]
        %v7857 = vld [vmem:[%s7 + $0x10] sm:$0xff]
        %v7858 = vld [vmem:[%s7 + $0x18] sm:$0x1]
        %v7859 = vld [vmem:[%s7 + $0x20] sm:$0xff]
        %v7860 = vld [vmem:[%s7 + $0x28] sm:$0xff]
        %v7861 = vld [vmem:[%s7 + $0x30] sm:$0xff]
        %v7862 = vld [vmem:[%s7 + $0x38] sm:$0x1]
        %v7863 = vld [vmem:[%s7 + $0x40] sm:$0xff]
        %v7864 = vld [vmem:[%s7 + $0x48] sm:$0xff]
        %v7865 = vld [vmem:[%s7 + $0x50] sm:$0xff]
        %v7866 = vld [vmem:[%s7 + $0x58] sm:$0x1]
        %v7867 = vld [vmem:[%s7 + $0x60] sm:$0xff]
        %v7868 = vld [vmem:[%s7 + $0x68] sm:$0xff]
        %v7869 = vld [vmem:[%s7 + $0x70] sm:$0xff]
        %v7870 = vld [vmem:[%s7 + $0x78] sm:$0x1]
        %v7871 = vld [vmem:[%s7 + $0x80] sm:$0xff]
        %v7872 = vld [vmem:[%s7 + $0x88] sm:$0xff]
        %v7873 = vld [vmem:[%s7 + $0x90] sm:$0xff]
        %v7874 = vld [vmem:[%s7 + $0x98] sm:$0x1]
        %v7875 = vld [vmem:[%s7 + $0xa0] sm:$0xff]
        %v7876 = vld [vmem:[%s7 + $0xa8] sm:$0xff]
        %v7877 = vld [vmem:[%s7 + $0xb0] sm:$0xff]
        %v7878 = vld [vmem:[%s7 + $0xb8] sm:$0x1]
        %v7879 = vld [vmem:[%s7 + $0xc0] sm:$0xff]
        %v7880 = vld [vmem:[%s7 + $0xc8] sm:$0xff]
        %v7881 = vld [vmem:[%s7 + $0xd0] sm:$0xff]
        %v7882 = vld [vmem:[%s7 + $0xd8] sm:$0x1]
        %v7883 = vld [vmem:[%s7 + $0xe0] sm:$0xff]
        %v7884 = vld [vmem:[%s7 + $0xe8] sm:$0xff]
        %v7885 = vld [vmem:[%s7 + $0xf0] sm:$0xff]
        %v7886 = vld [vmem:[%s7 + $0xf8] sm:$0x1]
        %v7887 = vld [vmem:[%s7 + $0x100] sm:$0xff]
        %v7888 = vld [vmem:[%s7 + $0x108] sm:$0xff]
        %v7889 = vld [vmem:[%s7 + $0x110] sm:$0xff]
        %v7890 = vld [vmem:[%s7 + $0x118] sm:$0x1]
        %v7891 = vld [vmem:[%s7 + $0x120] sm:$0xff]
        %v7892 = vld [vmem:[%s7 + $0x128] sm:$0xff]
        %v7893 = vld [vmem:[%s7 + $0x130] sm:$0xff]
        %v7894 = vld [vmem:[%s7 + $0x138] sm:$0x1]
        %v7895 = vld [vmem:[%s7 + $0x140] sm:$0xff]
        %v7896 = vld [vmem:[%s7 + $0x148] sm:$0xff]
        %v7897 = vld [vmem:[%s7 + $0x150] sm:$0xff]
        %v7898 = vld [vmem:[%s7 + $0x158] sm:$0x1]
        %v7899 = vld [vmem:[%s7 + $0x160] sm:$0xff]
        %v7900 = vld [vmem:[%s7 + $0x168] sm:$0xff]
        %v7901 = vld [vmem:[%s7 + $0x170] sm:$0xff]
        %v7902 = vld [vmem:[%s7 + $0x178] sm:$0x1]
        %v7903 = vld [vmem:[%s7 + $0x180] sm:$0xff]
        %v7904 = vld [vmem:[%s7 + $0x188] sm:$0xff]
        %v7905 = vld [vmem:[%s7 + $0x190] sm:$0xff]
        %v7906 = vld [vmem:[%s7 + $0x198] sm:$0x1]
        %v7907 = vld [vmem:[%s7 + $0x1a0] sm:$0xff]
        %v7908 = vld [vmem:[%s7 + $0x1a8] sm:$0xff]
        %v7909 = vld [vmem:[%s7 + $0x1b0] sm:$0xff]
        %v7910 = vld [vmem:[%s7 + $0x1b8] sm:$0x1]
        %v7911 = vld [vmem:[%s7 + $0x1c0] sm:$0xff]
        %v7912 = vld [vmem:[%s7 + $0x1c8] sm:$0xff]
        %v7913 = vld [vmem:[%s7 + $0x1d0] sm:$0xff]
        %v7914 = vld [vmem:[%s7 + $0x1d8] sm:$0x1]
        %v7915 = vld [vmem:[%s7 + $0x1e0] sm:$0xff]
        %v7916 = vld [vmem:[%s7 + $0x1e8] sm:$0xff]
        %v7917 = vld [vmem:[%s7 + $0x1f0] sm:$0xff]
        %v7918 = vld [vmem:[%s7 + $0x1f8] sm:$0x1]
        %v7919 = vld [vmem:[%s8] sm:$0x1]
        %vm7920 = vcmask 203776
        %v7922 = vsel %vm7920, %v7850, 0
        %v7925 = vsel %vm7828, %v7858, 0
        %7927 = vmatpush.msra.mxu0 0.0
        %7928 = vmatpush.msra.mxu0 0.0
        %7929 = vmatpush.msra.mxu0 0.0
        %7930 = vmatpush.msra.mxu0 0.0
        %7931 = vmatpush.msra.mxu0 0.0
        %7932 = vmatpush.msra.mxu0 0.0
        %7933 = vmatpush.msra.mxu0 0.0
        %7934 = vmatpush.msra.mxu0 0.0
        %7935 = vmatpush.msra.mxu0 0.0
        %7936 = vmatpush.msra.mxu0 0.0
        %7937 = vmatpush.msra.mxu0 0.0
        %7938 = vmatpush.msra.mxu0 0.0
        %7939 = vmatpush.msra.mxu0 %v7925
        %7940 = vmatpush.msra.mxu0 %v7857
        %7941 = vmatpush.msra.mxu0 %v7856
        %7942 = vmatpush.msra.mxu0 %v7855
        %7943 = vmatmul.f32.gmra.mxu0 %v7922
        %v7944 = vpop.f32.mrf.mxu0
        %v7945 = vadd.f32 0.0, %v7944
        %7946 = vdwg.mxu0
        %v7947 = vadd.f32 %v7919, %v7945
        %v7948 = vrot.slane %v7850, 1
        %v7949 = vsel %vm7920, %v7948, 0
        %v7952 = vsel %vm7828, %v7862, 0
        %7954 = vmatpush.msra.mxu0 0.0
        %7955 = vmatpush.msra.mxu0 0.0
        %7956 = vmatpush.msra.mxu0 0.0
        %7957 = vmatpush.msra.mxu0 0.0
        %7958 = vmatpush.msra.mxu0 0.0
        %7959 = vmatpush.msra.mxu0 0.0
        %7960 = vmatpush.msra.mxu0 0.0
        %7961 = vmatpush.msra.mxu0 0.0
        %7962 = vmatpush.msra.mxu0 0.0
        %7963 = vmatpush.msra.mxu0 0.0
        %7964 = vmatpush.msra.mxu0 0.0
        %7965 = vmatpush.msra.mxu0 0.0
        %7966 = vmatpush.msra.mxu0 %v7952
        %7967 = vmatpush.msra.mxu0 %v7861
        %7968 = vmatpush.msra.mxu0 %v7860
        %7969 = vmatpush.msra.mxu0 %v7859
        %7970 = vmatmul.f32.gmra.mxu0 %v7949
        %v7971 = vpop.f32.mrf.mxu0
        %v7972 = vadd.f32 0.0, %v7971
        %7973 = vdwg.mxu0
        %v7974 = vadd.f32 %v7947, %v7972
        %v7975 = vrot.slane %v7850, 2
        %v7976 = vsel %vm7920, %v7975, 0
        %v7979 = vsel %vm7828, %v7866, 0
        %7981 = vmatpush.msra.mxu0 0.0
        %7982 = vmatpush.msra.mxu0 0.0
        %7983 = vmatpush.msra.mxu0 0.0
        %7984 = vmatpush.msra.mxu0 0.0
        %7985 = vmatpush.msra.mxu0 0.0
        %7986 = vmatpush.msra.mxu0 0.0
        %7987 = vmatpush.msra.mxu0 0.0
        %7988 = vmatpush.msra.mxu0 0.0
        %7989 = vmatpush.msra.mxu0 0.0
        %7990 = vmatpush.msra.mxu0 0.0
        %7991 = vmatpush.msra.mxu0 0.0
        %7992 = vmatpush.msra.mxu0 0.0
        %7993 = vmatpush.msra.mxu0 %v7979
        %7994 = vmatpush.msra.mxu0 %v7865
        %7995 = vmatpush.msra.mxu0 %v7864
        %7996 = vmatpush.msra.mxu0 %v7863
        %7997 = vmatmul.f32.gmra.mxu0 %v7976
        %v7998 = vpop.f32.mrf.mxu0
        %v7999 = vadd.f32 0.0, %v7998
        %8000 = vdwg.mxu0
        %v8001 = vadd.f32 %v7974, %v7999
        %v8002 = vrot.slane %v7850, 3
        %v8003 = vsel %vm7920, %v8002, 0
        %v8006 = vsel %vm7828, %v7870, 0
        %8008 = vmatpush.msra.mxu0 0.0
        %8009 = vmatpush.msra.mxu0 0.0
        %8010 = vmatpush.msra.mxu0 0.0
        %8011 = vmatpush.msra.mxu0 0.0
        %8012 = vmatpush.msra.mxu0 0.0
        %8013 = vmatpush.msra.mxu0 0.0
        %8014 = vmatpush.msra.mxu0 0.0
        %8015 = vmatpush.msra.mxu0 0.0
        %8016 = vmatpush.msra.mxu0 0.0
        %8017 = vmatpush.msra.mxu0 0.0
        %8018 = vmatpush.msra.mxu0 0.0
        %8019 = vmatpush.msra.mxu0 0.0
        %8020 = vmatpush.msra.mxu0 %v8006
        %8021 = vmatpush.msra.mxu0 %v7869
        %8022 = vmatpush.msra.mxu0 %v7868
        %8023 = vmatpush.msra.mxu0 %v7867
        %8024 = vmatmul.f32.gmra.mxu0 %v8003
        %v8025 = vpop.f32.mrf.mxu0
        %v8026 = vadd.f32 0.0, %v8025
        %8027 = vdwg.mxu0
        %v8028 = vadd.f32 %v8001, %v8026
        %v8029 = vrot.slane %v7850, 4
        %v8030 = vsel %vm7920, %v8029, 0
        %v8033 = vsel %vm7828, %v7874, 0
        %8035 = vmatpush.msra.mxu0 0.0
        %8036 = vmatpush.msra.mxu0 0.0
        %8037 = vmatpush.msra.mxu0 0.0
        %8038 = vmatpush.msra.mxu0 0.0
        %8039 = vmatpush.msra.mxu0 0.0
        %8040 = vmatpush.msra.mxu0 0.0
        %8041 = vmatpush.msra.mxu0 0.0
        %8042 = vmatpush.msra.mxu0 0.0
        %8043 = vmatpush.msra.mxu0 0.0
        %8044 = vmatpush.msra.mxu0 0.0
        %8045 = vmatpush.msra.mxu0 0.0
        %8046 = vmatpush.msra.mxu0 0.0
        %8047 = vmatpush.msra.mxu0 %v8033
        %8048 = vmatpush.msra.mxu0 %v7873
        %8049 = vmatpush.msra.mxu0 %v7872
        %8050 = vmatpush.msra.mxu0 %v7871
        %8051 = vmatmul.f32.gmra.mxu0 %v8030
        %v8052 = vpop.f32.mrf.mxu0
        %v8053 = vadd.f32 0.0, %v8052
        %8054 = vdwg.mxu0
        %v8055 = vadd.f32 %v8028, %v8053
        %v8056 = vrot.slane %v7850, 5
        %v8057 = vsel %vm7920, %v8056, 0
        %v8060 = vsel %vm7828, %v7878, 0
        %8062 = vmatpush.msra.mxu0 0.0
        %8063 = vmatpush.msra.mxu0 0.0
        %8064 = vmatpush.msra.mxu0 0.0
        %8065 = vmatpush.msra.mxu0 0.0
        %8066 = vmatpush.msra.mxu0 0.0
        %8067 = vmatpush.msra.mxu0 0.0
        %8068 = vmatpush.msra.mxu0 0.0
        %8069 = vmatpush.msra.mxu0 0.0
        %8070 = vmatpush.msra.mxu0 0.0
        %8071 = vmatpush.msra.mxu0 0.0
        %8072 = vmatpush.msra.mxu0 0.0
        %8073 = vmatpush.msra.mxu0 0.0
        %8074 = vmatpush.msra.mxu0 %v8060
        %8075 = vmatpush.msra.mxu0 %v7877
        %8076 = vmatpush.msra.mxu0 %v7876
        %8077 = vmatpush.msra.mxu0 %v7875
        %8078 = vmatmul.f32.gmra.mxu0 %v8057
        %v8079 = vpop.f32.mrf.mxu0
        %v8080 = vadd.f32 0.0, %v8079
        %8081 = vdwg.mxu0
        %v8082 = vadd.f32 %v8055, %v8080
        %v8083 = vrot.slane %v7850, 6
        %v8084 = vsel %vm7920, %v8083, 0
        %v8087 = vsel %vm7828, %v7882, 0
        %8089 = vmatpush.msra.mxu0 0.0
        %8090 = vmatpush.msra.mxu0 0.0
        %8091 = vmatpush.msra.mxu0 0.0
        %8092 = vmatpush.msra.mxu0 0.0
        %8093 = vmatpush.msra.mxu0 0.0
        %8094 = vmatpush.msra.mxu0 0.0
        %8095 = vmatpush.msra.mxu0 0.0
        %8096 = vmatpush.msra.mxu0 0.0
        %8097 = vmatpush.msra.mxu0 0.0
        %8098 = vmatpush.msra.mxu0 0.0
        %8099 = vmatpush.msra.mxu0 0.0
        %8100 = vmatpush.msra.mxu0 0.0
        %8101 = vmatpush.msra.mxu0 %v8087
        %8102 = vmatpush.msra.mxu0 %v7881
        %8103 = vmatpush.msra.mxu0 %v7880
        %8104 = vmatpush.msra.mxu0 %v7879
        %8105 = vmatmul.f32.gmra.mxu0 %v8084
        %v8106 = vpop.f32.mrf.mxu0
        %v8107 = vadd.f32 0.0, %v8106
        %8108 = vdwg.mxu0
        %v8109 = vadd.f32 %v8082, %v8107
        %v8110 = vrot.slane %v7850, 7
        %v8111 = vsel %vm7920, %v8110, 0
        %v8114 = vsel %vm7828, %v7886, 0
        %8116 = vmatpush.msra.mxu0 0.0
        %8117 = vmatpush.msra.mxu0 0.0
        %8118 = vmatpush.msra.mxu0 0.0
        %8119 = vmatpush.msra.mxu0 0.0
        %8120 = vmatpush.msra.mxu0 0.0
        %8121 = vmatpush.msra.mxu0 0.0
        %8122 = vmatpush.msra.mxu0 0.0
        %8123 = vmatpush.msra.mxu0 0.0
        %8124 = vmatpush.msra.mxu0 0.0
        %8125 = vmatpush.msra.mxu0 0.0
        %8126 = vmatpush.msra.mxu0 0.0
        %8127 = vmatpush.msra.mxu0 0.0
        %8128 = vmatpush.msra.mxu0 %v8114
        %8129 = vmatpush.msra.mxu0 %v7885
        %8130 = vmatpush.msra.mxu0 %v7884
        %8131 = vmatpush.msra.mxu0 %v7883
        %8132 = vmatmul.f32.gmra.mxu0 %v8111
        %v8133 = vpop.f32.mrf.mxu0
        %v8134 = vadd.f32 0.0, %v8133
        %8135 = vdwg.mxu0
        %v8136 = vadd.f32 %v8109, %v8134
        %v8138 = vsel %vm7920, %v7853, 0
        %v8141 = vsel %vm7828, %v7890, 0
        %8143 = vmatpush.msra.mxu0 0.0
        %8144 = vmatpush.msra.mxu0 0.0
        %8145 = vmatpush.msra.mxu0 0.0
        %8146 = vmatpush.msra.mxu0 0.0
        %8147 = vmatpush.msra.mxu0 0.0
        %8148 = vmatpush.msra.mxu0 0.0
        %8149 = vmatpush.msra.mxu0 0.0
        %8150 = vmatpush.msra.mxu0 0.0
        %8151 = vmatpush.msra.mxu0 0.0
        %8152 = vmatpush.msra.mxu0 0.0
        %8153 = vmatpush.msra.mxu0 0.0
        %8154 = vmatpush.msra.mxu0 0.0
        %8155 = vmatpush.msra.mxu0 %v8141
        %8156 = vmatpush.msra.mxu0 %v7889
        %8157 = vmatpush.msra.mxu0 %v7888
        %8158 = vmatpush.msra.mxu0 %v7887
        %8159 = vmatmul.f32.gmra.mxu0 %v8138
        %v8160 = vpop.f32.mrf.mxu0
        %v8161 = vadd.f32 0.0, %v8160
        %8162 = vdwg.mxu0
        %v8163 = vadd.f32 %v8136, %v8161
        %v8164 = vrot.slane %v7853, 1
        %v8165 = vsel %vm7920, %v8164, 0
        %v8168 = vsel %vm7828, %v7894, 0
        %8170 = vmatpush.msra.mxu0 0.0
        %8171 = vmatpush.msra.mxu0 0.0
        %8172 = vmatpush.msra.mxu0 0.0
        %8173 = vmatpush.msra.mxu0 0.0
        %8174 = vmatpush.msra.mxu0 0.0
        %8175 = vmatpush.msra.mxu0 0.0
        %8176 = vmatpush.msra.mxu0 0.0
        %8177 = vmatpush.msra.mxu0 0.0
        %8178 = vmatpush.msra.mxu0 0.0
        %8179 = vmatpush.msra.mxu0 0.0
        %8180 = vmatpush.msra.mxu0 0.0
        %8181 = vmatpush.msra.mxu0 0.0
        %8182 = vmatpush.msra.mxu0 %v8168
        %8183 = vmatpush.msra.mxu0 %v7893
        %8184 = vmatpush.msra.mxu0 %v7892
        %8185 = vmatpush.msra.mxu0 %v7891
        %8186 = vmatmul.f32.gmra.mxu0 %v8165
        %v8187 = vpop.f32.mrf.mxu0
        %v8188 = vadd.f32 0.0, %v8187
        %8189 = vdwg.mxu0
        %v8190 = vadd.f32 %v8163, %v8188
        %v8191 = vrot.slane %v7853, 2
        %v8192 = vsel %vm7920, %v8191, 0
        %v8195 = vsel %vm7828, %v7898, 0
        %8197 = vmatpush.msra.mxu0 0.0
        %8198 = vmatpush.msra.mxu0 0.0
        %8199 = vmatpush.msra.mxu0 0.0
        %8200 = vmatpush.msra.mxu0 0.0
        %8201 = vmatpush.msra.mxu0 0.0
        %8202 = vmatpush.msra.mxu0 0.0
        %8203 = vmatpush.msra.mxu0 0.0
        %8204 = vmatpush.msra.mxu0 0.0
        %8205 = vmatpush.msra.mxu0 0.0
        %8206 = vmatpush.msra.mxu0 0.0
        %8207 = vmatpush.msra.mxu0 0.0
        %8208 = vmatpush.msra.mxu0 0.0
        %8209 = vmatpush.msra.mxu0 %v8195
        %8210 = vmatpush.msra.mxu0 %v7897
        %8211 = vmatpush.msra.mxu0 %v7896
        %8212 = vmatpush.msra.mxu0 %v7895
        %8213 = vmatmul.f32.gmra.mxu0 %v8192
        %v8214 = vpop.f32.mrf.mxu0
        %v8215 = vadd.f32 0.0, %v8214
        %8216 = vdwg.mxu0
        %v8217 = vadd.f32 %v8190, %v8215
        %v8218 = vrot.slane %v7853, 3
        %v8219 = vsel %vm7920, %v8218, 0
        %v8222 = vsel %vm7828, %v7902, 0
        %8224 = vmatpush.msra.mxu0 0.0
        %8225 = vmatpush.msra.mxu0 0.0
        %8226 = vmatpush.msra.mxu0 0.0
        %8227 = vmatpush.msra.mxu0 0.0
        %8228 = vmatpush.msra.mxu0 0.0
        %8229 = vmatpush.msra.mxu0 0.0
        %8230 = vmatpush.msra.mxu0 0.0
        %8231 = vmatpush.msra.mxu0 0.0
        %8232 = vmatpush.msra.mxu0 0.0
        %8233 = vmatpush.msra.mxu0 0.0
        %8234 = vmatpush.msra.mxu0 0.0
        %8235 = vmatpush.msra.mxu0 0.0
        %8236 = vmatpush.msra.mxu0 %v8222
        %8237 = vmatpush.msra.mxu0 %v7901
        %8238 = vmatpush.msra.mxu0 %v7900
        %8239 = vmatpush.msra.mxu0 %v7899
        %8240 = vmatmul.f32.gmra.mxu0 %v8219
        %v8241 = vpop.f32.mrf.mxu0
        %v8242 = vadd.f32 0.0, %v8241
        %8243 = vdwg.mxu0
        %v8244 = vadd.f32 %v8217, %v8242
        %v8245 = vrot.slane %v7853, 4
        %v8246 = vsel %vm7920, %v8245, 0
        %v8249 = vsel %vm7828, %v7906, 0
        %8251 = vmatpush.msra.mxu0 0.0
        %8252 = vmatpush.msra.mxu0 0.0
        %8253 = vmatpush.msra.mxu0 0.0
        %8254 = vmatpush.msra.mxu0 0.0
        %8255 = vmatpush.msra.mxu0 0.0
        %8256 = vmatpush.msra.mxu0 0.0
        %8257 = vmatpush.msra.mxu0 0.0
        %8258 = vmatpush.msra.mxu0 0.0
        %8259 = vmatpush.msra.mxu0 0.0
        %8260 = vmatpush.msra.mxu0 0.0
        %8261 = vmatpush.msra.mxu0 0.0
        %8262 = vmatpush.msra.mxu0 0.0
        %8263 = vmatpush.msra.mxu0 %v8249
        %8264 = vmatpush.msra.mxu0 %v7905
        %8265 = vmatpush.msra.mxu0 %v7904
        %8266 = vmatpush.msra.mxu0 %v7903
        %8267 = vmatmul.f32.gmra.mxu0 %v8246
        %v8268 = vpop.f32.mrf.mxu0
        %v8269 = vadd.f32 0.0, %v8268
        %8270 = vdwg.mxu0
        %v8271 = vadd.f32 %v8244, %v8269
        %v8272 = vrot.slane %v7853, 5
        %v8273 = vsel %vm7920, %v8272, 0
        %v8276 = vsel %vm7828, %v7910, 0
        %8278 = vmatpush.msra.mxu0 0.0
        %8279 = vmatpush.msra.mxu0 0.0
        %8280 = vmatpush.msra.mxu0 0.0
        %8281 = vmatpush.msra.mxu0 0.0
        %8282 = vmatpush.msra.mxu0 0.0
        %8283 = vmatpush.msra.mxu0 0.0
        %8284 = vmatpush.msra.mxu0 0.0
        %8285 = vmatpush.msra.mxu0 0.0
        %8286 = vmatpush.msra.mxu0 0.0
        %8287 = vmatpush.msra.mxu0 0.0
        %8288 = vmatpush.msra.mxu0 0.0
        %8289 = vmatpush.msra.mxu0 0.0
        %8290 = vmatpush.msra.mxu0 %v8276
        %8291 = vmatpush.msra.mxu0 %v7909
        %8292 = vmatpush.msra.mxu0 %v7908
        %8293 = vmatpush.msra.mxu0 %v7907
        %8294 = vmatmul.f32.gmra.mxu0 %v8273
        %v8295 = vpop.f32.mrf.mxu0
        %v8296 = vadd.f32 0.0, %v8295
        %8297 = vdwg.mxu0
        %v8298 = vadd.f32 %v8271, %v8296
        %v8299 = vrot.slane %v7853, 6
        %v8300 = vsel %vm7920, %v8299, 0
        %v8303 = vsel %vm7828, %v7914, 0
        %8305 = vmatpush.msra.mxu0 0.0
        %8306 = vmatpush.msra.mxu0 0.0
        %8307 = vmatpush.msra.mxu0 0.0
        %8308 = vmatpush.msra.mxu0 0.0
        %8309 = vmatpush.msra.mxu0 0.0
        %8310 = vmatpush.msra.mxu0 0.0
        %8311 = vmatpush.msra.mxu0 0.0
        %8312 = vmatpush.msra.mxu0 0.0
        %8313 = vmatpush.msra.mxu0 0.0
        %8314 = vmatpush.msra.mxu0 0.0
        %8315 = vmatpush.msra.mxu0 0.0
        %8316 = vmatpush.msra.mxu0 0.0
        %8317 = vmatpush.msra.mxu0 %v8303
        %8318 = vmatpush.msra.mxu0 %v7913
        %8319 = vmatpush.msra.mxu0 %v7912
        %8320 = vmatpush.msra.mxu0 %v7911
        %8321 = vmatmul.f32.gmra.mxu0 %v8300
        %v8322 = vpop.f32.mrf.mxu0
        %v8323 = vadd.f32 0.0, %v8322
        %8324 = vdwg.mxu0
        %v8325 = vadd.f32 %v8298, %v8323
        %v8326 = vrot.slane %v7853, 7
        %v8327 = vsel %vm7920, %v8326, 0
        %v8330 = vsel %vm7828, %v7918, 0
        %8332 = vmatpush.msra.mxu0 0.0
        %8333 = vmatpush.msra.mxu0 0.0
        %8334 = vmatpush.msra.mxu0 0.0
        %8335 = vmatpush.msra.mxu0 0.0
        %8336 = vmatpush.msra.mxu0 0.0
        %8337 = vmatpush.msra.mxu0 0.0
        %8338 = vmatpush.msra.mxu0 0.0
        %8339 = vmatpush.msra.mxu0 0.0
        %8340 = vmatpush.msra.mxu0 0.0
        %8341 = vmatpush.msra.mxu0 0.0
        %8342 = vmatpush.msra.mxu0 0.0
        %8343 = vmatpush.msra.mxu0 0.0
        %8344 = vmatpush.msra.mxu0 %v8330
        %8345 = vmatpush.msra.mxu0 %v7917
        %8346 = vmatpush.msra.mxu0 %v7916
        %8347 = vmatpush.msra.mxu0 %v7915
        %8348 = vmatmul.f32.gmra.mxu0 %v8327
        %v8349 = vpop.f32.mrf.mxu0
        %v8350 = vadd.f32 0.0, %v8349
        %8351 = vdwg.mxu0
        %v8352 = vadd.f32 %v8325, %v8350
        %v8353 = vmax.f32 %v8352, 0.0
        %v8354 = vld [vmem:[%s9] sm:$0xff]
        %v8355 = vld [vmem:[%s9 + $0x8] sm:$0xff]
        %v8356 = vld [vmem:[%s9 + $0x10] sm:$0xff]
        %v8357 = vld [vmem:[%s9 + $0x18] sm:$0xff]
        %v8358 = vld [vmem:[%s9 + $0x20] sm:$0xff]
        %v8359 = vld [vmem:[%s9 + $0x28] sm:$0xff]
        %v8360 = vld [vmem:[%s9 + $0x30] sm:$0xff]
        %v8361 = vld [vmem:[%s9 + $0x38] sm:$0xff]
        %v8362 = vld [vmem:[%s9 + $0x40] sm:$0xff]
        %v8363 = vld [vmem:[%s9 + $0x48] sm:$0xff]
        %v8364 = vld [vmem:[%s9 + $0x50] sm:$0xff]
        %v8365 = vld [vmem:[%s9 + $0x58] sm:$0xff]
        %v8366 = vld [vmem:[%s9 + $0x60] sm:$0xff]
        %v8367 = vld [vmem:[%s9 + $0x68] sm:$0xff]
        %v8368 = vld [vmem:[%s9 + $0x70] sm:$0xff]
        %v8369 = vld [vmem:[%s10] sm:$0x1]
        %vm8370 = vcmask 982016
        %v8372 = vsel %vm8370, %v8353, 0
        %8374 = vmatpush.msra.mxu0 0.0
        %8375 = vmatpush.msra.mxu0 %v8368
        %8376 = vmatpush.msra.mxu0 %v8367
        %8377 = vmatpush.msra.mxu0 %v8366
        %8378 = vmatpush.msra.mxu0 %v8365
        %8379 = vmatpush.msra.mxu0 %v8364
        %8380 = vmatpush.msra.mxu0 %v8363
        %8381 = vmatpush.msra.mxu0 %v8362
        %8382 = vmatpush.msra.mxu0 %v8361
        %8383 = vmatpush.msra.mxu0 %v8360
        %8384 = vmatpush.msra.mxu0 %v8359
        %8385 = vmatpush.msra.mxu0 %v8358
        %8386 = vmatpush.msra.mxu0 %v8357
        %8387 = vmatpush.msra.mxu0 %v8356
        %8388 = vmatpush.msra.mxu0 %v8355
        %8389 = vmatpush.msra.mxu0 %v8354
        %8390 = vmatmul.f32.gmra.mxu0 %v8372
        %v8391 = vpop.f32.mrf.mxu0
        %v8392 = vadd.f32 %v8369, %v8391
        %8393 = vdwg.mxu0
        %v8394 = vmax.f32 %v8392, 0.0
        %v8395 = vld [vmem:[%s11] sm:$0xff]
        %v8396 = vld [vmem:[%s11 + $0x8] sm:$0xff]
        %v8397 = vld [vmem:[%s11 + $0x10] sm:$0xff]
        %v8398 = vld [vmem:[%s11 + $0x18] sm:$0xff]
        %v8399 = vld [vmem:[%s11 + $0x20] sm:$0xff]
        %v8400 = vld [vmem:[%s11 + $0x28] sm:$0xff]
        %v8401 = vld [vmem:[%s11 + $0x30] sm:$0xff]
        %v8402 = vld [vmem:[%s11 + $0x38] sm:$0xff]
        %v8403 = vld [vmem:[%s11 + $0x40] sm:$0xff]
        %v8404 = vld [vmem:[%s11 + $0x48] sm:$0xff]
        %v8405 = vld [vmem:[%s11 + $0x50] sm:$0xf]
        %v8406 = vld [vmem:[%s12] sm:$0x1]
        %v8408 = vsel %vm7217, %v8394, 0
        %vm8410 = vcmask 1043456
        %v8412 = vsel %vm8410, %v8405, 0
        %8414 = vmatpush.msra.mxu0 0.0
        %8415 = vmatpush.msra.mxu0 0.0
        %8416 = vmatpush.msra.mxu0 0.0
        %8417 = vmatpush.msra.mxu0 0.0
        %8418 = vmatpush.msra.mxu0 0.0
        %8419 = vmatpush.msra.mxu0 %v8412
        %8420 = vmatpush.msra.mxu0 %v8404
        %8421 = vmatpush.msra.mxu0 %v8403
        %8422 = vmatpush.msra.mxu0 %v8402
        %8423 = vmatpush.msra.mxu0 %v8401
        %8424 = vmatpush.msra.mxu0 %v8400
        %8425 = vmatpush.msra.mxu0 %v8399
        %8426 = vmatpush.msra.mxu0 %v8398
        %8427 = vmatpush.msra.mxu0 %v8397
        %8428 = vmatpush.msra.mxu0 %v8396
        %8429 = vmatpush.msra.mxu0 %v8395
        %8430 = vmatmul.f32.gmra.mxu0 %v8408
        %v8431 = vpop.f32.mrf.mxu0
        %v8432 = vadd.f32 %v8406, %v8431
        %8433 = vdwg.mxu0
        %vm8434 = vcmask 73728
        %8435 = vst.msk [vmem:[%s432] sm:$0x1] %vm8434, %v8432
        %s8436 = sand.u32 %s313, 1
        %s8437 = scalar_lea.sflag [#allocation3], %s8436
        %s8438 = sand.u32 %s313, 1
        %s8439 = scalar_lea.vmem [#allocation2], %s8438
        // Predicated region
        $region73: #{cifarnet_forward.1} parent=71 // pred_check
          %p8440 = pneg %p323
        $region74: #{cifarnet_forward.1} parent=71 // pred_check_branch
          %8442 = sbr.rel (%p8440) target = $region76
        $region75: #{cifarnet_forward.1} parent=71 // pred_region
          %8444 = vsyncadd %s8437, 0
          %s8445 = scalar_lea.hbm %s13, %s27
          %s8447 = sshll.u32 %s8439, 4
          %s8448 = int_to_ptr.vmem [resolvable:$true] %s8447
          %s8449 = sshll.u32 %s8445, 4
          %s8450 = int_to_ptr.hbm [resolvable:$true] %s8449
          %8452 = dma.vmem_to_hbm [thread:$0]  %s8448, 16, %s8450, %s8437
        $region76: #{cifarnet_forward.1} parent=71 // pred_fallthru
          _
      $region72: #{cifarnet_forward.1} parent=5 // pred_fallthru
        _
      %p8453 = scmp.le.s32.totalorder 2, %s22
      // Predicated region
      $region77: #{cifarnet_forward.1} parent=5 // pred_check
        %p8454 = pneg %p8453
      $region78: #{cifarnet_forward.1} parent=5 // pred_check_branch
        %8456 = sbr.rel (%p8454) target = $region80
      $region79: #{cifarnet_forward.1} parent=5 // pred_region
        %s8457 = ssub.s32 %s22, 2
        // Predicated region
        $region81: #{cifarnet_forward.1} parent=79 // pred_check
          %p8458 = pneg %p329
        $region82: #{cifarnet_forward.1} parent=79 // pred_check_branch
          %8460 = sbr.rel (%p8458) target = $region84
        $region83: #{cifarnet_forward.1} parent=79 // pred_region
          %s8461 = sand.u32 %s314, 1
          %s8462 = scalar_lea.sflag [#allocation3], %s8461
          %s8463 = sand.u32 %s314, 1
          %s8464 = scalar_lea.vmem [#allocation2], %s8463
          %8466 = dma.done %s8462, 16
        $region84: #{cifarnet_forward.1} parent=79 // pred_fallthru
          _
      $region80: #{cifarnet_forward.1} parent=5 // pred_fallthru
        _
    $region6: #{cifarnet_forward.1} parent=1 // loop_footer
      %s26 = sadd.s32 1, %s22
    $region7: #{cifarnet_forward.1} parent=1 // loop_footer_branch
      %21 = sbr.rel target = $region3
    $region8: #{cifarnet_forward.1} parent=1 // loop_exit
      _
    %8467 = vsyncpa [#allocation3], 1
    %s8468 = scalar_lea.sflag [#allocation3], 1
    %8469 = vsyncpa %s8468, 1

</llo_original>
